<compile_context>
chip_gen: v7x
topology: tpu7x:2x2x1
jax: 0.10.0
libtpu: 0.0.40
codegen_flags: <defaults>
</compile_context>

<pallas_src>
import jax
import jax.numpy as jnp
from jax.experimental import pallas as pl
from jax.experimental.pallas import tpu as pltpu


# ----------------------------------------------------------------------------
# In-kernel math helpers (traced inside the Pallas kernel).
# ----------------------------------------------------------------------------
def _layernorm(x, gamma, beta, eps=1e-5):
    mu = jnp.mean(x, axis=-1, keepdims=True)
    xc = x - mu
    var = jnp.mean(xc * xc, axis=-1, keepdims=True)
    return xc * jax.lax.rsqrt(var + eps) * gamma + beta


def _gelu_tanh(x):
    # tanh-approx GELU: runs on the otherwise-idle EUP instead of a long VALU
    # erf rational chain.
    # TODO(synk): PyTorch's activation='gelu' is the exact erf GELU; the tanh form
    # deviates by <~1e-3 — swap back to an erf polynomial if bit-closeness matters.
    c = 0.7978845608028654  # sqrt(2 / pi)
    return 0.5 * x * (1.0 + jnp.tanh(c * (x + 0.044715 * x * x * x)))


# ----------------------------------------------------------------------------
# Single fused kernel: both TransformerEncoderLayers (post-norm, nhead=1, gelu)
# + classification-token extraction.  One batch block per grid step.
# ----------------------------------------------------------------------------
def _trf_rep2_kernel(x_ref, wqkv_ref, bqkv_ref, wo_ref, bo_ref, ln1_ref,
                     w1_ref, b1_ref, w2_ref, b2_ref, ln2_ref, o_ref):
    Bt, S1, D = x_ref.shape
    n_layers = wqkv_ref.shape[0]
    scale = 1.0 / jnp.sqrt(jnp.float32(D))

    xf = x_ref[...].astype(jnp.float32).reshape(Bt * S1, D)   # position-wise slab

    # ---------------- layers 0 .. n-2: full-sequence encoder layers -----------
    for l in range(n_layers - 1):                              # static unroll
        # packed QKV matmul (D, 3D): one wide MXU op instead of three narrow ones
        qkv = jnp.dot(xf, wqkv_ref[l],
                      preferred_element_type=jnp.float32) + bqkv_ref[l]
        qkv3 = qkv.reshape(Bt, S1, 3 * D)
        q = qkv3[:, :, 0 * D:1 * D] * scale                    # (Bt, S1, D)
        k = qkv3[:, :, 1 * D:2 * D]
        v = qkv3[:, :, 2 * D:3 * D]

        s = jnp.einsum("bqd,bkd->bqk", q, k,
                       preferred_element_type=jnp.float32)     # (Bt, S1, S1)
        s = s - jnp.max(s, axis=-1, keepdims=True)
        e = jnp.exp(s)
        p = e * pl.reciprocal(jnp.sum(e, axis=-1, keepdims=True), approx=True)
        ctx = jnp.einsum("bqk,bkd->bqd", p, v,
                         preferred_element_type=jnp.float32)   # (Bt, S1, D)

        attn = (jnp.dot(ctx.reshape(Bt * S1, D), wo_ref[l],
                        preferred_element_type=jnp.float32) + bo_ref[l])

        ln1 = ln1_ref[l]                                       # (2, D): gamma, beta
        xf = _layernorm(xf + attn, ln1[0:1, :], ln1[1:2, :])   # post-norm 1

        h = _gelu_tanh(jnp.dot(xf, w1_ref[l],
                               preferred_element_type=jnp.float32) + b1_ref[l])
        f = jnp.dot(h, w2_ref[l], preferred_element_type=jnp.float32) + b2_ref[l]

        ln2 = ln2_ref[l]
        xf = _layernorm(xf + f, ln2[0:1, :], ln2[1:2, :])      # post-norm 2

    # -------- final layer: only the CLS token (row 0) reaches the output ------
    L = n_layers - 1
    qkv = jnp.dot(xf, wqkv_ref[L],
                  preferred_element_type=jnp.float32) + bqkv_ref[L]
    qkv3 = qkv.reshape(Bt, S1, 3 * D)
    q0 = qkv3[:, 0:1, 0 * D:1 * D] * scale                     # (Bt, 1, D) — CLS query only
    k = qkv3[:, :, 1 * D:2 * D]                                # (Bt, S1, D)
    v = qkv3[:, :, 2 * D:3 * D]

    s = jnp.einsum("bqd,bkd->bqk", q0, k,
                   preferred_element_type=jnp.float32)         # (Bt, 1, S1)
    s = s - jnp.max(s, axis=-1, keepdims=True)
    e = jnp.exp(s)
    p = e * pl.reciprocal(jnp.sum(e, axis=-1, keepdims=True), approx=True)
    ctx0 = jnp.einsum("bqk,bkd->bqd", p, v,
                      preferred_element_type=jnp.float32)[:, 0, :]   # (Bt, D)

    attn0 = jnp.dot(ctx0, wo_ref[L],
                    preferred_element_type=jnp.float32) + bo_ref[L]  # (Bt, D)

    x0 = xf.reshape(Bt, S1, D)[:, 0, :]                        # residual: layer input, row 0
    ln1 = ln1_ref[L]
    y0 = _layernorm(x0 + attn0, ln1[0:1, :], ln1[1:2, :])      # post-norm 1 (row 0 only)

    h0 = _gelu_tanh(jnp.dot(y0, w1_ref[L],
                            preferred_element_type=jnp.float32) + b1_ref[L])
    f0 = jnp.dot(h0, w2_ref[L], preferred_element_type=jnp.float32) + b2_ref[L]

    ln2 = ln2_ref[L]
    o_ref[...] = _layernorm(y0 + f0, ln2[0:1, :], ln2[1:2, :]).astype(o_ref.dtype)


def trf_rep2_forward(x, params, block_b=8):
    """x: (B, S, D) float32 batch-first -> (B, D) classification-token features."""
    B, S, D = x.shape

    # Prepend the learnable classification token.  Single tiny XLA concat; all
    # remaining work happens inside one fused pallas_call.
    cls = jnp.broadcast_to(params["cls"].astype(jnp.float32), (B, 1, D))
    xe = jnp.concatenate([cls, x.astype(jnp.float32)], axis=1)   # (B, S+1, D)
    S1 = S + 1

    Bt = min(B, block_b)           # either == B or a multiple of 8 -> legal block
    grid = (pl.cdiv(B, Bt),)

    weight_names = ["wqkv", "bqkv", "wo", "bo", "ln1",
                    "w1", "b1", "w2", "b2", "ln2"]
    weights = [params[n] for n in weight_names]

    def full_spec(shape):
        return pl.BlockSpec(shape, lambda i, _n=len(shape): (0,) * _n)

    in_specs = ([pl.BlockSpec((Bt, S1, D), lambda i: (i, 0, 0))] +
                [full_spec(w.shape) for w in weights])

    return pl.pallas_call(
        _trf_rep2_kernel,
        out_shape=jax.ShapeDtypeStruct((B, D), jnp.float32),
        grid=grid,
        in_specs=in_specs,
        out_specs=pl.BlockSpec((Bt, D), lambda i: (i, 0)),
        compiler_params=pltpu.CompilerParams(
            dimension_semantics=("parallel",)),   # lets v7x shard batch over 2 TCs
    )(xe, *weights)


# ----------------------------------------------------------------------------
# Deterministic synthetic parameters (shapes implied by __init__; weights are
# pre-transposed and pre-packed host-side so the kernel does plain x @ W + b).
# ----------------------------------------------------------------------------
def init_params(key, d_mod, num_layers=2):
    def uni(k, shape, scale):
        return jax.random.uniform(k, shape, jnp.float32, -scale, scale)

    keys = iter(jax.random.split(key, 8 * num_layers + 2))
    wqkv, bqkv, wo, bo, w1, b1, w2, b2 = ([] for _ in range(8))
    for _ in range(num_layers):
        # packed QKV: columns [0:D]=Wq^T, [D:2D]=Wk^T, [2D:3D]=Wv^T
        wqkv.append(uni(next(keys), (d_mod, 3 * d_mod), 0.2))
        bqkv.append(uni(next(keys), (1, 3 * d_mod), 0.05))
        wo.append(uni(next(keys), (d_mod, d_mod), 0.2))
        bo.append(uni(next(keys), (1, d_mod), 0.05))
        w1.append(uni(next(keys), (d_mod, d_mod), 0.2))
        b1.append(uni(next(keys), (1, d_mod), 0.05))
        w2.append(uni(next(keys), (d_mod, d_mod), 0.2))
        b2.append(uni(next(keys), (1, d_mod), 0.05))

    # LayerNorm default init: row 0 = gamma (ones), row 1 = beta (zeros)
    ln = jnp.stack([jnp.ones((d_mod,), jnp.float32),
                    jnp.zeros((d_mod,), jnp.float32)])           # (2, D)

    return {
        "wqkv": jnp.stack(wqkv), "bqkv": jnp.stack(bqkv),
        "wo": jnp.stack(wo), "bo": jnp.stack(bo),
        "ln1": jnp.stack([ln] * num_layers),
        "ln2": jnp.stack([ln] * num_layers),
        "w1": jnp.stack(w1), "b1": jnp.stack(b1),
        "w2": jnp.stack(w2), "b2": jnp.stack(b2),
        # clf_head_time ~ torch.rand(1, 1, d_mod)
        "cls": jax.random.uniform(next(keys), (1, 1, d_mod), jnp.float32, 0.0, 1.0),
    }


if __name__ == "__main__":
    key = jax.random.PRNGKey(0)
    k_x, k_p = jax.random.split(key)

    B, S, d_mod = 2, 16, 60
    x = jax.random.normal(k_x, (B, S, d_mod), dtype=jnp.float32)
    params = init_params(k_p, d_mod)

    fwd = jax.jit(trf_rep2_forward)
    out = jax.block_until_ready(fwd(x, params))
    assert out.shape == (B, d_mod), out.shape
    assert bool(jnp.all(jnp.isfinite(out)))
    print("KERNEL_OK")
</pallas_src>

<mosaic_0001>
module attributes {stable_mosaic.version = 11 : i64} {
  func.func @_trf_rep2_kernel(%arg0: i32, %arg1: memref<2x17x60xf32, #tpu.memory_space<vmem>>, %arg2: memref<2x60x180xf32, #tpu.memory_space<vmem>>, %arg3: memref<2x1x180xf32, #tpu.memory_space<vmem>>, %arg4: memref<2x60x60xf32, #tpu.memory_space<vmem>>, %arg5: memref<2x1x60xf32, #tpu.memory_space<vmem>>, %arg6: memref<2x2x60xf32, #tpu.memory_space<vmem>>, %arg7: memref<2x60x60xf32, #tpu.memory_space<vmem>>, %arg8: memref<2x1x60xf32, #tpu.memory_space<vmem>>, %arg9: memref<2x60x60xf32, #tpu.memory_space<vmem>>, %arg10: memref<2x1x60xf32, #tpu.memory_space<vmem>>, %arg11: memref<2x2x60xf32, #tpu.memory_space<vmem>>, %arg12: memref<2x60xf32, #tpu.memory_space<vmem>>) attributes {dimension_semantics = [#tpu.dimension_semantics<parallel>], iteration_bounds = array<i64: 1>, scalar_prefetch = 0 : i64, scratch_operands = 0 : i64, tpu.core_type = #tpu.core_type<tc>, window_params = [{transform_indices = @transform_0, window_bounds = array<i64: 2, 17, 60>}, {pipeline_mode = #tpu.pipeline_mode<synchronous>, transform_indices = @transform_1, window_bounds = array<i64: 2, 60, 180>}, {pipeline_mode = #tpu.pipeline_mode<synchronous>, transform_indices = @transform_2, window_bounds = array<i64: 2, 1, 180>}, {pipeline_mode = #tpu.pipeline_mode<synchronous>, transform_indices = @transform_3, window_bounds = array<i64: 2, 60, 60>}, {pipeline_mode = #tpu.pipeline_mode<synchronous>, transform_indices = @transform_4, window_bounds = array<i64: 2, 1, 60>}, {pipeline_mode = #tpu.pipeline_mode<synchronous>, transform_indices = @transform_5, window_bounds = array<i64: 2, 2, 60>}, {pipeline_mode = #tpu.pipeline_mode<synchronous>, transform_indices = @transform_6, window_bounds = array<i64: 2, 60, 60>}, {pipeline_mode = #tpu.pipeline_mode<synchronous>, transform_indices = @transform_7, window_bounds = array<i64: 2, 1, 60>}, {pipeline_mode = #tpu.pipeline_mode<synchronous>, transform_indices = @transform_8, window_bounds = array<i64: 2, 60, 60>}, {pipeline_mode = #tpu.pipeline_mode<synchronous>, transform_indices = @transform_9, window_bounds = array<i64: 2, 1, 60>}, {pipeline_mode = #tpu.pipeline_mode<synchronous>, transform_indices = @transform_10, window_bounds = array<i64: 2, 2, 60>}, {transform_indices = @transform_11, window_bounds = array<i64: 2, 60>}]} {
    %cst = arith.constant 6.000000e+01 : f32
    %0 = math.sqrt %cst : f32
    %cst_0 = arith.constant 1.000000e+00 : f32
    %1 = arith.divf %cst_0, %0 : f32
    %c0 = arith.constant 0 : index
    %c0_1 = arith.constant 0 : index
    %c0_2 = arith.constant 0 : index
    %2 = vector.load %arg1[%c0, %c0_1, %c0_2] : memref<2x17x60xf32, #tpu.memory_space<vmem>>, vector<2x17x60xf32>
    %3 = vector.shape_cast %2 : vector<2x17x60xf32> to vector<34x60xf32>
    %c0_3 = arith.constant 0 : index
    %c0_4 = arith.constant 0 : index
    %c0_5 = arith.constant 0 : index
    %4 = vector.load %arg2[%c0_3, %c0_4, %c0_5] : memref<2x60x180xf32, #tpu.memory_space<vmem>>, vector<1x60x180xf32>
    %5 = vector.shape_cast %4 : vector<1x60x180xf32> to vector<60x180xf32>
    %cst_6 = arith.constant dense<0.000000e+00> : vector<34x180xf32>
    %6 = tpu.matmul %3, %5, %cst_6 {dimension_numbers = #tpu.dot_dimension_numbers<[1], [0], [0], [1], [0, 0, 1, 1], [], []>} : vector<34x60xf32>, vector<60x180xf32>, vector<34x180xf32> -> vector<34x180xf32>
    %c0_7 = arith.constant 0 : index
    %c0_8 = arith.constant 0 : index
    %c0_9 = arith.constant 0 : index
    %7 = vector.load %arg3[%c0_7, %c0_8, %c0_9] : memref<2x1x180xf32, #tpu.memory_space<vmem>>, vector<1x1x180xf32>
    %8 = vector.shape_cast %7 : vector<1x1x180xf32> to vector<1x180xf32>
    %9 = vector.broadcast %8 : vector<1x180xf32> to vector<34x180xf32>
    %10 = arith.addf %6, %9 : vector<34x180xf32>
    %11 = vector.shape_cast %10 : vector<34x180xf32> to vector<2x17x180xf32>
    %12 = vector.extract_strided_slice %11 {offsets = [0, 0, 0], sizes = [2, 17, 60], strides = [1, 1, 1]} : vector<2x17x180xf32> to vector<2x17x60xf32>
    %13 = vector.broadcast %1 : f32 to vector<2x17x60xf32>
    %14 = arith.mulf %12, %13 : vector<2x17x60xf32>
    %15 = vector.extract_strided_slice %11 {offsets = [0, 0, 60], sizes = [2, 17, 60], strides = [1, 1, 1]} : vector<2x17x180xf32> to vector<2x17x60xf32>
    %16 = vector.extract_strided_slice %11 {offsets = [0, 0, 120], sizes = [2, 17, 60], strides = [1, 1, 1]} : vector<2x17x180xf32> to vector<2x17x60xf32>
    "tpu.trace_start"() <{level = 10 : i32, message = "bqd,bkd->bqk"}> : () -> ()
    %cst_10 = arith.constant dense<0.000000e+00> : vector<2x17x17xf32>
    %17 = tpu.matmul %14, %15, %cst_10 {dimension_numbers = #tpu.dot_dimension_numbers<[2], [2], [1], [1], [0, 0, 0, 1, 1, 1], [0], [0]>} : vector<2x17x60xf32>, vector<2x17x60xf32>, vector<2x17x17xf32> -> vector<2x17x17xf32>
    "tpu.trace_stop"() : () -> ()
    %cst_11 = arith.constant dense<0xFF800000> : vector<2x17xf32>
    %18 = vector.multi_reduction <maximumf>, %17, %cst_11 [2] : vector<2x17x17xf32> to vector<2x17xf32>
    %19 = vector.shape_cast %18 : vector<2x17xf32> to vector<2x17x1xf32>
    %20 = vector.broadcast %19 : vector<2x17x1xf32> to vector<2x17x17xf32>
    %21 = arith.subf %17, %20 : vector<2x17x17xf32>
    %22 = math.exp %21 : vector<2x17x17xf32>
    %cst_12 = arith.constant dense<0.000000e+00> : vector<2x17xf32>
    %23 = vector.multi_reduction <add>, %22, %cst_12 [2] : vector<2x17x17xf32> to vector<2x17xf32>
    %24 = vector.shape_cast %23 : vector<2x17xf32> to vector<2x17x1xf32>
    %25 = tpu.reciprocal %24 {approx = true} : vector<2x17x1xf32> -> vector<2x17x1xf32>
    %26 = vector.broadcast %25 : vector<2x17x1xf32> to vector<2x17x17xf32>
    %27 = arith.mulf %22, %26 : vector<2x17x17xf32>
    "tpu.trace_start"() <{level = 10 : i32, message = "bqk,bkd->bqd"}> : () -> ()
    %cst_13 = arith.constant dense<0.000000e+00> : vector<2x17x60xf32>
    %28 = tpu.matmul %27, %16, %cst_13 {dimension_numbers = #tpu.dot_dimension_numbers<[2], [1], [1], [2], [0, 0, 0, 1, 1, 2], [0], [0]>} : vector<2x17x17xf32>, vector<2x17x60xf32>, vector<2x17x60xf32> -> vector<2x17x60xf32>
    "tpu.trace_stop"() : () -> ()
    %29 = vector.shape_cast %28 : vector<2x17x60xf32> to vector<34x60xf32>
    %c0_14 = arith.constant 0 : index
    %c0_15 = arith.constant 0 : index
    %c0_16 = arith.constant 0 : index
    %30 = vector.load %arg4[%c0_14, %c0_15, %c0_16] : memref<2x60x60xf32, #tpu.memory_space<vmem>>, vector<1x60x60xf32>
    %31 = vector.shape_cast %30 : vector<1x60x60xf32> to vector<60x60xf32>
    %cst_17 = arith.constant dense<0.000000e+00> : vector<34x60xf32>
    %32 = tpu.matmul %29, %31, %cst_17 {dimension_numbers = #tpu.dot_dimension_numbers<[1], [0], [0], [1], [0, 0, 1, 1], [], []>} : vector<34x60xf32>, vector<60x60xf32>, vector<34x60xf32> -> vector<34x60xf32>
    %c0_18 = arith.constant 0 : index
    %c0_19 = arith.constant 0 : index
    %c0_20 = arith.constant 0 : index
    %33 = vector.load %arg5[%c0_18, %c0_19, %c0_20] : memref<2x1x60xf32, #tpu.memory_space<vmem>>, vector<1x1x60xf32>
    %34 = vector.shape_cast %33 : vector<1x1x60xf32> to vector<1x60xf32>
    %35 = vector.broadcast %34 : vector<1x60xf32> to vector<34x60xf32>
    %36 = arith.addf %32, %35 : vector<34x60xf32>
    %c0_21 = arith.constant 0 : index
    %c0_22 = arith.constant 0 : index
    %c0_23 = arith.constant 0 : index
    %37 = vector.load %arg6[%c0_21, %c0_22, %c0_23] : memref<2x2x60xf32, #tpu.memory_space<vmem>>, vector<1x2x60xf32>
    %38 = vector.shape_cast %37 : vector<1x2x60xf32> to vector<2x60xf32>
    %39 = arith.addf %3, %36 : vector<34x60xf32>
    %40 = vector.extract_strided_slice %38 {offsets = [0, 0], sizes = [1, 60], strides = [1, 1]} : vector<2x60xf32> to vector<1x60xf32>
    %41 = vector.extract_strided_slice %38 {offsets = [1, 0], sizes = [1, 60], strides = [1, 1]} : vector<2x60xf32> to vector<1x60xf32>
    %cst_24 = arith.constant dense<0.000000e+00> : vector<34xf32>
    %42 = vector.multi_reduction <add>, %39, %cst_24 [1] : vector<34x60xf32> to vector<34xf32>
    %43 = vector.shape_cast %42 : vector<34xf32> to vector<34x1xf32>
    %cst_25 = arith.constant 6.000000e+01 : f32
    %44 = vector.broadcast %cst_25 : f32 to vector<34x1xf32>
    %45 = arith.divf %43, %44 : vector<34x1xf32>
    %46 = vector.broadcast %45 : vector<34x1xf32> to vector<34x60xf32>
    %47 = arith.subf %39, %46 : vector<34x60xf32>
    %48 = arith.mulf %47, %47 : vector<34x60xf32>
    %cst_26 = arith.constant dense<0.000000e+00> : vector<34xf32>
    %49 = vector.multi_reduction <add>, %48, %cst_26 [1] : vector<34x60xf32> to vector<34xf32>
    %50 = vector.shape_cast %49 : vector<34xf32> to vector<34x1xf32>
    %cst_27 = arith.constant 6.000000e+01 : f32
    %51 = vector.broadcast %cst_27 : f32 to vector<34x1xf32>
    %52 = arith.divf %50, %51 : vector<34x1xf32>
    %cst_28 = arith.constant 9.99999974E-6 : f32
    %53 = vector.broadcast %cst_28 : f32 to vector<34x1xf32>
    %54 = arith.addf %52, %53 : vector<34x1xf32>
    %55 = math.rsqrt %54 : vector<34x1xf32>
    %56 = vector.broadcast %55 : vector<34x1xf32> to vector<34x60xf32>
    %57 = arith.mulf %47, %56 : vector<34x60xf32>
    %58 = vector.broadcast %40 : vector<1x60xf32> to vector<34x60xf32>
    %59 = arith.mulf %57, %58 : vector<34x60xf32>
    %60 = vector.broadcast %41 : vector<1x60xf32> to vector<34x60xf32>
    %61 = arith.addf %59, %60 : vector<34x60xf32>
    %c0_29 = arith.constant 0 : index
    %c0_30 = arith.constant 0 : index
    %c0_31 = arith.constant 0 : index
    %62 = vector.load %arg7[%c0_29, %c0_30, %c0_31] : memref<2x60x60xf32, #tpu.memory_space<vmem>>, vector<1x60x60xf32>
    %63 = vector.shape_cast %62 : vector<1x60x60xf32> to vector<60x60xf32>
    %cst_32 = arith.constant dense<0.000000e+00> : vector<34x60xf32>
    %64 = tpu.matmul %61, %63, %cst_32 {dimension_numbers = #tpu.dot_dimension_numbers<[1], [0], [0], [1], [0, 0, 1, 1], [], []>} : vector<34x60xf32>, vector<60x60xf32>, vector<34x60xf32> -> vector<34x60xf32>
    %c0_33 = arith.constant 0 : index
    %c0_34 = arith.constant 0 : index
    %c0_35 = arith.constant 0 : index
    %65 = vector.load %arg8[%c0_33, %c0_34, %c0_35] : memref<2x1x60xf32, #tpu.memory_space<vmem>>, vector<1x1x60xf32>
    %66 = vector.shape_cast %65 : vector<1x1x60xf32> to vector<1x60xf32>
    %67 = vector.broadcast %66 : vector<1x60xf32> to vector<34x60xf32>
    %68 = arith.addf %64, %67 : vector<34x60xf32>
    %cst_36 = arith.constant 5.000000e-01 : f32
    %69 = vector.broadcast %cst_36 : f32 to vector<34x60xf32>
    %70 = arith.mulf %69, %68 : vector<34x60xf32>
    %cst_37 = arith.constant 4.471500e-02 : f32
    %71 = vector.broadcast %cst_37 : f32 to vector<34x60xf32>
    %72 = arith.mulf %71, %68 : vector<34x60xf32>
    %73 = arith.mulf %72, %68 : vector<34x60xf32>
    %74 = arith.mulf %73, %68 : vector<34x60xf32>
    %75 = arith.addf %68, %74 : vector<34x60xf32>
    %cst_38 = arith.constant 0.797884583 : f32
    %76 = vector.broadcast %cst_38 : f32 to vector<34x60xf32>
    %77 = arith.mulf %76, %75 : vector<34x60xf32>
    %78 = math.tanh %77 : vector<34x60xf32>
    %cst_39 = arith.constant 1.000000e+00 : f32
    %79 = vector.broadcast %cst_39 : f32 to vector<34x60xf32>
    %80 = arith.addf %79, %78 : vector<34x60xf32>
    %81 = arith.mulf %70, %80 : vector<34x60xf32>
    %c0_40 = arith.constant 0 : index
    %c0_41 = arith.constant 0 : index
    %c0_42 = arith.constant 0 : index
    %82 = vector.load %arg9[%c0_40, %c0_41, %c0_42] : memref<2x60x60xf32, #tpu.memory_space<vmem>>, vector<1x60x60xf32>
    %83 = vector.shape_cast %82 : vector<1x60x60xf32> to vector<60x60xf32>
    %cst_43 = arith.constant dense<0.000000e+00> : vector<34x60xf32>
    %84 = tpu.matmul %81, %83, %cst_43 {dimension_numbers = #tpu.dot_dimension_numbers<[1], [0], [0], [1], [0, 0, 1, 1], [], []>} : vector<34x60xf32>, vector<60x60xf32>, vector<34x60xf32> -> vector<34x60xf32>
    %c0_44 = arith.constant 0 : index
    %c0_45 = arith.constant 0 : index
    %c0_46 = arith.constant 0 : index
    %85 = vector.load %arg10[%c0_44, %c0_45, %c0_46] : memref<2x1x60xf32, #tpu.memory_space<vmem>>, vector<1x1x60xf32>
    %86 = vector.shape_cast %85 : vector<1x1x60xf32> to vector<1x60xf32>
    %87 = vector.broadcast %86 : vector<1x60xf32> to vector<34x60xf32>
    %88 = arith.addf %84, %87 : vector<34x60xf32>
    %c0_47 = arith.constant 0 : index
    %c0_48 = arith.constant 0 : index
    %c0_49 = arith.constant 0 : index
    %89 = vector.load %arg11[%c0_47, %c0_48, %c0_49] : memref<2x2x60xf32, #tpu.memory_space<vmem>>, vector<1x2x60xf32>
    %90 = vector.shape_cast %89 : vector<1x2x60xf32> to vector<2x60xf32>
    %91 = arith.addf %61, %88 : vector<34x60xf32>
    %92 = vector.extract_strided_slice %90 {offsets = [0, 0], sizes = [1, 60], strides = [1, 1]} : vector<2x60xf32> to vector<1x60xf32>
    %93 = vector.extract_strided_slice %90 {offsets = [1, 0], sizes = [1, 60], strides = [1, 1]} : vector<2x60xf32> to vector<1x60xf32>
    %cst_50 = arith.constant dense<0.000000e+00> : vector<34xf32>
    %94 = vector.multi_reduction <add>, %91, %cst_50 [1] : vector<34x60xf32> to vector<34xf32>
    %95 = vector.shape_cast %94 : vector<34xf32> to vector<34x1xf32>
    %cst_51 = arith.constant 6.000000e+01 : f32
    %96 = vector.broadcast %cst_51 : f32 to vector<34x1xf32>
    %97 = arith.divf %95, %96 : vector<34x1xf32>
    %98 = vector.broadcast %97 : vector<34x1xf32> to vector<34x60xf32>
    %99 = arith.subf %91, %98 : vector<34x60xf32>
    %100 = arith.mulf %99, %99 : vector<34x60xf32>
    %cst_52 = arith.constant dense<0.000000e+00> : vector<34xf32>
    %101 = vector.multi_reduction <add>, %100, %cst_52 [1] : vector<34x60xf32> to vector<34xf32>
    %102 = vector.shape_cast %101 : vector<34xf32> to vector<34x1xf32>
    %cst_53 = arith.constant 6.000000e+01 : f32
    %103 = vector.broadcast %cst_53 : f32 to vector<34x1xf32>
    %104 = arith.divf %102, %103 : vector<34x1xf32>
    %cst_54 = arith.constant 9.99999974E-6 : f32
    %105 = vector.broadcast %cst_54 : f32 to vector<34x1xf32>
    %106 = arith.addf %104, %105 : vector<34x1xf32>
    %107 = math.rsqrt %106 : vector<34x1xf32>
    %108 = vector.broadcast %107 : vector<34x1xf32> to vector<34x60xf32>
    %109 = arith.mulf %99, %108 : vector<34x60xf32>
    %110 = vector.broadcast %92 : vector<1x60xf32> to vector<34x60xf32>
    %111 = arith.mulf %109, %110 : vector<34x60xf32>
    %112 = vector.broadcast %93 : vector<1x60xf32> to vector<34x60xf32>
    %113 = arith.addf %111, %112 : vector<34x60xf32>
    %c1 = arith.constant 1 : index
    %c0_55 = arith.constant 0 : index
    %c0_56 = arith.constant 0 : index
    %114 = vector.load %arg2[%c1, %c0_55, %c0_56] : memref<2x60x180xf32, #tpu.memory_space<vmem>>, vector<1x60x180xf32>
    %115 = vector.shape_cast %114 : vector<1x60x180xf32> to vector<60x180xf32>
    %cst_57 = arith.constant dense<0.000000e+00> : vector<34x180xf32>
    %116 = tpu.matmul %113, %115, %cst_57 {dimension_numbers = #tpu.dot_dimension_numbers<[1], [0], [0], [1], [0, 0, 1, 1], [], []>} : vector<34x60xf32>, vector<60x180xf32>, vector<34x180xf32> -> vector<34x180xf32>
    %c1_58 = arith.constant 1 : index
    %c0_59 = arith.constant 0 : index
    %c0_60 = arith.constant 0 : index
    %117 = vector.load %arg3[%c1_58, %c0_59, %c0_60] : memref<2x1x180xf32, #tpu.memory_space<vmem>>, vector<1x1x180xf32>
    %118 = vector.shape_cast %117 : vector<1x1x180xf32> to vector<1x180xf32>
    %119 = vector.broadcast %118 : vector<1x180xf32> to vector<34x180xf32>
    %120 = arith.addf %116, %119 : vector<34x180xf32>
    %121 = vector.shape_cast %120 : vector<34x180xf32> to vector<2x17x180xf32>
    %122 = vector.extract_strided_slice %121 {offsets = [0, 0, 0], sizes = [2, 1, 60], strides = [1, 1, 1]} : vector<2x17x180xf32> to vector<2x1x60xf32>
    %123 = vector.broadcast %1 : f32 to vector<2x1x60xf32>
    %124 = arith.mulf %122, %123 : vector<2x1x60xf32>
    %125 = vector.extract_strided_slice %121 {offsets = [0, 0, 60], sizes = [2, 17, 60], strides = [1, 1, 1]} : vector<2x17x180xf32> to vector<2x17x60xf32>
    %126 = vector.extract_strided_slice %121 {offsets = [0, 0, 120], sizes = [2, 17, 60], strides = [1, 1, 1]} : vector<2x17x180xf32> to vector<2x17x60xf32>
    "tpu.trace_start"() <{level = 10 : i32, message = "bqd,bkd->bqk"}> : () -> ()
    %cst_61 = arith.constant dense<0.000000e+00> : vector<2x1x17xf32>
    %127 = tpu.matmul %124, %125, %cst_61 {dimension_numbers = #tpu.dot_dimension_numbers<[2], [2], [1], [1], [0, 0, 0, 1, 1, 1], [0], [0]>} : vector<2x1x60xf32>, vector<2x17x60xf32>, vector<2x1x17xf32> -> vector<2x1x17xf32>
    "tpu.trace_stop"() : () -> ()
    %cst_62 = arith.constant dense<0xFF800000> : vector<2x1xf32>
    %128 = vector.multi_reduction <maximumf>, %127, %cst_62 [2] : vector<2x1x17xf32> to vector<2x1xf32>
    %129 = vector.shape_cast %128 : vector<2x1xf32> to vector<2x1x1xf32>
    %130 = vector.broadcast %129 : vector<2x1x1xf32> to vector<2x1x17xf32>
    %131 = arith.subf %127, %130 : vector<2x1x17xf32>
    %132 = math.exp %131 : vector<2x1x17xf32>
    %cst_63 = arith.constant dense<0.000000e+00> : vector<2x1xf32>
    %133 = vector.multi_reduction <add>, %132, %cst_63 [2] : vector<2x1x17xf32> to vector<2x1xf32>
    %134 = vector.shape_cast %133 : vector<2x1xf32> to vector<2x1x1xf32>
    %135 = tpu.reciprocal %134 {approx = true} : vector<2x1x1xf32> -> vector<2x1x1xf32>
    %136 = vector.broadcast %135 : vector<2x1x1xf32> to vector<2x1x17xf32>
    %137 = arith.mulf %132, %136 : vector<2x1x17xf32>
    "tpu.trace_start"() <{level = 10 : i32, message = "bqk,bkd->bqd"}> : () -> ()
    %cst_64 = arith.constant dense<0.000000e+00> : vector<2x1x60xf32>
    %138 = tpu.matmul %137, %126, %cst_64 {dimension_numbers = #tpu.dot_dimension_numbers<[2], [1], [1], [2], [0, 0, 0, 1, 1, 2], [0], [0]>} : vector<2x1x17xf32>, vector<2x17x60xf32>, vector<2x1x60xf32> -> vector<2x1x60xf32>
    "tpu.trace_stop"() : () -> ()
    %139 = vector.shape_cast %138 : vector<2x1x60xf32> to vector<2x60xf32>
    %c1_65 = arith.constant 1 : index
    %c0_66 = arith.constant 0 : index
    %c0_67 = arith.constant 0 : index
    %140 = vector.load %arg4[%c1_65, %c0_66, %c0_67] : memref<2x60x60xf32, #tpu.memory_space<vmem>>, vector<1x60x60xf32>
    %141 = vector.shape_cast %140 : vector<1x60x60xf32> to vector<60x60xf32>
    %cst_68 = arith.constant dense<0.000000e+00> : vector<2x60xf32>
    %142 = tpu.matmul %139, %141, %cst_68 {dimension_numbers = #tpu.dot_dimension_numbers<[1], [0], [0], [1], [0, 0, 1, 1], [], []>} : vector<2x60xf32>, vector<60x60xf32>, vector<2x60xf32> -> vector<2x60xf32>
    %c1_69 = arith.constant 1 : index
    %c0_70 = arith.constant 0 : index
    %c0_71 = arith.constant 0 : index
    %143 = vector.load %arg5[%c1_69, %c0_70, %c0_71] : memref<2x1x60xf32, #tpu.memory_space<vmem>>, vector<1x1x60xf32>
    %144 = vector.shape_cast %143 : vector<1x1x60xf32> to vector<1x60xf32>
    %145 = vector.broadcast %144 : vector<1x60xf32> to vector<2x60xf32>
    %146 = arith.addf %142, %145 : vector<2x60xf32>
    %147 = vector.shape_cast %113 : vector<34x60xf32> to vector<2x17x60xf32>
    %148 = vector.extract_strided_slice %147 {offsets = [0, 0, 0], sizes = [2, 1, 60], strides = [1, 1, 1]} : vector<2x17x60xf32> to vector<2x1x60xf32>
    %149 = vector.shape_cast %148 : vector<2x1x60xf32> to vector<2x60xf32>
    %c1_72 = arith.constant 1 : index
    %c0_73 = arith.constant 0 : index
    %c0_74 = arith.constant 0 : index
    %150 = vector.load %arg6[%c1_72, %c0_73, %c0_74] : memref<2x2x60xf32, #tpu.memory_space<vmem>>, vector<1x2x60xf32>
    %151 = vector.shape_cast %150 : vector<1x2x60xf32> to vector<2x60xf32>
    %152 = arith.addf %149, %146 : vector<2x60xf32>
    %153 = vector.extract_strided_slice %151 {offsets = [0, 0], sizes = [1, 60], strides = [1, 1]} : vector<2x60xf32> to vector<1x60xf32>
    %154 = vector.extract_strided_slice %151 {offsets = [1, 0], sizes = [1, 60], strides = [1, 1]} : vector<2x60xf32> to vector<1x60xf32>
    %cst_75 = arith.constant dense<0.000000e+00> : vector<2xf32>
    %155 = vector.multi_reduction <add>, %152, %cst_75 [1] : vector<2x60xf32> to vector<2xf32>
    %156 = vector.shape_cast %155 : vector<2xf32> to vector<2x1xf32>
    %cst_76 = arith.constant 6.000000e+01 : f32
    %157 = vector.broadcast %cst_76 : f32 to vector<2x1xf32>
    %158 = arith.divf %156, %157 : vector<2x1xf32>
    %159 = vector.broadcast %158 : vector<2x1xf32> to vector<2x60xf32>
    %160 = arith.subf %152, %159 : vector<2x60xf32>
    %161 = arith.mulf %160, %160 : vector<2x60xf32>
    %cst_77 = arith.constant dense<0.000000e+00> : vector<2xf32>
    %162 = vector.multi_reduction <add>, %161, %cst_77 [1] : vector<2x60xf32> to vector<2xf32>
    %163 = vector.shape_cast %162 : vector<2xf32> to vector<2x1xf32>
    %cst_78 = arith.constant 6.000000e+01 : f32
    %164 = vector.broadcast %cst_78 : f32 to vector<2x1xf32>
    %165 = arith.divf %163, %164 : vector<2x1xf32>
    %cst_79 = arith.constant 9.99999974E-6 : f32
    %166 = vector.broadcast %cst_79 : f32 to vector<2x1xf32>
    %167 = arith.addf %165, %166 : vector<2x1xf32>
    %168 = math.rsqrt %167 : vector<2x1xf32>
    %169 = vector.broadcast %168 : vector<2x1xf32> to vector<2x60xf32>
    %170 = arith.mulf %160, %169 : vector<2x60xf32>
    %171 = vector.broadcast %153 : vector<1x60xf32> to vector<2x60xf32>
    %172 = arith.mulf %170, %171 : vector<2x60xf32>
    %173 = vector.broadcast %154 : vector<1x60xf32> to vector<2x60xf32>
    %174 = arith.addf %172, %173 : vector<2x60xf32>
    %c1_80 = arith.constant 1 : index
    %c0_81 = arith.constant 0 : index
    %c0_82 = arith.constant 0 : index
    %175 = vector.load %arg7[%c1_80, %c0_81, %c0_82] : memref<2x60x60xf32, #tpu.memory_space<vmem>>, vector<1x60x60xf32>
    %176 = vector.shape_cast %175 : vector<1x60x60xf32> to vector<60x60xf32>
    %cst_83 = arith.constant dense<0.000000e+00> : vector<2x60xf32>
    %177 = tpu.matmul %174, %176, %cst_83 {dimension_numbers = #tpu.dot_dimension_numbers<[1], [0], [0], [1], [0, 0, 1, 1], [], []>} : vector<2x60xf32>, vector<60x60xf32>, vector<2x60xf32> -> vector<2x60xf32>
    %c1_84 = arith.constant 1 : index
    %c0_85 = arith.constant 0 : index
    %c0_86 = arith.constant 0 : index
    %178 = vector.load %arg8[%c1_84, %c0_85, %c0_86] : memref<2x1x60xf32, #tpu.memory_space<vmem>>, vector<1x1x60xf32>
    %179 = vector.shape_cast %178 : vector<1x1x60xf32> to vector<1x60xf32>
    %180 = vector.broadcast %179 : vector<1x60xf32> to vector<2x60xf32>
    %181 = arith.addf %177, %180 : vector<2x60xf32>
    %cst_87 = arith.constant 5.000000e-01 : f32
    %182 = vector.broadcast %cst_87 : f32 to vector<2x60xf32>
    %183 = arith.mulf %182, %181 : vector<2x60xf32>
    %cst_88 = arith.constant 4.471500e-02 : f32
    %184 = vector.broadcast %cst_88 : f32 to vector<2x60xf32>
    %185 = arith.mulf %184, %181 : vector<2x60xf32>
    %186 = arith.mulf %185, %181 : vector<2x60xf32>
    %187 = arith.mulf %186, %181 : vector<2x60xf32>
    %188 = arith.addf %181, %187 : vector<2x60xf32>
    %cst_89 = arith.constant 0.797884583 : f32
    %189 = vector.broadcast %cst_89 : f32 to vector<2x60xf32>
    %190 = arith.mulf %189, %188 : vector<2x60xf32>
    %191 = math.tanh %190 : vector<2x60xf32>
    %cst_90 = arith.constant 1.000000e+00 : f32
    %192 = vector.broadcast %cst_90 : f32 to vector<2x60xf32>
    %193 = arith.addf %192, %191 : vector<2x60xf32>
    %194 = arith.mulf %183, %193 : vector<2x60xf32>
    %c1_91 = arith.constant 1 : index
    %c0_92 = arith.constant 0 : index
    %c0_93 = arith.constant 0 : index
    %195 = vector.load %arg9[%c1_91, %c0_92, %c0_93] : memref<2x60x60xf32, #tpu.memory_space<vmem>>, vector<1x60x60xf32>
    %196 = vector.shape_cast %195 : vector<1x60x60xf32> to vector<60x60xf32>
    %cst_94 = arith.constant dense<0.000000e+00> : vector<2x60xf32>
    %197 = tpu.matmul %194, %196, %cst_94 {dimension_numbers = #tpu.dot_dimension_numbers<[1], [0], [0], [1], [0, 0, 1, 1], [], []>} : vector<2x60xf32>, vector<60x60xf32>, vector<2x60xf32> -> vector<2x60xf32>
    %c1_95 = arith.constant 1 : index
    %c0_96 = arith.constant 0 : index
    %c0_97 = arith.constant 0 : index
    %198 = vector.load %arg10[%c1_95, %c0_96, %c0_97] : memref<2x1x60xf32, #tpu.memory_space<vmem>>, vector<1x1x60xf32>
    %199 = vector.shape_cast %198 : vector<1x1x60xf32> to vector<1x60xf32>
    %200 = vector.broadcast %199 : vector<1x60xf32> to vector<2x60xf32>
    %201 = arith.addf %197, %200 : vector<2x60xf32>
    %c1_98 = arith.constant 1 : index
    %c0_99 = arith.constant 0 : index
    %c0_100 = arith.constant 0 : index
    %202 = vector.load %arg11[%c1_98, %c0_99, %c0_100] : memref<2x2x60xf32, #tpu.memory_space<vmem>>, vector<1x2x60xf32>
    %203 = vector.shape_cast %202 : vector<1x2x60xf32> to vector<2x60xf32>
    %204 = arith.addf %174, %201 : vector<2x60xf32>
    %205 = vector.extract_strided_slice %203 {offsets = [0, 0], sizes = [1, 60], strides = [1, 1]} : vector<2x60xf32> to vector<1x60xf32>
    %206 = vector.extract_strided_slice %203 {offsets = [1, 0], sizes = [1, 60], strides = [1, 1]} : vector<2x60xf32> to vector<1x60xf32>
    %cst_101 = arith.constant dense<0.000000e+00> : vector<2xf32>
    %207 = vector.multi_reduction <add>, %204, %cst_101 [1] : vector<2x60xf32> to vector<2xf32>
    %208 = vector.shape_cast %207 : vector<2xf32> to vector<2x1xf32>
    %cst_102 = arith.constant 6.000000e+01 : f32
    %209 = vector.broadcast %cst_102 : f32 to vector<2x1xf32>
    %210 = arith.divf %208, %209 : vector<2x1xf32>
    %211 = vector.broadcast %210 : vector<2x1xf32> to vector<2x60xf32>
    %212 = arith.subf %204, %211 : vector<2x60xf32>
    %213 = arith.mulf %212, %212 : vector<2x60xf32>
    %cst_103 = arith.constant dense<0.000000e+00> : vector<2xf32>
    %214 = vector.multi_reduction <add>, %213, %cst_103 [1] : vector<2x60xf32> to vector<2xf32>
    %215 = vector.shape_cast %214 : vector<2xf32> to vector<2x1xf32>
    %cst_104 = arith.constant 6.000000e+01 : f32
    %216 = vector.broadcast %cst_104 : f32 to vector<2x1xf32>
    %217 = arith.divf %215, %216 : vector<2x1xf32>
    %cst_105 = arith.constant 9.99999974E-6 : f32
    %218 = vector.broadcast %cst_105 : f32 to vector<2x1xf32>
    %219 = arith.addf %217, %218 : vector<2x1xf32>
    %220 = math.rsqrt %219 : vector<2x1xf32>
    %221 = vector.broadcast %220 : vector<2x1xf32> to vector<2x60xf32>
    %222 = arith.mulf %212, %221 : vector<2x60xf32>
    %223 = vector.broadcast %205 : vector<1x60xf32> to vector<2x60xf32>
    %224 = arith.mulf %222, %223 : vector<2x60xf32>
    %225 = vector.broadcast %206 : vector<1x60xf32> to vector<2x60xf32>
    %226 = arith.addf %224, %225 : vector<2x60xf32>
    %c0_106 = arith.constant 0 : index
    %c0_107 = arith.constant 0 : index
    %227 = vector.load %arg12[%c0_106, %c0_107] : memref<2x60xf32, #tpu.memory_space<vmem>>, vector<2x60xf32>
    tpu.vector_store %arg12[%c0_106, %c0_107], %226 {strides = array<i32>} : memref<2x60xf32, #tpu.memory_space<vmem>>, vector<2x60xf32>,
    return
  }
  func.func @transform_0(%arg0: i32) -> (i32, i32, i32) {
    %c0_i32 = arith.constant 0 : i32
    %c0_i32_0 = arith.constant 0 : i32
    %c0_i32_1 = arith.constant 0 : i32
    return %arg0, %c0_i32, %c0_i32_0 : i32, i32, i32
  }
  func.func @transform_1(%arg0: i32) -> (i32, i32, i32) {
    %c0_i32 = arith.constant 0 : i32
    %c0_i32_0 = arith.constant 0 : i32
    %c0_i32_1 = arith.constant 0 : i32
    %c0_i32_2 = arith.constant 0 : i32
    return %c0_i32, %c0_i32_0, %c0_i32_1 : i32, i32, i32
  }
  func.func @transform_2(%arg0: i32) -> (i32, i32, i32) {
    %c0_i32 = arith.constant 0 : i32
    %c0_i32_0 = arith.constant 0 : i32
    %c0_i32_1 = arith.constant 0 : i32
    %c0_i32_2 = arith.constant 0 : i32
    return %c0_i32, %c0_i32_0, %c0_i32_1 : i32, i32, i32
  }
  func.func @transform_3(%arg0: i32) -> (i32, i32, i32) {
    %c0_i32 = arith.constant 0 : i32
    %c0_i32_0 = arith.constant 0 : i32
    %c0_i32_1 = arith.constant 0 : i32
    %c0_i32_2 = arith.constant 0 : i32
    return %c0_i32, %c0_i32_0, %c0_i32_1 : i32, i32, i32
  }
  func.func @transform_4(%arg0: i32) -> (i32, i32, i32) {
    %c0_i32 = arith.constant 0 : i32
    %c0_i32_0 = arith.constant 0 : i32
    %c0_i32_1 = arith.constant 0 : i32
    %c0_i32_2 = arith.constant 0 : i32
    return %c0_i32, %c0_i32_0, %c0_i32_1 : i32, i32, i32
  }
  func.func @transform_5(%arg0: i32) -> (i32, i32, i32) {
    %c0_i32 = arith.constant 0 : i32
    %c0_i32_0 = arith.constant 0 : i32
    %c0_i32_1 = arith.constant 0 : i32
    %c0_i32_2 = arith.constant 0 : i32
    return %c0_i32, %c0_i32_0, %c0_i32_1 : i32, i32, i32
  }
  func.func @transform_6(%arg0: i32) -> (i32, i32, i32) {
    %c0_i32 = arith.constant 0 : i32
    %c0_i32_0 = arith.constant 0 : i32
    %c0_i32_1 = arith.constant 0 : i32
    %c0_i32_2 = arith.constant 0 : i32
    return %c0_i32, %c0_i32_0, %c0_i32_1 : i32, i32, i32
  }
  func.func @transform_7(%arg0: i32) -> (i32, i32, i32) {
    %c0_i32 = arith.constant 0 : i32
    %c0_i32_0 = arith.constant 0 : i32
    %c0_i32_1 = arith.constant 0 : i32
    %c0_i32_2 = arith.constant 0 : i32
    return %c0_i32, %c0_i32_0, %c0_i32_1 : i32, i32, i32
  }
  func.func @transform_8(%arg0: i32) -> (i32, i32, i32) {
    %c0_i32 = arith.constant 0 : i32
    %c0_i32_0 = arith.constant 0 : i32
    %c0_i32_1 = arith.constant 0 : i32
    %c0_i32_2 = arith.constant 0 : i32
    return %c0_i32, %c0_i32_0, %c0_i32_1 : i32, i32, i32
  }
  func.func @transform_9(%arg0: i32) -> (i32, i32, i32) {
    %c0_i32 = arith.constant 0 : i32
    %c0_i32_0 = arith.constant 0 : i32
    %c0_i32_1 = arith.constant 0 : i32
    %c0_i32_2 = arith.constant 0 : i32
    return %c0_i32, %c0_i32_0, %c0_i32_1 : i32, i32, i32
  }
  func.func @transform_10(%arg0: i32) -> (i32, i32, i32) {
    %c0_i32 = arith.constant 0 : i32
    %c0_i32_0 = arith.constant 0 : i32
    %c0_i32_1 = arith.constant 0 : i32
    %c0_i32_2 = arith.constant 0 : i32
    return %c0_i32, %c0_i32_0, %c0_i32_1 : i32, i32, i32
  }
  func.func @transform_11(%arg0: i32) -> (i32, i32) {
    %c0_i32 = arith.constant 0 : i32
    %c0_i32_0 = arith.constant 0 : i32
    return %arg0, %c0_i32 : i32, i32
  }
}

</mosaic_0001>

<llo_original>
// kernel: trf_rep2_forward.1
$region0: #{trf_rep2_forward.1}
  #allocation0 [shape = 'u32[]', space=smem, size = 0x4, offset = 0x4, fixed_abs, tag = 'smem constant byte address 0x4 - core index']
  #allocation1 [shape = 'u32[144,128]{1,0:T(1,128)}', space=vmem, size = 0x12000, scoped, tag = 'internal scratch']
  %s0 = inlined_call_operand.vmem [shape: f32[2,17,60], index: 0, kind: input, shape index: {}]
  %s1 = inlined_call_operand.vmem [shape: f32[2,60,180], index: 1, kind: input, shape index: {}]
  %s2 = inlined_call_operand.vmem [shape: f32[2,1,180], index: 2, kind: input, shape index: {}]
  %s3 = inlined_call_operand.vmem [shape: f32[2,60,60], index: 3, kind: input, shape index: {}]
  %s4 = inlined_call_operand.vmem [shape: f32[2,1,60], index: 4, kind: input, shape index: {}]
  %s5 = inlined_call_operand.vmem [shape: f32[2,2,60], index: 5, kind: input, shape index: {}]
  %s6 = inlined_call_operand.vmem [shape: f32[2,60,60], index: 6, kind: input, shape index: {}]
  %s7 = inlined_call_operand.vmem [shape: f32[2,1,60], index: 7, kind: input, shape index: {}]
  %s8 = inlined_call_operand.vmem [shape: f32[2,60,60], index: 8, kind: input, shape index: {}]
  %s9 = inlined_call_operand.vmem [shape: f32[2,1,60], index: 9, kind: input, shape index: {}]
  %s10 = inlined_call_operand.vmem [shape: f32[2,2,60], index: 10, kind: input, shape index: {}]
  %s11 = inlined_call_operand.hbm [shape: f32[2,60], index: 11, kind: output, shape index: {}]
  %s12 = sld [smem:[#allocation0]]
  $region54: #{trf_rep2_forward.1} parent=0
    _
  %s14 = ssub.s32 1, %s12
  %s15 = scalar_select 0, %s14, %s12
  $region1: #{trf_rep2_forward.1} parent=0
    #allocation2 [shape = 'u8[1024]{0}', space=vmem, size = 0x400, scoped, tag = 'output window, operand 0, single buffered']
    #allocation3 [shape = 's32[1]{0}', space=sflag, size = 0x4, scoped, tag = 'scoped memory for trf_rep2_forward.1']
    %16 = vsyncpa [#allocation3], 0
    // Predicated region
    $region2: #{trf_rep2_forward.1} parent=1 // pred_check
      _
    $region3: #{trf_rep2_forward.1} parent=1 // pred_check_branch
      %18 = sbr.rel (0) target = $region5
    $region4: #{trf_rep2_forward.1} parent=1 // pred_region
      _
    $region5: #{trf_rep2_forward.1} parent=1 // pred_fallthru
      _
    // Predicated region
    $region6: #{trf_rep2_forward.1} parent=1 // pred_check
      _
    $region7: #{trf_rep2_forward.1} parent=1 // pred_check_branch
      %20 = sbr.rel (0) target = $region9
    $region8: #{trf_rep2_forward.1} parent=1 // pred_region
      _
    $region9: #{trf_rep2_forward.1} parent=1 // pred_fallthru
      _
    // Predicated region
    $region10: #{trf_rep2_forward.1} parent=1 // pred_check
      _
    $region11: #{trf_rep2_forward.1} parent=1 // pred_check_branch
      %22 = sbr.rel (0) target = $region13
    $region12: #{trf_rep2_forward.1} parent=1 // pred_region
      _
    $region13: #{trf_rep2_forward.1} parent=1 // pred_fallthru
      _
    // Predicated region
    $region14: #{trf_rep2_forward.1} parent=1 // pred_check
      _
    $region15: #{trf_rep2_forward.1} parent=1 // pred_check_branch
      %24 = sbr.rel (0) target = $region17
    $region16: #{trf_rep2_forward.1} parent=1 // pred_region
      _
    $region17: #{trf_rep2_forward.1} parent=1 // pred_fallthru
      _
    // Predicated region
    $region18: #{trf_rep2_forward.1} parent=1 // pred_check
      _
    $region19: #{trf_rep2_forward.1} parent=1 // pred_check_branch
      %26 = sbr.rel (0) target = $region21
    $region20: #{trf_rep2_forward.1} parent=1 // pred_region
      _
    $region21: #{trf_rep2_forward.1} parent=1 // pred_fallthru
      _
    // Predicated region
    $region22: #{trf_rep2_forward.1} parent=1 // pred_check
      _
    $region23: #{trf_rep2_forward.1} parent=1 // pred_check_branch
      %28 = sbr.rel (0) target = $region25
    $region24: #{trf_rep2_forward.1} parent=1 // pred_region
      _
    $region25: #{trf_rep2_forward.1} parent=1 // pred_fallthru
      _
    // Predicated region
    $region26: #{trf_rep2_forward.1} parent=1 // pred_check
      _
    $region27: #{trf_rep2_forward.1} parent=1 // pred_check_branch
      %30 = sbr.rel (0) target = $region29
    $region28: #{trf_rep2_forward.1} parent=1 // pred_region
      _
    $region29: #{trf_rep2_forward.1} parent=1 // pred_fallthru
      _
    // Predicated region
    $region30: #{trf_rep2_forward.1} parent=1 // pred_check
      _
    $region31: #{trf_rep2_forward.1} parent=1 // pred_check_branch
      %32 = sbr.rel (0) target = $region33
    $region32: #{trf_rep2_forward.1} parent=1 // pred_region
      _
    $region33: #{trf_rep2_forward.1} parent=1 // pred_fallthru
      _
    // Predicated region
    $region34: #{trf_rep2_forward.1} parent=1 // pred_check
      _
    $region35: #{trf_rep2_forward.1} parent=1 // pred_check_branch
      %34 = sbr.rel (0) target = $region37
    $region36: #{trf_rep2_forward.1} parent=1 // pred_region
      _
    $region37: #{trf_rep2_forward.1} parent=1 // pred_fallthru
      _
    // Predicated region
    $region38: #{trf_rep2_forward.1} parent=1 // pred_check
      _
    $region39: #{trf_rep2_forward.1} parent=1 // pred_check_branch
      %36 = sbr.rel (0) target = $region41
    $region40: #{trf_rep2_forward.1} parent=1 // pred_region
      _
    $region41: #{trf_rep2_forward.1} parent=1 // pred_fallthru
      _
    // Predicated region
    $region42: #{trf_rep2_forward.1} parent=1 // pred_check
      _
    $region43: #{trf_rep2_forward.1} parent=1 // pred_check_branch
      %38 = sbr.rel (0) target = $region45
    $region44: #{trf_rep2_forward.1} parent=1 // pred_region
      _
    $region45: #{trf_rep2_forward.1} parent=1 // pred_fallthru
      _
    %v39 = vld [vmem:[%s0] sm:$0xff]
    %v40 = vld [vmem:[%s0 + $0x8] sm:$0xff]
    %v41 = vld [vmem:[%s0 + $0x10] sm:$0x1]
    %v42 = vld [vmem:[%s0 + $0x18] sm:$0xff]
    %v43 = vld [vmem:[%s0 + $0x20] sm:$0xff]
    %v44 = vld [vmem:[%s0 + $0x28] sm:$0x1]
    %v51 = vcombine.high %v39, %v39
    %v53 = vunpack.c.l.s4 1966171168
    %v54 = vunpack.c.0.s8 %v53
    %v55 = vlaneseq
    %v56 = vshrl.u32 %v55, 7
    %v57 = vsub.s32 %v54, %v56
    %v58 = vrot.slane %v39, %v57
    %v60 = vunpack.c.l.s4 1966171168
    %v61 = vunpack.c.0.s8 %v60
    %v62 = vlaneseq
    %v63 = vshrl.u32 %v62, 7
    %v64 = vsub.s32 %v61, %v63
    %v65 = vrot.slane %v51, %v64
    %v66 = vcombine.high %v58, %v58
    %v67 = vcombine.high %v65, %v65
    %v69 = vunpack.c.l.s4 1966171168
    %v70 = vunpack.c.0.s8 %v69
    %v71 = vlaneseq
    %v72 = vshrl.u32 %v71, 7
    %v73 = vsub.s32 %v70, %v72
    %v74 = vrot.slane %v58, %v73
    %v76 = vunpack.c.l.s4 1966171168
    %v77 = vunpack.c.0.s8 %v76
    %v78 = vlaneseq
    %v79 = vshrl.u32 %v78, 7
    %v80 = vsub.s32 %v77, %v79
    %v81 = vrot.slane %v65, %v80
    %v83 = vunpack.c.l.s4 1966171168
    %v84 = vunpack.c.0.s8 %v83
    %v85 = vlaneseq
    %v86 = vshrl.u32 %v85, 7
    %v87 = vsub.s32 %v84, %v86
    %v88 = vrot.slane %v66, %v87
    %v90 = vunpack.c.l.s4 1966171168
    %v91 = vunpack.c.0.s8 %v90
    %v92 = vlaneseq
    %v93 = vshrl.u32 %v92, 7
    %v94 = vsub.s32 %v91, %v93
    %v95 = vrot.slane %v67, %v94
    %v96 = vcombine.high %v74, %v74
    %v97 = vcombine.high %v81, %v81
    %v98 = vcombine.high %v88, %v88
    %v99 = vcombine.high %v95, %v95
    %v100 = vcombine.high %v40, %v40
    %v102 = vunpack.c.l.s4 1966171168
    %v103 = vunpack.c.0.s8 %v102
    %v104 = vlaneseq
    %v105 = vshrl.u32 %v104, 7
    %v106 = vsub.s32 %v103, %v105
    %v107 = vrot.slane %v40, %v106
    %v109 = vunpack.c.l.s4 1966171168
    %v110 = vunpack.c.0.s8 %v109
    %v111 = vlaneseq
    %v112 = vshrl.u32 %v111, 7
    %v113 = vsub.s32 %v110, %v112
    %v114 = vrot.slane %v100, %v113
    %v115 = vcombine.high %v107, %v107
    %v116 = vcombine.high %v114, %v114
    %v118 = vunpack.c.l.s4 1966171168
    %v119 = vunpack.c.0.s8 %v118
    %v120 = vlaneseq
    %v121 = vshrl.u32 %v120, 7
    %v122 = vsub.s32 %v119, %v121
    %v123 = vrot.slane %v107, %v122
    %v125 = vunpack.c.l.s4 1966171168
    %v126 = vunpack.c.0.s8 %v125
    %v127 = vlaneseq
    %v128 = vshrl.u32 %v127, 7
    %v129 = vsub.s32 %v126, %v128
    %v130 = vrot.slane %v114, %v129
    %v132 = vunpack.c.l.s4 1966171168
    %v133 = vunpack.c.0.s8 %v132
    %v134 = vlaneseq
    %v135 = vshrl.u32 %v134, 7
    %v136 = vsub.s32 %v133, %v135
    %v137 = vrot.slane %v115, %v136
    %v139 = vunpack.c.l.s4 1966171168
    %v140 = vunpack.c.0.s8 %v139
    %v141 = vlaneseq
    %v142 = vshrl.u32 %v141, 7
    %v143 = vsub.s32 %v140, %v142
    %v144 = vrot.slane %v116, %v143
    %v145 = vcombine.high %v123, %v123
    %v146 = vcombine.high %v130, %v130
    %v147 = vcombine.high %v137, %v137
    %v148 = vcombine.high %v144, %v144
    %v150 = vunpack.c.l.s4 1966171168
    %v151 = vunpack.c.0.s8 %v150
    %v152 = vlaneseq
    %v153 = vshrl.u32 %v152, 7
    %v154 = vsub.s32 %v151, %v153
    %v155 = vrot.slane %v41, %v154
    %v157 = vunpack.c.l.s4 1966171168
    %v158 = vunpack.c.0.s8 %v157
    %v159 = vlaneseq
    %v160 = vshrl.u32 %v159, 7
    %v161 = vsub.s32 %v158, %v160
    %v162 = vrot.slane %v155, %v161
    %v163 = vcombine.high %v42, %v42
    %v165 = vunpack.c.l.s4 1966171168
    %v166 = vunpack.c.0.s8 %v165
    %v167 = vlaneseq
    %v168 = vshrl.u32 %v167, 7
    %v169 = vsub.s32 %v166, %v168
    %v170 = vrot.slane %v42, %v169
    %v172 = vunpack.c.l.s4 1966171168
    %v173 = vunpack.c.0.s8 %v172
    %v174 = vlaneseq
    %v175 = vshrl.u32 %v174, 7
    %v176 = vsub.s32 %v173, %v175
    %v177 = vrot.slane %v163, %v176
    %v178 = vcombine.high %v170, %v170
    %v179 = vcombine.high %v177, %v177
    %v181 = vunpack.c.l.s4 1966171168
    %v182 = vunpack.c.0.s8 %v181
    %v183 = vlaneseq
    %v184 = vshrl.u32 %v183, 7
    %v185 = vsub.s32 %v182, %v184
    %v186 = vrot.slane %v170, %v185
    %v188 = vunpack.c.l.s4 1966171168
    %v189 = vunpack.c.0.s8 %v188
    %v190 = vlaneseq
    %v191 = vshrl.u32 %v190, 7
    %v192 = vsub.s32 %v189, %v191
    %v193 = vrot.slane %v177, %v192
    %v195 = vunpack.c.l.s4 1966171168
    %v196 = vunpack.c.0.s8 %v195
    %v197 = vlaneseq
    %v198 = vshrl.u32 %v197, 7
    %v199 = vsub.s32 %v196, %v198
    %v200 = vrot.slane %v178, %v199
    %v202 = vunpack.c.l.s4 1966171168
    %v203 = vunpack.c.0.s8 %v202
    %v204 = vlaneseq
    %v205 = vshrl.u32 %v204, 7
    %v206 = vsub.s32 %v203, %v205
    %v207 = vrot.slane %v179, %v206
    %v208 = vcombine.high %v186, %v186
    %v209 = vcombine.high %v193, %v193
    %v210 = vcombine.high %v200, %v200
    %v211 = vcombine.high %v207, %v207
    %v212 = vcombine.high %v43, %v43
    %v214 = vunpack.c.l.s4 1966171168
    %v215 = vunpack.c.0.s8 %v214
    %v216 = vlaneseq
    %v217 = vshrl.u32 %v216, 7
    %v218 = vsub.s32 %v215, %v217
    %v219 = vrot.slane %v43, %v218
    %v221 = vunpack.c.l.s4 1966171168
    %v222 = vunpack.c.0.s8 %v221
    %v223 = vlaneseq
    %v224 = vshrl.u32 %v223, 7
    %v225 = vsub.s32 %v222, %v224
    %v226 = vrot.slane %v212, %v225
    %v227 = vcombine.high %v219, %v219
    %v228 = vcombine.high %v226, %v226
    %v230 = vunpack.c.l.s4 1966171168
    %v231 = vunpack.c.0.s8 %v230
    %v232 = vlaneseq
    %v233 = vshrl.u32 %v232, 7
    %v234 = vsub.s32 %v231, %v233
    %v235 = vrot.slane %v219, %v234
    %v237 = vunpack.c.l.s4 1966171168
    %v238 = vunpack.c.0.s8 %v237
    %v239 = vlaneseq
    %v240 = vshrl.u32 %v239, 7
    %v241 = vsub.s32 %v238, %v240
    %v242 = vrot.slane %v226, %v241
    %v244 = vunpack.c.l.s4 1966171168
    %v245 = vunpack.c.0.s8 %v244
    %v246 = vlaneseq
    %v247 = vshrl.u32 %v246, 7
    %v248 = vsub.s32 %v245, %v247
    %v249 = vrot.slane %v227, %v248
    %v251 = vunpack.c.l.s4 1966171168
    %v252 = vunpack.c.0.s8 %v251
    %v253 = vlaneseq
    %v254 = vshrl.u32 %v253, 7
    %v255 = vsub.s32 %v252, %v254
    %v256 = vrot.slane %v228, %v255
    %v257 = vcombine.high %v235, %v235
    %v258 = vcombine.high %v242, %v242
    %v259 = vcombine.high %v249, %v249
    %v260 = vcombine.high %v256, %v256
    %v262 = vunpack.c.l.s4 1966171168
    %v263 = vunpack.c.0.s8 %v262
    %v264 = vlaneseq
    %v265 = vshrl.u32 %v264, 7
    %v266 = vsub.s32 %v263, %v265
    %v267 = vrot.slane %v44, %v266
    %v269 = vunpack.c.l.s4 1966171168
    %v270 = vunpack.c.0.s8 %v269
    %v271 = vlaneseq
    %v272 = vshrl.u32 %v271, 7
    %v273 = vsub.s32 %v270, %v272
    %v274 = vrot.slane %v267, %v273
    %v309 = vld [vmem:[%s1] sm:$0xff]
    %v310 = vld [vmem:[%s1 + $0x8] sm:$0xff]
    %v311 = vld [vmem:[%s1 + $0x10] sm:$0xff]
    %v312 = vld [vmem:[%s1 + $0x18] sm:$0xff]
    %v313 = vld [vmem:[%s1 + $0x20] sm:$0xff]
    %v314 = vld [vmem:[%s1 + $0x28] sm:$0xff]
    %v315 = vld [vmem:[%s1 + $0x30] sm:$0xff]
    %v316 = vld [vmem:[%s1 + $0x38] sm:$0xff]
    %v317 = vld [vmem:[%s1 + $0x40] sm:$0xff]
    %v318 = vld [vmem:[%s1 + $0x48] sm:$0xff]
    %v319 = vld [vmem:[%s1 + $0x50] sm:$0xff]
    %v320 = vld [vmem:[%s1 + $0x58] sm:$0xff]
    %v321 = vld [vmem:[%s1 + $0x60] sm:$0xff]
    %v322 = vld [vmem:[%s1 + $0x68] sm:$0xff]
    %v323 = vld [vmem:[%s1 + $0x70] sm:$0xf]
    %v324 = vld [vmem:[%s1 + $0x78] sm:$0xf]
    %v325 = vld [vmem:[%s2] sm:$0x3]
    %v327 = vlaneseq
    %v328 = vshrl.u32 %v327, 7
    %v329 = vsub.s32 0, %v328
    %v330 = vrot.slane %v325, %v329
    %v331 = vlaneseq
    %v332 = vshrl.u32 %v331, 7
    %v333 = vsub.s32 1, %v332
    %v334 = vrot.slane %v325, %v333
    %v337 = vcombine.low %v74, %v88
    %v338 = vcombine.low %v96, %v98
    %v339 = vcombine.low %v81, %v95
    %v340 = vcombine.low %v97, %v99
    %v342 = vunpack.c.l.s4 1966171168
    %v343 = vunpack.c.0.s8 %v342
    %v344 = vlaneseq
    %v345 = vshrl.u32 %v344, 7
    %v346 = vsub.s32 %v343, %v345
    %v347 = vrot.slane %v337, %v346
    %v349 = vunpack.c.l.s4 1966171168
    %v350 = vunpack.c.0.s8 %v349
    %v351 = vlaneseq
    %v352 = vshrl.u32 %v351, 7
    %v353 = vsub.s32 %v350, %v352
    %v354 = vrot.slane %v338, %v353
    %v356 = vunpack.c.l.s4 1966171168
    %v357 = vunpack.c.0.s8 %v356
    %v358 = vlaneseq
    %v359 = vshrl.u32 %v358, 7
    %v360 = vsub.s32 %v357, %v359
    %v361 = vrot.slane %v339, %v360
    %v363 = vunpack.c.l.s4 1966171168
    %v364 = vunpack.c.0.s8 %v363
    %v365 = vlaneseq
    %v366 = vshrl.u32 %v365, 7
    %v367 = vsub.s32 %v364, %v366
    %v368 = vrot.slane %v340, %v367
    %v369 = vcombine.low %v347, %v354
    %v370 = vcombine.low %v361, %v368
    %v372 = vunpack.c.l.s4 1966171168
    %v373 = vunpack.c.0.s8 %v372
    %v374 = vlaneseq
    %v375 = vshrl.u32 %v374, 7
    %v376 = vsub.s32 %v373, %v375
    %v377 = vrot.slane %v369, %v376
    %v379 = vunpack.c.l.s4 1966171168
    %v380 = vunpack.c.0.s8 %v379
    %v381 = vlaneseq
    %v382 = vshrl.u32 %v381, 7
    %v383 = vsub.s32 %v380, %v382
    %v384 = vrot.slane %v370, %v383
    %v385 = vcombine.low %v377, %v384
    %v386 = vcombine.low %v123, %v137
    %v387 = vcombine.low %v145, %v147
    %v388 = vcombine.low %v130, %v144
    %v389 = vcombine.low %v146, %v148
    %v391 = vunpack.c.l.s4 1966171168
    %v392 = vunpack.c.0.s8 %v391
    %v393 = vlaneseq
    %v394 = vshrl.u32 %v393, 7
    %v395 = vsub.s32 %v392, %v394
    %v396 = vrot.slane %v386, %v395
    %v398 = vunpack.c.l.s4 1966171168
    %v399 = vunpack.c.0.s8 %v398
    %v400 = vlaneseq
    %v401 = vshrl.u32 %v400, 7
    %v402 = vsub.s32 %v399, %v401
    %v403 = vrot.slane %v387, %v402
    %v405 = vunpack.c.l.s4 1966171168
    %v406 = vunpack.c.0.s8 %v405
    %v407 = vlaneseq
    %v408 = vshrl.u32 %v407, 7
    %v409 = vsub.s32 %v406, %v408
    %v410 = vrot.slane %v388, %v409
    %v412 = vunpack.c.l.s4 1966171168
    %v413 = vunpack.c.0.s8 %v412
    %v414 = vlaneseq
    %v415 = vshrl.u32 %v414, 7
    %v416 = vsub.s32 %v413, %v415
    %v417 = vrot.slane %v389, %v416
    %v418 = vcombine.low %v396, %v403
    %v419 = vcombine.low %v410, %v417
    %v421 = vunpack.c.l.s4 1966171168
    %v422 = vunpack.c.0.s8 %v421
    %v423 = vlaneseq
    %v424 = vshrl.u32 %v423, 7
    %v425 = vsub.s32 %v422, %v424
    %v426 = vrot.slane %v418, %v425
    %v428 = vunpack.c.l.s4 1966171168
    %v429 = vunpack.c.0.s8 %v428
    %v430 = vlaneseq
    %v431 = vshrl.u32 %v430, 7
    %v432 = vsub.s32 %v429, %v431
    %v433 = vrot.slane %v419, %v432
    %v434 = vcombine.low %v426, %v433
    %v435 = vcombine.low %v162, %v186
    %v436 = vcombine.low %v200, %v208
    %v437 = vcombine.low %v210, %v193
    %v438 = vcombine.low %v207, %v209
    %v440 = vunpack.c.l.s4 1966171168
    %v441 = vunpack.c.0.s8 %v440
    %v442 = vlaneseq
    %v443 = vshrl.u32 %v442, 7
    %v444 = vsub.s32 %v441, %v443
    %v445 = vrot.slane %v435, %v444
    %v447 = vunpack.c.l.s4 1966171168
    %v448 = vunpack.c.0.s8 %v447
    %v449 = vlaneseq
    %v450 = vshrl.u32 %v449, 7
    %v451 = vsub.s32 %v448, %v450
    %v452 = vrot.slane %v436, %v451
    %v454 = vunpack.c.l.s4 1966171168
    %v455 = vunpack.c.0.s8 %v454
    %v456 = vlaneseq
    %v457 = vshrl.u32 %v456, 7
    %v458 = vsub.s32 %v455, %v457
    %v459 = vrot.slane %v437, %v458
    %v461 = vunpack.c.l.s4 1966171168
    %v462 = vunpack.c.0.s8 %v461
    %v463 = vlaneseq
    %v464 = vshrl.u32 %v463, 7
    %v465 = vsub.s32 %v462, %v464
    %v466 = vrot.slane %v438, %v465
    %v467 = vcombine.low %v445, %v452
    %v468 = vcombine.low %v459, %v466
    %v470 = vunpack.c.l.s4 1966171168
    %v471 = vunpack.c.0.s8 %v470
    %v472 = vlaneseq
    %v473 = vshrl.u32 %v472, 7
    %v474 = vsub.s32 %v471, %v473
    %v475 = vrot.slane %v467, %v474
    %v477 = vunpack.c.l.s4 1966171168
    %v478 = vunpack.c.0.s8 %v477
    %v479 = vlaneseq
    %v480 = vshrl.u32 %v479, 7
    %v481 = vsub.s32 %v478, %v480
    %v482 = vrot.slane %v468, %v481
    %v483 = vcombine.low %v475, %v482
    %v484 = vcombine.low %v211, %v235
    %v485 = vcombine.low %v249, %v257
    %v486 = vcombine.low %v259, %v242
    %v487 = vcombine.low %v256, %v258
    %v489 = vunpack.c.l.s4 1966171168
    %v490 = vunpack.c.0.s8 %v489
    %v491 = vlaneseq
    %v492 = vshrl.u32 %v491, 7
    %v493 = vsub.s32 %v490, %v492
    %v494 = vrot.slane %v484, %v493
    %v496 = vunpack.c.l.s4 1966171168
    %v497 = vunpack.c.0.s8 %v496
    %v498 = vlaneseq
    %v499 = vshrl.u32 %v498, 7
    %v500 = vsub.s32 %v497, %v499
    %v501 = vrot.slane %v485, %v500
    %v503 = vunpack.c.l.s4 1966171168
    %v504 = vunpack.c.0.s8 %v503
    %v505 = vlaneseq
    %v506 = vshrl.u32 %v505, 7
    %v507 = vsub.s32 %v504, %v506
    %v508 = vrot.slane %v486, %v507
    %v510 = vunpack.c.l.s4 1966171168
    %v511 = vunpack.c.0.s8 %v510
    %v512 = vlaneseq
    %v513 = vshrl.u32 %v512, 7
    %v514 = vsub.s32 %v511, %v513
    %v515 = vrot.slane %v487, %v514
    %v516 = vcombine.low %v494, %v501
    %v517 = vcombine.low %v508, %v515
    %v519 = vunpack.c.l.s4 1966171168
    %v520 = vunpack.c.0.s8 %v519
    %v521 = vlaneseq
    %v522 = vshrl.u32 %v521, 7
    %v523 = vsub.s32 %v520, %v522
    %v524 = vrot.slane %v516, %v523
    %v526 = vunpack.c.l.s4 1966171168
    %v527 = vunpack.c.0.s8 %v526
    %v528 = vlaneseq
    %v529 = vshrl.u32 %v528, 7
    %v530 = vsub.s32 %v527, %v529
    %v531 = vrot.slane %v517, %v530
    %v532 = vcombine.low %v524, %v531
    %v533 = vcombine.low %v260, %v274
    %v535 = vunpack.c.l.s4 1966171168
    %v536 = vunpack.c.0.s8 %v535
    %v537 = vlaneseq
    %v538 = vshrl.u32 %v537, 7
    %v539 = vsub.s32 %v536, %v538
    %v540 = vrot.slane %v533, %v539
    %v542 = vunpack.c.l.s4 1966171168
    %v543 = vunpack.c.0.s8 %v542
    %v544 = vlaneseq
    %v545 = vshrl.u32 %v544, 7
    %v546 = vsub.s32 %v543, %v545
    %v547 = vrot.slane %v540, %v546
    %vm548 = vcmask 490496
    %v549 = vsel %vm548, %v385, 0
    %v551 = vsel %vm548, %v434, 0
    %v553 = vsel %vm548, %v483, 0
    %v555 = vsel %vm548, %v532, 0
    %v557 = vsel %vm548, %v547, 0
    %vm559 = vcmask 1043456
    %v561 = vsel %vm559, %v323, 0
    %v564 = vsel %vm559, %v324, 0
    %566 = vmatprep.subr.mxu0 %v310
    %567 = vmatpush1.msra.mxu0 %v309
    %568 = vmatprep.subr.mxu0 %v312
    %569 = vmatpush1.msra.mxu0 %v311
    %570 = vmatprep.subr.mxu0 %v314
    %571 = vmatpush1.msra.mxu0 %v313
    %572 = vmatprep.subr.mxu0 %v316
    %573 = vmatpush1.msra.mxu0 %v315
    %574 = vmatprep.subr.mxu0 %v318
    %575 = vmatpush1.msra.mxu0 %v317
    %576 = vmatprep.subr.mxu0 %v320
    %577 = vmatpush1.msra.mxu0 %v319
    %578 = vmatprep.subr.mxu0 %v322
    %579 = vmatpush1.msra.mxu0 %v321
    %580 = vmatprep.subr.mxu0 %v564
    %581 = vmatpush1.msra.mxu0 %v561
    %582 = vmatprep.subr.mxu0 0.0
    %583 = vmatpush1.msra.mxu0 0.0
    %584 = vmatprep.subr.mxu0 0.0
    %585 = vmatpush1.msra.mxu0 0.0
    %586 = vmatprep.subr.mxu0 0.0
    %587 = vmatpush1.msra.mxu0 0.0
    %588 = vmatprep.subr.mxu0 0.0
    %589 = vmatpush1.msra.mxu0 0.0
    %590 = vmatprep.subr.mxu0 0.0
    %591 = vmatpush1.msra.mxu0 0.0
    %592 = vmatprep.subr.mxu0 0.0
    %593 = vmatpush1.msra.mxu0 0.0
    %594 = vmatprep.subr.mxu0 0.0
    %595 = vmatpush1.msra.mxu0 0.0
    %596 = vmatprep.subr.mxu0 0.0
    %597 = vmatpush1.msra.mxu0 0.0
    %598 = vmatprep.subr.mxu0 0.0
    %599 = vmatpush1.msra.mxu0 0.0
    %600 = vmatprep.subr.mxu0 0.0
    %601 = vmatpush1.msra.mxu0 0.0
    %602 = vmatprep.subr.mxu0 0.0
    %603 = vmatpush1.msra.mxu0 0.0
    %604 = vmatprep.subr.mxu0 0.0
    %605 = vmatpush1.msra.mxu0 0.0
    %606 = vmatprep.subr.mxu0 0.0
    %607 = vmatpush1.msra.mxu0 0.0
    %608 = vmatprep.subr.mxu0 0.0
    %609 = vmatpush1.msra.mxu0 0.0
    %610 = vmatprep.subr.mxu0 0.0
    %611 = vmatpush1.msra.mxu0 0.0
    %612 = vmatprep.subr.mxu0 0.0
    %613 = vmatpush1.msra.mxu0 0.0
    %614 = vmatprep.subr.mxu0 0.0
    %615 = vmatpush1.msra.mxu0 0.0
    %616 = vmatprep.subr.mxu0 0.0
    %617 = vmatpush1.msra.mxu0 0.0
    %618 = vmatprep.subr.mxu0 0.0
    %619 = vmatpush1.msra.mxu0 0.0
    %620 = vmatprep.subr.mxu0 0.0
    %621 = vmatpush1.msra.mxu0 0.0
    %622 = vmatprep.subr.mxu0 0.0
    %623 = vmatpush1.msra.mxu0 0.0
    %624 = vmatprep.subr.mxu0 0.0
    %625 = vmatpush1.msra.mxu0 0.0
    %626 = vmatprep.subr.mxu0 0.0
    %627 = vmatpush1.msra.mxu0 0.0
    %628 = vmatprep.subr.mxu0 0.0
    %629 = vmatpush1.msra.mxu0 0.0
    %630 = vmatprep.mubr.f32.mxu0 0.0
    %631 = vmatmul.mubr.f32.gmra.mrb[0].mxu0 %v549
    %v632 = vpop.f32.mrb[0].mxu0
    %v633 = vadd.f32 %v330, %v632
    %v634 = vpop.f32.mrb[0].mxu0
    %v635 = vadd.f32 %v334, %v634
    %636 = vmatprep.mubr.f32.mxu0 0.0
    %637 = vmatmul.mubr.f32.gmra.mrb[0].mxu0 %v551
    %v638 = vpop.f32.mrb[0].mxu0
    %v639 = vadd.f32 %v330, %v638
    %v640 = vpop.f32.mrb[0].mxu0
    %v641 = vadd.f32 %v334, %v640
    %642 = vmatprep.mubr.f32.mxu0 0.0
    %643 = vmatmul.mubr.f32.gmra.mrb[0].mxu0 %v553
    %v644 = vpop.f32.mrb[0].mxu0
    %v645 = vadd.f32 %v330, %v644
    %v646 = vpop.f32.mrb[0].mxu0
    %v647 = vadd.f32 %v334, %v646
    %648 = vmatprep.mubr.f32.mxu0 0.0
    %649 = vmatmul.mubr.f32.gmra.mrb[0].mxu0 %v555
    %v650 = vpop.f32.mrb[0].mxu0
    %v651 = vadd.f32 %v330, %v650
    %v652 = vpop.f32.mrb[0].mxu0
    %v653 = vadd.f32 %v334, %v652
    %654 = vmatprep.mubr.f32.mxu0 0.0
    %655 = vmatmul.mubr.f32.gmra.mrb[0].mxu0 %v557
    %v656 = vpop.f32.mrb[0].mxu0
    %v657 = vadd.f32 %v330, %v656
    %v658 = vpop.f32.mrb[0].mxu0
    %v659 = vadd.f32 %v334, %v658
    %660 = vdwg.mxu0
    %v671 = vcombine.low %v633, %v635
    %v672 = vcombine.high %v633, %v635
    %v674 = vunpack.c.l.s4 1966171168
    %v675 = vunpack.c.0.s8 %v674
    %v676 = vlaneseq
    %v677 = vshrl.u32 %v676, 7
    %v678 = vsub.s32 %v675, %v677
    %v679 = vrot.slane %v671, %v678
    %v681 = vunpack.c.l.s4 1966171168
    %v682 = vunpack.c.0.s8 %v681
    %v683 = vlaneseq
    %v684 = vshrl.u32 %v683, 7
    %v685 = vsub.s32 %v682, %v684
    %v686 = vrot.slane %v672, %v685
    %v687 = vcombine.high %v679, %v679
    %v688 = vcombine.high %v686, %v686
    %v690 = vunpack.c.l.s4 1966171168
    %v691 = vunpack.c.0.s8 %v690
    %v692 = vlaneseq
    %v693 = vshrl.u32 %v692, 7
    %v694 = vsub.s32 %v691, %v693
    %v695 = vrot.slane %v679, %v694
    %v697 = vunpack.c.l.s4 1966171168
    %v698 = vunpack.c.0.s8 %v697
    %v699 = vlaneseq
    %v700 = vshrl.u32 %v699, 7
    %v701 = vsub.s32 %v698, %v700
    %v702 = vrot.slane %v686, %v701
    %v704 = vunpack.c.l.s4 1966171168
    %v705 = vunpack.c.0.s8 %v704
    %v706 = vlaneseq
    %v707 = vshrl.u32 %v706, 7
    %v708 = vsub.s32 %v705, %v707
    %v709 = vrot.slane %v687, %v708
    %v711 = vunpack.c.l.s4 1966171168
    %v712 = vunpack.c.0.s8 %v711
    %v713 = vlaneseq
    %v714 = vshrl.u32 %v713, 7
    %v715 = vsub.s32 %v712, %v714
    %v716 = vrot.slane %v688, %v715
    %v717 = vcombine.high %v695, %v695
    %v718 = vcombine.high %v702, %v702
    %v719 = vcombine.high %v709, %v709
    %v720 = vcombine.high %v716, %v716
    %v721 = vcombine.low %v639, %v641
    %v722 = vcombine.high %v639, %v641
    %v724 = vunpack.c.l.s4 1966171168
    %v725 = vunpack.c.0.s8 %v724
    %v726 = vlaneseq
    %v727 = vshrl.u32 %v726, 7
    %v728 = vsub.s32 %v725, %v727
    %v729 = vrot.slane %v721, %v728
    %v731 = vunpack.c.l.s4 1966171168
    %v732 = vunpack.c.0.s8 %v731
    %v733 = vlaneseq
    %v734 = vshrl.u32 %v733, 7
    %v735 = vsub.s32 %v732, %v734
    %v736 = vrot.slane %v722, %v735
    %v737 = vcombine.high %v729, %v729
    %v738 = vcombine.high %v736, %v736
    %v740 = vunpack.c.l.s4 1966171168
    %v741 = vunpack.c.0.s8 %v740
    %v742 = vlaneseq
    %v743 = vshrl.u32 %v742, 7
    %v744 = vsub.s32 %v741, %v743
    %v745 = vrot.slane %v729, %v744
    %v747 = vunpack.c.l.s4 1966171168
    %v748 = vunpack.c.0.s8 %v747
    %v749 = vlaneseq
    %v750 = vshrl.u32 %v749, 7
    %v751 = vsub.s32 %v748, %v750
    %v752 = vrot.slane %v736, %v751
    %v754 = vunpack.c.l.s4 1966171168
    %v755 = vunpack.c.0.s8 %v754
    %v756 = vlaneseq
    %v757 = vshrl.u32 %v756, 7
    %v758 = vsub.s32 %v755, %v757
    %v759 = vrot.slane %v737, %v758
    %v761 = vunpack.c.l.s4 1966171168
    %v762 = vunpack.c.0.s8 %v761
    %v763 = vlaneseq
    %v764 = vshrl.u32 %v763, 7
    %v765 = vsub.s32 %v762, %v764
    %v766 = vrot.slane %v738, %v765
    %v767 = vcombine.high %v745, %v745
    %v768 = vcombine.high %v752, %v752
    %v769 = vcombine.high %v759, %v759
    %v770 = vcombine.high %v766, %v766
    %v771 = vcombine.low %v645, %v647
    %v772 = vcombine.high %v645, %v647
    %v774 = vunpack.c.l.s4 1966171168
    %v775 = vunpack.c.0.s8 %v774
    %v776 = vlaneseq
    %v777 = vshrl.u32 %v776, 7
    %v778 = vsub.s32 %v775, %v777
    %v779 = vrot.slane %v771, %v778
    %v781 = vunpack.c.l.s4 1966171168
    %v782 = vunpack.c.0.s8 %v781
    %v783 = vlaneseq
    %v784 = vshrl.u32 %v783, 7
    %v785 = vsub.s32 %v782, %v784
    %v786 = vrot.slane %v772, %v785
    %v787 = vcombine.high %v779, %v779
    %v788 = vcombine.high %v786, %v786
    %v790 = vunpack.c.l.s4 1966171168
    %v791 = vunpack.c.0.s8 %v790
    %v792 = vlaneseq
    %v793 = vshrl.u32 %v792, 7
    %v794 = vsub.s32 %v791, %v793
    %v795 = vrot.slane %v779, %v794
    %v797 = vunpack.c.l.s4 1966171168
    %v798 = vunpack.c.0.s8 %v797
    %v799 = vlaneseq
    %v800 = vshrl.u32 %v799, 7
    %v801 = vsub.s32 %v798, %v800
    %v802 = vrot.slane %v786, %v801
    %v804 = vunpack.c.l.s4 1966171168
    %v805 = vunpack.c.0.s8 %v804
    %v806 = vlaneseq
    %v807 = vshrl.u32 %v806, 7
    %v808 = vsub.s32 %v805, %v807
    %v809 = vrot.slane %v787, %v808
    %v811 = vunpack.c.l.s4 1966171168
    %v812 = vunpack.c.0.s8 %v811
    %v813 = vlaneseq
    %v814 = vshrl.u32 %v813, 7
    %v815 = vsub.s32 %v812, %v814
    %v816 = vrot.slane %v788, %v815
    %v817 = vcombine.high %v795, %v795
    %v818 = vcombine.high %v802, %v802
    %v819 = vcombine.high %v809, %v809
    %v820 = vcombine.high %v816, %v816
    %v821 = vcombine.low %v651, %v653
    %v822 = vcombine.high %v651, %v653
    %v824 = vunpack.c.l.s4 1966171168
    %v825 = vunpack.c.0.s8 %v824
    %v826 = vlaneseq
    %v827 = vshrl.u32 %v826, 7
    %v828 = vsub.s32 %v825, %v827
    %v829 = vrot.slane %v821, %v828
    %v831 = vunpack.c.l.s4 1966171168
    %v832 = vunpack.c.0.s8 %v831
    %v833 = vlaneseq
    %v834 = vshrl.u32 %v833, 7
    %v835 = vsub.s32 %v832, %v834
    %v836 = vrot.slane %v822, %v835
    %v837 = vcombine.high %v829, %v829
    %v838 = vcombine.high %v836, %v836
    %v840 = vunpack.c.l.s4 1966171168
    %v841 = vunpack.c.0.s8 %v840
    %v842 = vlaneseq
    %v843 = vshrl.u32 %v842, 7
    %v844 = vsub.s32 %v841, %v843
    %v845 = vrot.slane %v829, %v844
    %v847 = vunpack.c.l.s4 1966171168
    %v848 = vunpack.c.0.s8 %v847
    %v849 = vlaneseq
    %v850 = vshrl.u32 %v849, 7
    %v851 = vsub.s32 %v848, %v850
    %v852 = vrot.slane %v836, %v851
    %v854 = vunpack.c.l.s4 1966171168
    %v855 = vunpack.c.0.s8 %v854
    %v856 = vlaneseq
    %v857 = vshrl.u32 %v856, 7
    %v858 = vsub.s32 %v855, %v857
    %v859 = vrot.slane %v837, %v858
    %v861 = vunpack.c.l.s4 1966171168
    %v862 = vunpack.c.0.s8 %v861
    %v863 = vlaneseq
    %v864 = vshrl.u32 %v863, 7
    %v865 = vsub.s32 %v862, %v864
    %v866 = vrot.slane %v838, %v865
    %v867 = vcombine.high %v845, %v845
    %v868 = vcombine.high %v852, %v852
    %v869 = vcombine.high %v859, %v859
    %v870 = vcombine.high %v866, %v866
    %v871 = vcombine.low %v657, %v659
    %v873 = vunpack.c.l.s4 1966171168
    %v874 = vunpack.c.0.s8 %v873
    %v875 = vlaneseq
    %v876 = vshrl.u32 %v875, 7
    %v877 = vsub.s32 %v874, %v876
    %v878 = vrot.slane %v871, %v877
    %v879 = vcombine.high %v878, %v878
    %v881 = vunpack.c.l.s4 1966171168
    %v882 = vunpack.c.0.s8 %v881
    %v883 = vlaneseq
    %v884 = vshrl.u32 %v883, 7
    %v885 = vsub.s32 %v882, %v884
    %v886 = vrot.slane %v878, %v885
    %v888 = vunpack.c.l.s4 1966171168
    %v889 = vunpack.c.0.s8 %v888
    %v890 = vlaneseq
    %v891 = vshrl.u32 %v890, 7
    %v892 = vsub.s32 %v889, %v891
    %v893 = vrot.slane %v879, %v892
    %v928 = vmul.f32 %v695, 0.12909944
    %v929 = vmul.f32 %v709, 0.12909944
    %v930 = vmul.f32 %v717, 0.12909944
    %v931 = vmul.f32 %v719, 0.12909944
    %v932 = vmul.f32 %v702, 0.12909944
    %v933 = vmul.f32 %v716, 0.12909944
    %v934 = vmul.f32 %v718, 0.12909944
    %v935 = vmul.f32 %v720, 0.12909944
    %v936 = vmul.f32 %v745, 0.12909944
    %v937 = vmul.f32 %v759, 0.12909944
    %v938 = vmul.f32 %v767, 0.12909944
    %v939 = vmul.f32 %v769, 0.12909944
    %v940 = vmul.f32 %v752, 0.12909944
    %v941 = vmul.f32 %v766, 0.12909944
    %v942 = vmul.f32 %v768, 0.12909944
    %v943 = vmul.f32 %v770, 0.12909944
    %v944 = vmul.f32 %v795, 0.12909944
    %v945 = vmul.f32 %v809, 0.12909944
    %v946 = vmul.f32 %v817, 0.12909944
    %v947 = vmul.f32 %v819, 0.12909944
    %v948 = vmul.f32 %v802, 0.12909944
    %v949 = vmul.f32 %v816, 0.12909944
    %v950 = vmul.f32 %v818, 0.12909944
    %v951 = vmul.f32 %v820, 0.12909944
    %v952 = vmul.f32 %v845, 0.12909944
    %v953 = vmul.f32 %v859, 0.12909944
    %v954 = vmul.f32 %v867, 0.12909944
    %v955 = vmul.f32 %v869, 0.12909944
    %v956 = vmul.f32 %v852, 0.12909944
    %v957 = vmul.f32 %v866, 0.12909944
    %v958 = vmul.f32 %v868, 0.12909944
    %v959 = vmul.f32 %v870, 0.12909944
    %v960 = vmul.f32 %v886, 0.12909944
    %v961 = vmul.f32 %v893, 0.12909944
    %v979 = vcombine.low %v928, %v929
    %v980 = vcombine.low %v930, %v931
    %v981 = vcombine.low %v932, %v933
    %v982 = vcombine.low %v934, %v935
    %v984 = vunpack.c.l.s4 1966171168
    %v985 = vunpack.c.0.s8 %v984
    %v986 = vlaneseq
    %v987 = vshrl.u32 %v986, 7
    %v988 = vsub.s32 %v985, %v987
    %v989 = vrot.slane %v979, %v988
    %v991 = vunpack.c.l.s4 1966171168
    %v992 = vunpack.c.0.s8 %v991
    %v993 = vlaneseq
    %v994 = vshrl.u32 %v993, 7
    %v995 = vsub.s32 %v992, %v994
    %v996 = vrot.slane %v980, %v995
    %v998 = vunpack.c.l.s4 1966171168
    %v999 = vunpack.c.0.s8 %v998
    %v1000 = vlaneseq
    %v1001 = vshrl.u32 %v1000, 7
    %v1002 = vsub.s32 %v999, %v1001
    %v1003 = vrot.slane %v981, %v1002
    %v1005 = vunpack.c.l.s4 1966171168
    %v1006 = vunpack.c.0.s8 %v1005
    %v1007 = vlaneseq
    %v1008 = vshrl.u32 %v1007, 7
    %v1009 = vsub.s32 %v1006, %v1008
    %v1010 = vrot.slane %v982, %v1009
    %v1011 = vcombine.low %v989, %v996
    %v1012 = vcombine.low %v1003, %v1010
    %v1014 = vunpack.c.l.s4 1966171168
    %v1015 = vunpack.c.0.s8 %v1014
    %v1016 = vlaneseq
    %v1017 = vshrl.u32 %v1016, 7
    %v1018 = vsub.s32 %v1015, %v1017
    %v1019 = vrot.slane %v1011, %v1018
    %v1021 = vunpack.c.l.s4 1966171168
    %v1022 = vunpack.c.0.s8 %v1021
    %v1023 = vlaneseq
    %v1024 = vshrl.u32 %v1023, 7
    %v1025 = vsub.s32 %v1022, %v1024
    %v1026 = vrot.slane %v1012, %v1025
    %v1027 = vcombine.low %v1019, %v1026
    %v1028 = vcombine.low %v936, %v937
    %v1029 = vcombine.low %v938, %v939
    %v1030 = vcombine.low %v940, %v941
    %v1031 = vcombine.low %v942, %v943
    %v1033 = vunpack.c.l.s4 1966171168
    %v1034 = vunpack.c.0.s8 %v1033
    %v1035 = vlaneseq
    %v1036 = vshrl.u32 %v1035, 7
    %v1037 = vsub.s32 %v1034, %v1036
    %v1038 = vrot.slane %v1028, %v1037
    %v1040 = vunpack.c.l.s4 1966171168
    %v1041 = vunpack.c.0.s8 %v1040
    %v1042 = vlaneseq
    %v1043 = vshrl.u32 %v1042, 7
    %v1044 = vsub.s32 %v1041, %v1043
    %v1045 = vrot.slane %v1029, %v1044
    %v1047 = vunpack.c.l.s4 1966171168
    %v1048 = vunpack.c.0.s8 %v1047
    %v1049 = vlaneseq
    %v1050 = vshrl.u32 %v1049, 7
    %v1051 = vsub.s32 %v1048, %v1050
    %v1052 = vrot.slane %v1030, %v1051
    %v1054 = vunpack.c.l.s4 1966171168
    %v1055 = vunpack.c.0.s8 %v1054
    %v1056 = vlaneseq
    %v1057 = vshrl.u32 %v1056, 7
    %v1058 = vsub.s32 %v1055, %v1057
    %v1059 = vrot.slane %v1031, %v1058
    %v1060 = vcombine.low %v1038, %v1045
    %v1061 = vcombine.low %v1052, %v1059
    %v1063 = vunpack.c.l.s4 1966171168
    %v1064 = vunpack.c.0.s8 %v1063
    %v1065 = vlaneseq
    %v1066 = vshrl.u32 %v1065, 7
    %v1067 = vsub.s32 %v1064, %v1066
    %v1068 = vrot.slane %v1060, %v1067
    %v1070 = vunpack.c.l.s4 1966171168
    %v1071 = vunpack.c.0.s8 %v1070
    %v1072 = vlaneseq
    %v1073 = vshrl.u32 %v1072, 7
    %v1074 = vsub.s32 %v1071, %v1073
    %v1075 = vrot.slane %v1061, %v1074
    %v1076 = vcombine.low %v1068, %v1075
    %v1078 = vunpack.c.l.s4 1966171168
    %v1079 = vunpack.c.0.s8 %v1078
    %v1080 = vlaneseq
    %v1081 = vshrl.u32 %v1080, 7
    %v1082 = vsub.s32 %v1079, %v1081
    %v1083 = vrot.slane %v944, %v1082
    %v1085 = vunpack.c.l.s4 1966171168
    %v1086 = vunpack.c.0.s8 %v1085
    %v1087 = vlaneseq
    %v1088 = vshrl.u32 %v1087, 7
    %v1089 = vsub.s32 %v1086, %v1088
    %v1090 = vrot.slane %v1083, %v1089
    %v1091 = vcombine.low %v695, %v709
    %v1092 = vcombine.low %v717, %v719
    %v1093 = vcombine.low %v702, %v716
    %v1094 = vcombine.low %v718, %v720
    %v1096 = vunpack.c.l.s4 1966171168
    %v1097 = vunpack.c.0.s8 %v1096
    %v1098 = vlaneseq
    %v1099 = vshrl.u32 %v1098, 7
    %v1100 = vsub.s32 %v1097, %v1099
    %v1101 = vrot.slane %v1091, %v1100
    %v1103 = vunpack.c.l.s4 1966171168
    %v1104 = vunpack.c.0.s8 %v1103
    %v1105 = vlaneseq
    %v1106 = vshrl.u32 %v1105, 7
    %v1107 = vsub.s32 %v1104, %v1106
    %v1108 = vrot.slane %v1092, %v1107
    %v1110 = vunpack.c.l.s4 1966171168
    %v1111 = vunpack.c.0.s8 %v1110
    %v1112 = vlaneseq
    %v1113 = vshrl.u32 %v1112, 7
    %v1114 = vsub.s32 %v1111, %v1113
    %v1115 = vrot.slane %v1093, %v1114
    %v1117 = vunpack.c.l.s4 1966171168
    %v1118 = vunpack.c.0.s8 %v1117
    %v1119 = vlaneseq
    %v1120 = vshrl.u32 %v1119, 7
    %v1121 = vsub.s32 %v1118, %v1120
    %v1122 = vrot.slane %v1094, %v1121
    %v1123 = vcombine.low %v1101, %v1108
    %v1124 = vcombine.low %v1115, %v1122
    %v1126 = vunpack.c.l.s4 1966171168
    %v1127 = vunpack.c.0.s8 %v1126
    %v1128 = vlaneseq
    %v1129 = vshrl.u32 %v1128, 7
    %v1130 = vsub.s32 %v1127, %v1129
    %v1131 = vrot.slane %v1123, %v1130
    %v1133 = vunpack.c.l.s4 1966171168
    %v1134 = vunpack.c.0.s8 %v1133
    %v1135 = vlaneseq
    %v1136 = vshrl.u32 %v1135, 7
    %v1137 = vsub.s32 %v1134, %v1136
    %v1138 = vrot.slane %v1124, %v1137
    %v1139 = vcombine.low %v1131, %v1138
    %v1140 = vcombine.low %v745, %v759
    %v1141 = vcombine.low %v767, %v769
    %v1142 = vcombine.low %v752, %v766
    %v1143 = vcombine.low %v768, %v770
    %v1145 = vunpack.c.l.s4 1966171168
    %v1146 = vunpack.c.0.s8 %v1145
    %v1147 = vlaneseq
    %v1148 = vshrl.u32 %v1147, 7
    %v1149 = vsub.s32 %v1146, %v1148
    %v1150 = vrot.slane %v1140, %v1149
    %v1152 = vunpack.c.l.s4 1966171168
    %v1153 = vunpack.c.0.s8 %v1152
    %v1154 = vlaneseq
    %v1155 = vshrl.u32 %v1154, 7
    %v1156 = vsub.s32 %v1153, %v1155
    %v1157 = vrot.slane %v1141, %v1156
    %v1159 = vunpack.c.l.s4 1966171168
    %v1160 = vunpack.c.0.s8 %v1159
    %v1161 = vlaneseq
    %v1162 = vshrl.u32 %v1161, 7
    %v1163 = vsub.s32 %v1160, %v1162
    %v1164 = vrot.slane %v1142, %v1163
    %v1166 = vunpack.c.l.s4 1966171168
    %v1167 = vunpack.c.0.s8 %v1166
    %v1168 = vlaneseq
    %v1169 = vshrl.u32 %v1168, 7
    %v1170 = vsub.s32 %v1167, %v1169
    %v1171 = vrot.slane %v1143, %v1170
    %v1172 = vcombine.low %v1150, %v1157
    %v1173 = vcombine.low %v1164, %v1171
    %v1175 = vunpack.c.l.s4 1966171168
    %v1176 = vunpack.c.0.s8 %v1175
    %v1177 = vlaneseq
    %v1178 = vshrl.u32 %v1177, 7
    %v1179 = vsub.s32 %v1176, %v1178
    %v1180 = vrot.slane %v1172, %v1179
    %v1182 = vunpack.c.l.s4 1966171168
    %v1183 = vunpack.c.0.s8 %v1182
    %v1184 = vlaneseq
    %v1185 = vshrl.u32 %v1184, 7
    %v1186 = vsub.s32 %v1183, %v1185
    %v1187 = vrot.slane %v1173, %v1186
    %v1188 = vcombine.low %v1180, %v1187
    %v1190 = vunpack.c.l.s4 1966171168
    %v1191 = vunpack.c.0.s8 %v1190
    %v1192 = vlaneseq
    %v1193 = vshrl.u32 %v1192, 7
    %v1194 = vsub.s32 %v1191, %v1193
    %v1195 = vrot.slane %v795, %v1194
    %v1197 = vunpack.c.l.s4 1966171168
    %v1198 = vunpack.c.0.s8 %v1197
    %v1199 = vlaneseq
    %v1200 = vshrl.u32 %v1199, 7
    %v1201 = vsub.s32 %v1198, %v1200
    %v1202 = vrot.slane %v1195, %v1201
    %1203 = vrot.lane.b32.xlu0 %v1139, 68
    %v1204 = vpop.permute.xlu0 %1203
    %1205 = vrot.lane.b32.xlu0 %v1188, 68
    %v1206 = vpop.permute.xlu0 %1205
    %1207 = vrot.lane.b32.xlu0 %v1202, 68
    %v1208 = vpop.permute.xlu0 %1207
    %v1209 = vsel %vm548, %v1027, 0
    %v1211 = vsel %vm548, %v1076, 0
    %v1213 = vsel %vm548, %v1090, 0
    %v1215 = vsel %vm548, %v1204, 0
    %v1217 = vsel %vm548, %v1206, 0
    %v1219 = vsel %vm548, %v1208, 0
    %1221 = vmatprep.subr.mxu0 0.0
    %1222 = vmatpush1.xpose.msra.mxu0 %v1215
    %1223 = vmatprep.subr.mxu0 0.0
    %1224 = vmatpush1.xpose.msra.mxu0 %v1217
    %1225 = vmatprep.subr.mxu0 0.0
    %1226 = vmatpush1.xpose.msra.mxu0 %v1219
    %1227 = vmatprep.subr.mxu0 0.0
    %1228 = vmatpush1.xpose.msra.mxu0 0.0
    %1229 = vmatprep.subr.mxu0 0.0
    %1230 = vmatpush1.xpose.msra.mxu0 0.0
    %1231 = vmatprep.subr.mxu0 0.0
    %1232 = vmatpush1.xpose.msra.mxu0 0.0
    %1233 = vmatprep.subr.mxu0 0.0
    %1234 = vmatpush1.xpose.msra.mxu0 0.0
    %1235 = vmatprep.subr.mxu0 0.0
    %1236 = vmatpush1.xpose.msra.mxu0 0.0
    %1237 = vmatprep.subr.mxu0 0.0
    %1238 = vmatpush1.xpose.msra.mxu0 0.0
    %1239 = vmatprep.subr.mxu0 0.0
    %1240 = vmatpush1.xpose.msra.mxu0 0.0
    %1241 = vmatprep.subr.mxu0 0.0
    %1242 = vmatpush1.xpose.msra.mxu0 0.0
    %1243 = vmatprep.subr.mxu0 0.0
    %1244 = vmatpush1.xpose.msra.mxu0 0.0
    %1245 = vmatprep.subr.mxu0 0.0
    %1246 = vmatpush1.xpose.msra.mxu0 0.0
    %1247 = vmatprep.subr.mxu0 0.0
    %1248 = vmatpush1.xpose.msra.mxu0 0.0
    %1249 = vmatprep.subr.mxu0 0.0
    %1250 = vmatpush1.xpose.msra.mxu0 0.0
    %1251 = vmatprep.subr.mxu0 0.0
    %1252 = vmatpush1.xpose.msra.mxu0 0.0
    %1253 = vmatprep.subr.mxu0 0.0
    %1254 = vmatpush1.xpose.msra.mxu0 0.0
    %1255 = vmatprep.subr.mxu0 0.0
    %1256 = vmatpush1.xpose.msra.mxu0 0.0
    %1257 = vmatprep.subr.mxu0 0.0
    %1258 = vmatpush1.xpose.msra.mxu0 0.0
    %1259 = vmatprep.subr.mxu0 0.0
    %1260 = vmatpush1.xpose.msra.mxu0 0.0
    %1261 = vmatprep.subr.mxu0 0.0
    %1262 = vmatpush1.xpose.msra.mxu0 0.0
    %1263 = vmatprep.subr.mxu0 0.0
    %1264 = vmatpush1.xpose.msra.mxu0 0.0
    %1265 = vmatprep.subr.mxu0 0.0
    %1266 = vmatpush1.xpose.msra.mxu0 0.0
    %1267 = vmatprep.subr.mxu0 0.0
    %1268 = vmatpush1.xpose.msra.mxu0 0.0
    %1269 = vmatprep.subr.mxu0 0.0
    %1270 = vmatpush1.xpose.msra.mxu0 0.0
    %1271 = vmatprep.subr.mxu0 0.0
    %1272 = vmatpush1.xpose.msra.mxu0 0.0
    %1273 = vmatprep.subr.mxu0 0.0
    %1274 = vmatpush1.xpose.msra.mxu0 0.0
    %1275 = vmatprep.subr.mxu0 0.0
    %1276 = vmatpush1.xpose.msra.mxu0 0.0
    %1277 = vmatprep.subr.mxu0 0.0
    %1278 = vmatpush1.xpose.msra.mxu0 0.0
    %1279 = vmatprep.subr.mxu0 0.0
    %1280 = vmatpush1.xpose.msra.mxu0 0.0
    %1281 = vmatprep.subr.mxu0 0.0
    %1282 = vmatpush1.xpose.msra.mxu0 0.0
    %1283 = vmatprep.subr.mxu0 0.0
    %1284 = vmatpush1.xpose.msra.mxu0 0.0
    %1285 = vmatprep.mubr.f32.mxu0 0.0
    %1286 = vmatmul.mubr.f32.gmra.mrb[0].mxu0 %v1209
    %v1287 = vpop.f32.mrb[0].mxu0
    %v1288 = vadd.f32 0.0, %v1287
    %v1289 = vpop.f32.mrb[0].mxu0
    %1290 = vmatprep.mubr.f32.mxu0 0.0
    %1291 = vmatmul.mubr.f32.gmra.mrb[0].mxu0 %v1211
    %v1292 = vpop.f32.mrb[0].mxu0
    %v1293 = vadd.f32 0.0, %v1292
    %v1294 = vpop.f32.mrb[0].mxu0
    %1295 = vmatprep.mubr.f32.mxu0 0.0
    %1296 = vmatmul.mubr.f32.gmra.mrb[0].mxu0 %v1213
    %v1297 = vpop.f32.mrb[0].mxu0
    %v1298 = vadd.f32 0.0, %v1297
    %v1299 = vpop.f32.mrb[0].mxu0
    %1300 = vdwg.mxu0
    %v1318 = vcombine.low %v945, %v946
    %v1319 = vcombine.low %v947, %v948
    %v1320 = vcombine.low %v949, %v950
    %v1321 = vcombine.low %v951, %v952
    %v1323 = vunpack.c.l.s4 1966171168
    %v1324 = vunpack.c.0.s8 %v1323
    %v1325 = vlaneseq
    %v1326 = vshrl.u32 %v1325, 7
    %v1327 = vsub.s32 %v1324, %v1326
    %v1328 = vrot.slane %v1318, %v1327
    %v1330 = vunpack.c.l.s4 1966171168
    %v1331 = vunpack.c.0.s8 %v1330
    %v1332 = vlaneseq
    %v1333 = vshrl.u32 %v1332, 7
    %v1334 = vsub.s32 %v1331, %v1333
    %v1335 = vrot.slane %v1319, %v1334
    %v1337 = vunpack.c.l.s4 1966171168
    %v1338 = vunpack.c.0.s8 %v1337
    %v1339 = vlaneseq
    %v1340 = vshrl.u32 %v1339, 7
    %v1341 = vsub.s32 %v1338, %v1340
    %v1342 = vrot.slane %v1320, %v1341
    %v1344 = vunpack.c.l.s4 1966171168
    %v1345 = vunpack.c.0.s8 %v1344
    %v1346 = vlaneseq
    %v1347 = vshrl.u32 %v1346, 7
    %v1348 = vsub.s32 %v1345, %v1347
    %v1349 = vrot.slane %v1321, %v1348
    %v1350 = vcombine.low %v1328, %v1335
    %v1351 = vcombine.low %v1342, %v1349
    %v1353 = vunpack.c.l.s4 1966171168
    %v1354 = vunpack.c.0.s8 %v1353
    %v1355 = vlaneseq
    %v1356 = vshrl.u32 %v1355, 7
    %v1357 = vsub.s32 %v1354, %v1356
    %v1358 = vrot.slane %v1350, %v1357
    %v1360 = vunpack.c.l.s4 1966171168
    %v1361 = vunpack.c.0.s8 %v1360
    %v1362 = vlaneseq
    %v1363 = vshrl.u32 %v1362, 7
    %v1364 = vsub.s32 %v1361, %v1363
    %v1365 = vrot.slane %v1351, %v1364
    %v1366 = vcombine.low %v1358, %v1365
    %v1367 = vcombine.low %v953, %v954
    %v1368 = vcombine.low %v955, %v956
    %v1369 = vcombine.low %v957, %v958
    %v1370 = vcombine.low %v959, %v960
    %v1372 = vunpack.c.l.s4 1966171168
    %v1373 = vunpack.c.0.s8 %v1372
    %v1374 = vlaneseq
    %v1375 = vshrl.u32 %v1374, 7
    %v1376 = vsub.s32 %v1373, %v1375
    %v1377 = vrot.slane %v1367, %v1376
    %v1379 = vunpack.c.l.s4 1966171168
    %v1380 = vunpack.c.0.s8 %v1379
    %v1381 = vlaneseq
    %v1382 = vshrl.u32 %v1381, 7
    %v1383 = vsub.s32 %v1380, %v1382
    %v1384 = vrot.slane %v1368, %v1383
    %v1386 = vunpack.c.l.s4 1966171168
    %v1387 = vunpack.c.0.s8 %v1386
    %v1388 = vlaneseq
    %v1389 = vshrl.u32 %v1388, 7
    %v1390 = vsub.s32 %v1387, %v1389
    %v1391 = vrot.slane %v1369, %v1390
    %v1393 = vunpack.c.l.s4 1966171168
    %v1394 = vunpack.c.0.s8 %v1393
    %v1395 = vlaneseq
    %v1396 = vshrl.u32 %v1395, 7
    %v1397 = vsub.s32 %v1394, %v1396
    %v1398 = vrot.slane %v1370, %v1397
    %v1399 = vcombine.low %v1377, %v1384
    %v1400 = vcombine.low %v1391, %v1398
    %v1402 = vunpack.c.l.s4 1966171168
    %v1403 = vunpack.c.0.s8 %v1402
    %v1404 = vlaneseq
    %v1405 = vshrl.u32 %v1404, 7
    %v1406 = vsub.s32 %v1403, %v1405
    %v1407 = vrot.slane %v1399, %v1406
    %v1409 = vunpack.c.l.s4 1966171168
    %v1410 = vunpack.c.0.s8 %v1409
    %v1411 = vlaneseq
    %v1412 = vshrl.u32 %v1411, 7
    %v1413 = vsub.s32 %v1410, %v1412
    %v1414 = vrot.slane %v1400, %v1413
    %v1415 = vcombine.low %v1407, %v1414
    %v1417 = vunpack.c.l.s4 1966171168
    %v1418 = vunpack.c.0.s8 %v1417
    %v1419 = vlaneseq
    %v1420 = vshrl.u32 %v1419, 7
    %v1421 = vsub.s32 %v1418, %v1420
    %v1422 = vrot.slane %v961, %v1421
    %v1424 = vunpack.c.l.s4 1966171168
    %v1425 = vunpack.c.0.s8 %v1424
    %v1426 = vlaneseq
    %v1427 = vshrl.u32 %v1426, 7
    %v1428 = vsub.s32 %v1425, %v1427
    %v1429 = vrot.slane %v1422, %v1428
    %v1430 = vcombine.low %v809, %v817
    %v1431 = vcombine.low %v819, %v802
    %v1432 = vcombine.low %v816, %v818
    %v1433 = vcombine.low %v820, %v845
    %v1435 = vunpack.c.l.s4 1966171168
    %v1436 = vunpack.c.0.s8 %v1435
    %v1437 = vlaneseq
    %v1438 = vshrl.u32 %v1437, 7
    %v1439 = vsub.s32 %v1436, %v1438
    %v1440 = vrot.slane %v1430, %v1439
    %v1442 = vunpack.c.l.s4 1966171168
    %v1443 = vunpack.c.0.s8 %v1442
    %v1444 = vlaneseq
    %v1445 = vshrl.u32 %v1444, 7
    %v1446 = vsub.s32 %v1443, %v1445
    %v1447 = vrot.slane %v1431, %v1446
    %v1449 = vunpack.c.l.s4 1966171168
    %v1450 = vunpack.c.0.s8 %v1449
    %v1451 = vlaneseq
    %v1452 = vshrl.u32 %v1451, 7
    %v1453 = vsub.s32 %v1450, %v1452
    %v1454 = vrot.slane %v1432, %v1453
    %v1456 = vunpack.c.l.s4 1966171168
    %v1457 = vunpack.c.0.s8 %v1456
    %v1458 = vlaneseq
    %v1459 = vshrl.u32 %v1458, 7
    %v1460 = vsub.s32 %v1457, %v1459
    %v1461 = vrot.slane %v1433, %v1460
    %v1462 = vcombine.low %v1440, %v1447
    %v1463 = vcombine.low %v1454, %v1461
    %v1465 = vunpack.c.l.s4 1966171168
    %v1466 = vunpack.c.0.s8 %v1465
    %v1467 = vlaneseq
    %v1468 = vshrl.u32 %v1467, 7
    %v1469 = vsub.s32 %v1466, %v1468
    %v1470 = vrot.slane %v1462, %v1469
    %v1472 = vunpack.c.l.s4 1966171168
    %v1473 = vunpack.c.0.s8 %v1472
    %v1474 = vlaneseq
    %v1475 = vshrl.u32 %v1474, 7
    %v1476 = vsub.s32 %v1473, %v1475
    %v1477 = vrot.slane %v1463, %v1476
    %v1478 = vcombine.low %v1470, %v1477
    %v1479 = vcombine.low %v859, %v867
    %v1480 = vcombine.low %v869, %v852
    %v1481 = vcombine.low %v866, %v868
    %v1482 = vcombine.low %v870, %v886
    %v1484 = vunpack.c.l.s4 1966171168
    %v1485 = vunpack.c.0.s8 %v1484
    %v1486 = vlaneseq
    %v1487 = vshrl.u32 %v1486, 7
    %v1488 = vsub.s32 %v1485, %v1487
    %v1489 = vrot.slane %v1479, %v1488
    %v1491 = vunpack.c.l.s4 1966171168
    %v1492 = vunpack.c.0.s8 %v1491
    %v1493 = vlaneseq
    %v1494 = vshrl.u32 %v1493, 7
    %v1495 = vsub.s32 %v1492, %v1494
    %v1496 = vrot.slane %v1480, %v1495
    %v1498 = vunpack.c.l.s4 1966171168
    %v1499 = vunpack.c.0.s8 %v1498
    %v1500 = vlaneseq
    %v1501 = vshrl.u32 %v1500, 7
    %v1502 = vsub.s32 %v1499, %v1501
    %v1503 = vrot.slane %v1481, %v1502
    %v1505 = vunpack.c.l.s4 1966171168
    %v1506 = vunpack.c.0.s8 %v1505
    %v1507 = vlaneseq
    %v1508 = vshrl.u32 %v1507, 7
    %v1509 = vsub.s32 %v1506, %v1508
    %v1510 = vrot.slane %v1482, %v1509
    %v1511 = vcombine.low %v1489, %v1496
    %v1512 = vcombine.low %v1503, %v1510
    %v1514 = vunpack.c.l.s4 1966171168
    %v1515 = vunpack.c.0.s8 %v1514
    %v1516 = vlaneseq
    %v1517 = vshrl.u32 %v1516, 7
    %v1518 = vsub.s32 %v1515, %v1517
    %v1519 = vrot.slane %v1511, %v1518
    %v1521 = vunpack.c.l.s4 1966171168
    %v1522 = vunpack.c.0.s8 %v1521
    %v1523 = vlaneseq
    %v1524 = vshrl.u32 %v1523, 7
    %v1525 = vsub.s32 %v1522, %v1524
    %v1526 = vrot.slane %v1512, %v1525
    %v1527 = vcombine.low %v1519, %v1526
    %v1529 = vunpack.c.l.s4 1966171168
    %v1530 = vunpack.c.0.s8 %v1529
    %v1531 = vlaneseq
    %v1532 = vshrl.u32 %v1531, 7
    %v1533 = vsub.s32 %v1530, %v1532
    %v1534 = vrot.slane %v893, %v1533
    %v1536 = vunpack.c.l.s4 1966171168
    %v1537 = vunpack.c.0.s8 %v1536
    %v1538 = vlaneseq
    %v1539 = vshrl.u32 %v1538, 7
    %v1540 = vsub.s32 %v1537, %v1539
    %v1541 = vrot.slane %v1534, %v1540
    %1542 = vrot.lane.b32.xlu0 %v1478, 68
    %v1543 = vpop.permute.xlu0 %1542
    %1544 = vrot.lane.b32.xlu0 %v1527, 68
    %v1545 = vpop.permute.xlu0 %1544
    %1546 = vrot.lane.b32.xlu0 %v1541, 68
    %v1547 = vpop.permute.xlu0 %1546
    %v1548 = vsel %vm548, %v1366, 0
    %v1550 = vsel %vm548, %v1415, 0
    %v1552 = vsel %vm548, %v1429, 0
    %v1554 = vsel %vm548, %v1543, 0
    %v1556 = vsel %vm548, %v1545, 0
    %v1558 = vsel %vm548, %v1547, 0
    %1560 = vmatprep.subr.mxu0 0.0
    %1561 = vmatpush1.xpose.msra.mxu0 %v1554
    %1562 = vmatprep.subr.mxu0 0.0
    %1563 = vmatpush1.xpose.msra.mxu0 %v1556
    %1564 = vmatprep.subr.mxu0 0.0
    %1565 = vmatpush1.xpose.msra.mxu0 %v1558
    %1566 = vmatprep.subr.mxu0 0.0
    %1567 = vmatpush1.xpose.msra.mxu0 0.0
    %1568 = vmatprep.subr.mxu0 0.0
    %1569 = vmatpush1.xpose.msra.mxu0 0.0
    %1570 = vmatprep.subr.mxu0 0.0
    %1571 = vmatpush1.xpose.msra.mxu0 0.0
    %1572 = vmatprep.subr.mxu0 0.0
    %1573 = vmatpush1.xpose.msra.mxu0 0.0
    %1574 = vmatprep.subr.mxu0 0.0
    %1575 = vmatpush1.xpose.msra.mxu0 0.0
    %1576 = vmatprep.subr.mxu0 0.0
    %1577 = vmatpush1.xpose.msra.mxu0 0.0
    %1578 = vmatprep.subr.mxu0 0.0
    %1579 = vmatpush1.xpose.msra.mxu0 0.0
    %1580 = vmatprep.subr.mxu0 0.0
    %1581 = vmatpush1.xpose.msra.mxu0 0.0
    %1582 = vmatprep.subr.mxu0 0.0
    %1583 = vmatpush1.xpose.msra.mxu0 0.0
    %1584 = vmatprep.subr.mxu0 0.0
    %1585 = vmatpush1.xpose.msra.mxu0 0.0
    %1586 = vmatprep.subr.mxu0 0.0
    %1587 = vmatpush1.xpose.msra.mxu0 0.0
    %1588 = vmatprep.subr.mxu0 0.0
    %1589 = vmatpush1.xpose.msra.mxu0 0.0
    %1590 = vmatprep.subr.mxu0 0.0
    %1591 = vmatpush1.xpose.msra.mxu0 0.0
    %1592 = vmatprep.subr.mxu0 0.0
    %1593 = vmatpush1.xpose.msra.mxu0 0.0
    %1594 = vmatprep.subr.mxu0 0.0
    %1595 = vmatpush1.xpose.msra.mxu0 0.0
    %1596 = vmatprep.subr.mxu0 0.0
    %1597 = vmatpush1.xpose.msra.mxu0 0.0
    %1598 = vmatprep.subr.mxu0 0.0
    %1599 = vmatpush1.xpose.msra.mxu0 0.0
    %1600 = vmatprep.subr.mxu0 0.0
    %1601 = vmatpush1.xpose.msra.mxu0 0.0
    %1602 = vmatprep.subr.mxu0 0.0
    %1603 = vmatpush1.xpose.msra.mxu0 0.0
    %1604 = vmatprep.subr.mxu0 0.0
    %1605 = vmatpush1.xpose.msra.mxu0 0.0
    %1606 = vmatprep.subr.mxu0 0.0
    %1607 = vmatpush1.xpose.msra.mxu0 0.0
    %1608 = vmatprep.subr.mxu0 0.0
    %1609 = vmatpush1.xpose.msra.mxu0 0.0
    %1610 = vmatprep.subr.mxu0 0.0
    %1611 = vmatpush1.xpose.msra.mxu0 0.0
    %1612 = vmatprep.subr.mxu0 0.0
    %1613 = vmatpush1.xpose.msra.mxu0 0.0
    %1614 = vmatprep.subr.mxu0 0.0
    %1615 = vmatpush1.xpose.msra.mxu0 0.0
    %1616 = vmatprep.subr.mxu0 0.0
    %1617 = vmatpush1.xpose.msra.mxu0 0.0
    %1618 = vmatprep.subr.mxu0 0.0
    %1619 = vmatpush1.xpose.msra.mxu0 0.0
    %1620 = vmatprep.subr.mxu0 0.0
    %1621 = vmatpush1.xpose.msra.mxu0 0.0
    %1622 = vmatprep.subr.mxu0 0.0
    %1623 = vmatpush1.xpose.msra.mxu0 0.0
    %1624 = vmatprep.mubr.f32.mxu0 0.0
    %1625 = vmatmul.mubr.f32.gmra.mrb[0].mxu0 %v1548
    %v1626 = vpop.f32.mrb[0].mxu0
    %v1627 = vadd.f32 0.0, %v1626
    %v1628 = vpop.f32.mrb[0].mxu0
    %1629 = vmatprep.mubr.f32.mxu0 0.0
    %1630 = vmatmul.mubr.f32.gmra.mrb[0].mxu0 %v1550
    %v1631 = vpop.f32.mrb[0].mxu0
    %v1632 = vadd.f32 0.0, %v1631
    %v1633 = vpop.f32.mrb[0].mxu0
    %1634 = vmatprep.mubr.f32.mxu0 0.0
    %1635 = vmatmul.mubr.f32.gmra.mrb[0].mxu0 %v1552
    %v1636 = vpop.f32.mrb[0].mxu0
    %v1637 = vadd.f32 0.0, %v1636
    %v1638 = vpop.f32.mrb[0].mxu0
    %1639 = vdwg.mxu0
    %vm1640 = vcmask 138240
    %v1641 = vsel %vm1640, %v1288, -inf
    %1642 = vmax.xlane.f32.xlu0 %v1641
    %v1643 = vpop.xlane.xlu0 %1642
    %v1644 = vsel %vm1640, %v1293, -inf
    %1645 = vmax.xlane.f32.xlu0 %v1644
    %v1646 = vpop.xlane.xlu0 %1645
    %vm1647 = vcmask 131072
    %v1648 = vsel %vm1647, %v1298, -inf
    %1649 = vmax.xlane.f32.xlu0 %v1648
    %v1650 = vpop.xlane.xlu0 %1649
    %v1651 = vsel %vm1640, %v1627, -inf
    %1652 = vmax.xlane.f32.xlu0 %v1651
    %v1653 = vpop.xlane.xlu0 %1652
    %v1654 = vsel %vm1640, %v1632, -inf
    %1655 = vmax.xlane.f32.xlu0 %v1654
    %v1656 = vpop.xlane.xlu0 %1655
    %v1657 = vsel %vm1647, %v1637, -inf
    %1658 = vmax.xlane.f32.xlu0 %v1657
    %v1659 = vpop.xlane.xlu0 %1658
    %v1660 = vsub.f32 %v1288, %v1643
    %v1661 = vsub.f32 %v1293, %v1646
    %v1662 = vsub.f32 %v1298, %v1650
    %v1663 = vsub.f32 %v1627, %v1653
    %v1664 = vsub.f32 %v1632, %v1656
    %v1665 = vsub.f32 %v1637, %v1659
    %v1666 = vmul.f32 %v1660, 1.442695
    %v1667 = vpow.pop %v1666
    %v1668 = vmul.f32 %v1661, 1.442695
    %v1669 = vpow.pop %v1668
    %v1670 = vmul.f32 %v1662, 1.442695
    %v1671 = vpow.pop %v1670
    %v1672 = vmul.f32 %v1663, 1.442695
    %v1673 = vpow.pop %v1672
    %v1674 = vmul.f32 %v1664, 1.442695
    %v1675 = vpow.pop %v1674
    %v1676 = vmul.f32 %v1665, 1.442695
    %v1677 = vpow.pop %v1676
    %v1678 = vsel %vm1640, %v1667, 0.0
    %1679 = vadd.xlane.f32.xlu0 %v1678
    %v1680 = vpop.xlane.xlu0 %1679
    %v1681 = vsel %vm1640, %v1669, 0.0
    %1682 = vadd.xlane.f32.xlu0 %v1681
    %v1683 = vpop.xlane.xlu0 %1682
    %v1684 = vsel %vm1647, %v1671, 0.0
    %1685 = vadd.xlane.f32.xlu0 %v1684
    %v1686 = vpop.xlane.xlu0 %1685
    %v1687 = vsel %vm1640, %v1673, 0.0
    %1688 = vadd.xlane.f32.xlu0 %v1687
    %v1689 = vpop.xlane.xlu0 %1688
    %v1690 = vsel %vm1640, %v1675, 0.0
    %1691 = vadd.xlane.f32.xlu0 %v1690
    %v1692 = vpop.xlane.xlu0 %1691
    %v1693 = vsel %vm1647, %v1677, 0.0
    %1694 = vadd.xlane.f32.xlu0 %v1693
    %v1695 = vpop.xlane.xlu0 %1694
    %v1696 = vrcp.pop %v1680
    %v1697 = vrcp.pop %v1683
    %v1698 = vrcp.pop %v1686
    %v1699 = vrcp.pop %v1689
    %v1700 = vrcp.pop %v1692
    %v1701 = vrcp.pop %v1695
    %v1702 = vmul.f32 %v1667, %v1696
    %v1703 = vmul.f32 %v1669, %v1697
    %v1704 = vmul.f32 %v1671, %v1698
    %v1705 = vmul.f32 %v1673, %v1699
    %v1706 = vmul.f32 %v1675, %v1700
    %v1707 = vmul.f32 %v1677, %v1701
    %v1708 = vcombine.high %v1101, %v1108
    %v1709 = vcombine.high %v1115, %v1122
    %v1711 = vunpack.c.l.s4 1966171168
    %v1712 = vunpack.c.0.s8 %v1711
    %v1713 = vlaneseq
    %v1714 = vshrl.u32 %v1713, 7
    %v1715 = vsub.s32 %v1712, %v1714
    %v1716 = vrot.slane %v1708, %v1715
    %v1718 = vunpack.c.l.s4 1966171168
    %v1719 = vunpack.c.0.s8 %v1718
    %v1720 = vlaneseq
    %v1721 = vshrl.u32 %v1720, 7
    %v1722 = vsub.s32 %v1719, %v1721
    %v1723 = vrot.slane %v1709, %v1722
    %v1724 = vcombine.low %v1716, %v1723
    %v1725 = vcombine.high %v1150, %v1157
    %v1726 = vcombine.high %v1164, %v1171
    %v1728 = vunpack.c.l.s4 1966171168
    %v1729 = vunpack.c.0.s8 %v1728
    %v1730 = vlaneseq
    %v1731 = vshrl.u32 %v1730, 7
    %v1732 = vsub.s32 %v1729, %v1731
    %v1733 = vrot.slane %v1725, %v1732
    %v1735 = vunpack.c.l.s4 1966171168
    %v1736 = vunpack.c.0.s8 %v1735
    %v1737 = vlaneseq
    %v1738 = vshrl.u32 %v1737, 7
    %v1739 = vsub.s32 %v1736, %v1738
    %v1740 = vrot.slane %v1726, %v1739
    %v1741 = vcombine.low %v1733, %v1740
    %v1742 = vcombine.high %v1195, %v1195
    %v1744 = vunpack.c.l.s4 1966171168
    %v1745 = vunpack.c.0.s8 %v1744
    %v1746 = vlaneseq
    %v1747 = vshrl.u32 %v1746, 7
    %v1748 = vsub.s32 %v1745, %v1747
    %v1749 = vrot.slane %v1742, %v1748
    %1750 = vrot.lane.b32.xlu0 %v1139, 8
    %v1751 = vpop.permute.xlu0 %1750
    %1752 = vrot.lane.b32.xlu0 %v1724, 8
    %v1753 = vpop.permute.xlu0 %1752
    %1754 = vrot.lane.b32.xlu0 %v1188, 8
    %v1755 = vpop.permute.xlu0 %1754
    %1756 = vrot.lane.b32.xlu0 %v1741, 8
    %v1757 = vpop.permute.xlu0 %1756
    %1758 = vrot.lane.b32.xlu0 %v1202, 8
    %v1759 = vpop.permute.xlu0 %1758
    %1760 = vrot.lane.b32.xlu0 %v1749, 8
    %v1761 = vpop.permute.xlu0 %1760
    %vm1762 = vcmask 64512
    %v1763 = vsel %vm1762, %v1751, %v1753
    %v1764 = vsel %vm1762, %v1755, %v1757
    %v1765 = vsel %vm1762, %v1759, %v1761
    %v1769 = vsel %vm1640, %v1702, 0
    %v1772 = vsel %vm1640, %v1703, 0
    %v1775 = vsel %vm1640, %v1704, 0
    %vm1777 = vcmask 1040384
    %v1778 = vsel %vm1777, %v1765, 0
    %1780 = vmatprep.subr.mxu0 0.0
    %1781 = vmatpush1.msra.mxu0 %v1763
    %1782 = vmatprep.subr.mxu0 0.0
    %1783 = vmatpush1.msra.mxu0 %v1764
    %1784 = vmatprep.subr.mxu0 0.0
    %1785 = vmatpush1.msra.mxu0 %v1778
    %1786 = vmatprep.subr.mxu0 0.0
    %1787 = vmatpush1.msra.mxu0 0.0
    %1788 = vmatprep.subr.mxu0 0.0
    %1789 = vmatpush1.msra.mxu0 0.0
    %1790 = vmatprep.subr.mxu0 0.0
    %1791 = vmatpush1.msra.mxu0 0.0
    %1792 = vmatprep.subr.mxu0 0.0
    %1793 = vmatpush1.msra.mxu0 0.0
    %1794 = vmatprep.subr.mxu0 0.0
    %1795 = vmatpush1.msra.mxu0 0.0
    %1796 = vmatprep.subr.mxu0 0.0
    %1797 = vmatpush1.msra.mxu0 0.0
    %1798 = vmatprep.subr.mxu0 0.0
    %1799 = vmatpush1.msra.mxu0 0.0
    %1800 = vmatprep.subr.mxu0 0.0
    %1801 = vmatpush1.msra.mxu0 0.0
    %1802 = vmatprep.subr.mxu0 0.0
    %1803 = vmatpush1.msra.mxu0 0.0
    %1804 = vmatprep.subr.mxu0 0.0
    %1805 = vmatpush1.msra.mxu0 0.0
    %1806 = vmatprep.subr.mxu0 0.0
    %1807 = vmatpush1.msra.mxu0 0.0
    %1808 = vmatprep.subr.mxu0 0.0
    %1809 = vmatpush1.msra.mxu0 0.0
    %1810 = vmatprep.subr.mxu0 0.0
    %1811 = vmatpush1.msra.mxu0 0.0
    %1812 = vmatprep.subr.mxu0 0.0
    %1813 = vmatpush1.msra.mxu0 0.0
    %1814 = vmatprep.subr.mxu0 0.0
    %1815 = vmatpush1.msra.mxu0 0.0
    %1816 = vmatprep.subr.mxu0 0.0
    %1817 = vmatpush1.msra.mxu0 0.0
    %1818 = vmatprep.subr.mxu0 0.0
    %1819 = vmatpush1.msra.mxu0 0.0
    %1820 = vmatprep.subr.mxu0 0.0
    %1821 = vmatpush1.msra.mxu0 0.0
    %1822 = vmatprep.subr.mxu0 0.0
    %1823 = vmatpush1.msra.mxu0 0.0
    %1824 = vmatprep.subr.mxu0 0.0
    %1825 = vmatpush1.msra.mxu0 0.0
    %1826 = vmatprep.subr.mxu0 0.0
    %1827 = vmatpush1.msra.mxu0 0.0
    %1828 = vmatprep.subr.mxu0 0.0
    %1829 = vmatpush1.msra.mxu0 0.0
    %1830 = vmatprep.subr.mxu0 0.0
    %1831 = vmatpush1.msra.mxu0 0.0
    %1832 = vmatprep.subr.mxu0 0.0
    %1833 = vmatpush1.msra.mxu0 0.0
    %1834 = vmatprep.subr.mxu0 0.0
    %1835 = vmatpush1.msra.mxu0 0.0
    %1836 = vmatprep.subr.mxu0 0.0
    %1837 = vmatpush1.msra.mxu0 0.0
    %1838 = vmatprep.subr.mxu0 0.0
    %1839 = vmatpush1.msra.mxu0 0.0
    %1840 = vmatprep.subr.mxu0 0.0
    %1841 = vmatpush1.msra.mxu0 0.0
    %1842 = vmatprep.subr.mxu0 0.0
    %1843 = vmatpush1.msra.mxu0 0.0
    %1844 = vmatprep.mubr.f32.mxu0 0.0
    %1845 = vmatmul.mubr.f32.gmra.mrb[0].mxu0 %v1769
    %v1846 = vpop.f32.mrb[0].mxu0
    %v1847 = vadd.f32 0.0, %v1846
    %v1848 = vpop.f32.mrb[0].mxu0
    %1849 = vmatprep.mubr.f32.mxu0 0.0
    %1850 = vmatmul.mubr.f32.gmra.mrb[0].mxu0 %v1772
    %v1851 = vpop.f32.mrb[0].mxu0
    %v1852 = vadd.f32 0.0, %v1851
    %v1853 = vpop.f32.mrb[0].mxu0
    %1854 = vmatprep.mubr.f32.mxu0 0.0
    %1855 = vmatmul.mubr.f32.gmra.mrb[0].mxu0 %v1775
    %v1856 = vpop.f32.mrb[0].mxu0
    %v1857 = vadd.f32 0.0, %v1856
    %v1858 = vpop.f32.mrb[0].mxu0
    %1859 = vdwg.mxu0
    %v1860 = vcombine.high %v1440, %v1447
    %v1861 = vcombine.high %v1454, %v1461
    %v1863 = vunpack.c.l.s4 1966171168
    %v1864 = vunpack.c.0.s8 %v1863
    %v1865 = vlaneseq
    %v1866 = vshrl.u32 %v1865, 7
    %v1867 = vsub.s32 %v1864, %v1866
    %v1868 = vrot.slane %v1860, %v1867
    %v1870 = vunpack.c.l.s4 1966171168
    %v1871 = vunpack.c.0.s8 %v1870
    %v1872 = vlaneseq
    %v1873 = vshrl.u32 %v1872, 7
    %v1874 = vsub.s32 %v1871, %v1873
    %v1875 = vrot.slane %v1861, %v1874
    %v1876 = vcombine.low %v1868, %v1875
    %v1877 = vcombine.high %v1489, %v1496
    %v1878 = vcombine.high %v1503, %v1510
    %v1880 = vunpack.c.l.s4 1966171168
    %v1881 = vunpack.c.0.s8 %v1880
    %v1882 = vlaneseq
    %v1883 = vshrl.u32 %v1882, 7
    %v1884 = vsub.s32 %v1881, %v1883
    %v1885 = vrot.slane %v1877, %v1884
    %v1887 = vunpack.c.l.s4 1966171168
    %v1888 = vunpack.c.0.s8 %v1887
    %v1889 = vlaneseq
    %v1890 = vshrl.u32 %v1889, 7
    %v1891 = vsub.s32 %v1888, %v1890
    %v1892 = vrot.slane %v1878, %v1891
    %v1893 = vcombine.low %v1885, %v1892
    %v1894 = vcombine.high %v1534, %v1534
    %v1896 = vunpack.c.l.s4 1966171168
    %v1897 = vunpack.c.0.s8 %v1896
    %v1898 = vlaneseq
    %v1899 = vshrl.u32 %v1898, 7
    %v1900 = vsub.s32 %v1897, %v1899
    %v1901 = vrot.slane %v1894, %v1900
    %1902 = vrot.lane.b32.xlu0 %v1478, 8
    %v1903 = vpop.permute.xlu0 %1902
    %1904 = vrot.lane.b32.xlu0 %v1876, 8
    %v1905 = vpop.permute.xlu0 %1904
    %1906 = vrot.lane.b32.xlu0 %v1527, 8
    %v1907 = vpop.permute.xlu0 %1906
    %1908 = vrot.lane.b32.xlu0 %v1893, 8
    %v1909 = vpop.permute.xlu0 %1908
    %1910 = vrot.lane.b32.xlu0 %v1541, 8
    %v1911 = vpop.permute.xlu0 %1910
    %1912 = vrot.lane.b32.xlu0 %v1901, 8
    %v1913 = vpop.permute.xlu0 %1912
    %v1914 = vsel %vm1762, %v1903, %v1905
    %v1915 = vsel %vm1762, %v1907, %v1909
    %v1916 = vsel %vm1762, %v1911, %v1913
    %v1920 = vsel %vm1640, %v1705, 0
    %v1923 = vsel %vm1640, %v1706, 0
    %v1926 = vsel %vm1640, %v1707, 0
    %v1928 = vsel %vm1777, %v1916, 0
    %1930 = vmatprep.subr.mxu0 0.0
    %1931 = vmatpush1.msra.mxu0 %v1914
    %1932 = vmatprep.subr.mxu0 0.0
    %1933 = vmatpush1.msra.mxu0 %v1915
    %1934 = vmatprep.subr.mxu0 0.0
    %1935 = vmatpush1.msra.mxu0 %v1928
    %1936 = vmatprep.subr.mxu0 0.0
    %1937 = vmatpush1.msra.mxu0 0.0
    %1938 = vmatprep.subr.mxu0 0.0
    %1939 = vmatpush1.msra.mxu0 0.0
    %1940 = vmatprep.subr.mxu0 0.0
    %1941 = vmatpush1.msra.mxu0 0.0
    %1942 = vmatprep.subr.mxu0 0.0
    %1943 = vmatpush1.msra.mxu0 0.0
    %1944 = vmatprep.subr.mxu0 0.0
    %1945 = vmatpush1.msra.mxu0 0.0
    %1946 = vmatprep.subr.mxu0 0.0
    %1947 = vmatpush1.msra.mxu0 0.0
    %1948 = vmatprep.subr.mxu0 0.0
    %1949 = vmatpush1.msra.mxu0 0.0
    %1950 = vmatprep.subr.mxu0 0.0
    %1951 = vmatpush1.msra.mxu0 0.0
    %1952 = vmatprep.subr.mxu0 0.0
    %1953 = vmatpush1.msra.mxu0 0.0
    %1954 = vmatprep.subr.mxu0 0.0
    %1955 = vmatpush1.msra.mxu0 0.0
    %1956 = vmatprep.subr.mxu0 0.0
    %1957 = vmatpush1.msra.mxu0 0.0
    %1958 = vmatprep.subr.mxu0 0.0
    %1959 = vmatpush1.msra.mxu0 0.0
    %1960 = vmatprep.subr.mxu0 0.0
    %1961 = vmatpush1.msra.mxu0 0.0
    %1962 = vmatprep.subr.mxu0 0.0
    %1963 = vmatpush1.msra.mxu0 0.0
    %1964 = vmatprep.subr.mxu0 0.0
    %1965 = vmatpush1.msra.mxu0 0.0
    %1966 = vmatprep.subr.mxu0 0.0
    %1967 = vmatpush1.msra.mxu0 0.0
    %1968 = vmatprep.subr.mxu0 0.0
    %1969 = vmatpush1.msra.mxu0 0.0
    %1970 = vmatprep.subr.mxu0 0.0
    %1971 = vmatpush1.msra.mxu0 0.0
    %1972 = vmatprep.subr.mxu0 0.0
    %1973 = vmatpush1.msra.mxu0 0.0
    %1974 = vmatprep.subr.mxu0 0.0
    %1975 = vmatpush1.msra.mxu0 0.0
    %1976 = vmatprep.subr.mxu0 0.0
    %1977 = vmatpush1.msra.mxu0 0.0
    %1978 = vmatprep.subr.mxu0 0.0
    %1979 = vmatpush1.msra.mxu0 0.0
    %1980 = vmatprep.subr.mxu0 0.0
    %1981 = vmatpush1.msra.mxu0 0.0
    %1982 = vmatprep.subr.mxu0 0.0
    %1983 = vmatpush1.msra.mxu0 0.0
    %1984 = vmatprep.subr.mxu0 0.0
    %1985 = vmatpush1.msra.mxu0 0.0
    %1986 = vmatprep.subr.mxu0 0.0
    %1987 = vmatpush1.msra.mxu0 0.0
    %1988 = vmatprep.subr.mxu0 0.0
    %1989 = vmatpush1.msra.mxu0 0.0
    %1990 = vmatprep.subr.mxu0 0.0
    %1991 = vmatpush1.msra.mxu0 0.0
    %1992 = vmatprep.subr.mxu0 0.0
    %1993 = vmatpush1.msra.mxu0 0.0
    %1994 = vmatprep.mubr.f32.mxu0 0.0
    %1995 = vmatmul.mubr.f32.gmra.mrb[0].mxu0 %v1920
    %v1996 = vpop.f32.mrb[0].mxu0
    %v1997 = vadd.f32 0.0, %v1996
    %v1998 = vpop.f32.mrb[0].mxu0
    %1999 = vmatprep.mubr.f32.mxu0 0.0
    %2000 = vmatmul.mubr.f32.gmra.mrb[0].mxu0 %v1923
    %v2001 = vpop.f32.mrb[0].mxu0
    %v2002 = vadd.f32 0.0, %v2001
    %v2003 = vpop.f32.mrb[0].mxu0
    %2004 = vmatprep.mubr.f32.mxu0 0.0
    %2005 = vmatmul.mubr.f32.gmra.mrb[0].mxu0 %v1926
    %v2006 = vpop.f32.mrb[0].mxu0
    %v2007 = vadd.f32 0.0, %v2006
    %v2008 = vpop.f32.mrb[0].mxu0
    %2009 = vdwg.mxu0
    %v2016 = vcombine.high %v1847, %v1847
    %v2018 = vunpack.c.l.s4 1966171168
    %v2019 = vunpack.c.0.s8 %v2018
    %v2020 = vlaneseq
    %v2021 = vshrl.u32 %v2020, 7
    %v2022 = vsub.s32 %v2019, %v2021
    %v2023 = vrot.slane %v1847, %v2022
    %v2025 = vunpack.c.l.s4 1966171168
    %v2026 = vunpack.c.0.s8 %v2025
    %v2027 = vlaneseq
    %v2028 = vshrl.u32 %v2027, 7
    %v2029 = vsub.s32 %v2026, %v2028
    %v2030 = vrot.slane %v2016, %v2029
    %v2031 = vcombine.high %v2023, %v2023
    %v2032 = vcombine.high %v2030, %v2030
    %v2034 = vunpack.c.l.s4 1966171168
    %v2035 = vunpack.c.0.s8 %v2034
    %v2036 = vlaneseq
    %v2037 = vshrl.u32 %v2036, 7
    %v2038 = vsub.s32 %v2035, %v2037
    %v2039 = vrot.slane %v2023, %v2038
    %v2041 = vunpack.c.l.s4 1966171168
    %v2042 = vunpack.c.0.s8 %v2041
    %v2043 = vlaneseq
    %v2044 = vshrl.u32 %v2043, 7
    %v2045 = vsub.s32 %v2042, %v2044
    %v2046 = vrot.slane %v2030, %v2045
    %v2048 = vunpack.c.l.s4 1966171168
    %v2049 = vunpack.c.0.s8 %v2048
    %v2050 = vlaneseq
    %v2051 = vshrl.u32 %v2050, 7
    %v2052 = vsub.s32 %v2049, %v2051
    %v2053 = vrot.slane %v2031, %v2052
    %v2055 = vunpack.c.l.s4 1966171168
    %v2056 = vunpack.c.0.s8 %v2055
    %v2057 = vlaneseq
    %v2058 = vshrl.u32 %v2057, 7
    %v2059 = vsub.s32 %v2056, %v2058
    %v2060 = vrot.slane %v2032, %v2059
    %v2061 = vcombine.high %v2039, %v2039
    %v2062 = vcombine.high %v2046, %v2046
    %v2063 = vcombine.high %v2053, %v2053
    %v2064 = vcombine.high %v2060, %v2060
    %v2065 = vcombine.high %v1852, %v1852
    %v2067 = vunpack.c.l.s4 1966171168
    %v2068 = vunpack.c.0.s8 %v2067
    %v2069 = vlaneseq
    %v2070 = vshrl.u32 %v2069, 7
    %v2071 = vsub.s32 %v2068, %v2070
    %v2072 = vrot.slane %v1852, %v2071
    %v2074 = vunpack.c.l.s4 1966171168
    %v2075 = vunpack.c.0.s8 %v2074
    %v2076 = vlaneseq
    %v2077 = vshrl.u32 %v2076, 7
    %v2078 = vsub.s32 %v2075, %v2077
    %v2079 = vrot.slane %v2065, %v2078
    %v2080 = vcombine.high %v2072, %v2072
    %v2081 = vcombine.high %v2079, %v2079
    %v2083 = vunpack.c.l.s4 1966171168
    %v2084 = vunpack.c.0.s8 %v2083
    %v2085 = vlaneseq
    %v2086 = vshrl.u32 %v2085, 7
    %v2087 = vsub.s32 %v2084, %v2086
    %v2088 = vrot.slane %v2072, %v2087
    %v2090 = vunpack.c.l.s4 1966171168
    %v2091 = vunpack.c.0.s8 %v2090
    %v2092 = vlaneseq
    %v2093 = vshrl.u32 %v2092, 7
    %v2094 = vsub.s32 %v2091, %v2093
    %v2095 = vrot.slane %v2079, %v2094
    %v2097 = vunpack.c.l.s4 1966171168
    %v2098 = vunpack.c.0.s8 %v2097
    %v2099 = vlaneseq
    %v2100 = vshrl.u32 %v2099, 7
    %v2101 = vsub.s32 %v2098, %v2100
    %v2102 = vrot.slane %v2080, %v2101
    %v2104 = vunpack.c.l.s4 1966171168
    %v2105 = vunpack.c.0.s8 %v2104
    %v2106 = vlaneseq
    %v2107 = vshrl.u32 %v2106, 7
    %v2108 = vsub.s32 %v2105, %v2107
    %v2109 = vrot.slane %v2081, %v2108
    %v2110 = vcombine.high %v2088, %v2088
    %v2111 = vcombine.high %v2095, %v2095
    %v2112 = vcombine.high %v2102, %v2102
    %v2113 = vcombine.high %v2109, %v2109
    %v2115 = vunpack.c.l.s4 1966171168
    %v2116 = vunpack.c.0.s8 %v2115
    %v2117 = vlaneseq
    %v2118 = vshrl.u32 %v2117, 7
    %v2119 = vsub.s32 %v2116, %v2118
    %v2120 = vrot.slane %v1857, %v2119
    %v2122 = vunpack.c.l.s4 1966171168
    %v2123 = vunpack.c.0.s8 %v2122
    %v2124 = vlaneseq
    %v2125 = vshrl.u32 %v2124, 7
    %v2126 = vsub.s32 %v2123, %v2125
    %v2127 = vrot.slane %v2120, %v2126
    %v2128 = vcombine.high %v1997, %v1997
    %v2130 = vunpack.c.l.s4 1966171168
    %v2131 = vunpack.c.0.s8 %v2130
    %v2132 = vlaneseq
    %v2133 = vshrl.u32 %v2132, 7
    %v2134 = vsub.s32 %v2131, %v2133
    %v2135 = vrot.slane %v1997, %v2134
    %v2137 = vunpack.c.l.s4 1966171168
    %v2138 = vunpack.c.0.s8 %v2137
    %v2139 = vlaneseq
    %v2140 = vshrl.u32 %v2139, 7
    %v2141 = vsub.s32 %v2138, %v2140
    %v2142 = vrot.slane %v2128, %v2141
    %v2143 = vcombine.high %v2135, %v2135
    %v2144 = vcombine.high %v2142, %v2142
    %v2146 = vunpack.c.l.s4 1966171168
    %v2147 = vunpack.c.0.s8 %v2146
    %v2148 = vlaneseq
    %v2149 = vshrl.u32 %v2148, 7
    %v2150 = vsub.s32 %v2147, %v2149
    %v2151 = vrot.slane %v2135, %v2150
    %v2153 = vunpack.c.l.s4 1966171168
    %v2154 = vunpack.c.0.s8 %v2153
    %v2155 = vlaneseq
    %v2156 = vshrl.u32 %v2155, 7
    %v2157 = vsub.s32 %v2154, %v2156
    %v2158 = vrot.slane %v2142, %v2157
    %v2160 = vunpack.c.l.s4 1966171168
    %v2161 = vunpack.c.0.s8 %v2160
    %v2162 = vlaneseq
    %v2163 = vshrl.u32 %v2162, 7
    %v2164 = vsub.s32 %v2161, %v2163
    %v2165 = vrot.slane %v2143, %v2164
    %v2167 = vunpack.c.l.s4 1966171168
    %v2168 = vunpack.c.0.s8 %v2167
    %v2169 = vlaneseq
    %v2170 = vshrl.u32 %v2169, 7
    %v2171 = vsub.s32 %v2168, %v2170
    %v2172 = vrot.slane %v2144, %v2171
    %v2173 = vcombine.high %v2151, %v2151
    %v2174 = vcombine.high %v2158, %v2158
    %v2175 = vcombine.high %v2165, %v2165
    %v2176 = vcombine.high %v2172, %v2172
    %v2177 = vcombine.high %v2002, %v2002
    %v2179 = vunpack.c.l.s4 1966171168
    %v2180 = vunpack.c.0.s8 %v2179
    %v2181 = vlaneseq
    %v2182 = vshrl.u32 %v2181, 7
    %v2183 = vsub.s32 %v2180, %v2182
    %v2184 = vrot.slane %v2002, %v2183
    %v2186 = vunpack.c.l.s4 1966171168
    %v2187 = vunpack.c.0.s8 %v2186
    %v2188 = vlaneseq
    %v2189 = vshrl.u32 %v2188, 7
    %v2190 = vsub.s32 %v2187, %v2189
    %v2191 = vrot.slane %v2177, %v2190
    %v2192 = vcombine.high %v2184, %v2184
    %v2193 = vcombine.high %v2191, %v2191
    %v2195 = vunpack.c.l.s4 1966171168
    %v2196 = vunpack.c.0.s8 %v2195
    %v2197 = vlaneseq
    %v2198 = vshrl.u32 %v2197, 7
    %v2199 = vsub.s32 %v2196, %v2198
    %v2200 = vrot.slane %v2184, %v2199
    %v2202 = vunpack.c.l.s4 1966171168
    %v2203 = vunpack.c.0.s8 %v2202
    %v2204 = vlaneseq
    %v2205 = vshrl.u32 %v2204, 7
    %v2206 = vsub.s32 %v2203, %v2205
    %v2207 = vrot.slane %v2191, %v2206
    %v2209 = vunpack.c.l.s4 1966171168
    %v2210 = vunpack.c.0.s8 %v2209
    %v2211 = vlaneseq
    %v2212 = vshrl.u32 %v2211, 7
    %v2213 = vsub.s32 %v2210, %v2212
    %v2214 = vrot.slane %v2192, %v2213
    %v2216 = vunpack.c.l.s4 1966171168
    %v2217 = vunpack.c.0.s8 %v2216
    %v2218 = vlaneseq
    %v2219 = vshrl.u32 %v2218, 7
    %v2220 = vsub.s32 %v2217, %v2219
    %v2221 = vrot.slane %v2193, %v2220
    %v2222 = vcombine.high %v2200, %v2200
    %v2223 = vcombine.high %v2207, %v2207
    %v2224 = vcombine.high %v2214, %v2214
    %v2225 = vcombine.high %v2221, %v2221
    %v2227 = vunpack.c.l.s4 1966171168
    %v2228 = vunpack.c.0.s8 %v2227
    %v2229 = vlaneseq
    %v2230 = vshrl.u32 %v2229, 7
    %v2231 = vsub.s32 %v2228, %v2230
    %v2232 = vrot.slane %v2007, %v2231
    %v2234 = vunpack.c.l.s4 1966171168
    %v2235 = vunpack.c.0.s8 %v2234
    %v2236 = vlaneseq
    %v2237 = vshrl.u32 %v2236, 7
    %v2238 = vsub.s32 %v2235, %v2237
    %v2239 = vrot.slane %v2232, %v2238
    %v2240 = vld [vmem:[%s3] sm:$0xff]
    %v2241 = vld [vmem:[%s3 + $0x8] sm:$0xff]
    %v2242 = vld [vmem:[%s3 + $0x10] sm:$0xff]
    %v2243 = vld [vmem:[%s3 + $0x18] sm:$0xff]
    %v2244 = vld [vmem:[%s3 + $0x20] sm:$0xff]
    %v2245 = vld [vmem:[%s3 + $0x28] sm:$0xff]
    %v2246 = vld [vmem:[%s3 + $0x30] sm:$0xff]
    %v2247 = vld [vmem:[%s3 + $0x38] sm:$0xf]
    %v2248 = vld [vmem:[%s4] sm:$0x1]
    %v2250 = vlaneseq
    %v2251 = vshrl.u32 %v2250, 7
    %v2252 = vsub.s32 0, %v2251
    %v2253 = vrot.slane %v2248, %v2252
    %v2255 = vcombine.low %v2039, %v2053
    %v2256 = vcombine.low %v2061, %v2063
    %v2257 = vcombine.low %v2046, %v2060
    %v2258 = vcombine.low %v2062, %v2064
    %v2260 = vunpack.c.l.s4 1966171168
    %v2261 = vunpack.c.0.s8 %v2260
    %v2262 = vlaneseq
    %v2263 = vshrl.u32 %v2262, 7
    %v2264 = vsub.s32 %v2261, %v2263
    %v2265 = vrot.slane %v2255, %v2264
    %v2267 = vunpack.c.l.s4 1966171168
    %v2268 = vunpack.c.0.s8 %v2267
    %v2269 = vlaneseq
    %v2270 = vshrl.u32 %v2269, 7
    %v2271 = vsub.s32 %v2268, %v2270
    %v2272 = vrot.slane %v2256, %v2271
    %v2274 = vunpack.c.l.s4 1966171168
    %v2275 = vunpack.c.0.s8 %v2274
    %v2276 = vlaneseq
    %v2277 = vshrl.u32 %v2276, 7
    %v2278 = vsub.s32 %v2275, %v2277
    %v2279 = vrot.slane %v2257, %v2278
    %v2281 = vunpack.c.l.s4 1966171168
    %v2282 = vunpack.c.0.s8 %v2281
    %v2283 = vlaneseq
    %v2284 = vshrl.u32 %v2283, 7
    %v2285 = vsub.s32 %v2282, %v2284
    %v2286 = vrot.slane %v2258, %v2285
    %v2287 = vcombine.low %v2265, %v2272
    %v2288 = vcombine.low %v2279, %v2286
    %v2290 = vunpack.c.l.s4 1966171168
    %v2291 = vunpack.c.0.s8 %v2290
    %v2292 = vlaneseq
    %v2293 = vshrl.u32 %v2292, 7
    %v2294 = vsub.s32 %v2291, %v2293
    %v2295 = vrot.slane %v2287, %v2294
    %v2297 = vunpack.c.l.s4 1966171168
    %v2298 = vunpack.c.0.s8 %v2297
    %v2299 = vlaneseq
    %v2300 = vshrl.u32 %v2299, 7
    %v2301 = vsub.s32 %v2298, %v2300
    %v2302 = vrot.slane %v2288, %v2301
    %v2303 = vcombine.low %v2295, %v2302
    %v2304 = vcombine.low %v2088, %v2102
    %v2305 = vcombine.low %v2110, %v2112
    %v2306 = vcombine.low %v2095, %v2109
    %v2307 = vcombine.low %v2111, %v2113
    %v2309 = vunpack.c.l.s4 1966171168
    %v2310 = vunpack.c.0.s8 %v2309
    %v2311 = vlaneseq
    %v2312 = vshrl.u32 %v2311, 7
    %v2313 = vsub.s32 %v2310, %v2312
    %v2314 = vrot.slane %v2304, %v2313
    %v2316 = vunpack.c.l.s4 1966171168
    %v2317 = vunpack.c.0.s8 %v2316
    %v2318 = vlaneseq
    %v2319 = vshrl.u32 %v2318, 7
    %v2320 = vsub.s32 %v2317, %v2319
    %v2321 = vrot.slane %v2305, %v2320
    %v2323 = vunpack.c.l.s4 1966171168
    %v2324 = vunpack.c.0.s8 %v2323
    %v2325 = vlaneseq
    %v2326 = vshrl.u32 %v2325, 7
    %v2327 = vsub.s32 %v2324, %v2326
    %v2328 = vrot.slane %v2306, %v2327
    %v2330 = vunpack.c.l.s4 1966171168
    %v2331 = vunpack.c.0.s8 %v2330
    %v2332 = vlaneseq
    %v2333 = vshrl.u32 %v2332, 7
    %v2334 = vsub.s32 %v2331, %v2333
    %v2335 = vrot.slane %v2307, %v2334
    %v2336 = vcombine.low %v2314, %v2321
    %v2337 = vcombine.low %v2328, %v2335
    %v2339 = vunpack.c.l.s4 1966171168
    %v2340 = vunpack.c.0.s8 %v2339
    %v2341 = vlaneseq
    %v2342 = vshrl.u32 %v2341, 7
    %v2343 = vsub.s32 %v2340, %v2342
    %v2344 = vrot.slane %v2336, %v2343
    %v2346 = vunpack.c.l.s4 1966171168
    %v2347 = vunpack.c.0.s8 %v2346
    %v2348 = vlaneseq
    %v2349 = vshrl.u32 %v2348, 7
    %v2350 = vsub.s32 %v2347, %v2349
    %v2351 = vrot.slane %v2337, %v2350
    %v2352 = vcombine.low %v2344, %v2351
    %v2353 = vcombine.low %v2127, %v2151
    %v2354 = vcombine.low %v2165, %v2173
    %v2355 = vcombine.low %v2175, %v2158
    %v2356 = vcombine.low %v2172, %v2174
    %v2358 = vunpack.c.l.s4 1966171168
    %v2359 = vunpack.c.0.s8 %v2358
    %v2360 = vlaneseq
    %v2361 = vshrl.u32 %v2360, 7
    %v2362 = vsub.s32 %v2359, %v2361
    %v2363 = vrot.slane %v2353, %v2362
    %v2365 = vunpack.c.l.s4 1966171168
    %v2366 = vunpack.c.0.s8 %v2365
    %v2367 = vlaneseq
    %v2368 = vshrl.u32 %v2367, 7
    %v2369 = vsub.s32 %v2366, %v2368
    %v2370 = vrot.slane %v2354, %v2369
    %v2372 = vunpack.c.l.s4 1966171168
    %v2373 = vunpack.c.0.s8 %v2372
    %v2374 = vlaneseq
    %v2375 = vshrl.u32 %v2374, 7
    %v2376 = vsub.s32 %v2373, %v2375
    %v2377 = vrot.slane %v2355, %v2376
    %v2379 = vunpack.c.l.s4 1966171168
    %v2380 = vunpack.c.0.s8 %v2379
    %v2381 = vlaneseq
    %v2382 = vshrl.u32 %v2381, 7
    %v2383 = vsub.s32 %v2380, %v2382
    %v2384 = vrot.slane %v2356, %v2383
    %v2385 = vcombine.low %v2363, %v2370
    %v2386 = vcombine.low %v2377, %v2384
    %v2388 = vunpack.c.l.s4 1966171168
    %v2389 = vunpack.c.0.s8 %v2388
    %v2390 = vlaneseq
    %v2391 = vshrl.u32 %v2390, 7
    %v2392 = vsub.s32 %v2389, %v2391
    %v2393 = vrot.slane %v2385, %v2392
    %v2395 = vunpack.c.l.s4 1966171168
    %v2396 = vunpack.c.0.s8 %v2395
    %v2397 = vlaneseq
    %v2398 = vshrl.u32 %v2397, 7
    %v2399 = vsub.s32 %v2396, %v2398
    %v2400 = vrot.slane %v2386, %v2399
    %v2401 = vcombine.low %v2393, %v2400
    %v2402 = vcombine.low %v2176, %v2200
    %v2403 = vcombine.low %v2214, %v2222
    %v2404 = vcombine.low %v2224, %v2207
    %v2405 = vcombine.low %v2221, %v2223
    %v2407 = vunpack.c.l.s4 1966171168
    %v2408 = vunpack.c.0.s8 %v2407
    %v2409 = vlaneseq
    %v2410 = vshrl.u32 %v2409, 7
    %v2411 = vsub.s32 %v2408, %v2410
    %v2412 = vrot.slane %v2402, %v2411
    %v2414 = vunpack.c.l.s4 1966171168
    %v2415 = vunpack.c.0.s8 %v2414
    %v2416 = vlaneseq
    %v2417 = vshrl.u32 %v2416, 7
    %v2418 = vsub.s32 %v2415, %v2417
    %v2419 = vrot.slane %v2403, %v2418
    %v2421 = vunpack.c.l.s4 1966171168
    %v2422 = vunpack.c.0.s8 %v2421
    %v2423 = vlaneseq
    %v2424 = vshrl.u32 %v2423, 7
    %v2425 = vsub.s32 %v2422, %v2424
    %v2426 = vrot.slane %v2404, %v2425
    %v2428 = vunpack.c.l.s4 1966171168
    %v2429 = vunpack.c.0.s8 %v2428
    %v2430 = vlaneseq
    %v2431 = vshrl.u32 %v2430, 7
    %v2432 = vsub.s32 %v2429, %v2431
    %v2433 = vrot.slane %v2405, %v2432
    %v2434 = vcombine.low %v2412, %v2419
    %v2435 = vcombine.low %v2426, %v2433
    %v2437 = vunpack.c.l.s4 1966171168
    %v2438 = vunpack.c.0.s8 %v2437
    %v2439 = vlaneseq
    %v2440 = vshrl.u32 %v2439, 7
    %v2441 = vsub.s32 %v2438, %v2440
    %v2442 = vrot.slane %v2434, %v2441
    %v2444 = vunpack.c.l.s4 1966171168
    %v2445 = vunpack.c.0.s8 %v2444
    %v2446 = vlaneseq
    %v2447 = vshrl.u32 %v2446, 7
    %v2448 = vsub.s32 %v2445, %v2447
    %v2449 = vrot.slane %v2435, %v2448
    %v2450 = vcombine.low %v2442, %v2449
    %v2451 = vcombine.low %v2225, %v2239
    %v2453 = vunpack.c.l.s4 1966171168
    %v2454 = vunpack.c.0.s8 %v2453
    %v2455 = vlaneseq
    %v2456 = vshrl.u32 %v2455, 7
    %v2457 = vsub.s32 %v2454, %v2456
    %v2458 = vrot.slane %v2451, %v2457
    %v2460 = vunpack.c.l.s4 1966171168
    %v2461 = vunpack.c.0.s8 %v2460
    %v2462 = vlaneseq
    %v2463 = vshrl.u32 %v2462, 7
    %v2464 = vsub.s32 %v2461, %v2463
    %v2465 = vrot.slane %v2458, %v2464
    %v2466 = vsel %vm548, %v2303, 0
    %v2468 = vsel %vm548, %v2352, 0
    %v2470 = vsel %vm548, %v2401, 0
    %v2472 = vsel %vm548, %v2450, 0
    %v2474 = vsel %vm548, %v2465, 0
    %v2477 = vsel %vm559, %v2247, 0
    %2479 = vmatprep.subr.mxu0 0.0
    %2480 = vmatpush1.msra.mxu0 %v2240
    %2481 = vmatprep.subr.mxu0 0.0
    %2482 = vmatpush1.msra.mxu0 %v2241
    %2483 = vmatprep.subr.mxu0 0.0
    %2484 = vmatpush1.msra.mxu0 %v2242
    %2485 = vmatprep.subr.mxu0 0.0
    %2486 = vmatpush1.msra.mxu0 %v2243
    %2487 = vmatprep.subr.mxu0 0.0
    %2488 = vmatpush1.msra.mxu0 %v2244
    %2489 = vmatprep.subr.mxu0 0.0
    %2490 = vmatpush1.msra.mxu0 %v2245
    %2491 = vmatprep.subr.mxu0 0.0
    %2492 = vmatpush1.msra.mxu0 %v2246
    %2493 = vmatprep.subr.mxu0 0.0
    %2494 = vmatpush1.msra.mxu0 %v2477
    %2495 = vmatprep.subr.mxu0 0.0
    %2496 = vmatpush1.msra.mxu0 0.0
    %2497 = vmatprep.subr.mxu0 0.0
    %2498 = vmatpush1.msra.mxu0 0.0
    %2499 = vmatprep.subr.mxu0 0.0
    %2500 = vmatpush1.msra.mxu0 0.0
    %2501 = vmatprep.subr.mxu0 0.0
    %2502 = vmatpush1.msra.mxu0 0.0
    %2503 = vmatprep.subr.mxu0 0.0
    %2504 = vmatpush1.msra.mxu0 0.0
    %2505 = vmatprep.subr.mxu0 0.0
    %2506 = vmatpush1.msra.mxu0 0.0
    %2507 = vmatprep.subr.mxu0 0.0
    %2508 = vmatpush1.msra.mxu0 0.0
    %2509 = vmatprep.subr.mxu0 0.0
    %2510 = vmatpush1.msra.mxu0 0.0
    %2511 = vmatprep.subr.mxu0 0.0
    %2512 = vmatpush1.msra.mxu0 0.0
    %2513 = vmatprep.subr.mxu0 0.0
    %2514 = vmatpush1.msra.mxu0 0.0
    %2515 = vmatprep.subr.mxu0 0.0
    %2516 = vmatpush1.msra.mxu0 0.0
    %2517 = vmatprep.subr.mxu0 0.0
    %2518 = vmatpush1.msra.mxu0 0.0
    %2519 = vmatprep.subr.mxu0 0.0
    %2520 = vmatpush1.msra.mxu0 0.0
    %2521 = vmatprep.subr.mxu0 0.0
    %2522 = vmatpush1.msra.mxu0 0.0
    %2523 = vmatprep.subr.mxu0 0.0
    %2524 = vmatpush1.msra.mxu0 0.0
    %2525 = vmatprep.subr.mxu0 0.0
    %2526 = vmatpush1.msra.mxu0 0.0
    %2527 = vmatprep.subr.mxu0 0.0
    %2528 = vmatpush1.msra.mxu0 0.0
    %2529 = vmatprep.subr.mxu0 0.0
    %2530 = vmatpush1.msra.mxu0 0.0
    %2531 = vmatprep.subr.mxu0 0.0
    %2532 = vmatpush1.msra.mxu0 0.0
    %2533 = vmatprep.subr.mxu0 0.0
    %2534 = vmatpush1.msra.mxu0 0.0
    %2535 = vmatprep.subr.mxu0 0.0
    %2536 = vmatpush1.msra.mxu0 0.0
    %2537 = vmatprep.subr.mxu0 0.0
    %2538 = vmatpush1.msra.mxu0 0.0
    %2539 = vmatprep.subr.mxu0 0.0
    %2540 = vmatpush1.msra.mxu0 0.0
    %2541 = vmatprep.subr.mxu0 0.0
    %2542 = vmatpush1.msra.mxu0 0.0
    %2543 = vmatprep.mubr.f32.mxu0 0.0
    %2544 = vmatmul.mubr.f32.gmra.mrb[0].mxu0 %v2466
    %v2545 = vpop.f32.mrb[0].mxu0
    %v2546 = vadd.f32 %v2253, %v2545
    %v2547 = vpop.f32.mrb[0].mxu0
    %2548 = vmatprep.mubr.f32.mxu0 0.0
    %2549 = vmatmul.mubr.f32.gmra.mrb[0].mxu0 %v2468
    %v2550 = vpop.f32.mrb[0].mxu0
    %v2551 = vadd.f32 %v2253, %v2550
    %v2552 = vpop.f32.mrb[0].mxu0
    %2553 = vmatprep.mubr.f32.mxu0 0.0
    %2554 = vmatmul.mubr.f32.gmra.mrb[0].mxu0 %v2470
    %v2555 = vpop.f32.mrb[0].mxu0
    %v2556 = vadd.f32 %v2253, %v2555
    %v2557 = vpop.f32.mrb[0].mxu0
    %2558 = vmatprep.mubr.f32.mxu0 0.0
    %2559 = vmatmul.mubr.f32.gmra.mrb[0].mxu0 %v2472
    %v2560 = vpop.f32.mrb[0].mxu0
    %v2561 = vadd.f32 %v2253, %v2560
    %v2562 = vpop.f32.mrb[0].mxu0
    %2563 = vmatprep.mubr.f32.mxu0 0.0
    %2564 = vmatmul.mubr.f32.gmra.mrb[0].mxu0 %v2474
    %v2565 = vpop.f32.mrb[0].mxu0
    %v2566 = vadd.f32 %v2253, %v2565
    %v2567 = vpop.f32.mrb[0].mxu0
    %2568 = vdwg.mxu0
    %v2569 = vld [vmem:[%s5] sm:$0x3]
    %v2575 = vcombine.high %v2546, %v2546
    %v2577 = vunpack.c.l.s4 1966171168
    %v2578 = vunpack.c.0.s8 %v2577
    %v2579 = vlaneseq
    %v2580 = vshrl.u32 %v2579, 7
    %v2581 = vsub.s32 %v2578, %v2580
    %v2582 = vrot.slane %v2546, %v2581
    %v2584 = vunpack.c.l.s4 1966171168
    %v2585 = vunpack.c.0.s8 %v2584
    %v2586 = vlaneseq
    %v2587 = vshrl.u32 %v2586, 7
    %v2588 = vsub.s32 %v2585, %v2587
    %v2589 = vrot.slane %v2575, %v2588
    %v2590 = vcombine.high %v2582, %v2582
    %v2591 = vcombine.high %v2589, %v2589
    %v2593 = vunpack.c.l.s4 1966171168
    %v2594 = vunpack.c.0.s8 %v2593
    %v2595 = vlaneseq
    %v2596 = vshrl.u32 %v2595, 7
    %v2597 = vsub.s32 %v2594, %v2596
    %v2598 = vrot.slane %v2582, %v2597
    %v2600 = vunpack.c.l.s4 1966171168
    %v2601 = vunpack.c.0.s8 %v2600
    %v2602 = vlaneseq
    %v2603 = vshrl.u32 %v2602, 7
    %v2604 = vsub.s32 %v2601, %v2603
    %v2605 = vrot.slane %v2589, %v2604
    %v2607 = vunpack.c.l.s4 1966171168
    %v2608 = vunpack.c.0.s8 %v2607
    %v2609 = vlaneseq
    %v2610 = vshrl.u32 %v2609, 7
    %v2611 = vsub.s32 %v2608, %v2610
    %v2612 = vrot.slane %v2590, %v2611
    %v2614 = vunpack.c.l.s4 1966171168
    %v2615 = vunpack.c.0.s8 %v2614
    %v2616 = vlaneseq
    %v2617 = vshrl.u32 %v2616, 7
    %v2618 = vsub.s32 %v2615, %v2617
    %v2619 = vrot.slane %v2591, %v2618
    %v2620 = vcombine.high %v2598, %v2598
    %v2621 = vcombine.high %v2605, %v2605
    %v2622 = vcombine.high %v2612, %v2612
    %v2623 = vcombine.high %v2619, %v2619
    %v2624 = vcombine.high %v2551, %v2551
    %v2626 = vunpack.c.l.s4 1966171168
    %v2627 = vunpack.c.0.s8 %v2626
    %v2628 = vlaneseq
    %v2629 = vshrl.u32 %v2628, 7
    %v2630 = vsub.s32 %v2627, %v2629
    %v2631 = vrot.slane %v2551, %v2630
    %v2633 = vunpack.c.l.s4 1966171168
    %v2634 = vunpack.c.0.s8 %v2633
    %v2635 = vlaneseq
    %v2636 = vshrl.u32 %v2635, 7
    %v2637 = vsub.s32 %v2634, %v2636
    %v2638 = vrot.slane %v2624, %v2637
    %v2639 = vcombine.high %v2631, %v2631
    %v2640 = vcombine.high %v2638, %v2638
    %v2642 = vunpack.c.l.s4 1966171168
    %v2643 = vunpack.c.0.s8 %v2642
    %v2644 = vlaneseq
    %v2645 = vshrl.u32 %v2644, 7
    %v2646 = vsub.s32 %v2643, %v2645
    %v2647 = vrot.slane %v2631, %v2646
    %v2649 = vunpack.c.l.s4 1966171168
    %v2650 = vunpack.c.0.s8 %v2649
    %v2651 = vlaneseq
    %v2652 = vshrl.u32 %v2651, 7
    %v2653 = vsub.s32 %v2650, %v2652
    %v2654 = vrot.slane %v2638, %v2653
    %v2656 = vunpack.c.l.s4 1966171168
    %v2657 = vunpack.c.0.s8 %v2656
    %v2658 = vlaneseq
    %v2659 = vshrl.u32 %v2658, 7
    %v2660 = vsub.s32 %v2657, %v2659
    %v2661 = vrot.slane %v2639, %v2660
    %v2663 = vunpack.c.l.s4 1966171168
    %v2664 = vunpack.c.0.s8 %v2663
    %v2665 = vlaneseq
    %v2666 = vshrl.u32 %v2665, 7
    %v2667 = vsub.s32 %v2664, %v2666
    %v2668 = vrot.slane %v2640, %v2667
    %v2669 = vcombine.high %v2647, %v2647
    %v2670 = vcombine.high %v2654, %v2654
    %v2671 = vcombine.high %v2661, %v2661
    %v2672 = vcombine.high %v2668, %v2668
    %v2673 = vcombine.high %v2556, %v2556
    %v2675 = vunpack.c.l.s4 1966171168
    %v2676 = vunpack.c.0.s8 %v2675
    %v2677 = vlaneseq
    %v2678 = vshrl.u32 %v2677, 7
    %v2679 = vsub.s32 %v2676, %v2678
    %v2680 = vrot.slane %v2556, %v2679
    %v2682 = vunpack.c.l.s4 1966171168
    %v2683 = vunpack.c.0.s8 %v2682
    %v2684 = vlaneseq
    %v2685 = vshrl.u32 %v2684, 7
    %v2686 = vsub.s32 %v2683, %v2685
    %v2687 = vrot.slane %v2673, %v2686
    %v2688 = vcombine.high %v2680, %v2680
    %v2689 = vcombine.high %v2687, %v2687
    %v2691 = vunpack.c.l.s4 1966171168
    %v2692 = vunpack.c.0.s8 %v2691
    %v2693 = vlaneseq
    %v2694 = vshrl.u32 %v2693, 7
    %v2695 = vsub.s32 %v2692, %v2694
    %v2696 = vrot.slane %v2680, %v2695
    %v2698 = vunpack.c.l.s4 1966171168
    %v2699 = vunpack.c.0.s8 %v2698
    %v2700 = vlaneseq
    %v2701 = vshrl.u32 %v2700, 7
    %v2702 = vsub.s32 %v2699, %v2701
    %v2703 = vrot.slane %v2687, %v2702
    %v2705 = vunpack.c.l.s4 1966171168
    %v2706 = vunpack.c.0.s8 %v2705
    %v2707 = vlaneseq
    %v2708 = vshrl.u32 %v2707, 7
    %v2709 = vsub.s32 %v2706, %v2708
    %v2710 = vrot.slane %v2688, %v2709
    %v2712 = vunpack.c.l.s4 1966171168
    %v2713 = vunpack.c.0.s8 %v2712
    %v2714 = vlaneseq
    %v2715 = vshrl.u32 %v2714, 7
    %v2716 = vsub.s32 %v2713, %v2715
    %v2717 = vrot.slane %v2689, %v2716
    %v2718 = vcombine.high %v2696, %v2696
    %v2719 = vcombine.high %v2703, %v2703
    %v2720 = vcombine.high %v2710, %v2710
    %v2721 = vcombine.high %v2717, %v2717
    %v2722 = vcombine.high %v2561, %v2561
    %v2724 = vunpack.c.l.s4 1966171168
    %v2725 = vunpack.c.0.s8 %v2724
    %v2726 = vlaneseq
    %v2727 = vshrl.u32 %v2726, 7
    %v2728 = vsub.s32 %v2725, %v2727
    %v2729 = vrot.slane %v2561, %v2728
    %v2731 = vunpack.c.l.s4 1966171168
    %v2732 = vunpack.c.0.s8 %v2731
    %v2733 = vlaneseq
    %v2734 = vshrl.u32 %v2733, 7
    %v2735 = vsub.s32 %v2732, %v2734
    %v2736 = vrot.slane %v2722, %v2735
    %v2737 = vcombine.high %v2729, %v2729
    %v2738 = vcombine.high %v2736, %v2736
    %v2740 = vunpack.c.l.s4 1966171168
    %v2741 = vunpack.c.0.s8 %v2740
    %v2742 = vlaneseq
    %v2743 = vshrl.u32 %v2742, 7
    %v2744 = vsub.s32 %v2741, %v2743
    %v2745 = vrot.slane %v2729, %v2744
    %v2747 = vunpack.c.l.s4 1966171168
    %v2748 = vunpack.c.0.s8 %v2747
    %v2749 = vlaneseq
    %v2750 = vshrl.u32 %v2749, 7
    %v2751 = vsub.s32 %v2748, %v2750
    %v2752 = vrot.slane %v2736, %v2751
    %v2754 = vunpack.c.l.s4 1966171168
    %v2755 = vunpack.c.0.s8 %v2754
    %v2756 = vlaneseq
    %v2757 = vshrl.u32 %v2756, 7
    %v2758 = vsub.s32 %v2755, %v2757
    %v2759 = vrot.slane %v2737, %v2758
    %v2761 = vunpack.c.l.s4 1966171168
    %v2762 = vunpack.c.0.s8 %v2761
    %v2763 = vlaneseq
    %v2764 = vshrl.u32 %v2763, 7
    %v2765 = vsub.s32 %v2762, %v2764
    %v2766 = vrot.slane %v2738, %v2765
    %v2767 = vcombine.high %v2745, %v2745
    %v2768 = vcombine.high %v2752, %v2752
    %v2769 = vcombine.high %v2759, %v2759
    %v2770 = vcombine.high %v2766, %v2766
    %v2772 = vunpack.c.l.s4 1966171168
    %v2773 = vunpack.c.0.s8 %v2772
    %v2774 = vlaneseq
    %v2775 = vshrl.u32 %v2774, 7
    %v2776 = vsub.s32 %v2773, %v2775
    %v2777 = vrot.slane %v2566, %v2776
    %v2778 = vcombine.high %v2777, %v2777
    %v2780 = vunpack.c.l.s4 1966171168
    %v2781 = vunpack.c.0.s8 %v2780
    %v2782 = vlaneseq
    %v2783 = vshrl.u32 %v2782, 7
    %v2784 = vsub.s32 %v2781, %v2783
    %v2785 = vrot.slane %v2777, %v2784
    %v2787 = vunpack.c.l.s4 1966171168
    %v2788 = vunpack.c.0.s8 %v2787
    %v2789 = vlaneseq
    %v2790 = vshrl.u32 %v2789, 7
    %v2791 = vsub.s32 %v2788, %v2790
    %v2792 = vrot.slane %v2778, %v2791
    %v2827 = vadd.f32 %v74, %v2598
    %v2828 = vadd.f32 %v88, %v2612
    %v2829 = vadd.f32 %v96, %v2620
    %v2830 = vadd.f32 %v98, %v2622
    %v2831 = vadd.f32 %v81, %v2605
    %v2832 = vadd.f32 %v95, %v2619
    %v2833 = vadd.f32 %v97, %v2621
    %v2834 = vadd.f32 %v99, %v2623
    %v2835 = vadd.f32 %v123, %v2647
    %v2836 = vadd.f32 %v137, %v2661
    %v2837 = vadd.f32 %v145, %v2669
    %v2838 = vadd.f32 %v147, %v2671
    %v2839 = vadd.f32 %v130, %v2654
    %v2840 = vadd.f32 %v144, %v2668
    %v2841 = vadd.f32 %v146, %v2670
    %v2842 = vadd.f32 %v148, %v2672
    %v2843 = vadd.f32 %v162, %v2696
    %v2844 = vadd.f32 %v186, %v2710
    %v2845 = vadd.f32 %v200, %v2718
    %v2846 = vadd.f32 %v208, %v2720
    %v2847 = vadd.f32 %v210, %v2703
    %v2848 = vadd.f32 %v193, %v2717
    %v2849 = vadd.f32 %v207, %v2719
    %v2850 = vadd.f32 %v209, %v2721
    %v2851 = vadd.f32 %v211, %v2745
    %v2852 = vadd.f32 %v235, %v2759
    %v2853 = vadd.f32 %v249, %v2767
    %v2854 = vadd.f32 %v257, %v2769
    %v2855 = vadd.f32 %v259, %v2752
    %v2856 = vadd.f32 %v242, %v2766
    %v2857 = vadd.f32 %v256, %v2768
    %v2858 = vadd.f32 %v258, %v2770
    %v2859 = vadd.f32 %v260, %v2785
    %v2860 = vadd.f32 %v274, %v2792
    %v2895 = vcombine.low %v2827, %v2828
    %v2896 = vcombine.low %v2829, %v2830
    %v2897 = vcombine.low %v2831, %v2832
    %v2898 = vcombine.low %v2833, %v2834
    %v2900 = vunpack.c.l.s4 1966171168
    %v2901 = vunpack.c.0.s8 %v2900
    %v2902 = vlaneseq
    %v2903 = vshrl.u32 %v2902, 7
    %v2904 = vsub.s32 %v2901, %v2903
    %v2905 = vrot.slane %v2895, %v2904
    %v2907 = vunpack.c.l.s4 1966171168
    %v2908 = vunpack.c.0.s8 %v2907
    %v2909 = vlaneseq
    %v2910 = vshrl.u32 %v2909, 7
    %v2911 = vsub.s32 %v2908, %v2910
    %v2912 = vrot.slane %v2896, %v2911
    %v2914 = vunpack.c.l.s4 1966171168
    %v2915 = vunpack.c.0.s8 %v2914
    %v2916 = vlaneseq
    %v2917 = vshrl.u32 %v2916, 7
    %v2918 = vsub.s32 %v2915, %v2917
    %v2919 = vrot.slane %v2897, %v2918
    %v2921 = vunpack.c.l.s4 1966171168
    %v2922 = vunpack.c.0.s8 %v2921
    %v2923 = vlaneseq
    %v2924 = vshrl.u32 %v2923, 7
    %v2925 = vsub.s32 %v2922, %v2924
    %v2926 = vrot.slane %v2898, %v2925
    %v2927 = vcombine.low %v2905, %v2912
    %v2928 = vcombine.low %v2919, %v2926
    %v2930 = vunpack.c.l.s4 1966171168
    %v2931 = vunpack.c.0.s8 %v2930
    %v2932 = vlaneseq
    %v2933 = vshrl.u32 %v2932, 7
    %v2934 = vsub.s32 %v2931, %v2933
    %v2935 = vrot.slane %v2927, %v2934
    %v2937 = vunpack.c.l.s4 1966171168
    %v2938 = vunpack.c.0.s8 %v2937
    %v2939 = vlaneseq
    %v2940 = vshrl.u32 %v2939, 7
    %v2941 = vsub.s32 %v2938, %v2940
    %v2942 = vrot.slane %v2928, %v2941
    %v2943 = vcombine.low %v2935, %v2942
    %v2944 = vcombine.low %v2835, %v2836
    %v2945 = vcombine.low %v2837, %v2838
    %v2946 = vcombine.low %v2839, %v2840
    %v2947 = vcombine.low %v2841, %v2842
    %v2949 = vunpack.c.l.s4 1966171168
    %v2950 = vunpack.c.0.s8 %v2949
    %v2951 = vlaneseq
    %v2952 = vshrl.u32 %v2951, 7
    %v2953 = vsub.s32 %v2950, %v2952
    %v2954 = vrot.slane %v2944, %v2953
    %v2956 = vunpack.c.l.s4 1966171168
    %v2957 = vunpack.c.0.s8 %v2956
    %v2958 = vlaneseq
    %v2959 = vshrl.u32 %v2958, 7
    %v2960 = vsub.s32 %v2957, %v2959
    %v2961 = vrot.slane %v2945, %v2960
    %v2963 = vunpack.c.l.s4 1966171168
    %v2964 = vunpack.c.0.s8 %v2963
    %v2965 = vlaneseq
    %v2966 = vshrl.u32 %v2965, 7
    %v2967 = vsub.s32 %v2964, %v2966
    %v2968 = vrot.slane %v2946, %v2967
    %v2970 = vunpack.c.l.s4 1966171168
    %v2971 = vunpack.c.0.s8 %v2970
    %v2972 = vlaneseq
    %v2973 = vshrl.u32 %v2972, 7
    %v2974 = vsub.s32 %v2971, %v2973
    %v2975 = vrot.slane %v2947, %v2974
    %v2976 = vcombine.low %v2954, %v2961
    %v2977 = vcombine.low %v2968, %v2975
    %v2979 = vunpack.c.l.s4 1966171168
    %v2980 = vunpack.c.0.s8 %v2979
    %v2981 = vlaneseq
    %v2982 = vshrl.u32 %v2981, 7
    %v2983 = vsub.s32 %v2980, %v2982
    %v2984 = vrot.slane %v2976, %v2983
    %v2986 = vunpack.c.l.s4 1966171168
    %v2987 = vunpack.c.0.s8 %v2986
    %v2988 = vlaneseq
    %v2989 = vshrl.u32 %v2988, 7
    %v2990 = vsub.s32 %v2987, %v2989
    %v2991 = vrot.slane %v2977, %v2990
    %v2992 = vcombine.low %v2984, %v2991
    %v2993 = vcombine.low %v2843, %v2844
    %v2994 = vcombine.low %v2845, %v2846
    %v2995 = vcombine.low %v2847, %v2848
    %v2996 = vcombine.low %v2849, %v2850
    %v2998 = vunpack.c.l.s4 1966171168
    %v2999 = vunpack.c.0.s8 %v2998
    %v3000 = vlaneseq
    %v3001 = vshrl.u32 %v3000, 7
    %v3002 = vsub.s32 %v2999, %v3001
    %v3003 = vrot.slane %v2993, %v3002
    %v3005 = vunpack.c.l.s4 1966171168
    %v3006 = vunpack.c.0.s8 %v3005
    %v3007 = vlaneseq
    %v3008 = vshrl.u32 %v3007, 7
    %v3009 = vsub.s32 %v3006, %v3008
    %v3010 = vrot.slane %v2994, %v3009
    %v3012 = vunpack.c.l.s4 1966171168
    %v3013 = vunpack.c.0.s8 %v3012
    %v3014 = vlaneseq
    %v3015 = vshrl.u32 %v3014, 7
    %v3016 = vsub.s32 %v3013, %v3015
    %v3017 = vrot.slane %v2995, %v3016
    %v3019 = vunpack.c.l.s4 1966171168
    %v3020 = vunpack.c.0.s8 %v3019
    %v3021 = vlaneseq
    %v3022 = vshrl.u32 %v3021, 7
    %v3023 = vsub.s32 %v3020, %v3022
    %v3024 = vrot.slane %v2996, %v3023
    %v3025 = vcombine.low %v3003, %v3010
    %v3026 = vcombine.low %v3017, %v3024
    %v3028 = vunpack.c.l.s4 1966171168
    %v3029 = vunpack.c.0.s8 %v3028
    %v3030 = vlaneseq
    %v3031 = vshrl.u32 %v3030, 7
    %v3032 = vsub.s32 %v3029, %v3031
    %v3033 = vrot.slane %v3025, %v3032
    %v3035 = vunpack.c.l.s4 1966171168
    %v3036 = vunpack.c.0.s8 %v3035
    %v3037 = vlaneseq
    %v3038 = vshrl.u32 %v3037, 7
    %v3039 = vsub.s32 %v3036, %v3038
    %v3040 = vrot.slane %v3026, %v3039
    %v3041 = vcombine.low %v3033, %v3040
    %v3042 = vcombine.low %v2851, %v2852
    %v3043 = vcombine.low %v2853, %v2854
    %v3044 = vcombine.low %v2855, %v2856
    %v3045 = vcombine.low %v2857, %v2858
    %v3047 = vunpack.c.l.s4 1966171168
    %v3048 = vunpack.c.0.s8 %v3047
    %v3049 = vlaneseq
    %v3050 = vshrl.u32 %v3049, 7
    %v3051 = vsub.s32 %v3048, %v3050
    %v3052 = vrot.slane %v3042, %v3051
    %v3054 = vunpack.c.l.s4 1966171168
    %v3055 = vunpack.c.0.s8 %v3054
    %v3056 = vlaneseq
    %v3057 = vshrl.u32 %v3056, 7
    %v3058 = vsub.s32 %v3055, %v3057
    %v3059 = vrot.slane %v3043, %v3058
    %v3061 = vunpack.c.l.s4 1966171168
    %v3062 = vunpack.c.0.s8 %v3061
    %v3063 = vlaneseq
    %v3064 = vshrl.u32 %v3063, 7
    %v3065 = vsub.s32 %v3062, %v3064
    %v3066 = vrot.slane %v3044, %v3065
    %v3068 = vunpack.c.l.s4 1966171168
    %v3069 = vunpack.c.0.s8 %v3068
    %v3070 = vlaneseq
    %v3071 = vshrl.u32 %v3070, 7
    %v3072 = vsub.s32 %v3069, %v3071
    %v3073 = vrot.slane %v3045, %v3072
    %v3074 = vcombine.low %v3052, %v3059
    %v3075 = vcombine.low %v3066, %v3073
    %v3077 = vunpack.c.l.s4 1966171168
    %v3078 = vunpack.c.0.s8 %v3077
    %v3079 = vlaneseq
    %v3080 = vshrl.u32 %v3079, 7
    %v3081 = vsub.s32 %v3078, %v3080
    %v3082 = vrot.slane %v3074, %v3081
    %v3084 = vunpack.c.l.s4 1966171168
    %v3085 = vunpack.c.0.s8 %v3084
    %v3086 = vlaneseq
    %v3087 = vshrl.u32 %v3086, 7
    %v3088 = vsub.s32 %v3085, %v3087
    %v3089 = vrot.slane %v3075, %v3088
    %v3090 = vcombine.low %v3082, %v3089
    %v3091 = vcombine.low %v2859, %v2860
    %v3093 = vunpack.c.l.s4 1966171168
    %v3094 = vunpack.c.0.s8 %v3093
    %v3095 = vlaneseq
    %v3096 = vshrl.u32 %v3095, 7
    %v3097 = vsub.s32 %v3094, %v3096
    %v3098 = vrot.slane %v3091, %v3097
    %v3100 = vunpack.c.l.s4 1966171168
    %v3101 = vunpack.c.0.s8 %v3100
    %v3102 = vlaneseq
    %v3103 = vshrl.u32 %v3102, 7
    %v3104 = vsub.s32 %v3101, %v3103
    %v3105 = vrot.slane %v3098, %v3104
    %v3111 = vsel %vm548, %v2943, 0.0
    %3112 = vadd.xlane.f32.xlu0 %v3111
    %v3113 = vpop.xlane.xlu0 %3112
    %v3114 = vsel %vm548, %v2992, 0.0
    %3115 = vadd.xlane.f32.xlu0 %v3114
    %v3116 = vpop.xlane.xlu0 %3115
    %v3117 = vsel %vm548, %v3041, 0.0
    %3118 = vadd.xlane.f32.xlu0 %v3117
    %v3119 = vpop.xlane.xlu0 %3118
    %v3120 = vsel %vm548, %v3090, 0.0
    %3121 = vadd.xlane.f32.xlu0 %v3120
    %v3122 = vpop.xlane.xlu0 %3121
    %vm3123 = vcmask 484352
    %v3124 = vsel %vm3123, %v3105, 0.0
    %3125 = vadd.xlane.f32.xlu0 %v3124
    %v3126 = vpop.xlane.xlu0 %3125
    %v3127 = vrcp.pop 60.0
    %v3128 = vmul.f32 %v3113, %v3127
    %v3129 = vmul.f32 %v3116, %v3127
    %v3130 = vmul.f32 %v3119, %v3127
    %v3131 = vmul.f32 %v3122, %v3127
    %v3132 = vmul.f32 %v3126, %v3127
    %v3138 = vlaneseq
    %v3139 = vshrl.u32 %v3138, 7
    %v3140 = vsub.s32 0, %v3139
    %v3141 = vrot.slane %v3128, %v3140
    %v3142 = vlaneseq
    %v3143 = vshrl.u32 %v3142, 7
    %v3144 = vsub.s32 1, %v3143
    %v3145 = vrot.slane %v3128, %v3144
    %v3146 = vlaneseq
    %v3147 = vshrl.u32 %v3146, 7
    %v3148 = vsub.s32 2, %v3147
    %v3149 = vrot.slane %v3128, %v3148
    %v3150 = vlaneseq
    %v3151 = vshrl.u32 %v3150, 7
    %v3152 = vsub.s32 3, %v3151
    %v3153 = vrot.slane %v3128, %v3152
    %v3154 = vlaneseq
    %v3155 = vshrl.u32 %v3154, 7
    %v3156 = vsub.s32 4, %v3155
    %v3157 = vrot.slane %v3128, %v3156
    %v3158 = vlaneseq
    %v3159 = vshrl.u32 %v3158, 7
    %v3160 = vsub.s32 5, %v3159
    %v3161 = vrot.slane %v3128, %v3160
    %v3162 = vlaneseq
    %v3163 = vshrl.u32 %v3162, 7
    %v3164 = vsub.s32 6, %v3163
    %v3165 = vrot.slane %v3128, %v3164
    %v3166 = vlaneseq
    %v3167 = vshrl.u32 %v3166, 7
    %v3168 = vsub.s32 7, %v3167
    %v3169 = vrot.slane %v3128, %v3168
    %v3170 = vlaneseq
    %v3171 = vshrl.u32 %v3170, 7
    %v3172 = vsub.s32 0, %v3171
    %v3173 = vrot.slane %v3129, %v3172
    %v3174 = vlaneseq
    %v3175 = vshrl.u32 %v3174, 7
    %v3176 = vsub.s32 1, %v3175
    %v3177 = vrot.slane %v3129, %v3176
    %v3178 = vlaneseq
    %v3179 = vshrl.u32 %v3178, 7
    %v3180 = vsub.s32 2, %v3179
    %v3181 = vrot.slane %v3129, %v3180
    %v3182 = vlaneseq
    %v3183 = vshrl.u32 %v3182, 7
    %v3184 = vsub.s32 3, %v3183
    %v3185 = vrot.slane %v3129, %v3184
    %v3186 = vlaneseq
    %v3187 = vshrl.u32 %v3186, 7
    %v3188 = vsub.s32 4, %v3187
    %v3189 = vrot.slane %v3129, %v3188
    %v3190 = vlaneseq
    %v3191 = vshrl.u32 %v3190, 7
    %v3192 = vsub.s32 5, %v3191
    %v3193 = vrot.slane %v3129, %v3192
    %v3194 = vlaneseq
    %v3195 = vshrl.u32 %v3194, 7
    %v3196 = vsub.s32 6, %v3195
    %v3197 = vrot.slane %v3129, %v3196
    %v3198 = vlaneseq
    %v3199 = vshrl.u32 %v3198, 7
    %v3200 = vsub.s32 7, %v3199
    %v3201 = vrot.slane %v3129, %v3200
    %v3202 = vlaneseq
    %v3203 = vshrl.u32 %v3202, 7
    %v3204 = vsub.s32 0, %v3203
    %v3205 = vrot.slane %v3130, %v3204
    %v3206 = vlaneseq
    %v3207 = vshrl.u32 %v3206, 7
    %v3208 = vsub.s32 1, %v3207
    %v3209 = vrot.slane %v3130, %v3208
    %v3210 = vlaneseq
    %v3211 = vshrl.u32 %v3210, 7
    %v3212 = vsub.s32 2, %v3211
    %v3213 = vrot.slane %v3130, %v3212
    %v3214 = vlaneseq
    %v3215 = vshrl.u32 %v3214, 7
    %v3216 = vsub.s32 3, %v3215
    %v3217 = vrot.slane %v3130, %v3216
    %v3218 = vlaneseq
    %v3219 = vshrl.u32 %v3218, 7
    %v3220 = vsub.s32 4, %v3219
    %v3221 = vrot.slane %v3130, %v3220
    %v3222 = vlaneseq
    %v3223 = vshrl.u32 %v3222, 7
    %v3224 = vsub.s32 5, %v3223
    %v3225 = vrot.slane %v3130, %v3224
    %v3226 = vlaneseq
    %v3227 = vshrl.u32 %v3226, 7
    %v3228 = vsub.s32 6, %v3227
    %v3229 = vrot.slane %v3130, %v3228
    %v3230 = vlaneseq
    %v3231 = vshrl.u32 %v3230, 7
    %v3232 = vsub.s32 7, %v3231
    %v3233 = vrot.slane %v3130, %v3232
    %v3234 = vlaneseq
    %v3235 = vshrl.u32 %v3234, 7
    %v3236 = vsub.s32 0, %v3235
    %v3237 = vrot.slane %v3131, %v3236
    %v3238 = vlaneseq
    %v3239 = vshrl.u32 %v3238, 7
    %v3240 = vsub.s32 1, %v3239
    %v3241 = vrot.slane %v3131, %v3240
    %v3242 = vlaneseq
    %v3243 = vshrl.u32 %v3242, 7
    %v3244 = vsub.s32 2, %v3243
    %v3245 = vrot.slane %v3131, %v3244
    %v3246 = vlaneseq
    %v3247 = vshrl.u32 %v3246, 7
    %v3248 = vsub.s32 3, %v3247
    %v3249 = vrot.slane %v3131, %v3248
    %v3250 = vlaneseq
    %v3251 = vshrl.u32 %v3250, 7
    %v3252 = vsub.s32 4, %v3251
    %v3253 = vrot.slane %v3131, %v3252
    %v3254 = vlaneseq
    %v3255 = vshrl.u32 %v3254, 7
    %v3256 = vsub.s32 5, %v3255
    %v3257 = vrot.slane %v3131, %v3256
    %v3258 = vlaneseq
    %v3259 = vshrl.u32 %v3258, 7
    %v3260 = vsub.s32 6, %v3259
    %v3261 = vrot.slane %v3131, %v3260
    %v3262 = vlaneseq
    %v3263 = vshrl.u32 %v3262, 7
    %v3264 = vsub.s32 7, %v3263
    %v3265 = vrot.slane %v3131, %v3264
    %v3266 = vlaneseq
    %v3267 = vshrl.u32 %v3266, 7
    %v3268 = vsub.s32 0, %v3267
    %v3269 = vrot.slane %v3132, %v3268
    %v3270 = vlaneseq
    %v3271 = vshrl.u32 %v3270, 7
    %v3272 = vsub.s32 1, %v3271
    %v3273 = vrot.slane %v3132, %v3272
    %v3308 = vsub.f32 %v2827, %v3141
    %v3309 = vsub.f32 %v2828, %v3145
    %v3310 = vsub.f32 %v2829, %v3149
    %v3311 = vsub.f32 %v2830, %v3153
    %v3312 = vsub.f32 %v2831, %v3157
    %v3313 = vsub.f32 %v2832, %v3161
    %v3314 = vsub.f32 %v2833, %v3165
    %v3315 = vsub.f32 %v2834, %v3169
    %v3316 = vsub.f32 %v2835, %v3173
    %v3317 = vsub.f32 %v2836, %v3177
    %v3318 = vsub.f32 %v2837, %v3181
    %v3319 = vsub.f32 %v2838, %v3185
    %v3320 = vsub.f32 %v2839, %v3189
    %v3321 = vsub.f32 %v2840, %v3193
    %v3322 = vsub.f32 %v2841, %v3197
    %v3323 = vsub.f32 %v2842, %v3201
    %v3324 = vsub.f32 %v2843, %v3205
    %v3325 = vsub.f32 %v2844, %v3209
    %v3326 = vsub.f32 %v2845, %v3213
    %v3327 = vsub.f32 %v2846, %v3217
    %v3328 = vsub.f32 %v2847, %v3221
    %v3329 = vsub.f32 %v2848, %v3225
    %v3330 = vsub.f32 %v2849, %v3229
    %v3331 = vsub.f32 %v2850, %v3233
    %v3332 = vsub.f32 %v2851, %v3237
    %v3333 = vsub.f32 %v2852, %v3241
    %v3334 = vsub.f32 %v2853, %v3245
    %v3335 = vsub.f32 %v2854, %v3249
    %v3336 = vsub.f32 %v2855, %v3253
    %v3337 = vsub.f32 %v2856, %v3257
    %v3338 = vsub.f32 %v2857, %v3261
    %v3339 = vsub.f32 %v2858, %v3265
    %v3340 = vsub.f32 %v2859, %v3269
    %v3341 = vsub.f32 %v2860, %v3273
    %v3342 = vmul.f32 %v3308, %v3308
    %v3343 = vmul.f32 %v3309, %v3309
    %v3344 = vmul.f32 %v3310, %v3310
    %v3345 = vmul.f32 %v3311, %v3311
    %v3346 = vmul.f32 %v3312, %v3312
    %v3347 = vmul.f32 %v3313, %v3313
    %v3348 = vmul.f32 %v3314, %v3314
    %v3349 = vmul.f32 %v3315, %v3315
    %v3350 = vmul.f32 %v3316, %v3316
    %v3351 = vmul.f32 %v3317, %v3317
    %v3352 = vmul.f32 %v3318, %v3318
    %v3353 = vmul.f32 %v3319, %v3319
    %v3354 = vmul.f32 %v3320, %v3320
    %v3355 = vmul.f32 %v3321, %v3321
    %v3356 = vmul.f32 %v3322, %v3322
    %v3357 = vmul.f32 %v3323, %v3323
    %v3358 = vmul.f32 %v3324, %v3324
    %v3359 = vmul.f32 %v3325, %v3325
    %v3360 = vmul.f32 %v3326, %v3326
    %v3361 = vmul.f32 %v3327, %v3327
    %v3362 = vmul.f32 %v3328, %v3328
    %v3363 = vmul.f32 %v3329, %v3329
    %v3364 = vmul.f32 %v3330, %v3330
    %v3365 = vmul.f32 %v3331, %v3331
    %v3366 = vmul.f32 %v3332, %v3332
    %v3367 = vmul.f32 %v3333, %v3333
    %v3368 = vmul.f32 %v3334, %v3334
    %v3369 = vmul.f32 %v3335, %v3335
    %v3370 = vmul.f32 %v3336, %v3336
    %v3371 = vmul.f32 %v3337, %v3337
    %v3372 = vmul.f32 %v3338, %v3338
    %v3373 = vmul.f32 %v3339, %v3339
    %v3374 = vmul.f32 %v3340, %v3340
    %v3375 = vmul.f32 %v3341, %v3341
    %v3410 = vcombine.low %v3342, %v3343
    %v3411 = vcombine.low %v3344, %v3345
    %v3412 = vcombine.low %v3346, %v3347
    %v3413 = vcombine.low %v3348, %v3349
    %v3415 = vunpack.c.l.s4 1966171168
    %v3416 = vunpack.c.0.s8 %v3415
    %v3417 = vlaneseq
    %v3418 = vshrl.u32 %v3417, 7
    %v3419 = vsub.s32 %v3416, %v3418
    %v3420 = vrot.slane %v3410, %v3419
    %v3422 = vunpack.c.l.s4 1966171168
    %v3423 = vunpack.c.0.s8 %v3422
    %v3424 = vlaneseq
    %v3425 = vshrl.u32 %v3424, 7
    %v3426 = vsub.s32 %v3423, %v3425
    %v3427 = vrot.slane %v3411, %v3426
    %v3429 = vunpack.c.l.s4 1966171168
    %v3430 = vunpack.c.0.s8 %v3429
    %v3431 = vlaneseq
    %v3432 = vshrl.u32 %v3431, 7
    %v3433 = vsub.s32 %v3430, %v3432
    %v3434 = vrot.slane %v3412, %v3433
    %v3436 = vunpack.c.l.s4 1966171168
    %v3437 = vunpack.c.0.s8 %v3436
    %v3438 = vlaneseq
    %v3439 = vshrl.u32 %v3438, 7
    %v3440 = vsub.s32 %v3437, %v3439
    %v3441 = vrot.slane %v3413, %v3440
    %v3442 = vcombine.low %v3420, %v3427
    %v3443 = vcombine.low %v3434, %v3441
    %v3445 = vunpack.c.l.s4 1966171168
    %v3446 = vunpack.c.0.s8 %v3445
    %v3447 = vlaneseq
    %v3448 = vshrl.u32 %v3447, 7
    %v3449 = vsub.s32 %v3446, %v3448
    %v3450 = vrot.slane %v3442, %v3449
    %v3452 = vunpack.c.l.s4 1966171168
    %v3453 = vunpack.c.0.s8 %v3452
    %v3454 = vlaneseq
    %v3455 = vshrl.u32 %v3454, 7
    %v3456 = vsub.s32 %v3453, %v3455
    %v3457 = vrot.slane %v3443, %v3456
    %v3458 = vcombine.low %v3450, %v3457
    %v3459 = vcombine.low %v3350, %v3351
    %v3460 = vcombine.low %v3352, %v3353
    %v3461 = vcombine.low %v3354, %v3355
    %v3462 = vcombine.low %v3356, %v3357
    %v3464 = vunpack.c.l.s4 1966171168
    %v3465 = vunpack.c.0.s8 %v3464
    %v3466 = vlaneseq
    %v3467 = vshrl.u32 %v3466, 7
    %v3468 = vsub.s32 %v3465, %v3467
    %v3469 = vrot.slane %v3459, %v3468
    %v3471 = vunpack.c.l.s4 1966171168
    %v3472 = vunpack.c.0.s8 %v3471
    %v3473 = vlaneseq
    %v3474 = vshrl.u32 %v3473, 7
    %v3475 = vsub.s32 %v3472, %v3474
    %v3476 = vrot.slane %v3460, %v3475
    %v3478 = vunpack.c.l.s4 1966171168
    %v3479 = vunpack.c.0.s8 %v3478
    %v3480 = vlaneseq
    %v3481 = vshrl.u32 %v3480, 7
    %v3482 = vsub.s32 %v3479, %v3481
    %v3483 = vrot.slane %v3461, %v3482
    %v3485 = vunpack.c.l.s4 1966171168
    %v3486 = vunpack.c.0.s8 %v3485
    %v3487 = vlaneseq
    %v3488 = vshrl.u32 %v3487, 7
    %v3489 = vsub.s32 %v3486, %v3488
    %v3490 = vrot.slane %v3462, %v3489
    %v3491 = vcombine.low %v3469, %v3476
    %v3492 = vcombine.low %v3483, %v3490
    %v3494 = vunpack.c.l.s4 1966171168
    %v3495 = vunpack.c.0.s8 %v3494
    %v3496 = vlaneseq
    %v3497 = vshrl.u32 %v3496, 7
    %v3498 = vsub.s32 %v3495, %v3497
    %v3499 = vrot.slane %v3491, %v3498
    %v3501 = vunpack.c.l.s4 1966171168
    %v3502 = vunpack.c.0.s8 %v3501
    %v3503 = vlaneseq
    %v3504 = vshrl.u32 %v3503, 7
    %v3505 = vsub.s32 %v3502, %v3504
    %v3506 = vrot.slane %v3492, %v3505
    %v3507 = vcombine.low %v3499, %v3506
    %v3508 = vcombine.low %v3358, %v3359
    %v3509 = vcombine.low %v3360, %v3361
    %v3510 = vcombine.low %v3362, %v3363
    %v3511 = vcombine.low %v3364, %v3365
    %v3513 = vunpack.c.l.s4 1966171168
    %v3514 = vunpack.c.0.s8 %v3513
    %v3515 = vlaneseq
    %v3516 = vshrl.u32 %v3515, 7
    %v3517 = vsub.s32 %v3514, %v3516
    %v3518 = vrot.slane %v3508, %v3517
    %v3520 = vunpack.c.l.s4 1966171168
    %v3521 = vunpack.c.0.s8 %v3520
    %v3522 = vlaneseq
    %v3523 = vshrl.u32 %v3522, 7
    %v3524 = vsub.s32 %v3521, %v3523
    %v3525 = vrot.slane %v3509, %v3524
    %v3527 = vunpack.c.l.s4 1966171168
    %v3528 = vunpack.c.0.s8 %v3527
    %v3529 = vlaneseq
    %v3530 = vshrl.u32 %v3529, 7
    %v3531 = vsub.s32 %v3528, %v3530
    %v3532 = vrot.slane %v3510, %v3531
    %v3534 = vunpack.c.l.s4 1966171168
    %v3535 = vunpack.c.0.s8 %v3534
    %v3536 = vlaneseq
    %v3537 = vshrl.u32 %v3536, 7
    %v3538 = vsub.s32 %v3535, %v3537
    %v3539 = vrot.slane %v3511, %v3538
    %v3540 = vcombine.low %v3518, %v3525
    %v3541 = vcombine.low %v3532, %v3539
    %v3543 = vunpack.c.l.s4 1966171168
    %v3544 = vunpack.c.0.s8 %v3543
    %v3545 = vlaneseq
    %v3546 = vshrl.u32 %v3545, 7
    %v3547 = vsub.s32 %v3544, %v3546
    %v3548 = vrot.slane %v3540, %v3547
    %v3550 = vunpack.c.l.s4 1966171168
    %v3551 = vunpack.c.0.s8 %v3550
    %v3552 = vlaneseq
    %v3553 = vshrl.u32 %v3552, 7
    %v3554 = vsub.s32 %v3551, %v3553
    %v3555 = vrot.slane %v3541, %v3554
    %v3556 = vcombine.low %v3548, %v3555
    %v3557 = vcombine.low %v3366, %v3367
    %v3558 = vcombine.low %v3368, %v3369
    %v3559 = vcombine.low %v3370, %v3371
    %v3560 = vcombine.low %v3372, %v3373
    %v3562 = vunpack.c.l.s4 1966171168
    %v3563 = vunpack.c.0.s8 %v3562
    %v3564 = vlaneseq
    %v3565 = vshrl.u32 %v3564, 7
    %v3566 = vsub.s32 %v3563, %v3565
    %v3567 = vrot.slane %v3557, %v3566
    %v3569 = vunpack.c.l.s4 1966171168
    %v3570 = vunpack.c.0.s8 %v3569
    %v3571 = vlaneseq
    %v3572 = vshrl.u32 %v3571, 7
    %v3573 = vsub.s32 %v3570, %v3572
    %v3574 = vrot.slane %v3558, %v3573
    %v3576 = vunpack.c.l.s4 1966171168
    %v3577 = vunpack.c.0.s8 %v3576
    %v3578 = vlaneseq
    %v3579 = vshrl.u32 %v3578, 7
    %v3580 = vsub.s32 %v3577, %v3579
    %v3581 = vrot.slane %v3559, %v3580
    %v3583 = vunpack.c.l.s4 1966171168
    %v3584 = vunpack.c.0.s8 %v3583
    %v3585 = vlaneseq
    %v3586 = vshrl.u32 %v3585, 7
    %v3587 = vsub.s32 %v3584, %v3586
    %v3588 = vrot.slane %v3560, %v3587
    %v3589 = vcombine.low %v3567, %v3574
    %v3590 = vcombine.low %v3581, %v3588
    %v3592 = vunpack.c.l.s4 1966171168
    %v3593 = vunpack.c.0.s8 %v3592
    %v3594 = vlaneseq
    %v3595 = vshrl.u32 %v3594, 7
    %v3596 = vsub.s32 %v3593, %v3595
    %v3597 = vrot.slane %v3589, %v3596
    %v3599 = vunpack.c.l.s4 1966171168
    %v3600 = vunpack.c.0.s8 %v3599
    %v3601 = vlaneseq
    %v3602 = vshrl.u32 %v3601, 7
    %v3603 = vsub.s32 %v3600, %v3602
    %v3604 = vrot.slane %v3590, %v3603
    %v3605 = vcombine.low %v3597, %v3604
    %v3606 = vcombine.low %v3374, %v3375
    %v3608 = vunpack.c.l.s4 1966171168
    %v3609 = vunpack.c.0.s8 %v3608
    %v3610 = vlaneseq
    %v3611 = vshrl.u32 %v3610, 7
    %v3612 = vsub.s32 %v3609, %v3611
    %v3613 = vrot.slane %v3606, %v3612
    %v3615 = vunpack.c.l.s4 1966171168
    %v3616 = vunpack.c.0.s8 %v3615
    %v3617 = vlaneseq
    %v3618 = vshrl.u32 %v3617, 7
    %v3619 = vsub.s32 %v3616, %v3618
    %v3620 = vrot.slane %v3613, %v3619
    %v3626 = vsel %vm548, %v3458, 0.0
    %3627 = vadd.xlane.f32.xlu0 %v3626
    %v3628 = vpop.xlane.xlu0 %3627
    %v3629 = vsel %vm548, %v3507, 0.0
    %3630 = vadd.xlane.f32.xlu0 %v3629
    %v3631 = vpop.xlane.xlu0 %3630
    %v3632 = vsel %vm548, %v3556, 0.0
    %3633 = vadd.xlane.f32.xlu0 %v3632
    %v3634 = vpop.xlane.xlu0 %3633
    %v3635 = vsel %vm548, %v3605, 0.0
    %3636 = vadd.xlane.f32.xlu0 %v3635
    %v3637 = vpop.xlane.xlu0 %3636
    %v3638 = vsel %vm3123, %v3620, 0.0
    %3639 = vadd.xlane.f32.xlu0 %v3638
    %v3640 = vpop.xlane.xlu0 %3639
    %v3641 = vmul.f32 %v3628, %v3127
    %v3642 = vmul.f32 %v3631, %v3127
    %v3643 = vmul.f32 %v3634, %v3127
    %v3644 = vmul.f32 %v3637, %v3127
    %v3645 = vmul.f32 %v3640, %v3127
    %v3646 = vadd.f32 %v3641, 1e-05
    %v3647 = vadd.f32 %v3642, 1e-05
    %v3648 = vadd.f32 %v3643, 1e-05
    %v3649 = vadd.f32 %v3644, 1e-05
    %v3650 = vadd.f32 %v3645, 1e-05
    %v3651 = vrsqrt.pop %v3646
    %v3652 = vrsqrt.pop %v3647
    %v3653 = vrsqrt.pop %v3648
    %v3654 = vrsqrt.pop %v3649
    %v3655 = vrsqrt.pop %v3650
    %v3661 = vlaneseq
    %v3662 = vshrl.u32 %v3661, 7
    %v3663 = vsub.s32 0, %v3662
    %v3664 = vrot.slane %v3651, %v3663
    %v3665 = vlaneseq
    %v3666 = vshrl.u32 %v3665, 7
    %v3667 = vsub.s32 1, %v3666
    %v3668 = vrot.slane %v3651, %v3667
    %v3669 = vlaneseq
    %v3670 = vshrl.u32 %v3669, 7
    %v3671 = vsub.s32 2, %v3670
    %v3672 = vrot.slane %v3651, %v3671
    %v3673 = vlaneseq
    %v3674 = vshrl.u32 %v3673, 7
    %v3675 = vsub.s32 3, %v3674
    %v3676 = vrot.slane %v3651, %v3675
    %v3677 = vlaneseq
    %v3678 = vshrl.u32 %v3677, 7
    %v3679 = vsub.s32 4, %v3678
    %v3680 = vrot.slane %v3651, %v3679
    %v3681 = vlaneseq
    %v3682 = vshrl.u32 %v3681, 7
    %v3683 = vsub.s32 5, %v3682
    %v3684 = vrot.slane %v3651, %v3683
    %v3685 = vlaneseq
    %v3686 = vshrl.u32 %v3685, 7
    %v3687 = vsub.s32 6, %v3686
    %v3688 = vrot.slane %v3651, %v3687
    %v3689 = vlaneseq
    %v3690 = vshrl.u32 %v3689, 7
    %v3691 = vsub.s32 7, %v3690
    %v3692 = vrot.slane %v3651, %v3691
    %v3693 = vlaneseq
    %v3694 = vshrl.u32 %v3693, 7
    %v3695 = vsub.s32 0, %v3694
    %v3696 = vrot.slane %v3652, %v3695
    %v3697 = vlaneseq
    %v3698 = vshrl.u32 %v3697, 7
    %v3699 = vsub.s32 1, %v3698
    %v3700 = vrot.slane %v3652, %v3699
    %v3701 = vlaneseq
    %v3702 = vshrl.u32 %v3701, 7
    %v3703 = vsub.s32 2, %v3702
    %v3704 = vrot.slane %v3652, %v3703
    %v3705 = vlaneseq
    %v3706 = vshrl.u32 %v3705, 7
    %v3707 = vsub.s32 3, %v3706
    %v3708 = vrot.slane %v3652, %v3707
    %v3709 = vlaneseq
    %v3710 = vshrl.u32 %v3709, 7
    %v3711 = vsub.s32 4, %v3710
    %v3712 = vrot.slane %v3652, %v3711
    %v3713 = vlaneseq
    %v3714 = vshrl.u32 %v3713, 7
    %v3715 = vsub.s32 5, %v3714
    %v3716 = vrot.slane %v3652, %v3715
    %v3717 = vlaneseq
    %v3718 = vshrl.u32 %v3717, 7
    %v3719 = vsub.s32 6, %v3718
    %v3720 = vrot.slane %v3652, %v3719
    %v3721 = vlaneseq
    %v3722 = vshrl.u32 %v3721, 7
    %v3723 = vsub.s32 7, %v3722
    %v3724 = vrot.slane %v3652, %v3723
    %v3725 = vlaneseq
    %v3726 = vshrl.u32 %v3725, 7
    %v3727 = vsub.s32 0, %v3726
    %v3728 = vrot.slane %v3653, %v3727
    %v3729 = vlaneseq
    %v3730 = vshrl.u32 %v3729, 7
    %v3731 = vsub.s32 1, %v3730
    %v3732 = vrot.slane %v3653, %v3731
    %v3733 = vlaneseq
    %v3734 = vshrl.u32 %v3733, 7
    %v3735 = vsub.s32 2, %v3734
    %v3736 = vrot.slane %v3653, %v3735
    %v3737 = vlaneseq
    %v3738 = vshrl.u32 %v3737, 7
    %v3739 = vsub.s32 3, %v3738
    %v3740 = vrot.slane %v3653, %v3739
    %v3741 = vlaneseq
    %v3742 = vshrl.u32 %v3741, 7
    %v3743 = vsub.s32 4, %v3742
    %v3744 = vrot.slane %v3653, %v3743
    %v3745 = vlaneseq
    %v3746 = vshrl.u32 %v3745, 7
    %v3747 = vsub.s32 5, %v3746
    %v3748 = vrot.slane %v3653, %v3747
    %v3749 = vlaneseq
    %v3750 = vshrl.u32 %v3749, 7
    %v3751 = vsub.s32 6, %v3750
    %v3752 = vrot.slane %v3653, %v3751
    %v3753 = vlaneseq
    %v3754 = vshrl.u32 %v3753, 7
    %v3755 = vsub.s32 7, %v3754
    %v3756 = vrot.slane %v3653, %v3755
    %v3757 = vlaneseq
    %v3758 = vshrl.u32 %v3757, 7
    %v3759 = vsub.s32 0, %v3758
    %v3760 = vrot.slane %v3654, %v3759
    %v3761 = vlaneseq
    %v3762 = vshrl.u32 %v3761, 7
    %v3763 = vsub.s32 1, %v3762
    %v3764 = vrot.slane %v3654, %v3763
    %v3765 = vlaneseq
    %v3766 = vshrl.u32 %v3765, 7
    %v3767 = vsub.s32 2, %v3766
    %v3768 = vrot.slane %v3654, %v3767
    %v3769 = vlaneseq
    %v3770 = vshrl.u32 %v3769, 7
    %v3771 = vsub.s32 3, %v3770
    %v3772 = vrot.slane %v3654, %v3771
    %v3773 = vlaneseq
    %v3774 = vshrl.u32 %v3773, 7
    %v3775 = vsub.s32 4, %v3774
    %v3776 = vrot.slane %v3654, %v3775
    %v3777 = vlaneseq
    %v3778 = vshrl.u32 %v3777, 7
    %v3779 = vsub.s32 5, %v3778
    %v3780 = vrot.slane %v3654, %v3779
    %v3781 = vlaneseq
    %v3782 = vshrl.u32 %v3781, 7
    %v3783 = vsub.s32 6, %v3782
    %v3784 = vrot.slane %v3654, %v3783
    %v3785 = vlaneseq
    %v3786 = vshrl.u32 %v3785, 7
    %v3787 = vsub.s32 7, %v3786
    %v3788 = vrot.slane %v3654, %v3787
    %v3789 = vlaneseq
    %v3790 = vshrl.u32 %v3789, 7
    %v3791 = vsub.s32 0, %v3790
    %v3792 = vrot.slane %v3655, %v3791
    %v3793 = vlaneseq
    %v3794 = vshrl.u32 %v3793, 7
    %v3795 = vsub.s32 1, %v3794
    %v3796 = vrot.slane %v3655, %v3795
    %v3831 = vmul.f32 %v3308, %v3664
    %v3832 = vmul.f32 %v3309, %v3668
    %v3833 = vmul.f32 %v3310, %v3672
    %v3834 = vmul.f32 %v3311, %v3676
    %v3835 = vmul.f32 %v3312, %v3680
    %v3836 = vmul.f32 %v3313, %v3684
    %v3837 = vmul.f32 %v3314, %v3688
    %v3838 = vmul.f32 %v3315, %v3692
    %v3839 = vmul.f32 %v3316, %v3696
    %v3840 = vmul.f32 %v3317, %v3700
    %v3841 = vmul.f32 %v3318, %v3704
    %v3842 = vmul.f32 %v3319, %v3708
    %v3843 = vmul.f32 %v3320, %v3712
    %v3844 = vmul.f32 %v3321, %v3716
    %v3845 = vmul.f32 %v3322, %v3720
    %v3846 = vmul.f32 %v3323, %v3724
    %v3847 = vmul.f32 %v3324, %v3728
    %v3848 = vmul.f32 %v3325, %v3732
    %v3849 = vmul.f32 %v3326, %v3736
    %v3850 = vmul.f32 %v3327, %v3740
    %v3851 = vmul.f32 %v3328, %v3744
    %v3852 = vmul.f32 %v3329, %v3748
    %v3853 = vmul.f32 %v3330, %v3752
    %v3854 = vmul.f32 %v3331, %v3756
    %v3855 = vmul.f32 %v3332, %v3760
    %v3856 = vmul.f32 %v3333, %v3764
    %v3857 = vmul.f32 %v3334, %v3768
    %v3858 = vmul.f32 %v3335, %v3772
    %v3859 = vmul.f32 %v3336, %v3776
    %v3860 = vmul.f32 %v3337, %v3780
    %v3861 = vmul.f32 %v3338, %v3784
    %v3862 = vmul.f32 %v3339, %v3788
    %v3863 = vmul.f32 %v3340, %v3792
    %v3864 = vmul.f32 %v3341, %v3796
    %v3865 = vlaneseq
    %v3866 = vshrl.u32 %v3865, 7
    %v3867 = vsub.s32 0, %v3866
    %v3868 = vrot.slane %v2569, %v3867
    %v3870 = vcombine.high %v3868, %v3868
    %v3872 = vunpack.c.l.s4 1966171168
    %v3873 = vunpack.c.0.s8 %v3872
    %v3874 = vlaneseq
    %v3875 = vshrl.u32 %v3874, 7
    %v3876 = vsub.s32 %v3873, %v3875
    %v3877 = vrot.slane %v3868, %v3876
    %v3879 = vunpack.c.l.s4 1966171168
    %v3880 = vunpack.c.0.s8 %v3879
    %v3881 = vlaneseq
    %v3882 = vshrl.u32 %v3881, 7
    %v3883 = vsub.s32 %v3880, %v3882
    %v3884 = vrot.slane %v3870, %v3883
    %v3885 = vcombine.high %v3877, %v3877
    %v3886 = vcombine.high %v3884, %v3884
    %v3888 = vunpack.c.l.s4 1966171168
    %v3889 = vunpack.c.0.s8 %v3888
    %v3890 = vlaneseq
    %v3891 = vshrl.u32 %v3890, 7
    %v3892 = vsub.s32 %v3889, %v3891
    %v3893 = vrot.slane %v3877, %v3892
    %v3895 = vunpack.c.l.s4 1966171168
    %v3896 = vunpack.c.0.s8 %v3895
    %v3897 = vlaneseq
    %v3898 = vshrl.u32 %v3897, 7
    %v3899 = vsub.s32 %v3896, %v3898
    %v3900 = vrot.slane %v3884, %v3899
    %v3902 = vunpack.c.l.s4 1966171168
    %v3903 = vunpack.c.0.s8 %v3902
    %v3904 = vlaneseq
    %v3905 = vshrl.u32 %v3904, 7
    %v3906 = vsub.s32 %v3903, %v3905
    %v3907 = vrot.slane %v3885, %v3906
    %v3909 = vunpack.c.l.s4 1966171168
    %v3910 = vunpack.c.0.s8 %v3909
    %v3911 = vlaneseq
    %v3912 = vshrl.u32 %v3911, 7
    %v3913 = vsub.s32 %v3910, %v3912
    %v3914 = vrot.slane %v3886, %v3913
    %v3915 = vcombine.high %v3893, %v3893
    %v3916 = vcombine.high %v3900, %v3900
    %v3917 = vcombine.high %v3907, %v3907
    %v3918 = vcombine.high %v3914, %v3914
    %v3927 = vmul.f32 %v3831, %v3893
    %v3928 = vmul.f32 %v3832, %v3907
    %v3929 = vmul.f32 %v3833, %v3915
    %v3930 = vmul.f32 %v3834, %v3917
    %v3931 = vmul.f32 %v3835, %v3900
    %v3932 = vmul.f32 %v3836, %v3914
    %v3933 = vmul.f32 %v3837, %v3916
    %v3934 = vmul.f32 %v3838, %v3918
    %v3935 = vmul.f32 %v3839, %v3893
    %v3936 = vmul.f32 %v3840, %v3907
    %v3937 = vmul.f32 %v3841, %v3915
    %v3938 = vmul.f32 %v3842, %v3917
    %v3939 = vmul.f32 %v3843, %v3900
    %v3940 = vmul.f32 %v3844, %v3914
    %v3941 = vmul.f32 %v3845, %v3916
    %v3942 = vmul.f32 %v3846, %v3918
    %v3943 = vmul.f32 %v3847, %v3893
    %v3944 = vmul.f32 %v3848, %v3907
    %v3945 = vmul.f32 %v3849, %v3915
    %v3946 = vmul.f32 %v3850, %v3917
    %v3947 = vmul.f32 %v3851, %v3900
    %v3948 = vmul.f32 %v3852, %v3914
    %v3949 = vmul.f32 %v3853, %v3916
    %v3950 = vmul.f32 %v3854, %v3918
    %v3951 = vmul.f32 %v3855, %v3893
    %v3952 = vmul.f32 %v3856, %v3907
    %v3953 = vmul.f32 %v3857, %v3915
    %v3954 = vmul.f32 %v3858, %v3917
    %v3955 = vmul.f32 %v3859, %v3900
    %v3956 = vmul.f32 %v3860, %v3914
    %v3957 = vmul.f32 %v3861, %v3916
    %v3958 = vmul.f32 %v3862, %v3918
    %v3959 = vmul.f32 %v3863, %v3893
    %v3960 = vmul.f32 %v3864, %v3907
    %v3961 = vlaneseq
    %v3962 = vshrl.u32 %v3961, 7
    %v3963 = vsub.s32 1, %v3962
    %v3964 = vrot.slane %v2569, %v3963
    %v3966 = vcombine.high %v3964, %v3964
    %v3968 = vunpack.c.l.s4 1966171168
    %v3969 = vunpack.c.0.s8 %v3968
    %v3970 = vlaneseq
    %v3971 = vshrl.u32 %v3970, 7
    %v3972 = vsub.s32 %v3969, %v3971
    %v3973 = vrot.slane %v3964, %v3972
    %v3975 = vunpack.c.l.s4 1966171168
    %v3976 = vunpack.c.0.s8 %v3975
    %v3977 = vlaneseq
    %v3978 = vshrl.u32 %v3977, 7
    %v3979 = vsub.s32 %v3976, %v3978
    %v3980 = vrot.slane %v3966, %v3979
    %v3981 = vcombine.high %v3973, %v3973
    %v3982 = vcombine.high %v3980, %v3980
    %v3984 = vunpack.c.l.s4 1966171168
    %v3985 = vunpack.c.0.s8 %v3984
    %v3986 = vlaneseq
    %v3987 = vshrl.u32 %v3986, 7
    %v3988 = vsub.s32 %v3985, %v3987
    %v3989 = vrot.slane %v3973, %v3988
    %v3991 = vunpack.c.l.s4 1966171168
    %v3992 = vunpack.c.0.s8 %v3991
    %v3993 = vlaneseq
    %v3994 = vshrl.u32 %v3993, 7
    %v3995 = vsub.s32 %v3992, %v3994
    %v3996 = vrot.slane %v3980, %v3995
    %v3998 = vunpack.c.l.s4 1966171168
    %v3999 = vunpack.c.0.s8 %v3998
    %v4000 = vlaneseq
    %v4001 = vshrl.u32 %v4000, 7
    %v4002 = vsub.s32 %v3999, %v4001
    %v4003 = vrot.slane %v3981, %v4002
    %v4005 = vunpack.c.l.s4 1966171168
    %v4006 = vunpack.c.0.s8 %v4005
    %v4007 = vlaneseq
    %v4008 = vshrl.u32 %v4007, 7
    %v4009 = vsub.s32 %v4006, %v4008
    %v4010 = vrot.slane %v3982, %v4009
    %v4011 = vcombine.high %v3989, %v3989
    %v4012 = vcombine.high %v3996, %v3996
    %v4013 = vcombine.high %v4003, %v4003
    %v4014 = vcombine.high %v4010, %v4010
    %v4023 = vadd.f32 %v3927, %v3989
    %v4024 = vadd.f32 %v3928, %v4003
    %v4025 = vadd.f32 %v3929, %v4011
    %v4026 = vadd.f32 %v3930, %v4013
    %v4027 = vadd.f32 %v3931, %v3996
    %v4028 = vadd.f32 %v3932, %v4010
    %v4029 = vadd.f32 %v3933, %v4012
    %v4030 = vadd.f32 %v3934, %v4014
    %v4031 = vadd.f32 %v3935, %v3989
    %v4032 = vadd.f32 %v3936, %v4003
    %v4033 = vadd.f32 %v3937, %v4011
    %v4034 = vadd.f32 %v3938, %v4013
    %v4035 = vadd.f32 %v3939, %v3996
    %v4036 = vadd.f32 %v3940, %v4010
    %v4037 = vadd.f32 %v3941, %v4012
    %v4038 = vadd.f32 %v3942, %v4014
    %v4039 = vadd.f32 %v3943, %v3989
    %v4040 = vadd.f32 %v3944, %v4003
    %v4041 = vadd.f32 %v3945, %v4011
    %v4042 = vadd.f32 %v3946, %v4013
    %v4043 = vadd.f32 %v3947, %v3996
    %v4044 = vadd.f32 %v3948, %v4010
    %v4045 = vadd.f32 %v3949, %v4012
    %v4046 = vadd.f32 %v3950, %v4014
    %v4047 = vadd.f32 %v3951, %v3989
    %v4048 = vadd.f32 %v3952, %v4003
    %v4049 = vadd.f32 %v3953, %v4011
    %v4050 = vadd.f32 %v3954, %v4013
    %v4051 = vadd.f32 %v3955, %v3996
    %v4052 = vadd.f32 %v3956, %v4010
    %v4053 = vadd.f32 %v3957, %v4012
    %v4054 = vadd.f32 %v3958, %v4014
    %v4055 = vadd.f32 %v3959, %v3989
    %v4056 = vadd.f32 %v3960, %v4003
    %v4057 = vld [vmem:[%s6] sm:$0xff]
    %v4058 = vld [vmem:[%s6 + $0x8] sm:$0xff]
    %v4059 = vld [vmem:[%s6 + $0x10] sm:$0xff]
    %v4060 = vld [vmem:[%s6 + $0x18] sm:$0xff]
    %v4061 = vld [vmem:[%s6 + $0x20] sm:$0xff]
    %v4062 = vld [vmem:[%s6 + $0x28] sm:$0xff]
    %v4063 = vld [vmem:[%s6 + $0x30] sm:$0xff]
    %v4064 = vld [vmem:[%s6 + $0x38] sm:$0xf]
    %v4065 = vld [vmem:[%s7] sm:$0x1]
    %v4067 = vlaneseq
    %v4068 = vshrl.u32 %v4067, 7
    %v4069 = vsub.s32 0, %v4068
    %v4070 = vrot.slane %v4065, %v4069
    %v4106 = vcombine.low %v4023, %v4024
    %v4107 = vcombine.low %v4025, %v4026
    %v4108 = vcombine.low %v4027, %v4028
    %v4109 = vcombine.low %v4029, %v4030
    %v4111 = vunpack.c.l.s4 1966171168
    %v4112 = vunpack.c.0.s8 %v4111
    %v4113 = vlaneseq
    %v4114 = vshrl.u32 %v4113, 7
    %v4115 = vsub.s32 %v4112, %v4114
    %v4116 = vrot.slane %v4106, %v4115
    %v4118 = vunpack.c.l.s4 1966171168
    %v4119 = vunpack.c.0.s8 %v4118
    %v4120 = vlaneseq
    %v4121 = vshrl.u32 %v4120, 7
    %v4122 = vsub.s32 %v4119, %v4121
    %v4123 = vrot.slane %v4107, %v4122
    %v4125 = vunpack.c.l.s4 1966171168
    %v4126 = vunpack.c.0.s8 %v4125
    %v4127 = vlaneseq
    %v4128 = vshrl.u32 %v4127, 7
    %v4129 = vsub.s32 %v4126, %v4128
    %v4130 = vrot.slane %v4108, %v4129
    %v4132 = vunpack.c.l.s4 1966171168
    %v4133 = vunpack.c.0.s8 %v4132
    %v4134 = vlaneseq
    %v4135 = vshrl.u32 %v4134, 7
    %v4136 = vsub.s32 %v4133, %v4135
    %v4137 = vrot.slane %v4109, %v4136
    %v4138 = vcombine.low %v4116, %v4123
    %v4139 = vcombine.low %v4130, %v4137
    %v4141 = vunpack.c.l.s4 1966171168
    %v4142 = vunpack.c.0.s8 %v4141
    %v4143 = vlaneseq
    %v4144 = vshrl.u32 %v4143, 7
    %v4145 = vsub.s32 %v4142, %v4144
    %v4146 = vrot.slane %v4138, %v4145
    %v4148 = vunpack.c.l.s4 1966171168
    %v4149 = vunpack.c.0.s8 %v4148
    %v4150 = vlaneseq
    %v4151 = vshrl.u32 %v4150, 7
    %v4152 = vsub.s32 %v4149, %v4151
    %v4153 = vrot.slane %v4139, %v4152
    %v4154 = vcombine.low %v4146, %v4153
    %v4155 = vcombine.low %v4031, %v4032
    %v4156 = vcombine.low %v4033, %v4034
    %v4157 = vcombine.low %v4035, %v4036
    %v4158 = vcombine.low %v4037, %v4038
    %v4160 = vunpack.c.l.s4 1966171168
    %v4161 = vunpack.c.0.s8 %v4160
    %v4162 = vlaneseq
    %v4163 = vshrl.u32 %v4162, 7
    %v4164 = vsub.s32 %v4161, %v4163
    %v4165 = vrot.slane %v4155, %v4164
    %v4167 = vunpack.c.l.s4 1966171168
    %v4168 = vunpack.c.0.s8 %v4167
    %v4169 = vlaneseq
    %v4170 = vshrl.u32 %v4169, 7
    %v4171 = vsub.s32 %v4168, %v4170
    %v4172 = vrot.slane %v4156, %v4171
    %v4174 = vunpack.c.l.s4 1966171168
    %v4175 = vunpack.c.0.s8 %v4174
    %v4176 = vlaneseq
    %v4177 = vshrl.u32 %v4176, 7
    %v4178 = vsub.s32 %v4175, %v4177
    %v4179 = vrot.slane %v4157, %v4178
    %v4181 = vunpack.c.l.s4 1966171168
    %v4182 = vunpack.c.0.s8 %v4181
    %v4183 = vlaneseq
    %v4184 = vshrl.u32 %v4183, 7
    %v4185 = vsub.s32 %v4182, %v4184
    %v4186 = vrot.slane %v4158, %v4185
    %v4187 = vcombine.low %v4165, %v4172
    %v4188 = vcombine.low %v4179, %v4186
    %v4190 = vunpack.c.l.s4 1966171168
    %v4191 = vunpack.c.0.s8 %v4190
    %v4192 = vlaneseq
    %v4193 = vshrl.u32 %v4192, 7
    %v4194 = vsub.s32 %v4191, %v4193
    %v4195 = vrot.slane %v4187, %v4194
    %v4197 = vunpack.c.l.s4 1966171168
    %v4198 = vunpack.c.0.s8 %v4197
    %v4199 = vlaneseq
    %v4200 = vshrl.u32 %v4199, 7
    %v4201 = vsub.s32 %v4198, %v4200
    %v4202 = vrot.slane %v4188, %v4201
    %v4203 = vcombine.low %v4195, %v4202
    %v4204 = vcombine.low %v4039, %v4040
    %v4205 = vcombine.low %v4041, %v4042
    %v4206 = vcombine.low %v4043, %v4044
    %v4207 = vcombine.low %v4045, %v4046
    %v4209 = vunpack.c.l.s4 1966171168
    %v4210 = vunpack.c.0.s8 %v4209
    %v4211 = vlaneseq
    %v4212 = vshrl.u32 %v4211, 7
    %v4213 = vsub.s32 %v4210, %v4212
    %v4214 = vrot.slane %v4204, %v4213
    %v4216 = vunpack.c.l.s4 1966171168
    %v4217 = vunpack.c.0.s8 %v4216
    %v4218 = vlaneseq
    %v4219 = vshrl.u32 %v4218, 7
    %v4220 = vsub.s32 %v4217, %v4219
    %v4221 = vrot.slane %v4205, %v4220
    %v4223 = vunpack.c.l.s4 1966171168
    %v4224 = vunpack.c.0.s8 %v4223
    %v4225 = vlaneseq
    %v4226 = vshrl.u32 %v4225, 7
    %v4227 = vsub.s32 %v4224, %v4226
    %v4228 = vrot.slane %v4206, %v4227
    %v4230 = vunpack.c.l.s4 1966171168
    %v4231 = vunpack.c.0.s8 %v4230
    %v4232 = vlaneseq
    %v4233 = vshrl.u32 %v4232, 7
    %v4234 = vsub.s32 %v4231, %v4233
    %v4235 = vrot.slane %v4207, %v4234
    %v4236 = vcombine.low %v4214, %v4221
    %v4237 = vcombine.low %v4228, %v4235
    %v4239 = vunpack.c.l.s4 1966171168
    %v4240 = vunpack.c.0.s8 %v4239
    %v4241 = vlaneseq
    %v4242 = vshrl.u32 %v4241, 7
    %v4243 = vsub.s32 %v4240, %v4242
    %v4244 = vrot.slane %v4236, %v4243
    %v4246 = vunpack.c.l.s4 1966171168
    %v4247 = vunpack.c.0.s8 %v4246
    %v4248 = vlaneseq
    %v4249 = vshrl.u32 %v4248, 7
    %v4250 = vsub.s32 %v4247, %v4249
    %v4251 = vrot.slane %v4237, %v4250
    %v4252 = vcombine.low %v4244, %v4251
    %v4253 = vcombine.low %v4047, %v4048
    %v4254 = vcombine.low %v4049, %v4050
    %v4255 = vcombine.low %v4051, %v4052
    %v4256 = vcombine.low %v4053, %v4054
    %v4258 = vunpack.c.l.s4 1966171168
    %v4259 = vunpack.c.0.s8 %v4258
    %v4260 = vlaneseq
    %v4261 = vshrl.u32 %v4260, 7
    %v4262 = vsub.s32 %v4259, %v4261
    %v4263 = vrot.slane %v4253, %v4262
    %v4265 = vunpack.c.l.s4 1966171168
    %v4266 = vunpack.c.0.s8 %v4265
    %v4267 = vlaneseq
    %v4268 = vshrl.u32 %v4267, 7
    %v4269 = vsub.s32 %v4266, %v4268
    %v4270 = vrot.slane %v4254, %v4269
    %v4272 = vunpack.c.l.s4 1966171168
    %v4273 = vunpack.c.0.s8 %v4272
    %v4274 = vlaneseq
    %v4275 = vshrl.u32 %v4274, 7
    %v4276 = vsub.s32 %v4273, %v4275
    %v4277 = vrot.slane %v4255, %v4276
    %v4279 = vunpack.c.l.s4 1966171168
    %v4280 = vunpack.c.0.s8 %v4279
    %v4281 = vlaneseq
    %v4282 = vshrl.u32 %v4281, 7
    %v4283 = vsub.s32 %v4280, %v4282
    %v4284 = vrot.slane %v4256, %v4283
    %v4285 = vcombine.low %v4263, %v4270
    %v4286 = vcombine.low %v4277, %v4284
    %v4288 = vunpack.c.l.s4 1966171168
    %v4289 = vunpack.c.0.s8 %v4288
    %v4290 = vlaneseq
    %v4291 = vshrl.u32 %v4290, 7
    %v4292 = vsub.s32 %v4289, %v4291
    %v4293 = vrot.slane %v4285, %v4292
    %v4295 = vunpack.c.l.s4 1966171168
    %v4296 = vunpack.c.0.s8 %v4295
    %v4297 = vlaneseq
    %v4298 = vshrl.u32 %v4297, 7
    %v4299 = vsub.s32 %v4296, %v4298
    %v4300 = vrot.slane %v4286, %v4299
    %v4301 = vcombine.low %v4293, %v4300
    %v4302 = vcombine.low %v4055, %v4056
    %v4304 = vunpack.c.l.s4 1966171168
    %v4305 = vunpack.c.0.s8 %v4304
    %v4306 = vlaneseq
    %v4307 = vshrl.u32 %v4306, 7
    %v4308 = vsub.s32 %v4305, %v4307
    %v4309 = vrot.slane %v4302, %v4308
    %v4311 = vunpack.c.l.s4 1966171168
    %v4312 = vunpack.c.0.s8 %v4311
    %v4313 = vlaneseq
    %v4314 = vshrl.u32 %v4313, 7
    %v4315 = vsub.s32 %v4312, %v4314
    %v4316 = vrot.slane %v4309, %v4315
    %v4317 = vsel %vm548, %v4154, 0
    %v4319 = vsel %vm548, %v4203, 0
    %v4321 = vsel %vm548, %v4252, 0
    %v4323 = vsel %vm548, %v4301, 0
    %v4325 = vsel %vm548, %v4316, 0
    %v4328 = vsel %vm559, %v4064, 0
    %4330 = vmatprep.subr.mxu0 0.0
    %4331 = vmatpush1.msra.mxu0 %v4057
    %4332 = vmatprep.subr.mxu0 0.0
    %4333 = vmatpush1.msra.mxu0 %v4058
    %4334 = vmatprep.subr.mxu0 0.0
    %4335 = vmatpush1.msra.mxu0 %v4059
    %4336 = vmatprep.subr.mxu0 0.0
    %4337 = vmatpush1.msra.mxu0 %v4060
    %4338 = vmatprep.subr.mxu0 0.0
    %4339 = vmatpush1.msra.mxu0 %v4061
    %4340 = vmatprep.subr.mxu0 0.0
    %4341 = vmatpush1.msra.mxu0 %v4062
    %4342 = vmatprep.subr.mxu0 0.0
    %4343 = vmatpush1.msra.mxu0 %v4063
    %4344 = vmatprep.subr.mxu0 0.0
    %4345 = vmatpush1.msra.mxu0 %v4328
    %4346 = vmatprep.subr.mxu0 0.0
    %4347 = vmatpush1.msra.mxu0 0.0
    %4348 = vmatprep.subr.mxu0 0.0
    %4349 = vmatpush1.msra.mxu0 0.0
    %4350 = vmatprep.subr.mxu0 0.0
    %4351 = vmatpush1.msra.mxu0 0.0
    %4352 = vmatprep.subr.mxu0 0.0
    %4353 = vmatpush1.msra.mxu0 0.0
    %4354 = vmatprep.subr.mxu0 0.0
    %4355 = vmatpush1.msra.mxu0 0.0
    %4356 = vmatprep.subr.mxu0 0.0
    %4357 = vmatpush1.msra.mxu0 0.0
    %4358 = vmatprep.subr.mxu0 0.0
    %4359 = vmatpush1.msra.mxu0 0.0
    %4360 = vmatprep.subr.mxu0 0.0
    %4361 = vmatpush1.msra.mxu0 0.0
    %4362 = vmatprep.subr.mxu0 0.0
    %4363 = vmatpush1.msra.mxu0 0.0
    %4364 = vmatprep.subr.mxu0 0.0
    %4365 = vmatpush1.msra.mxu0 0.0
    %4366 = vmatprep.subr.mxu0 0.0
    %4367 = vmatpush1.msra.mxu0 0.0
    %4368 = vmatprep.subr.mxu0 0.0
    %4369 = vmatpush1.msra.mxu0 0.0
    %4370 = vmatprep.subr.mxu0 0.0
    %4371 = vmatpush1.msra.mxu0 0.0
    %4372 = vmatprep.subr.mxu0 0.0
    %4373 = vmatpush1.msra.mxu0 0.0
    %4374 = vmatprep.subr.mxu0 0.0
    %4375 = vmatpush1.msra.mxu0 0.0
    %4376 = vmatprep.subr.mxu0 0.0
    %4377 = vmatpush1.msra.mxu0 0.0
    %4378 = vmatprep.subr.mxu0 0.0
    %4379 = vmatpush1.msra.mxu0 0.0
    %4380 = vmatprep.subr.mxu0 0.0
    %4381 = vmatpush1.msra.mxu0 0.0
    %4382 = vmatprep.subr.mxu0 0.0
    %4383 = vmatpush1.msra.mxu0 0.0
    %4384 = vmatprep.subr.mxu0 0.0
    %4385 = vmatpush1.msra.mxu0 0.0
    %4386 = vmatprep.subr.mxu0 0.0
    %4387 = vmatpush1.msra.mxu0 0.0
    %4388 = vmatprep.subr.mxu0 0.0
    %4389 = vmatpush1.msra.mxu0 0.0
    %4390 = vmatprep.subr.mxu0 0.0
    %4391 = vmatpush1.msra.mxu0 0.0
    %4392 = vmatprep.subr.mxu0 0.0
    %4393 = vmatpush1.msra.mxu0 0.0
    %4394 = vmatprep.mubr.f32.mxu0 0.0
    %4395 = vmatmul.mubr.f32.gmra.mrb[0].mxu0 %v4317
    %v4396 = vpop.f32.mrb[0].mxu0
    %v4397 = vadd.f32 %v4070, %v4396
    %v4398 = vpop.f32.mrb[0].mxu0
    %4399 = vmatprep.mubr.f32.mxu0 0.0
    %4400 = vmatmul.mubr.f32.gmra.mrb[0].mxu0 %v4319
    %v4401 = vpop.f32.mrb[0].mxu0
    %v4402 = vadd.f32 %v4070, %v4401
    %v4403 = vpop.f32.mrb[0].mxu0
    %4404 = vmatprep.mubr.f32.mxu0 0.0
    %4405 = vmatmul.mubr.f32.gmra.mrb[0].mxu0 %v4321
    %v4406 = vpop.f32.mrb[0].mxu0
    %v4407 = vadd.f32 %v4070, %v4406
    %v4408 = vpop.f32.mrb[0].mxu0
    %4409 = vmatprep.mubr.f32.mxu0 0.0
    %4410 = vmatmul.mubr.f32.gmra.mrb[0].mxu0 %v4323
    %v4411 = vpop.f32.mrb[0].mxu0
    %v4412 = vadd.f32 %v4070, %v4411
    %v4413 = vpop.f32.mrb[0].mxu0
    %4414 = vmatprep.mubr.f32.mxu0 0.0
    %4415 = vmatmul.mubr.f32.gmra.mrb[0].mxu0 %v4325
    %v4416 = vpop.f32.mrb[0].mxu0
    %v4417 = vadd.f32 %v4070, %v4416
    %v4418 = vpop.f32.mrb[0].mxu0
    %4419 = vdwg.mxu0
    %v4420 = vmul.f32 %v4397, 0.5
    %v4421 = vmul.f32 %v4402, 0.5
    %v4422 = vmul.f32 %v4407, 0.5
    %v4423 = vmul.f32 %v4412, 0.5
    %v4424 = vmul.f32 %v4417, 0.5
    %v4425 = vmul.f32 %v4397, 0.044715
    %v4426 = vmul.f32 %v4402, 0.044715
    %v4427 = vmul.f32 %v4407, 0.044715
    %v4428 = vmul.f32 %v4412, 0.044715
    %v4429 = vmul.f32 %v4417, 0.044715
    %v4430 = vmul.f32 %v4425, %v4397
    %v4431 = vmul.f32 %v4426, %v4402
    %v4432 = vmul.f32 %v4427, %v4407
    %v4433 = vmul.f32 %v4428, %v4412
    %v4434 = vmul.f32 %v4429, %v4417
    %v4435 = vmul.f32 %v4430, %v4397
    %v4436 = vmul.f32 %v4431, %v4402
    %v4437 = vmul.f32 %v4432, %v4407
    %v4438 = vmul.f32 %v4433, %v4412
    %v4439 = vmul.f32 %v4434, %v4417
    %v4440 = vadd.f32 %v4397, %v4435
    %v4441 = vadd.f32 %v4402, %v4436
    %v4442 = vadd.f32 %v4407, %v4437
    %v4443 = vadd.f32 %v4412, %v4438
    %v4444 = vadd.f32 %v4417, %v4439
    %v4445 = vmul.f32 %v4440, 0.7978846
    %v4446 = vmul.f32 %v4441, 0.7978846
    %v4447 = vmul.f32 %v4442, 0.7978846
    %v4448 = vmul.f32 %v4443, 0.7978846
    %v4449 = vmul.f32 %v4444, 0.7978846
    %v4450 = vtanh.pop %v4445
    %v4451 = vtanh.pop %v4446
    %v4452 = vtanh.pop %v4447
    %v4453 = vtanh.pop %v4448
    %v4454 = vtanh.pop %v4449
    %v4455 = vadd.f32 %v4450, 1.0
    %v4456 = vadd.f32 %v4451, 1.0
    %v4457 = vadd.f32 %v4452, 1.0
    %v4458 = vadd.f32 %v4453, 1.0
    %v4459 = vadd.f32 %v4454, 1.0
    %v4460 = vmul.f32 %v4420, %v4455
    %v4461 = vmul.f32 %v4421, %v4456
    %v4462 = vmul.f32 %v4422, %v4457
    %v4463 = vmul.f32 %v4423, %v4458
    %v4464 = vmul.f32 %v4424, %v4459
    %v4465 = vld [vmem:[%s8] sm:$0xff]
    %v4466 = vld [vmem:[%s8 + $0x8] sm:$0xff]
    %v4467 = vld [vmem:[%s8 + $0x10] sm:$0xff]
    %v4468 = vld [vmem:[%s8 + $0x18] sm:$0xff]
    %v4469 = vld [vmem:[%s8 + $0x20] sm:$0xff]
    %v4470 = vld [vmem:[%s8 + $0x28] sm:$0xff]
    %v4471 = vld [vmem:[%s8 + $0x30] sm:$0xff]
    %v4472 = vld [vmem:[%s8 + $0x38] sm:$0xf]
    %v4473 = vld [vmem:[%s9] sm:$0x1]
    %v4475 = vlaneseq
    %v4476 = vshrl.u32 %v4475, 7
    %v4477 = vsub.s32 0, %v4476
    %v4478 = vrot.slane %v4473, %v4477
    %v4481 = vsel %vm548, %v4460, 0
    %v4484 = vsel %vm548, %v4461, 0
    %v4487 = vsel %vm548, %v4462, 0
    %v4490 = vsel %vm548, %v4463, 0
    %v4493 = vsel %vm548, %v4464, 0
    %v4496 = vsel %vm559, %v4472, 0
    %4498 = vmatprep.subr.mxu0 0.0
    %4499 = vmatpush1.msra.mxu0 %v4465
    %4500 = vmatprep.subr.mxu0 0.0
    %4501 = vmatpush1.msra.mxu0 %v4466
    %4502 = vmatprep.subr.mxu0 0.0
    %4503 = vmatpush1.msra.mxu0 %v4467
    %4504 = vmatprep.subr.mxu0 0.0
    %4505 = vmatpush1.msra.mxu0 %v4468
    %4506 = vmatprep.subr.mxu0 0.0
    %4507 = vmatpush1.msra.mxu0 %v4469
    %4508 = vmatprep.subr.mxu0 0.0
    %4509 = vmatpush1.msra.mxu0 %v4470
    %4510 = vmatprep.subr.mxu0 0.0
    %4511 = vmatpush1.msra.mxu0 %v4471
    %4512 = vmatprep.subr.mxu0 0.0
    %4513 = vmatpush1.msra.mxu0 %v4496
    %4514 = vmatprep.subr.mxu0 0.0
    %4515 = vmatpush1.msra.mxu0 0.0
    %4516 = vmatprep.subr.mxu0 0.0
    %4517 = vmatpush1.msra.mxu0 0.0
    %4518 = vmatprep.subr.mxu0 0.0
    %4519 = vmatpush1.msra.mxu0 0.0
    %4520 = vmatprep.subr.mxu0 0.0
    %4521 = vmatpush1.msra.mxu0 0.0
    %4522 = vmatprep.subr.mxu0 0.0
    %4523 = vmatpush1.msra.mxu0 0.0
    %4524 = vmatprep.subr.mxu0 0.0
    %4525 = vmatpush1.msra.mxu0 0.0
    %4526 = vmatprep.subr.mxu0 0.0
    %4527 = vmatpush1.msra.mxu0 0.0
    %4528 = vmatprep.subr.mxu0 0.0
    %4529 = vmatpush1.msra.mxu0 0.0
    %4530 = vmatprep.subr.mxu0 0.0
    %4531 = vmatpush1.msra.mxu0 0.0
    %4532 = vmatprep.subr.mxu0 0.0
    %4533 = vmatpush1.msra.mxu0 0.0
    %4534 = vmatprep.subr.mxu0 0.0
    %4535 = vmatpush1.msra.mxu0 0.0
    %4536 = vmatprep.subr.mxu0 0.0
    %4537 = vmatpush1.msra.mxu0 0.0
    %4538 = vmatprep.subr.mxu0 0.0
    %4539 = vmatpush1.msra.mxu0 0.0
    %4540 = vmatprep.subr.mxu0 0.0
    %4541 = vmatpush1.msra.mxu0 0.0
    %4542 = vmatprep.subr.mxu0 0.0
    %4543 = vmatpush1.msra.mxu0 0.0
    %4544 = vmatprep.subr.mxu0 0.0
    %4545 = vmatpush1.msra.mxu0 0.0
    %4546 = vmatprep.subr.mxu0 0.0
    %4547 = vmatpush1.msra.mxu0 0.0
    %4548 = vmatprep.subr.mxu0 0.0
    %4549 = vmatpush1.msra.mxu0 0.0
    %4550 = vmatprep.subr.mxu0 0.0
    %4551 = vmatpush1.msra.mxu0 0.0
    %4552 = vmatprep.subr.mxu0 0.0
    %4553 = vmatpush1.msra.mxu0 0.0
    %4554 = vmatprep.subr.mxu0 0.0
    %4555 = vmatpush1.msra.mxu0 0.0
    %4556 = vmatprep.subr.mxu0 0.0
    %4557 = vmatpush1.msra.mxu0 0.0
    %4558 = vmatprep.subr.mxu0 0.0
    %4559 = vmatpush1.msra.mxu0 0.0
    %4560 = vmatprep.subr.mxu0 0.0
    %4561 = vmatpush1.msra.mxu0 0.0
    %4562 = vmatprep.mubr.f32.mxu0 0.0
    %4563 = vmatmul.mubr.f32.gmra.mrb[0].mxu0 %v4481
    %v4564 = vpop.f32.mrb[0].mxu0
    %v4565 = vadd.f32 %v4478, %v4564
    %v4566 = vpop.f32.mrb[0].mxu0
    %4567 = vmatprep.mubr.f32.mxu0 0.0
    %4568 = vmatmul.mubr.f32.gmra.mrb[0].mxu0 %v4484
    %v4569 = vpop.f32.mrb[0].mxu0
    %v4570 = vadd.f32 %v4478, %v4569
    %v4571 = vpop.f32.mrb[0].mxu0
    %4572 = vmatprep.mubr.f32.mxu0 0.0
    %4573 = vmatmul.mubr.f32.gmra.mrb[0].mxu0 %v4487
    %v4574 = vpop.f32.mrb[0].mxu0
    %v4575 = vadd.f32 %v4478, %v4574
    %v4576 = vpop.f32.mrb[0].mxu0
    %4577 = vmatprep.mubr.f32.mxu0 0.0
    %4578 = vmatmul.mubr.f32.gmra.mrb[0].mxu0 %v4490
    %v4579 = vpop.f32.mrb[0].mxu0
    %v4580 = vadd.f32 %v4478, %v4579
    %v4581 = vpop.f32.mrb[0].mxu0
    %4582 = vmatprep.mubr.f32.mxu0 0.0
    %4583 = vmatmul.mubr.f32.gmra.mrb[0].mxu0 %v4493
    %v4584 = vpop.f32.mrb[0].mxu0
    %v4585 = vadd.f32 %v4478, %v4584
    %v4586 = vpop.f32.mrb[0].mxu0
    %4587 = vdwg.mxu0
    %v4588 = vld [vmem:[%s10] sm:$0x3]
    %v4594 = vcombine.high %v4565, %v4565
    %v4596 = vunpack.c.l.s4 1966171168
    %v4597 = vunpack.c.0.s8 %v4596
    %v4598 = vlaneseq
    %v4599 = vshrl.u32 %v4598, 7
    %v4600 = vsub.s32 %v4597, %v4599
    %v4601 = vrot.slane %v4565, %v4600
    %v4603 = vunpack.c.l.s4 1966171168
    %v4604 = vunpack.c.0.s8 %v4603
    %v4605 = vlaneseq
    %v4606 = vshrl.u32 %v4605, 7
    %v4607 = vsub.s32 %v4604, %v4606
    %v4608 = vrot.slane %v4594, %v4607
    %v4609 = vcombine.high %v4601, %v4601
    %v4610 = vcombine.high %v4608, %v4608
    %v4612 = vunpack.c.l.s4 1966171168
    %v4613 = vunpack.c.0.s8 %v4612
    %v4614 = vlaneseq
    %v4615 = vshrl.u32 %v4614, 7
    %v4616 = vsub.s32 %v4613, %v4615
    %v4617 = vrot.slane %v4601, %v4616
    %v4619 = vunpack.c.l.s4 1966171168
    %v4620 = vunpack.c.0.s8 %v4619
    %v4621 = vlaneseq
    %v4622 = vshrl.u32 %v4621, 7
    %v4623 = vsub.s32 %v4620, %v4622
    %v4624 = vrot.slane %v4608, %v4623
    %v4626 = vunpack.c.l.s4 1966171168
    %v4627 = vunpack.c.0.s8 %v4626
    %v4628 = vlaneseq
    %v4629 = vshrl.u32 %v4628, 7
    %v4630 = vsub.s32 %v4627, %v4629
    %v4631 = vrot.slane %v4609, %v4630
    %v4633 = vunpack.c.l.s4 1966171168
    %v4634 = vunpack.c.0.s8 %v4633
    %v4635 = vlaneseq
    %v4636 = vshrl.u32 %v4635, 7
    %v4637 = vsub.s32 %v4634, %v4636
    %v4638 = vrot.slane %v4610, %v4637
    %v4639 = vcombine.high %v4617, %v4617
    %v4640 = vcombine.high %v4624, %v4624
    %v4641 = vcombine.high %v4631, %v4631
    %v4642 = vcombine.high %v4638, %v4638
    %v4643 = vcombine.high %v4570, %v4570
    %v4645 = vunpack.c.l.s4 1966171168
    %v4646 = vunpack.c.0.s8 %v4645
    %v4647 = vlaneseq
    %v4648 = vshrl.u32 %v4647, 7
    %v4649 = vsub.s32 %v4646, %v4648
    %v4650 = vrot.slane %v4570, %v4649
    %v4652 = vunpack.c.l.s4 1966171168
    %v4653 = vunpack.c.0.s8 %v4652
    %v4654 = vlaneseq
    %v4655 = vshrl.u32 %v4654, 7
    %v4656 = vsub.s32 %v4653, %v4655
    %v4657 = vrot.slane %v4643, %v4656
    %v4658 = vcombine.high %v4650, %v4650
    %v4659 = vcombine.high %v4657, %v4657
    %v4661 = vunpack.c.l.s4 1966171168
    %v4662 = vunpack.c.0.s8 %v4661
    %v4663 = vlaneseq
    %v4664 = vshrl.u32 %v4663, 7
    %v4665 = vsub.s32 %v4662, %v4664
    %v4666 = vrot.slane %v4650, %v4665
    %v4668 = vunpack.c.l.s4 1966171168
    %v4669 = vunpack.c.0.s8 %v4668
    %v4670 = vlaneseq
    %v4671 = vshrl.u32 %v4670, 7
    %v4672 = vsub.s32 %v4669, %v4671
    %v4673 = vrot.slane %v4657, %v4672
    %v4675 = vunpack.c.l.s4 1966171168
    %v4676 = vunpack.c.0.s8 %v4675
    %v4677 = vlaneseq
    %v4678 = vshrl.u32 %v4677, 7
    %v4679 = vsub.s32 %v4676, %v4678
    %v4680 = vrot.slane %v4658, %v4679
    %v4682 = vunpack.c.l.s4 1966171168
    %v4683 = vunpack.c.0.s8 %v4682
    %v4684 = vlaneseq
    %v4685 = vshrl.u32 %v4684, 7
    %v4686 = vsub.s32 %v4683, %v4685
    %v4687 = vrot.slane %v4659, %v4686
    %v4688 = vcombine.high %v4666, %v4666
    %v4689 = vcombine.high %v4673, %v4673
    %v4690 = vcombine.high %v4680, %v4680
    %v4691 = vcombine.high %v4687, %v4687
    %v4692 = vcombine.high %v4575, %v4575
    %v4694 = vunpack.c.l.s4 1966171168
    %v4695 = vunpack.c.0.s8 %v4694
    %v4696 = vlaneseq
    %v4697 = vshrl.u32 %v4696, 7
    %v4698 = vsub.s32 %v4695, %v4697
    %v4699 = vrot.slane %v4575, %v4698
    %v4701 = vunpack.c.l.s4 1966171168
    %v4702 = vunpack.c.0.s8 %v4701
    %v4703 = vlaneseq
    %v4704 = vshrl.u32 %v4703, 7
    %v4705 = vsub.s32 %v4702, %v4704
    %v4706 = vrot.slane %v4692, %v4705
    %v4707 = vcombine.high %v4699, %v4699
    %v4708 = vcombine.high %v4706, %v4706
    %v4710 = vunpack.c.l.s4 1966171168
    %v4711 = vunpack.c.0.s8 %v4710
    %v4712 = vlaneseq
    %v4713 = vshrl.u32 %v4712, 7
    %v4714 = vsub.s32 %v4711, %v4713
    %v4715 = vrot.slane %v4699, %v4714
    %v4717 = vunpack.c.l.s4 1966171168
    %v4718 = vunpack.c.0.s8 %v4717
    %v4719 = vlaneseq
    %v4720 = vshrl.u32 %v4719, 7
    %v4721 = vsub.s32 %v4718, %v4720
    %v4722 = vrot.slane %v4706, %v4721
    %v4724 = vunpack.c.l.s4 1966171168
    %v4725 = vunpack.c.0.s8 %v4724
    %v4726 = vlaneseq
    %v4727 = vshrl.u32 %v4726, 7
    %v4728 = vsub.s32 %v4725, %v4727
    %v4729 = vrot.slane %v4707, %v4728
    %v4731 = vunpack.c.l.s4 1966171168
    %v4732 = vunpack.c.0.s8 %v4731
    %v4733 = vlaneseq
    %v4734 = vshrl.u32 %v4733, 7
    %v4735 = vsub.s32 %v4732, %v4734
    %v4736 = vrot.slane %v4708, %v4735
    %v4737 = vcombine.high %v4715, %v4715
    %v4738 = vcombine.high %v4722, %v4722
    %v4739 = vcombine.high %v4729, %v4729
    %v4740 = vcombine.high %v4736, %v4736
    %v4741 = vcombine.high %v4580, %v4580
    %v4743 = vunpack.c.l.s4 1966171168
    %v4744 = vunpack.c.0.s8 %v4743
    %v4745 = vlaneseq
    %v4746 = vshrl.u32 %v4745, 7
    %v4747 = vsub.s32 %v4744, %v4746
    %v4748 = vrot.slane %v4580, %v4747
    %v4750 = vunpack.c.l.s4 1966171168
    %v4751 = vunpack.c.0.s8 %v4750
    %v4752 = vlaneseq
    %v4753 = vshrl.u32 %v4752, 7
    %v4754 = vsub.s32 %v4751, %v4753
    %v4755 = vrot.slane %v4741, %v4754
    %v4756 = vcombine.high %v4748, %v4748
    %v4757 = vcombine.high %v4755, %v4755
    %v4759 = vunpack.c.l.s4 1966171168
    %v4760 = vunpack.c.0.s8 %v4759
    %v4761 = vlaneseq
    %v4762 = vshrl.u32 %v4761, 7
    %v4763 = vsub.s32 %v4760, %v4762
    %v4764 = vrot.slane %v4748, %v4763
    %v4766 = vunpack.c.l.s4 1966171168
    %v4767 = vunpack.c.0.s8 %v4766
    %v4768 = vlaneseq
    %v4769 = vshrl.u32 %v4768, 7
    %v4770 = vsub.s32 %v4767, %v4769
    %v4771 = vrot.slane %v4755, %v4770
    %v4773 = vunpack.c.l.s4 1966171168
    %v4774 = vunpack.c.0.s8 %v4773
    %v4775 = vlaneseq
    %v4776 = vshrl.u32 %v4775, 7
    %v4777 = vsub.s32 %v4774, %v4776
    %v4778 = vrot.slane %v4756, %v4777
    %v4780 = vunpack.c.l.s4 1966171168
    %v4781 = vunpack.c.0.s8 %v4780
    %v4782 = vlaneseq
    %v4783 = vshrl.u32 %v4782, 7
    %v4784 = vsub.s32 %v4781, %v4783
    %v4785 = vrot.slane %v4757, %v4784
    %v4786 = vcombine.high %v4764, %v4764
    %v4787 = vcombine.high %v4771, %v4771
    %v4788 = vcombine.high %v4778, %v4778
    %v4789 = vcombine.high %v4785, %v4785
    %v4791 = vunpack.c.l.s4 1966171168
    %v4792 = vunpack.c.0.s8 %v4791
    %v4793 = vlaneseq
    %v4794 = vshrl.u32 %v4793, 7
    %v4795 = vsub.s32 %v4792, %v4794
    %v4796 = vrot.slane %v4585, %v4795
    %v4797 = vcombine.high %v4796, %v4796
    %v4799 = vunpack.c.l.s4 1966171168
    %v4800 = vunpack.c.0.s8 %v4799
    %v4801 = vlaneseq
    %v4802 = vshrl.u32 %v4801, 7
    %v4803 = vsub.s32 %v4800, %v4802
    %v4804 = vrot.slane %v4796, %v4803
    %v4806 = vunpack.c.l.s4 1966171168
    %v4807 = vunpack.c.0.s8 %v4806
    %v4808 = vlaneseq
    %v4809 = vshrl.u32 %v4808, 7
    %v4810 = vsub.s32 %v4807, %v4809
    %v4811 = vrot.slane %v4797, %v4810
    %v4846 = vadd.f32 %v4023, %v4617
    %v4847 = vadd.f32 %v4024, %v4631
    %v4848 = vadd.f32 %v4025, %v4639
    %v4849 = vadd.f32 %v4026, %v4641
    %v4850 = vadd.f32 %v4027, %v4624
    %v4851 = vadd.f32 %v4028, %v4638
    %v4852 = vadd.f32 %v4029, %v4640
    %v4853 = vadd.f32 %v4030, %v4642
    %v4854 = vadd.f32 %v4031, %v4666
    %v4855 = vadd.f32 %v4032, %v4680
    %v4856 = vadd.f32 %v4033, %v4688
    %v4857 = vadd.f32 %v4034, %v4690
    %v4858 = vadd.f32 %v4035, %v4673
    %v4859 = vadd.f32 %v4036, %v4687
    %v4860 = vadd.f32 %v4037, %v4689
    %v4861 = vadd.f32 %v4038, %v4691
    %v4862 = vadd.f32 %v4039, %v4715
    %v4863 = vadd.f32 %v4040, %v4729
    %v4864 = vadd.f32 %v4041, %v4737
    %v4865 = vadd.f32 %v4042, %v4739
    %v4866 = vadd.f32 %v4043, %v4722
    %v4867 = vadd.f32 %v4044, %v4736
    %v4868 = vadd.f32 %v4045, %v4738
    %v4869 = vadd.f32 %v4046, %v4740
    %v4870 = vadd.f32 %v4047, %v4764
    %v4871 = vadd.f32 %v4048, %v4778
    %v4872 = vadd.f32 %v4049, %v4786
    %v4873 = vadd.f32 %v4050, %v4788
    %v4874 = vadd.f32 %v4051, %v4771
    %v4875 = vadd.f32 %v4052, %v4785
    %v4876 = vadd.f32 %v4053, %v4787
    %v4877 = vadd.f32 %v4054, %v4789
    %v4878 = vadd.f32 %v4055, %v4804
    %v4879 = vadd.f32 %v4056, %v4811
    %v4914 = vcombine.low %v4846, %v4847
    %v4915 = vcombine.low %v4848, %v4849
    %v4916 = vcombine.low %v4850, %v4851
    %v4917 = vcombine.low %v4852, %v4853
    %v4919 = vunpack.c.l.s4 1966171168
    %v4920 = vunpack.c.0.s8 %v4919
    %v4921 = vlaneseq
    %v4922 = vshrl.u32 %v4921, 7
    %v4923 = vsub.s32 %v4920, %v4922
    %v4924 = vrot.slane %v4914, %v4923
    %v4926 = vunpack.c.l.s4 1966171168
    %v4927 = vunpack.c.0.s8 %v4926
    %v4928 = vlaneseq
    %v4929 = vshrl.u32 %v4928, 7
    %v4930 = vsub.s32 %v4927, %v4929
    %v4931 = vrot.slane %v4915, %v4930
    %v4933 = vunpack.c.l.s4 1966171168
    %v4934 = vunpack.c.0.s8 %v4933
    %v4935 = vlaneseq
    %v4936 = vshrl.u32 %v4935, 7
    %v4937 = vsub.s32 %v4934, %v4936
    %v4938 = vrot.slane %v4916, %v4937
    %v4940 = vunpack.c.l.s4 1966171168
    %v4941 = vunpack.c.0.s8 %v4940
    %v4942 = vlaneseq
    %v4943 = vshrl.u32 %v4942, 7
    %v4944 = vsub.s32 %v4941, %v4943
    %v4945 = vrot.slane %v4917, %v4944
    %v4946 = vcombine.low %v4924, %v4931
    %v4947 = vcombine.low %v4938, %v4945
    %v4949 = vunpack.c.l.s4 1966171168
    %v4950 = vunpack.c.0.s8 %v4949
    %v4951 = vlaneseq
    %v4952 = vshrl.u32 %v4951, 7
    %v4953 = vsub.s32 %v4950, %v4952
    %v4954 = vrot.slane %v4946, %v4953
    %v4956 = vunpack.c.l.s4 1966171168
    %v4957 = vunpack.c.0.s8 %v4956
    %v4958 = vlaneseq
    %v4959 = vshrl.u32 %v4958, 7
    %v4960 = vsub.s32 %v4957, %v4959
    %v4961 = vrot.slane %v4947, %v4960
    %v4962 = vcombine.low %v4954, %v4961
    %v4963 = vcombine.low %v4854, %v4855
    %v4964 = vcombine.low %v4856, %v4857
    %v4965 = vcombine.low %v4858, %v4859
    %v4966 = vcombine.low %v4860, %v4861
    %v4968 = vunpack.c.l.s4 1966171168
    %v4969 = vunpack.c.0.s8 %v4968
    %v4970 = vlaneseq
    %v4971 = vshrl.u32 %v4970, 7
    %v4972 = vsub.s32 %v4969, %v4971
    %v4973 = vrot.slane %v4963, %v4972
    %v4975 = vunpack.c.l.s4 1966171168
    %v4976 = vunpack.c.0.s8 %v4975
    %v4977 = vlaneseq
    %v4978 = vshrl.u32 %v4977, 7
    %v4979 = vsub.s32 %v4976, %v4978
    %v4980 = vrot.slane %v4964, %v4979
    %v4982 = vunpack.c.l.s4 1966171168
    %v4983 = vunpack.c.0.s8 %v4982
    %v4984 = vlaneseq
    %v4985 = vshrl.u32 %v4984, 7
    %v4986 = vsub.s32 %v4983, %v4985
    %v4987 = vrot.slane %v4965, %v4986
    %v4989 = vunpack.c.l.s4 1966171168
    %v4990 = vunpack.c.0.s8 %v4989
    %v4991 = vlaneseq
    %v4992 = vshrl.u32 %v4991, 7
    %v4993 = vsub.s32 %v4990, %v4992
    %v4994 = vrot.slane %v4966, %v4993
    %v4995 = vcombine.low %v4973, %v4980
    %v4996 = vcombine.low %v4987, %v4994
    %v4998 = vunpack.c.l.s4 1966171168
    %v4999 = vunpack.c.0.s8 %v4998
    %v5000 = vlaneseq
    %v5001 = vshrl.u32 %v5000, 7
    %v5002 = vsub.s32 %v4999, %v5001
    %v5003 = vrot.slane %v4995, %v5002
    %v5005 = vunpack.c.l.s4 1966171168
    %v5006 = vunpack.c.0.s8 %v5005
    %v5007 = vlaneseq
    %v5008 = vshrl.u32 %v5007, 7
    %v5009 = vsub.s32 %v5006, %v5008
    %v5010 = vrot.slane %v4996, %v5009
    %v5011 = vcombine.low %v5003, %v5010
    %v5012 = vcombine.low %v4862, %v4863
    %v5013 = vcombine.low %v4864, %v4865
    %v5014 = vcombine.low %v4866, %v4867
    %v5015 = vcombine.low %v4868, %v4869
    %v5017 = vunpack.c.l.s4 1966171168
    %v5018 = vunpack.c.0.s8 %v5017
    %v5019 = vlaneseq
    %v5020 = vshrl.u32 %v5019, 7
    %v5021 = vsub.s32 %v5018, %v5020
    %v5022 = vrot.slane %v5012, %v5021
    %v5024 = vunpack.c.l.s4 1966171168
    %v5025 = vunpack.c.0.s8 %v5024
    %v5026 = vlaneseq
    %v5027 = vshrl.u32 %v5026, 7
    %v5028 = vsub.s32 %v5025, %v5027
    %v5029 = vrot.slane %v5013, %v5028
    %v5031 = vunpack.c.l.s4 1966171168
    %v5032 = vunpack.c.0.s8 %v5031
    %v5033 = vlaneseq
    %v5034 = vshrl.u32 %v5033, 7
    %v5035 = vsub.s32 %v5032, %v5034
    %v5036 = vrot.slane %v5014, %v5035
    %v5038 = vunpack.c.l.s4 1966171168
    %v5039 = vunpack.c.0.s8 %v5038
    %v5040 = vlaneseq
    %v5041 = vshrl.u32 %v5040, 7
    %v5042 = vsub.s32 %v5039, %v5041
    %v5043 = vrot.slane %v5015, %v5042
    %v5044 = vcombine.low %v5022, %v5029
    %v5045 = vcombine.low %v5036, %v5043
    %v5047 = vunpack.c.l.s4 1966171168
    %v5048 = vunpack.c.0.s8 %v5047
    %v5049 = vlaneseq
    %v5050 = vshrl.u32 %v5049, 7
    %v5051 = vsub.s32 %v5048, %v5050
    %v5052 = vrot.slane %v5044, %v5051
    %v5054 = vunpack.c.l.s4 1966171168
    %v5055 = vunpack.c.0.s8 %v5054
    %v5056 = vlaneseq
    %v5057 = vshrl.u32 %v5056, 7
    %v5058 = vsub.s32 %v5055, %v5057
    %v5059 = vrot.slane %v5045, %v5058
    %v5060 = vcombine.low %v5052, %v5059
    %v5061 = vcombine.low %v4870, %v4871
    %v5062 = vcombine.low %v4872, %v4873
    %v5063 = vcombine.low %v4874, %v4875
    %v5064 = vcombine.low %v4876, %v4877
    %v5066 = vunpack.c.l.s4 1966171168
    %v5067 = vunpack.c.0.s8 %v5066
    %v5068 = vlaneseq
    %v5069 = vshrl.u32 %v5068, 7
    %v5070 = vsub.s32 %v5067, %v5069
    %v5071 = vrot.slane %v5061, %v5070
    %v5073 = vunpack.c.l.s4 1966171168
    %v5074 = vunpack.c.0.s8 %v5073
    %v5075 = vlaneseq
    %v5076 = vshrl.u32 %v5075, 7
    %v5077 = vsub.s32 %v5074, %v5076
    %v5078 = vrot.slane %v5062, %v5077
    %v5080 = vunpack.c.l.s4 1966171168
    %v5081 = vunpack.c.0.s8 %v5080
    %v5082 = vlaneseq
    %v5083 = vshrl.u32 %v5082, 7
    %v5084 = vsub.s32 %v5081, %v5083
    %v5085 = vrot.slane %v5063, %v5084
    %v5087 = vunpack.c.l.s4 1966171168
    %v5088 = vunpack.c.0.s8 %v5087
    %v5089 = vlaneseq
    %v5090 = vshrl.u32 %v5089, 7
    %v5091 = vsub.s32 %v5088, %v5090
    %v5092 = vrot.slane %v5064, %v5091
    %v5093 = vcombine.low %v5071, %v5078
    %v5094 = vcombine.low %v5085, %v5092
    %v5096 = vunpack.c.l.s4 1966171168
    %v5097 = vunpack.c.0.s8 %v5096
    %v5098 = vlaneseq
    %v5099 = vshrl.u32 %v5098, 7
    %v5100 = vsub.s32 %v5097, %v5099
    %v5101 = vrot.slane %v5093, %v5100
    %v5103 = vunpack.c.l.s4 1966171168
    %v5104 = vunpack.c.0.s8 %v5103
    %v5105 = vlaneseq
    %v5106 = vshrl.u32 %v5105, 7
    %v5107 = vsub.s32 %v5104, %v5106
    %v5108 = vrot.slane %v5094, %v5107
    %v5109 = vcombine.low %v5101, %v5108
    %v5110 = vcombine.low %v4878, %v4879
    %v5112 = vunpack.c.l.s4 1966171168
    %v5113 = vunpack.c.0.s8 %v5112
    %v5114 = vlaneseq
    %v5115 = vshrl.u32 %v5114, 7
    %v5116 = vsub.s32 %v5113, %v5115
    %v5117 = vrot.slane %v5110, %v5116
    %v5119 = vunpack.c.l.s4 1966171168
    %v5120 = vunpack.c.0.s8 %v5119
    %v5121 = vlaneseq
    %v5122 = vshrl.u32 %v5121, 7
    %v5123 = vsub.s32 %v5120, %v5122
    %v5124 = vrot.slane %v5117, %v5123
    %v5130 = vsel %vm548, %v4962, 0.0
    %5131 = vadd.xlane.f32.xlu0 %v5130
    %v5132 = vpop.xlane.xlu0 %5131
    %v5133 = vsel %vm548, %v5011, 0.0
    %5134 = vadd.xlane.f32.xlu0 %v5133
    %v5135 = vpop.xlane.xlu0 %5134
    %v5136 = vsel %vm548, %v5060, 0.0
    %5137 = vadd.xlane.f32.xlu0 %v5136
    %v5138 = vpop.xlane.xlu0 %5137
    %v5139 = vsel %vm548, %v5109, 0.0
    %5140 = vadd.xlane.f32.xlu0 %v5139
    %v5141 = vpop.xlane.xlu0 %5140
    %v5142 = vsel %vm3123, %v5124, 0.0
    %5143 = vadd.xlane.f32.xlu0 %v5142
    %v5144 = vpop.xlane.xlu0 %5143
    %v5145 = vmul.f32 %v5132, %v3127
    %v5146 = vmul.f32 %v5135, %v3127
    %v5147 = vmul.f32 %v5138, %v3127
    %v5148 = vmul.f32 %v5141, %v3127
    %v5149 = vmul.f32 %v5144, %v3127
    %v5155 = vlaneseq
    %v5156 = vshrl.u32 %v5155, 7
    %v5157 = vsub.s32 0, %v5156
    %v5158 = vrot.slane %v5145, %v5157
    %v5159 = vlaneseq
    %v5160 = vshrl.u32 %v5159, 7
    %v5161 = vsub.s32 1, %v5160
    %v5162 = vrot.slane %v5145, %v5161
    %v5163 = vlaneseq
    %v5164 = vshrl.u32 %v5163, 7
    %v5165 = vsub.s32 2, %v5164
    %v5166 = vrot.slane %v5145, %v5165
    %v5167 = vlaneseq
    %v5168 = vshrl.u32 %v5167, 7
    %v5169 = vsub.s32 3, %v5168
    %v5170 = vrot.slane %v5145, %v5169
    %v5171 = vlaneseq
    %v5172 = vshrl.u32 %v5171, 7
    %v5173 = vsub.s32 4, %v5172
    %v5174 = vrot.slane %v5145, %v5173
    %v5175 = vlaneseq
    %v5176 = vshrl.u32 %v5175, 7
    %v5177 = vsub.s32 5, %v5176
    %v5178 = vrot.slane %v5145, %v5177
    %v5179 = vlaneseq
    %v5180 = vshrl.u32 %v5179, 7
    %v5181 = vsub.s32 6, %v5180
    %v5182 = vrot.slane %v5145, %v5181
    %v5183 = vlaneseq
    %v5184 = vshrl.u32 %v5183, 7
    %v5185 = vsub.s32 7, %v5184
    %v5186 = vrot.slane %v5145, %v5185
    %v5187 = vlaneseq
    %v5188 = vshrl.u32 %v5187, 7
    %v5189 = vsub.s32 0, %v5188
    %v5190 = vrot.slane %v5146, %v5189
    %v5191 = vlaneseq
    %v5192 = vshrl.u32 %v5191, 7
    %v5193 = vsub.s32 1, %v5192
    %v5194 = vrot.slane %v5146, %v5193
    %v5195 = vlaneseq
    %v5196 = vshrl.u32 %v5195, 7
    %v5197 = vsub.s32 2, %v5196
    %v5198 = vrot.slane %v5146, %v5197
    %v5199 = vlaneseq
    %v5200 = vshrl.u32 %v5199, 7
    %v5201 = vsub.s32 3, %v5200
    %v5202 = vrot.slane %v5146, %v5201
    %v5203 = vlaneseq
    %v5204 = vshrl.u32 %v5203, 7
    %v5205 = vsub.s32 4, %v5204
    %v5206 = vrot.slane %v5146, %v5205
    %v5207 = vlaneseq
    %v5208 = vshrl.u32 %v5207, 7
    %v5209 = vsub.s32 5, %v5208
    %v5210 = vrot.slane %v5146, %v5209
    %v5211 = vlaneseq
    %v5212 = vshrl.u32 %v5211, 7
    %v5213 = vsub.s32 6, %v5212
    %v5214 = vrot.slane %v5146, %v5213
    %v5215 = vlaneseq
    %v5216 = vshrl.u32 %v5215, 7
    %v5217 = vsub.s32 7, %v5216
    %v5218 = vrot.slane %v5146, %v5217
    %v5219 = vlaneseq
    %v5220 = vshrl.u32 %v5219, 7
    %v5221 = vsub.s32 0, %v5220
    %v5222 = vrot.slane %v5147, %v5221
    %v5223 = vlaneseq
    %v5224 = vshrl.u32 %v5223, 7
    %v5225 = vsub.s32 1, %v5224
    %v5226 = vrot.slane %v5147, %v5225
    %v5227 = vlaneseq
    %v5228 = vshrl.u32 %v5227, 7
    %v5229 = vsub.s32 2, %v5228
    %v5230 = vrot.slane %v5147, %v5229
    %v5231 = vlaneseq
    %v5232 = vshrl.u32 %v5231, 7
    %v5233 = vsub.s32 3, %v5232
    %v5234 = vrot.slane %v5147, %v5233
    %v5235 = vlaneseq
    %v5236 = vshrl.u32 %v5235, 7
    %v5237 = vsub.s32 4, %v5236
    %v5238 = vrot.slane %v5147, %v5237
    %v5239 = vlaneseq
    %v5240 = vshrl.u32 %v5239, 7
    %v5241 = vsub.s32 5, %v5240
    %v5242 = vrot.slane %v5147, %v5241
    %v5243 = vlaneseq
    %v5244 = vshrl.u32 %v5243, 7
    %v5245 = vsub.s32 6, %v5244
    %v5246 = vrot.slane %v5147, %v5245
    %v5247 = vlaneseq
    %v5248 = vshrl.u32 %v5247, 7
    %v5249 = vsub.s32 7, %v5248
    %v5250 = vrot.slane %v5147, %v5249
    %v5251 = vlaneseq
    %v5252 = vshrl.u32 %v5251, 7
    %v5253 = vsub.s32 0, %v5252
    %v5254 = vrot.slane %v5148, %v5253
    %v5255 = vlaneseq
    %v5256 = vshrl.u32 %v5255, 7
    %v5257 = vsub.s32 1, %v5256
    %v5258 = vrot.slane %v5148, %v5257
    %v5259 = vlaneseq
    %v5260 = vshrl.u32 %v5259, 7
    %v5261 = vsub.s32 2, %v5260
    %v5262 = vrot.slane %v5148, %v5261
    %v5263 = vlaneseq
    %v5264 = vshrl.u32 %v5263, 7
    %v5265 = vsub.s32 3, %v5264
    %v5266 = vrot.slane %v5148, %v5265
    %v5267 = vlaneseq
    %v5268 = vshrl.u32 %v5267, 7
    %v5269 = vsub.s32 4, %v5268
    %v5270 = vrot.slane %v5148, %v5269
    %v5271 = vlaneseq
    %v5272 = vshrl.u32 %v5271, 7
    %v5273 = vsub.s32 5, %v5272
    %v5274 = vrot.slane %v5148, %v5273
    %v5275 = vlaneseq
    %v5276 = vshrl.u32 %v5275, 7
    %v5277 = vsub.s32 6, %v5276
    %v5278 = vrot.slane %v5148, %v5277
    %v5279 = vlaneseq
    %v5280 = vshrl.u32 %v5279, 7
    %v5281 = vsub.s32 7, %v5280
    %v5282 = vrot.slane %v5148, %v5281
    %v5283 = vlaneseq
    %v5284 = vshrl.u32 %v5283, 7
    %v5285 = vsub.s32 0, %v5284
    %v5286 = vrot.slane %v5149, %v5285
    %v5287 = vlaneseq
    %v5288 = vshrl.u32 %v5287, 7
    %v5289 = vsub.s32 1, %v5288
    %v5290 = vrot.slane %v5149, %v5289
    %v5325 = vsub.f32 %v4846, %v5158
    %v5326 = vsub.f32 %v4847, %v5162
    %v5327 = vsub.f32 %v4848, %v5166
    %v5328 = vsub.f32 %v4849, %v5170
    %v5329 = vsub.f32 %v4850, %v5174
    %v5330 = vsub.f32 %v4851, %v5178
    %v5331 = vsub.f32 %v4852, %v5182
    %v5332 = vsub.f32 %v4853, %v5186
    %v5333 = vsub.f32 %v4854, %v5190
    %v5334 = vsub.f32 %v4855, %v5194
    %v5335 = vsub.f32 %v4856, %v5198
    %v5336 = vsub.f32 %v4857, %v5202
    %v5337 = vsub.f32 %v4858, %v5206
    %v5338 = vsub.f32 %v4859, %v5210
    %v5339 = vsub.f32 %v4860, %v5214
    %v5340 = vsub.f32 %v4861, %v5218
    %v5341 = vsub.f32 %v4862, %v5222
    %v5342 = vsub.f32 %v4863, %v5226
    %v5343 = vsub.f32 %v4864, %v5230
    %v5344 = vsub.f32 %v4865, %v5234
    %v5345 = vsub.f32 %v4866, %v5238
    %v5346 = vsub.f32 %v4867, %v5242
    %v5347 = vsub.f32 %v4868, %v5246
    %v5348 = vsub.f32 %v4869, %v5250
    %v5349 = vsub.f32 %v4870, %v5254
    %v5350 = vsub.f32 %v4871, %v5258
    %v5351 = vsub.f32 %v4872, %v5262
    %v5352 = vsub.f32 %v4873, %v5266
    %v5353 = vsub.f32 %v4874, %v5270
    %v5354 = vsub.f32 %v4875, %v5274
    %v5355 = vsub.f32 %v4876, %v5278
    %v5356 = vsub.f32 %v4877, %v5282
    %v5357 = vsub.f32 %v4878, %v5286
    %v5358 = vsub.f32 %v4879, %v5290
    %v5359 = vmul.f32 %v5325, %v5325
    %v5360 = vmul.f32 %v5326, %v5326
    %v5361 = vmul.f32 %v5327, %v5327
    %v5362 = vmul.f32 %v5328, %v5328
    %v5363 = vmul.f32 %v5329, %v5329
    %v5364 = vmul.f32 %v5330, %v5330
    %v5365 = vmul.f32 %v5331, %v5331
    %v5366 = vmul.f32 %v5332, %v5332
    %v5367 = vmul.f32 %v5333, %v5333
    %v5368 = vmul.f32 %v5334, %v5334
    %v5369 = vmul.f32 %v5335, %v5335
    %v5370 = vmul.f32 %v5336, %v5336
    %v5371 = vmul.f32 %v5337, %v5337
    %v5372 = vmul.f32 %v5338, %v5338
    %v5373 = vmul.f32 %v5339, %v5339
    %v5374 = vmul.f32 %v5340, %v5340
    %v5375 = vmul.f32 %v5341, %v5341
    %v5376 = vmul.f32 %v5342, %v5342
    %v5377 = vmul.f32 %v5343, %v5343
    %v5378 = vmul.f32 %v5344, %v5344
    %v5379 = vmul.f32 %v5345, %v5345
    %v5380 = vmul.f32 %v5346, %v5346
    %v5381 = vmul.f32 %v5347, %v5347
    %v5382 = vmul.f32 %v5348, %v5348
    %v5383 = vmul.f32 %v5349, %v5349
    %v5384 = vmul.f32 %v5350, %v5350
    %v5385 = vmul.f32 %v5351, %v5351
    %v5386 = vmul.f32 %v5352, %v5352
    %v5387 = vmul.f32 %v5353, %v5353
    %v5388 = vmul.f32 %v5354, %v5354
    %v5389 = vmul.f32 %v5355, %v5355
    %v5390 = vmul.f32 %v5356, %v5356
    %v5391 = vmul.f32 %v5357, %v5357
    %v5392 = vmul.f32 %v5358, %v5358
    %v5427 = vcombine.low %v5359, %v5360
    %v5428 = vcombine.low %v5361, %v5362
    %v5429 = vcombine.low %v5363, %v5364
    %v5430 = vcombine.low %v5365, %v5366
    %v5432 = vunpack.c.l.s4 1966171168
    %v5433 = vunpack.c.0.s8 %v5432
    %v5434 = vlaneseq
    %v5435 = vshrl.u32 %v5434, 7
    %v5436 = vsub.s32 %v5433, %v5435
    %v5437 = vrot.slane %v5427, %v5436
    %v5439 = vunpack.c.l.s4 1966171168
    %v5440 = vunpack.c.0.s8 %v5439
    %v5441 = vlaneseq
    %v5442 = vshrl.u32 %v5441, 7
    %v5443 = vsub.s32 %v5440, %v5442
    %v5444 = vrot.slane %v5428, %v5443
    %v5446 = vunpack.c.l.s4 1966171168
    %v5447 = vunpack.c.0.s8 %v5446
    %v5448 = vlaneseq
    %v5449 = vshrl.u32 %v5448, 7
    %v5450 = vsub.s32 %v5447, %v5449
    %v5451 = vrot.slane %v5429, %v5450
    %v5453 = vunpack.c.l.s4 1966171168
    %v5454 = vunpack.c.0.s8 %v5453
    %v5455 = vlaneseq
    %v5456 = vshrl.u32 %v5455, 7
    %v5457 = vsub.s32 %v5454, %v5456
    %v5458 = vrot.slane %v5430, %v5457
    %v5459 = vcombine.low %v5437, %v5444
    %v5460 = vcombine.low %v5451, %v5458
    %v5462 = vunpack.c.l.s4 1966171168
    %v5463 = vunpack.c.0.s8 %v5462
    %v5464 = vlaneseq
    %v5465 = vshrl.u32 %v5464, 7
    %v5466 = vsub.s32 %v5463, %v5465
    %v5467 = vrot.slane %v5459, %v5466
    %v5469 = vunpack.c.l.s4 1966171168
    %v5470 = vunpack.c.0.s8 %v5469
    %v5471 = vlaneseq
    %v5472 = vshrl.u32 %v5471, 7
    %v5473 = vsub.s32 %v5470, %v5472
    %v5474 = vrot.slane %v5460, %v5473
    %v5475 = vcombine.low %v5467, %v5474
    %v5476 = vcombine.low %v5367, %v5368
    %v5477 = vcombine.low %v5369, %v5370
    %v5478 = vcombine.low %v5371, %v5372
    %v5479 = vcombine.low %v5373, %v5374
    %v5481 = vunpack.c.l.s4 1966171168
    %v5482 = vunpack.c.0.s8 %v5481
    %v5483 = vlaneseq
    %v5484 = vshrl.u32 %v5483, 7
    %v5485 = vsub.s32 %v5482, %v5484
    %v5486 = vrot.slane %v5476, %v5485
    %v5488 = vunpack.c.l.s4 1966171168
    %v5489 = vunpack.c.0.s8 %v5488
    %v5490 = vlaneseq
    %v5491 = vshrl.u32 %v5490, 7
    %v5492 = vsub.s32 %v5489, %v5491
    %v5493 = vrot.slane %v5477, %v5492
    %v5495 = vunpack.c.l.s4 1966171168
    %v5496 = vunpack.c.0.s8 %v5495
    %v5497 = vlaneseq
    %v5498 = vshrl.u32 %v5497, 7
    %v5499 = vsub.s32 %v5496, %v5498
    %v5500 = vrot.slane %v5478, %v5499
    %v5502 = vunpack.c.l.s4 1966171168
    %v5503 = vunpack.c.0.s8 %v5502
    %v5504 = vlaneseq
    %v5505 = vshrl.u32 %v5504, 7
    %v5506 = vsub.s32 %v5503, %v5505
    %v5507 = vrot.slane %v5479, %v5506
    %v5508 = vcombine.low %v5486, %v5493
    %v5509 = vcombine.low %v5500, %v5507
    %v5511 = vunpack.c.l.s4 1966171168
    %v5512 = vunpack.c.0.s8 %v5511
    %v5513 = vlaneseq
    %v5514 = vshrl.u32 %v5513, 7
    %v5515 = vsub.s32 %v5512, %v5514
    %v5516 = vrot.slane %v5508, %v5515
    %v5518 = vunpack.c.l.s4 1966171168
    %v5519 = vunpack.c.0.s8 %v5518
    %v5520 = vlaneseq
    %v5521 = vshrl.u32 %v5520, 7
    %v5522 = vsub.s32 %v5519, %v5521
    %v5523 = vrot.slane %v5509, %v5522
    %v5524 = vcombine.low %v5516, %v5523
    %v5525 = vcombine.low %v5375, %v5376
    %v5526 = vcombine.low %v5377, %v5378
    %v5527 = vcombine.low %v5379, %v5380
    %v5528 = vcombine.low %v5381, %v5382
    %v5530 = vunpack.c.l.s4 1966171168
    %v5531 = vunpack.c.0.s8 %v5530
    %v5532 = vlaneseq
    %v5533 = vshrl.u32 %v5532, 7
    %v5534 = vsub.s32 %v5531, %v5533
    %v5535 = vrot.slane %v5525, %v5534
    %v5537 = vunpack.c.l.s4 1966171168
    %v5538 = vunpack.c.0.s8 %v5537
    %v5539 = vlaneseq
    %v5540 = vshrl.u32 %v5539, 7
    %v5541 = vsub.s32 %v5538, %v5540
    %v5542 = vrot.slane %v5526, %v5541
    %v5544 = vunpack.c.l.s4 1966171168
    %v5545 = vunpack.c.0.s8 %v5544
    %v5546 = vlaneseq
    %v5547 = vshrl.u32 %v5546, 7
    %v5548 = vsub.s32 %v5545, %v5547
    %v5549 = vrot.slane %v5527, %v5548
    %v5551 = vunpack.c.l.s4 1966171168
    %v5552 = vunpack.c.0.s8 %v5551
    %v5553 = vlaneseq
    %v5554 = vshrl.u32 %v5553, 7
    %v5555 = vsub.s32 %v5552, %v5554
    %v5556 = vrot.slane %v5528, %v5555
    %v5557 = vcombine.low %v5535, %v5542
    %v5558 = vcombine.low %v5549, %v5556
    %v5560 = vunpack.c.l.s4 1966171168
    %v5561 = vunpack.c.0.s8 %v5560
    %v5562 = vlaneseq
    %v5563 = vshrl.u32 %v5562, 7
    %v5564 = vsub.s32 %v5561, %v5563
    %v5565 = vrot.slane %v5557, %v5564
    %v5567 = vunpack.c.l.s4 1966171168
    %v5568 = vunpack.c.0.s8 %v5567
    %v5569 = vlaneseq
    %v5570 = vshrl.u32 %v5569, 7
    %v5571 = vsub.s32 %v5568, %v5570
    %v5572 = vrot.slane %v5558, %v5571
    %v5573 = vcombine.low %v5565, %v5572
    %v5574 = vcombine.low %v5383, %v5384
    %v5575 = vcombine.low %v5385, %v5386
    %v5576 = vcombine.low %v5387, %v5388
    %v5577 = vcombine.low %v5389, %v5390
    %v5579 = vunpack.c.l.s4 1966171168
    %v5580 = vunpack.c.0.s8 %v5579
    %v5581 = vlaneseq
    %v5582 = vshrl.u32 %v5581, 7
    %v5583 = vsub.s32 %v5580, %v5582
    %v5584 = vrot.slane %v5574, %v5583
    %v5586 = vunpack.c.l.s4 1966171168
    %v5587 = vunpack.c.0.s8 %v5586
    %v5588 = vlaneseq
    %v5589 = vshrl.u32 %v5588, 7
    %v5590 = vsub.s32 %v5587, %v5589
    %v5591 = vrot.slane %v5575, %v5590
    %v5593 = vunpack.c.l.s4 1966171168
    %v5594 = vunpack.c.0.s8 %v5593
    %v5595 = vlaneseq
    %v5596 = vshrl.u32 %v5595, 7
    %v5597 = vsub.s32 %v5594, %v5596
    %v5598 = vrot.slane %v5576, %v5597
    %v5600 = vunpack.c.l.s4 1966171168
    %v5601 = vunpack.c.0.s8 %v5600
    %v5602 = vlaneseq
    %v5603 = vshrl.u32 %v5602, 7
    %v5604 = vsub.s32 %v5601, %v5603
    %v5605 = vrot.slane %v5577, %v5604
    %v5606 = vcombine.low %v5584, %v5591
    %v5607 = vcombine.low %v5598, %v5605
    %v5609 = vunpack.c.l.s4 1966171168
    %v5610 = vunpack.c.0.s8 %v5609
    %v5611 = vlaneseq
    %v5612 = vshrl.u32 %v5611, 7
    %v5613 = vsub.s32 %v5610, %v5612
    %v5614 = vrot.slane %v5606, %v5613
    %v5616 = vunpack.c.l.s4 1966171168
    %v5617 = vunpack.c.0.s8 %v5616
    %v5618 = vlaneseq
    %v5619 = vshrl.u32 %v5618, 7
    %v5620 = vsub.s32 %v5617, %v5619
    %v5621 = vrot.slane %v5607, %v5620
    %v5622 = vcombine.low %v5614, %v5621
    %v5623 = vcombine.low %v5391, %v5392
    %v5625 = vunpack.c.l.s4 1966171168
    %v5626 = vunpack.c.0.s8 %v5625
    %v5627 = vlaneseq
    %v5628 = vshrl.u32 %v5627, 7
    %v5629 = vsub.s32 %v5626, %v5628
    %v5630 = vrot.slane %v5623, %v5629
    %v5632 = vunpack.c.l.s4 1966171168
    %v5633 = vunpack.c.0.s8 %v5632
    %v5634 = vlaneseq
    %v5635 = vshrl.u32 %v5634, 7
    %v5636 = vsub.s32 %v5633, %v5635
    %v5637 = vrot.slane %v5630, %v5636
    %v5643 = vsel %vm548, %v5475, 0.0
    %5644 = vadd.xlane.f32.xlu0 %v5643
    %v5645 = vpop.xlane.xlu0 %5644
    %v5646 = vsel %vm548, %v5524, 0.0
    %5647 = vadd.xlane.f32.xlu0 %v5646
    %v5648 = vpop.xlane.xlu0 %5647
    %v5649 = vsel %vm548, %v5573, 0.0
    %5650 = vadd.xlane.f32.xlu0 %v5649
    %v5651 = vpop.xlane.xlu0 %5650
    %v5652 = vsel %vm548, %v5622, 0.0
    %5653 = vadd.xlane.f32.xlu0 %v5652
    %v5654 = vpop.xlane.xlu0 %5653
    %v5655 = vsel %vm3123, %v5637, 0.0
    %5656 = vadd.xlane.f32.xlu0 %v5655
    %v5657 = vpop.xlane.xlu0 %5656
    %v5658 = vmul.f32 %v5645, %v3127
    %v5659 = vmul.f32 %v5648, %v3127
    %v5660 = vmul.f32 %v5651, %v3127
    %v5661 = vmul.f32 %v5654, %v3127
    %v5662 = vmul.f32 %v5657, %v3127
    %v5663 = vadd.f32 %v5658, 1e-05
    %v5664 = vadd.f32 %v5659, 1e-05
    %v5665 = vadd.f32 %v5660, 1e-05
    %v5666 = vadd.f32 %v5661, 1e-05
    %v5667 = vadd.f32 %v5662, 1e-05
    %v5668 = vrsqrt.pop %v5663
    %v5669 = vrsqrt.pop %v5664
    %v5670 = vrsqrt.pop %v5665
    %v5671 = vrsqrt.pop %v5666
    %v5672 = vrsqrt.pop %v5667
    %v5678 = vlaneseq
    %v5679 = vshrl.u32 %v5678, 7
    %v5680 = vsub.s32 0, %v5679
    %v5681 = vrot.slane %v5668, %v5680
    %v5682 = vlaneseq
    %v5683 = vshrl.u32 %v5682, 7
    %v5684 = vsub.s32 1, %v5683
    %v5685 = vrot.slane %v5668, %v5684
    %v5686 = vlaneseq
    %v5687 = vshrl.u32 %v5686, 7
    %v5688 = vsub.s32 2, %v5687
    %v5689 = vrot.slane %v5668, %v5688
    %v5690 = vlaneseq
    %v5691 = vshrl.u32 %v5690, 7
    %v5692 = vsub.s32 3, %v5691
    %v5693 = vrot.slane %v5668, %v5692
    %v5694 = vlaneseq
    %v5695 = vshrl.u32 %v5694, 7
    %v5696 = vsub.s32 4, %v5695
    %v5697 = vrot.slane %v5668, %v5696
    %v5698 = vlaneseq
    %v5699 = vshrl.u32 %v5698, 7
    %v5700 = vsub.s32 5, %v5699
    %v5701 = vrot.slane %v5668, %v5700
    %v5702 = vlaneseq
    %v5703 = vshrl.u32 %v5702, 7
    %v5704 = vsub.s32 6, %v5703
    %v5705 = vrot.slane %v5668, %v5704
    %v5706 = vlaneseq
    %v5707 = vshrl.u32 %v5706, 7
    %v5708 = vsub.s32 7, %v5707
    %v5709 = vrot.slane %v5668, %v5708
    %v5710 = vlaneseq
    %v5711 = vshrl.u32 %v5710, 7
    %v5712 = vsub.s32 0, %v5711
    %v5713 = vrot.slane %v5669, %v5712
    %v5714 = vlaneseq
    %v5715 = vshrl.u32 %v5714, 7
    %v5716 = vsub.s32 1, %v5715
    %v5717 = vrot.slane %v5669, %v5716
    %v5718 = vlaneseq
    %v5719 = vshrl.u32 %v5718, 7
    %v5720 = vsub.s32 2, %v5719
    %v5721 = vrot.slane %v5669, %v5720
    %v5722 = vlaneseq
    %v5723 = vshrl.u32 %v5722, 7
    %v5724 = vsub.s32 3, %v5723
    %v5725 = vrot.slane %v5669, %v5724
    %v5726 = vlaneseq
    %v5727 = vshrl.u32 %v5726, 7
    %v5728 = vsub.s32 4, %v5727
    %v5729 = vrot.slane %v5669, %v5728
    %v5730 = vlaneseq
    %v5731 = vshrl.u32 %v5730, 7
    %v5732 = vsub.s32 5, %v5731
    %v5733 = vrot.slane %v5669, %v5732
    %v5734 = vlaneseq
    %v5735 = vshrl.u32 %v5734, 7
    %v5736 = vsub.s32 6, %v5735
    %v5737 = vrot.slane %v5669, %v5736
    %v5738 = vlaneseq
    %v5739 = vshrl.u32 %v5738, 7
    %v5740 = vsub.s32 7, %v5739
    %v5741 = vrot.slane %v5669, %v5740
    %v5742 = vlaneseq
    %v5743 = vshrl.u32 %v5742, 7
    %v5744 = vsub.s32 0, %v5743
    %v5745 = vrot.slane %v5670, %v5744
    %v5746 = vlaneseq
    %v5747 = vshrl.u32 %v5746, 7
    %v5748 = vsub.s32 1, %v5747
    %v5749 = vrot.slane %v5670, %v5748
    %v5750 = vlaneseq
    %v5751 = vshrl.u32 %v5750, 7
    %v5752 = vsub.s32 2, %v5751
    %v5753 = vrot.slane %v5670, %v5752
    %v5754 = vlaneseq
    %v5755 = vshrl.u32 %v5754, 7
    %v5756 = vsub.s32 3, %v5755
    %v5757 = vrot.slane %v5670, %v5756
    %v5758 = vlaneseq
    %v5759 = vshrl.u32 %v5758, 7
    %v5760 = vsub.s32 4, %v5759
    %v5761 = vrot.slane %v5670, %v5760
    %v5762 = vlaneseq
    %v5763 = vshrl.u32 %v5762, 7
    %v5764 = vsub.s32 5, %v5763
    %v5765 = vrot.slane %v5670, %v5764
    %v5766 = vlaneseq
    %v5767 = vshrl.u32 %v5766, 7
    %v5768 = vsub.s32 6, %v5767
    %v5769 = vrot.slane %v5670, %v5768
    %v5770 = vlaneseq
    %v5771 = vshrl.u32 %v5770, 7
    %v5772 = vsub.s32 7, %v5771
    %v5773 = vrot.slane %v5670, %v5772
    %v5774 = vlaneseq
    %v5775 = vshrl.u32 %v5774, 7
    %v5776 = vsub.s32 0, %v5775
    %v5777 = vrot.slane %v5671, %v5776
    %v5778 = vlaneseq
    %v5779 = vshrl.u32 %v5778, 7
    %v5780 = vsub.s32 1, %v5779
    %v5781 = vrot.slane %v5671, %v5780
    %v5782 = vlaneseq
    %v5783 = vshrl.u32 %v5782, 7
    %v5784 = vsub.s32 2, %v5783
    %v5785 = vrot.slane %v5671, %v5784
    %v5786 = vlaneseq
    %v5787 = vshrl.u32 %v5786, 7
    %v5788 = vsub.s32 3, %v5787
    %v5789 = vrot.slane %v5671, %v5788
    %v5790 = vlaneseq
    %v5791 = vshrl.u32 %v5790, 7
    %v5792 = vsub.s32 4, %v5791
    %v5793 = vrot.slane %v5671, %v5792
    %v5794 = vlaneseq
    %v5795 = vshrl.u32 %v5794, 7
    %v5796 = vsub.s32 5, %v5795
    %v5797 = vrot.slane %v5671, %v5796
    %v5798 = vlaneseq
    %v5799 = vshrl.u32 %v5798, 7
    %v5800 = vsub.s32 6, %v5799
    %v5801 = vrot.slane %v5671, %v5800
    %v5802 = vlaneseq
    %v5803 = vshrl.u32 %v5802, 7
    %v5804 = vsub.s32 7, %v5803
    %v5805 = vrot.slane %v5671, %v5804
    %v5806 = vlaneseq
    %v5807 = vshrl.u32 %v5806, 7
    %v5808 = vsub.s32 0, %v5807
    %v5809 = vrot.slane %v5672, %v5808
    %v5810 = vlaneseq
    %v5811 = vshrl.u32 %v5810, 7
    %v5812 = vsub.s32 1, %v5811
    %v5813 = vrot.slane %v5672, %v5812
    %v5848 = vmul.f32 %v5325, %v5681
    %v5849 = vmul.f32 %v5326, %v5685
    %v5850 = vmul.f32 %v5327, %v5689
    %v5851 = vmul.f32 %v5328, %v5693
    %v5852 = vmul.f32 %v5329, %v5697
    %v5853 = vmul.f32 %v5330, %v5701
    %v5854 = vmul.f32 %v5331, %v5705
    %v5855 = vmul.f32 %v5332, %v5709
    %v5856 = vmul.f32 %v5333, %v5713
    %v5857 = vmul.f32 %v5334, %v5717
    %v5858 = vmul.f32 %v5335, %v5721
    %v5859 = vmul.f32 %v5336, %v5725
    %v5860 = vmul.f32 %v5337, %v5729
    %v5861 = vmul.f32 %v5338, %v5733
    %v5862 = vmul.f32 %v5339, %v5737
    %v5863 = vmul.f32 %v5340, %v5741
    %v5864 = vmul.f32 %v5341, %v5745
    %v5865 = vmul.f32 %v5342, %v5749
    %v5866 = vmul.f32 %v5343, %v5753
    %v5867 = vmul.f32 %v5344, %v5757
    %v5868 = vmul.f32 %v5345, %v5761
    %v5869 = vmul.f32 %v5346, %v5765
    %v5870 = vmul.f32 %v5347, %v5769
    %v5871 = vmul.f32 %v5348, %v5773
    %v5872 = vmul.f32 %v5349, %v5777
    %v5873 = vmul.f32 %v5350, %v5781
    %v5874 = vmul.f32 %v5351, %v5785
    %v5875 = vmul.f32 %v5352, %v5789
    %v5876 = vmul.f32 %v5353, %v5793
    %v5877 = vmul.f32 %v5354, %v5797
    %v5878 = vmul.f32 %v5355, %v5801
    %v5879 = vmul.f32 %v5356, %v5805
    %v5880 = vmul.f32 %v5357, %v5809
    %v5881 = vmul.f32 %v5358, %v5813
    %v5882 = vlaneseq
    %v5883 = vshrl.u32 %v5882, 7
    %v5884 = vsub.s32 0, %v5883
    %v5885 = vrot.slane %v4588, %v5884
    %v5887 = vcombine.high %v5885, %v5885
    %v5889 = vunpack.c.l.s4 1966171168
    %v5890 = vunpack.c.0.s8 %v5889
    %v5891 = vlaneseq
    %v5892 = vshrl.u32 %v5891, 7
    %v5893 = vsub.s32 %v5890, %v5892
    %v5894 = vrot.slane %v5885, %v5893
    %v5896 = vunpack.c.l.s4 1966171168
    %v5897 = vunpack.c.0.s8 %v5896
    %v5898 = vlaneseq
    %v5899 = vshrl.u32 %v5898, 7
    %v5900 = vsub.s32 %v5897, %v5899
    %v5901 = vrot.slane %v5887, %v5900
    %v5902 = vcombine.high %v5894, %v5894
    %v5903 = vcombine.high %v5901, %v5901
    %v5905 = vunpack.c.l.s4 1966171168
    %v5906 = vunpack.c.0.s8 %v5905
    %v5907 = vlaneseq
    %v5908 = vshrl.u32 %v5907, 7
    %v5909 = vsub.s32 %v5906, %v5908
    %v5910 = vrot.slane %v5894, %v5909
    %v5912 = vunpack.c.l.s4 1966171168
    %v5913 = vunpack.c.0.s8 %v5912
    %v5914 = vlaneseq
    %v5915 = vshrl.u32 %v5914, 7
    %v5916 = vsub.s32 %v5913, %v5915
    %v5917 = vrot.slane %v5901, %v5916
    %v5919 = vunpack.c.l.s4 1966171168
    %v5920 = vunpack.c.0.s8 %v5919
    %v5921 = vlaneseq
    %v5922 = vshrl.u32 %v5921, 7
    %v5923 = vsub.s32 %v5920, %v5922
    %v5924 = vrot.slane %v5902, %v5923
    %v5926 = vunpack.c.l.s4 1966171168
    %v5927 = vunpack.c.0.s8 %v5926
    %v5928 = vlaneseq
    %v5929 = vshrl.u32 %v5928, 7
    %v5930 = vsub.s32 %v5927, %v5929
    %v5931 = vrot.slane %v5903, %v5930
    %v5932 = vcombine.high %v5910, %v5910
    %v5933 = vcombine.high %v5917, %v5917
    %v5934 = vcombine.high %v5924, %v5924
    %v5935 = vcombine.high %v5931, %v5931
    %v5944 = vmul.f32 %v5848, %v5910
    %v5945 = vmul.f32 %v5849, %v5924
    %v5946 = vmul.f32 %v5850, %v5932
    %v5947 = vmul.f32 %v5851, %v5934
    %v5948 = vmul.f32 %v5852, %v5917
    %v5949 = vmul.f32 %v5853, %v5931
    %v5950 = vmul.f32 %v5854, %v5933
    %v5951 = vmul.f32 %v5855, %v5935
    %v5952 = vmul.f32 %v5856, %v5910
    %v5953 = vmul.f32 %v5857, %v5924
    %v5954 = vmul.f32 %v5858, %v5932
    %v5955 = vmul.f32 %v5859, %v5934
    %v5956 = vmul.f32 %v5860, %v5917
    %v5957 = vmul.f32 %v5861, %v5931
    %v5958 = vmul.f32 %v5862, %v5933
    %v5959 = vmul.f32 %v5863, %v5935
    %v5960 = vmul.f32 %v5864, %v5910
    %v5961 = vmul.f32 %v5865, %v5924
    %v5962 = vmul.f32 %v5866, %v5932
    %v5963 = vmul.f32 %v5867, %v5934
    %v5964 = vmul.f32 %v5868, %v5917
    %v5965 = vmul.f32 %v5869, %v5931
    %v5966 = vmul.f32 %v5870, %v5933
    %v5967 = vmul.f32 %v5871, %v5935
    %v5968 = vmul.f32 %v5872, %v5910
    %v5969 = vmul.f32 %v5873, %v5924
    %v5970 = vmul.f32 %v5874, %v5932
    %v5971 = vmul.f32 %v5875, %v5934
    %v5972 = vmul.f32 %v5876, %v5917
    %v5973 = vmul.f32 %v5877, %v5931
    %v5974 = vmul.f32 %v5878, %v5933
    %v5975 = vmul.f32 %v5879, %v5935
    %v5976 = vmul.f32 %v5880, %v5910
    %v5977 = vmul.f32 %v5881, %v5924
    %v5978 = vlaneseq
    %v5979 = vshrl.u32 %v5978, 7
    %v5980 = vsub.s32 1, %v5979
    %v5981 = vrot.slane %v4588, %v5980
    %v5983 = vcombine.high %v5981, %v5981
    %v5985 = vunpack.c.l.s4 1966171168
    %v5986 = vunpack.c.0.s8 %v5985
    %v5987 = vlaneseq
    %v5988 = vshrl.u32 %v5987, 7
    %v5989 = vsub.s32 %v5986, %v5988
    %v5990 = vrot.slane %v5981, %v5989
    %v5992 = vunpack.c.l.s4 1966171168
    %v5993 = vunpack.c.0.s8 %v5992
    %v5994 = vlaneseq
    %v5995 = vshrl.u32 %v5994, 7
    %v5996 = vsub.s32 %v5993, %v5995
    %v5997 = vrot.slane %v5983, %v5996
    %v5998 = vcombine.high %v5990, %v5990
    %v5999 = vcombine.high %v5997, %v5997
    %v6001 = vunpack.c.l.s4 1966171168
    %v6002 = vunpack.c.0.s8 %v6001
    %v6003 = vlaneseq
    %v6004 = vshrl.u32 %v6003, 7
    %v6005 = vsub.s32 %v6002, %v6004
    %v6006 = vrot.slane %v5990, %v6005
    %v6008 = vunpack.c.l.s4 1966171168
    %v6009 = vunpack.c.0.s8 %v6008
    %v6010 = vlaneseq
    %v6011 = vshrl.u32 %v6010, 7
    %v6012 = vsub.s32 %v6009, %v6011
    %v6013 = vrot.slane %v5997, %v6012
    %v6015 = vunpack.c.l.s4 1966171168
    %v6016 = vunpack.c.0.s8 %v6015
    %v6017 = vlaneseq
    %v6018 = vshrl.u32 %v6017, 7
    %v6019 = vsub.s32 %v6016, %v6018
    %v6020 = vrot.slane %v5998, %v6019
    %v6022 = vunpack.c.l.s4 1966171168
    %v6023 = vunpack.c.0.s8 %v6022
    %v6024 = vlaneseq
    %v6025 = vshrl.u32 %v6024, 7
    %v6026 = vsub.s32 %v6023, %v6025
    %v6027 = vrot.slane %v5999, %v6026
    %v6028 = vcombine.high %v6006, %v6006
    %v6029 = vcombine.high %v6013, %v6013
    %v6030 = vcombine.high %v6020, %v6020
    %v6031 = vcombine.high %v6027, %v6027
    %v6040 = vadd.f32 %v5944, %v6006
    %v6041 = vadd.f32 %v5945, %v6020
    %v6042 = vadd.f32 %v5946, %v6028
    %v6043 = vadd.f32 %v5947, %v6030
    %v6044 = vadd.f32 %v5948, %v6013
    %v6045 = vadd.f32 %v5949, %v6027
    %v6046 = vadd.f32 %v5950, %v6029
    %v6047 = vadd.f32 %v5951, %v6031
    %v6048 = vadd.f32 %v5952, %v6006
    %v6049 = vadd.f32 %v5953, %v6020
    %v6050 = vadd.f32 %v5954, %v6028
    %v6051 = vadd.f32 %v5955, %v6030
    %v6052 = vadd.f32 %v5956, %v6013
    %v6053 = vadd.f32 %v5957, %v6027
    %v6054 = vadd.f32 %v5958, %v6029
    %v6055 = vadd.f32 %v5959, %v6031
    %v6056 = vadd.f32 %v5960, %v6006
    %v6057 = vadd.f32 %v5961, %v6020
    %v6058 = vadd.f32 %v5962, %v6028
    %v6059 = vadd.f32 %v5963, %v6030
    %v6060 = vadd.f32 %v5964, %v6013
    %v6061 = vadd.f32 %v5965, %v6027
    %v6062 = vadd.f32 %v5966, %v6029
    %v6063 = vadd.f32 %v5967, %v6031
    %v6064 = vadd.f32 %v5968, %v6006
    %v6065 = vadd.f32 %v5969, %v6020
    %v6066 = vadd.f32 %v5970, %v6028
    %v6067 = vadd.f32 %v5971, %v6030
    %v6068 = vadd.f32 %v5972, %v6013
    %v6069 = vadd.f32 %v5973, %v6027
    %v6070 = vadd.f32 %v5974, %v6029
    %v6071 = vadd.f32 %v5975, %v6031
    %v6072 = vadd.f32 %v5976, %v6006
    %v6073 = vadd.f32 %v5977, %v6020
    %s6074 = scalar_lea.vmem %s1, 128
    %v6075 = vld [vmem:[%s6074] sm:$0xff]
    %v6076 = vld [vmem:[%s6074 + $0x8] sm:$0xff]
    %v6077 = vld [vmem:[%s6074 + $0x10] sm:$0xff]
    %v6078 = vld [vmem:[%s6074 + $0x18] sm:$0xff]
    %v6079 = vld [vmem:[%s6074 + $0x20] sm:$0xff]
    %v6080 = vld [vmem:[%s6074 + $0x28] sm:$0xff]
    %v6081 = vld [vmem:[%s6074 + $0x30] sm:$0xff]
    %v6082 = vld [vmem:[%s6074 + $0x38] sm:$0xff]
    %v6083 = vld [vmem:[%s6074 + $0x40] sm:$0xff]
    %v6084 = vld [vmem:[%s6074 + $0x48] sm:$0xff]
    %v6085 = vld [vmem:[%s6074 + $0x50] sm:$0xff]
    %v6086 = vld [vmem:[%s6074 + $0x58] sm:$0xff]
    %v6087 = vld [vmem:[%s6074 + $0x60] sm:$0xff]
    %v6088 = vld [vmem:[%s6074 + $0x68] sm:$0xff]
    %v6089 = vld [vmem:[%s6074 + $0x70] sm:$0xf]
    %v6090 = vld [vmem:[%s6074 + $0x78] sm:$0xf]
    %s6091 = scalar_lea.vmem %s2, 2
    %v6092 = vld [vmem:[%s6091] sm:$0x3]
    %v6094 = vlaneseq
    %v6095 = vshrl.u32 %v6094, 7
    %v6096 = vsub.s32 0, %v6095
    %v6097 = vrot.slane %v6092, %v6096
    %v6098 = vlaneseq
    %v6099 = vshrl.u32 %v6098, 7
    %v6100 = vsub.s32 1, %v6099
    %v6101 = vrot.slane %v6092, %v6100
    %v6138 = vcombine.low %v6040, %v6041
    %v6139 = vcombine.low %v6042, %v6043
    %v6140 = vcombine.low %v6044, %v6045
    %v6141 = vcombine.low %v6046, %v6047
    %v6143 = vunpack.c.l.s4 1966171168
    %v6144 = vunpack.c.0.s8 %v6143
    %v6145 = vlaneseq
    %v6146 = vshrl.u32 %v6145, 7
    %v6147 = vsub.s32 %v6144, %v6146
    %v6148 = vrot.slane %v6138, %v6147
    %v6150 = vunpack.c.l.s4 1966171168
    %v6151 = vunpack.c.0.s8 %v6150
    %v6152 = vlaneseq
    %v6153 = vshrl.u32 %v6152, 7
    %v6154 = vsub.s32 %v6151, %v6153
    %v6155 = vrot.slane %v6139, %v6154
    %v6157 = vunpack.c.l.s4 1966171168
    %v6158 = vunpack.c.0.s8 %v6157
    %v6159 = vlaneseq
    %v6160 = vshrl.u32 %v6159, 7
    %v6161 = vsub.s32 %v6158, %v6160
    %v6162 = vrot.slane %v6140, %v6161
    %v6164 = vunpack.c.l.s4 1966171168
    %v6165 = vunpack.c.0.s8 %v6164
    %v6166 = vlaneseq
    %v6167 = vshrl.u32 %v6166, 7
    %v6168 = vsub.s32 %v6165, %v6167
    %v6169 = vrot.slane %v6141, %v6168
    %v6170 = vcombine.low %v6148, %v6155
    %v6171 = vcombine.low %v6162, %v6169
    %v6173 = vunpack.c.l.s4 1966171168
    %v6174 = vunpack.c.0.s8 %v6173
    %v6175 = vlaneseq
    %v6176 = vshrl.u32 %v6175, 7
    %v6177 = vsub.s32 %v6174, %v6176
    %v6178 = vrot.slane %v6170, %v6177
    %v6180 = vunpack.c.l.s4 1966171168
    %v6181 = vunpack.c.0.s8 %v6180
    %v6182 = vlaneseq
    %v6183 = vshrl.u32 %v6182, 7
    %v6184 = vsub.s32 %v6181, %v6183
    %v6185 = vrot.slane %v6171, %v6184
    %v6186 = vcombine.low %v6178, %v6185
    %v6187 = vcombine.low %v6048, %v6049
    %v6188 = vcombine.low %v6050, %v6051
    %v6189 = vcombine.low %v6052, %v6053
    %v6190 = vcombine.low %v6054, %v6055
    %v6192 = vunpack.c.l.s4 1966171168
    %v6193 = vunpack.c.0.s8 %v6192
    %v6194 = vlaneseq
    %v6195 = vshrl.u32 %v6194, 7
    %v6196 = vsub.s32 %v6193, %v6195
    %v6197 = vrot.slane %v6187, %v6196
    %v6199 = vunpack.c.l.s4 1966171168
    %v6200 = vunpack.c.0.s8 %v6199
    %v6201 = vlaneseq
    %v6202 = vshrl.u32 %v6201, 7
    %v6203 = vsub.s32 %v6200, %v6202
    %v6204 = vrot.slane %v6188, %v6203
    %v6206 = vunpack.c.l.s4 1966171168
    %v6207 = vunpack.c.0.s8 %v6206
    %v6208 = vlaneseq
    %v6209 = vshrl.u32 %v6208, 7
    %v6210 = vsub.s32 %v6207, %v6209
    %v6211 = vrot.slane %v6189, %v6210
    %v6213 = vunpack.c.l.s4 1966171168
    %v6214 = vunpack.c.0.s8 %v6213
    %v6215 = vlaneseq
    %v6216 = vshrl.u32 %v6215, 7
    %v6217 = vsub.s32 %v6214, %v6216
    %v6218 = vrot.slane %v6190, %v6217
    %v6219 = vcombine.low %v6197, %v6204
    %v6220 = vcombine.low %v6211, %v6218
    %v6222 = vunpack.c.l.s4 1966171168
    %v6223 = vunpack.c.0.s8 %v6222
    %v6224 = vlaneseq
    %v6225 = vshrl.u32 %v6224, 7
    %v6226 = vsub.s32 %v6223, %v6225
    %v6227 = vrot.slane %v6219, %v6226
    %v6229 = vunpack.c.l.s4 1966171168
    %v6230 = vunpack.c.0.s8 %v6229
    %v6231 = vlaneseq
    %v6232 = vshrl.u32 %v6231, 7
    %v6233 = vsub.s32 %v6230, %v6232
    %v6234 = vrot.slane %v6220, %v6233
    %v6235 = vcombine.low %v6227, %v6234
    %v6236 = vcombine.low %v6056, %v6057
    %v6237 = vcombine.low %v6058, %v6059
    %v6238 = vcombine.low %v6060, %v6061
    %v6239 = vcombine.low %v6062, %v6063
    %v6241 = vunpack.c.l.s4 1966171168
    %v6242 = vunpack.c.0.s8 %v6241
    %v6243 = vlaneseq
    %v6244 = vshrl.u32 %v6243, 7
    %v6245 = vsub.s32 %v6242, %v6244
    %v6246 = vrot.slane %v6236, %v6245
    %v6248 = vunpack.c.l.s4 1966171168
    %v6249 = vunpack.c.0.s8 %v6248
    %v6250 = vlaneseq
    %v6251 = vshrl.u32 %v6250, 7
    %v6252 = vsub.s32 %v6249, %v6251
    %v6253 = vrot.slane %v6237, %v6252
    %v6255 = vunpack.c.l.s4 1966171168
    %v6256 = vunpack.c.0.s8 %v6255
    %v6257 = vlaneseq
    %v6258 = vshrl.u32 %v6257, 7
    %v6259 = vsub.s32 %v6256, %v6258
    %v6260 = vrot.slane %v6238, %v6259
    %v6262 = vunpack.c.l.s4 1966171168
    %v6263 = vunpack.c.0.s8 %v6262
    %v6264 = vlaneseq
    %v6265 = vshrl.u32 %v6264, 7
    %v6266 = vsub.s32 %v6263, %v6265
    %v6267 = vrot.slane %v6239, %v6266
    %v6268 = vcombine.low %v6246, %v6253
    %v6269 = vcombine.low %v6260, %v6267
    %v6271 = vunpack.c.l.s4 1966171168
    %v6272 = vunpack.c.0.s8 %v6271
    %v6273 = vlaneseq
    %v6274 = vshrl.u32 %v6273, 7
    %v6275 = vsub.s32 %v6272, %v6274
    %v6276 = vrot.slane %v6268, %v6275
    %v6278 = vunpack.c.l.s4 1966171168
    %v6279 = vunpack.c.0.s8 %v6278
    %v6280 = vlaneseq
    %v6281 = vshrl.u32 %v6280, 7
    %v6282 = vsub.s32 %v6279, %v6281
    %v6283 = vrot.slane %v6269, %v6282
    %v6284 = vcombine.low %v6276, %v6283
    %v6285 = vcombine.low %v6064, %v6065
    %v6286 = vcombine.low %v6066, %v6067
    %v6287 = vcombine.low %v6068, %v6069
    %v6288 = vcombine.low %v6070, %v6071
    %v6290 = vunpack.c.l.s4 1966171168
    %v6291 = vunpack.c.0.s8 %v6290
    %v6292 = vlaneseq
    %v6293 = vshrl.u32 %v6292, 7
    %v6294 = vsub.s32 %v6291, %v6293
    %v6295 = vrot.slane %v6285, %v6294
    %v6297 = vunpack.c.l.s4 1966171168
    %v6298 = vunpack.c.0.s8 %v6297
    %v6299 = vlaneseq
    %v6300 = vshrl.u32 %v6299, 7
    %v6301 = vsub.s32 %v6298, %v6300
    %v6302 = vrot.slane %v6286, %v6301
    %v6304 = vunpack.c.l.s4 1966171168
    %v6305 = vunpack.c.0.s8 %v6304
    %v6306 = vlaneseq
    %v6307 = vshrl.u32 %v6306, 7
    %v6308 = vsub.s32 %v6305, %v6307
    %v6309 = vrot.slane %v6287, %v6308
    %v6311 = vunpack.c.l.s4 1966171168
    %v6312 = vunpack.c.0.s8 %v6311
    %v6313 = vlaneseq
    %v6314 = vshrl.u32 %v6313, 7
    %v6315 = vsub.s32 %v6312, %v6314
    %v6316 = vrot.slane %v6288, %v6315
    %v6317 = vcombine.low %v6295, %v6302
    %v6318 = vcombine.low %v6309, %v6316
    %v6320 = vunpack.c.l.s4 1966171168
    %v6321 = vunpack.c.0.s8 %v6320
    %v6322 = vlaneseq
    %v6323 = vshrl.u32 %v6322, 7
    %v6324 = vsub.s32 %v6321, %v6323
    %v6325 = vrot.slane %v6317, %v6324
    %v6327 = vunpack.c.l.s4 1966171168
    %v6328 = vunpack.c.0.s8 %v6327
    %v6329 = vlaneseq
    %v6330 = vshrl.u32 %v6329, 7
    %v6331 = vsub.s32 %v6328, %v6330
    %v6332 = vrot.slane %v6318, %v6331
    %v6333 = vcombine.low %v6325, %v6332
    %v6334 = vcombine.low %v6072, %v6073
    %v6336 = vunpack.c.l.s4 1966171168
    %v6337 = vunpack.c.0.s8 %v6336
    %v6338 = vlaneseq
    %v6339 = vshrl.u32 %v6338, 7
    %v6340 = vsub.s32 %v6337, %v6339
    %v6341 = vrot.slane %v6334, %v6340
    %v6343 = vunpack.c.l.s4 1966171168
    %v6344 = vunpack.c.0.s8 %v6343
    %v6345 = vlaneseq
    %v6346 = vshrl.u32 %v6345, 7
    %v6347 = vsub.s32 %v6344, %v6346
    %v6348 = vrot.slane %v6341, %v6347
    %v6349 = vsel %vm548, %v6186, 0
    %v6351 = vsel %vm548, %v6235, 0
    %v6353 = vsel %vm548, %v6284, 0
    %v6355 = vsel %vm548, %v6333, 0
    %v6357 = vsel %vm548, %v6348, 0
    %v6360 = vsel %vm559, %v6089, 0
    %v6363 = vsel %vm559, %v6090, 0
    %6365 = vmatprep.subr.mxu0 %v6076
    %6366 = vmatpush1.msra.mxu0 %v6075
    %6367 = vmatprep.subr.mxu0 %v6078
    %6368 = vmatpush1.msra.mxu0 %v6077
    %6369 = vmatprep.subr.mxu0 %v6080
    %6370 = vmatpush1.msra.mxu0 %v6079
    %6371 = vmatprep.subr.mxu0 %v6082
    %6372 = vmatpush1.msra.mxu0 %v6081
    %6373 = vmatprep.subr.mxu0 %v6084
    %6374 = vmatpush1.msra.mxu0 %v6083
    %6375 = vmatprep.subr.mxu0 %v6086
    %6376 = vmatpush1.msra.mxu0 %v6085
    %6377 = vmatprep.subr.mxu0 %v6088
    %6378 = vmatpush1.msra.mxu0 %v6087
    %6379 = vmatprep.subr.mxu0 %v6363
    %6380 = vmatpush1.msra.mxu0 %v6360
    %6381 = vmatprep.subr.mxu0 0.0
    %6382 = vmatpush1.msra.mxu0 0.0
    %6383 = vmatprep.subr.mxu0 0.0
    %6384 = vmatpush1.msra.mxu0 0.0
    %6385 = vmatprep.subr.mxu0 0.0
    %6386 = vmatpush1.msra.mxu0 0.0
    %6387 = vmatprep.subr.mxu0 0.0
    %6388 = vmatpush1.msra.mxu0 0.0
    %6389 = vmatprep.subr.mxu0 0.0
    %6390 = vmatpush1.msra.mxu0 0.0
    %6391 = vmatprep.subr.mxu0 0.0
    %6392 = vmatpush1.msra.mxu0 0.0
    %6393 = vmatprep.subr.mxu0 0.0
    %6394 = vmatpush1.msra.mxu0 0.0
    %6395 = vmatprep.subr.mxu0 0.0
    %6396 = vmatpush1.msra.mxu0 0.0
    %6397 = vmatprep.subr.mxu0 0.0
    %6398 = vmatpush1.msra.mxu0 0.0
    %6399 = vmatprep.subr.mxu0 0.0
    %6400 = vmatpush1.msra.mxu0 0.0
    %6401 = vmatprep.subr.mxu0 0.0
    %6402 = vmatpush1.msra.mxu0 0.0
    %6403 = vmatprep.subr.mxu0 0.0
    %6404 = vmatpush1.msra.mxu0 0.0
    %6405 = vmatprep.subr.mxu0 0.0
    %6406 = vmatpush1.msra.mxu0 0.0
    %6407 = vmatprep.subr.mxu0 0.0
    %6408 = vmatpush1.msra.mxu0 0.0
    %6409 = vmatprep.subr.mxu0 0.0
    %6410 = vmatpush1.msra.mxu0 0.0
    %6411 = vmatprep.subr.mxu0 0.0
    %6412 = vmatpush1.msra.mxu0 0.0
    %6413 = vmatprep.subr.mxu0 0.0
    %6414 = vmatpush1.msra.mxu0 0.0
    %6415 = vmatprep.subr.mxu0 0.0
    %6416 = vmatpush1.msra.mxu0 0.0
    %6417 = vmatprep.subr.mxu0 0.0
    %6418 = vmatpush1.msra.mxu0 0.0
    %6419 = vmatprep.subr.mxu0 0.0
    %6420 = vmatpush1.msra.mxu0 0.0
    %6421 = vmatprep.subr.mxu0 0.0
    %6422 = vmatpush1.msra.mxu0 0.0
    %6423 = vmatprep.subr.mxu0 0.0
    %6424 = vmatpush1.msra.mxu0 0.0
    %6425 = vmatprep.subr.mxu0 0.0
    %6426 = vmatpush1.msra.mxu0 0.0
    %6427 = vmatprep.subr.mxu0 0.0
    %6428 = vmatpush1.msra.mxu0 0.0
    %6429 = vmatprep.mubr.f32.mxu0 0.0
    %6430 = vmatmul.mubr.f32.gmra.mrb[0].mxu0 %v6349
    %v6431 = vpop.f32.mrb[0].mxu0
    %v6432 = vadd.f32 %v6097, %v6431
    %v6433 = vpop.f32.mrb[0].mxu0
    %v6434 = vadd.f32 %v6101, %v6433
    %6435 = vmatprep.mubr.f32.mxu0 0.0
    %6436 = vmatmul.mubr.f32.gmra.mrb[0].mxu0 %v6351
    %v6437 = vpop.f32.mrb[0].mxu0
    %v6438 = vadd.f32 %v6097, %v6437
    %v6439 = vpop.f32.mrb[0].mxu0
    %v6440 = vadd.f32 %v6101, %v6439
    %6441 = vmatprep.mubr.f32.mxu0 0.0
    %6442 = vmatmul.mubr.f32.gmra.mrb[0].mxu0 %v6353
    %v6443 = vpop.f32.mrb[0].mxu0
    %v6444 = vadd.f32 %v6097, %v6443
    %v6445 = vpop.f32.mrb[0].mxu0
    %v6446 = vadd.f32 %v6101, %v6445
    %6447 = vmatprep.mubr.f32.mxu0 0.0
    %6448 = vmatmul.mubr.f32.gmra.mrb[0].mxu0 %v6355
    %v6449 = vpop.f32.mrb[0].mxu0
    %v6450 = vadd.f32 %v6097, %v6449
    %v6451 = vpop.f32.mrb[0].mxu0
    %v6452 = vadd.f32 %v6101, %v6451
    %6453 = vmatprep.mubr.f32.mxu0 0.0
    %6454 = vmatmul.mubr.f32.gmra.mrb[0].mxu0 %v6357
    %v6455 = vpop.f32.mrb[0].mxu0
    %v6456 = vadd.f32 %v6097, %v6455
    %v6457 = vpop.f32.mrb[0].mxu0
    %v6458 = vadd.f32 %v6101, %v6457
    %6459 = vdwg.mxu0
    %v6470 = vcombine.low %v6432, %v6434
    %v6471 = vcombine.high %v6432, %v6434
    %v6473 = vunpack.c.l.s4 1966171168
    %v6474 = vunpack.c.0.s8 %v6473
    %v6475 = vlaneseq
    %v6476 = vshrl.u32 %v6475, 7
    %v6477 = vsub.s32 %v6474, %v6476
    %v6478 = vrot.slane %v6470, %v6477
    %v6480 = vunpack.c.l.s4 1966171168
    %v6481 = vunpack.c.0.s8 %v6480
    %v6482 = vlaneseq
    %v6483 = vshrl.u32 %v6482, 7
    %v6484 = vsub.s32 %v6481, %v6483
    %v6485 = vrot.slane %v6471, %v6484
    %v6486 = vcombine.high %v6478, %v6478
    %v6487 = vcombine.high %v6485, %v6485
    %v6489 = vunpack.c.l.s4 1966171168
    %v6490 = vunpack.c.0.s8 %v6489
    %v6491 = vlaneseq
    %v6492 = vshrl.u32 %v6491, 7
    %v6493 = vsub.s32 %v6490, %v6492
    %v6494 = vrot.slane %v6478, %v6493
    %v6496 = vunpack.c.l.s4 1966171168
    %v6497 = vunpack.c.0.s8 %v6496
    %v6498 = vlaneseq
    %v6499 = vshrl.u32 %v6498, 7
    %v6500 = vsub.s32 %v6497, %v6499
    %v6501 = vrot.slane %v6485, %v6500
    %v6503 = vunpack.c.l.s4 1966171168
    %v6504 = vunpack.c.0.s8 %v6503
    %v6505 = vlaneseq
    %v6506 = vshrl.u32 %v6505, 7
    %v6507 = vsub.s32 %v6504, %v6506
    %v6508 = vrot.slane %v6486, %v6507
    %v6510 = vunpack.c.l.s4 1966171168
    %v6511 = vunpack.c.0.s8 %v6510
    %v6512 = vlaneseq
    %v6513 = vshrl.u32 %v6512, 7
    %v6514 = vsub.s32 %v6511, %v6513
    %v6515 = vrot.slane %v6487, %v6514
    %v6516 = vcombine.high %v6494, %v6494
    %v6517 = vcombine.high %v6501, %v6501
    %v6518 = vcombine.high %v6508, %v6508
    %v6519 = vcombine.high %v6515, %v6515
    %v6520 = vcombine.low %v6438, %v6440
    %v6521 = vcombine.high %v6438, %v6440
    %v6523 = vunpack.c.l.s4 1966171168
    %v6524 = vunpack.c.0.s8 %v6523
    %v6525 = vlaneseq
    %v6526 = vshrl.u32 %v6525, 7
    %v6527 = vsub.s32 %v6524, %v6526
    %v6528 = vrot.slane %v6520, %v6527
    %v6530 = vunpack.c.l.s4 1966171168
    %v6531 = vunpack.c.0.s8 %v6530
    %v6532 = vlaneseq
    %v6533 = vshrl.u32 %v6532, 7
    %v6534 = vsub.s32 %v6531, %v6533
    %v6535 = vrot.slane %v6521, %v6534
    %v6536 = vcombine.high %v6528, %v6528
    %v6537 = vcombine.high %v6535, %v6535
    %v6539 = vunpack.c.l.s4 1966171168
    %v6540 = vunpack.c.0.s8 %v6539
    %v6541 = vlaneseq
    %v6542 = vshrl.u32 %v6541, 7
    %v6543 = vsub.s32 %v6540, %v6542
    %v6544 = vrot.slane %v6528, %v6543
    %v6546 = vunpack.c.l.s4 1966171168
    %v6547 = vunpack.c.0.s8 %v6546
    %v6548 = vlaneseq
    %v6549 = vshrl.u32 %v6548, 7
    %v6550 = vsub.s32 %v6547, %v6549
    %v6551 = vrot.slane %v6535, %v6550
    %v6553 = vunpack.c.l.s4 1966171168
    %v6554 = vunpack.c.0.s8 %v6553
    %v6555 = vlaneseq
    %v6556 = vshrl.u32 %v6555, 7
    %v6557 = vsub.s32 %v6554, %v6556
    %v6558 = vrot.slane %v6536, %v6557
    %v6560 = vunpack.c.l.s4 1966171168
    %v6561 = vunpack.c.0.s8 %v6560
    %v6562 = vlaneseq
    %v6563 = vshrl.u32 %v6562, 7
    %v6564 = vsub.s32 %v6561, %v6563
    %v6565 = vrot.slane %v6537, %v6564
    %v6566 = vcombine.high %v6544, %v6544
    %v6567 = vcombine.high %v6551, %v6551
    %v6568 = vcombine.high %v6558, %v6558
    %v6569 = vcombine.high %v6565, %v6565
    %v6570 = vcombine.low %v6444, %v6446
    %v6571 = vcombine.high %v6444, %v6446
    %v6573 = vunpack.c.l.s4 1966171168
    %v6574 = vunpack.c.0.s8 %v6573
    %v6575 = vlaneseq
    %v6576 = vshrl.u32 %v6575, 7
    %v6577 = vsub.s32 %v6574, %v6576
    %v6578 = vrot.slane %v6570, %v6577
    %v6580 = vunpack.c.l.s4 1966171168
    %v6581 = vunpack.c.0.s8 %v6580
    %v6582 = vlaneseq
    %v6583 = vshrl.u32 %v6582, 7
    %v6584 = vsub.s32 %v6581, %v6583
    %v6585 = vrot.slane %v6571, %v6584
    %v6586 = vcombine.high %v6578, %v6578
    %v6587 = vcombine.high %v6585, %v6585
    %v6589 = vunpack.c.l.s4 1966171168
    %v6590 = vunpack.c.0.s8 %v6589
    %v6591 = vlaneseq
    %v6592 = vshrl.u32 %v6591, 7
    %v6593 = vsub.s32 %v6590, %v6592
    %v6594 = vrot.slane %v6578, %v6593
    %v6596 = vunpack.c.l.s4 1966171168
    %v6597 = vunpack.c.0.s8 %v6596
    %v6598 = vlaneseq
    %v6599 = vshrl.u32 %v6598, 7
    %v6600 = vsub.s32 %v6597, %v6599
    %v6601 = vrot.slane %v6585, %v6600
    %v6603 = vunpack.c.l.s4 1966171168
    %v6604 = vunpack.c.0.s8 %v6603
    %v6605 = vlaneseq
    %v6606 = vshrl.u32 %v6605, 7
    %v6607 = vsub.s32 %v6604, %v6606
    %v6608 = vrot.slane %v6586, %v6607
    %v6610 = vunpack.c.l.s4 1966171168
    %v6611 = vunpack.c.0.s8 %v6610
    %v6612 = vlaneseq
    %v6613 = vshrl.u32 %v6612, 7
    %v6614 = vsub.s32 %v6611, %v6613
    %v6615 = vrot.slane %v6587, %v6614
    %v6616 = vcombine.high %v6594, %v6594
    %v6617 = vcombine.high %v6601, %v6601
    %v6618 = vcombine.high %v6608, %v6608
    %v6619 = vcombine.high %v6615, %v6615
    %v6620 = vcombine.low %v6450, %v6452
    %v6621 = vcombine.high %v6450, %v6452
    %v6623 = vunpack.c.l.s4 1966171168
    %v6624 = vunpack.c.0.s8 %v6623
    %v6625 = vlaneseq
    %v6626 = vshrl.u32 %v6625, 7
    %v6627 = vsub.s32 %v6624, %v6626
    %v6628 = vrot.slane %v6620, %v6627
    %v6630 = vunpack.c.l.s4 1966171168
    %v6631 = vunpack.c.0.s8 %v6630
    %v6632 = vlaneseq
    %v6633 = vshrl.u32 %v6632, 7
    %v6634 = vsub.s32 %v6631, %v6633
    %v6635 = vrot.slane %v6621, %v6634
    %v6636 = vcombine.high %v6628, %v6628
    %v6637 = vcombine.high %v6635, %v6635
    %v6639 = vunpack.c.l.s4 1966171168
    %v6640 = vunpack.c.0.s8 %v6639
    %v6641 = vlaneseq
    %v6642 = vshrl.u32 %v6641, 7
    %v6643 = vsub.s32 %v6640, %v6642
    %v6644 = vrot.slane %v6628, %v6643
    %v6646 = vunpack.c.l.s4 1966171168
    %v6647 = vunpack.c.0.s8 %v6646
    %v6648 = vlaneseq
    %v6649 = vshrl.u32 %v6648, 7
    %v6650 = vsub.s32 %v6647, %v6649
    %v6651 = vrot.slane %v6635, %v6650
    %v6653 = vunpack.c.l.s4 1966171168
    %v6654 = vunpack.c.0.s8 %v6653
    %v6655 = vlaneseq
    %v6656 = vshrl.u32 %v6655, 7
    %v6657 = vsub.s32 %v6654, %v6656
    %v6658 = vrot.slane %v6636, %v6657
    %v6660 = vunpack.c.l.s4 1966171168
    %v6661 = vunpack.c.0.s8 %v6660
    %v6662 = vlaneseq
    %v6663 = vshrl.u32 %v6662, 7
    %v6664 = vsub.s32 %v6661, %v6663
    %v6665 = vrot.slane %v6637, %v6664
    %v6666 = vcombine.high %v6644, %v6644
    %v6667 = vcombine.high %v6651, %v6651
    %v6668 = vcombine.high %v6658, %v6658
    %v6669 = vcombine.high %v6665, %v6665
    %v6670 = vcombine.low %v6456, %v6458
    %v6672 = vunpack.c.l.s4 1966171168
    %v6673 = vunpack.c.0.s8 %v6672
    %v6674 = vlaneseq
    %v6675 = vshrl.u32 %v6674, 7
    %v6676 = vsub.s32 %v6673, %v6675
    %v6677 = vrot.slane %v6670, %v6676
    %v6678 = vcombine.high %v6677, %v6677
    %v6680 = vunpack.c.l.s4 1966171168
    %v6681 = vunpack.c.0.s8 %v6680
    %v6682 = vlaneseq
    %v6683 = vshrl.u32 %v6682, 7
    %v6684 = vsub.s32 %v6681, %v6683
    %v6685 = vrot.slane %v6677, %v6684
    %v6687 = vunpack.c.l.s4 1966171168
    %v6688 = vunpack.c.0.s8 %v6687
    %v6689 = vlaneseq
    %v6690 = vshrl.u32 %v6689, 7
    %v6691 = vsub.s32 %v6688, %v6690
    %v6692 = vrot.slane %v6678, %v6691
    %v6695 = vmul.f32 %v6494, 0.12909944
    %v6696 = vmul.f32 %v6608, 0.12909944
    %v6697 = vcombine.low %v6494, %v6508
    %v6698 = vcombine.low %v6516, %v6518
    %v6699 = vcombine.low %v6501, %v6515
    %v6700 = vcombine.low %v6517, %v6519
    %v6702 = vunpack.c.l.s4 1966171168
    %v6703 = vunpack.c.0.s8 %v6702
    %v6704 = vlaneseq
    %v6705 = vshrl.u32 %v6704, 7
    %v6706 = vsub.s32 %v6703, %v6705
    %v6707 = vrot.slane %v6697, %v6706
    %v6709 = vunpack.c.l.s4 1966171168
    %v6710 = vunpack.c.0.s8 %v6709
    %v6711 = vlaneseq
    %v6712 = vshrl.u32 %v6711, 7
    %v6713 = vsub.s32 %v6710, %v6712
    %v6714 = vrot.slane %v6698, %v6713
    %v6716 = vunpack.c.l.s4 1966171168
    %v6717 = vunpack.c.0.s8 %v6716
    %v6718 = vlaneseq
    %v6719 = vshrl.u32 %v6718, 7
    %v6720 = vsub.s32 %v6717, %v6719
    %v6721 = vrot.slane %v6699, %v6720
    %v6723 = vunpack.c.l.s4 1966171168
    %v6724 = vunpack.c.0.s8 %v6723
    %v6725 = vlaneseq
    %v6726 = vshrl.u32 %v6725, 7
    %v6727 = vsub.s32 %v6724, %v6726
    %v6728 = vrot.slane %v6700, %v6727
    %v6729 = vcombine.low %v6707, %v6714
    %v6730 = vcombine.low %v6721, %v6728
    %v6732 = vunpack.c.l.s4 1966171168
    %v6733 = vunpack.c.0.s8 %v6732
    %v6734 = vlaneseq
    %v6735 = vshrl.u32 %v6734, 7
    %v6736 = vsub.s32 %v6733, %v6735
    %v6737 = vrot.slane %v6729, %v6736
    %v6739 = vunpack.c.l.s4 1966171168
    %v6740 = vunpack.c.0.s8 %v6739
    %v6741 = vlaneseq
    %v6742 = vshrl.u32 %v6741, 7
    %v6743 = vsub.s32 %v6740, %v6742
    %v6744 = vrot.slane %v6730, %v6743
    %v6745 = vcombine.low %v6737, %v6744
    %v6746 = vcombine.low %v6544, %v6558
    %v6747 = vcombine.low %v6566, %v6568
    %v6748 = vcombine.low %v6551, %v6565
    %v6749 = vcombine.low %v6567, %v6569
    %v6751 = vunpack.c.l.s4 1966171168
    %v6752 = vunpack.c.0.s8 %v6751
    %v6753 = vlaneseq
    %v6754 = vshrl.u32 %v6753, 7
    %v6755 = vsub.s32 %v6752, %v6754
    %v6756 = vrot.slane %v6746, %v6755
    %v6758 = vunpack.c.l.s4 1966171168
    %v6759 = vunpack.c.0.s8 %v6758
    %v6760 = vlaneseq
    %v6761 = vshrl.u32 %v6760, 7
    %v6762 = vsub.s32 %v6759, %v6761
    %v6763 = vrot.slane %v6747, %v6762
    %v6765 = vunpack.c.l.s4 1966171168
    %v6766 = vunpack.c.0.s8 %v6765
    %v6767 = vlaneseq
    %v6768 = vshrl.u32 %v6767, 7
    %v6769 = vsub.s32 %v6766, %v6768
    %v6770 = vrot.slane %v6748, %v6769
    %v6772 = vunpack.c.l.s4 1966171168
    %v6773 = vunpack.c.0.s8 %v6772
    %v6774 = vlaneseq
    %v6775 = vshrl.u32 %v6774, 7
    %v6776 = vsub.s32 %v6773, %v6775
    %v6777 = vrot.slane %v6749, %v6776
    %v6778 = vcombine.low %v6756, %v6763
    %v6779 = vcombine.low %v6770, %v6777
    %v6781 = vunpack.c.l.s4 1966171168
    %v6782 = vunpack.c.0.s8 %v6781
    %v6783 = vlaneseq
    %v6784 = vshrl.u32 %v6783, 7
    %v6785 = vsub.s32 %v6782, %v6784
    %v6786 = vrot.slane %v6778, %v6785
    %v6788 = vunpack.c.l.s4 1966171168
    %v6789 = vunpack.c.0.s8 %v6788
    %v6790 = vlaneseq
    %v6791 = vshrl.u32 %v6790, 7
    %v6792 = vsub.s32 %v6789, %v6791
    %v6793 = vrot.slane %v6779, %v6792
    %v6794 = vcombine.low %v6786, %v6793
    %v6796 = vunpack.c.l.s4 1966171168
    %v6797 = vunpack.c.0.s8 %v6796
    %v6798 = vlaneseq
    %v6799 = vshrl.u32 %v6798, 7
    %v6800 = vsub.s32 %v6797, %v6799
    %v6801 = vrot.slane %v6594, %v6800
    %v6803 = vunpack.c.l.s4 1966171168
    %v6804 = vunpack.c.0.s8 %v6803
    %v6805 = vlaneseq
    %v6806 = vshrl.u32 %v6805, 7
    %v6807 = vsub.s32 %v6804, %v6806
    %v6808 = vrot.slane %v6801, %v6807
    %6809 = vrot.lane.b32.xlu0 %v6745, 68
    %v6810 = vpop.permute.xlu0 %6809
    %6811 = vrot.lane.b32.xlu0 %v6794, 68
    %v6812 = vpop.permute.xlu0 %6811
    %6813 = vrot.lane.b32.xlu0 %v6808, 68
    %v6814 = vpop.permute.xlu0 %6813
    %v6816 = vsel %vm548, %v6695, 0
    %v6818 = vsel %vm548, %v6810, 0
    %v6820 = vsel %vm548, %v6812, 0
    %v6822 = vsel %vm548, %v6814, 0
    %6824 = vmatprep.subr.mxu0 0.0
    %6825 = vmatpush1.xpose.msra.mxu0 %v6818
    %6826 = vmatprep.subr.mxu0 0.0
    %6827 = vmatpush1.xpose.msra.mxu0 %v6820
    %6828 = vmatprep.subr.mxu0 0.0
    %6829 = vmatpush1.xpose.msra.mxu0 %v6822
    %6830 = vmatprep.subr.mxu0 0.0
    %6831 = vmatpush1.xpose.msra.mxu0 0.0
    %6832 = vmatprep.subr.mxu0 0.0
    %6833 = vmatpush1.xpose.msra.mxu0 0.0
    %6834 = vmatprep.subr.mxu0 0.0
    %6835 = vmatpush1.xpose.msra.mxu0 0.0
    %6836 = vmatprep.subr.mxu0 0.0
    %6837 = vmatpush1.xpose.msra.mxu0 0.0
    %6838 = vmatprep.subr.mxu0 0.0
    %6839 = vmatpush1.xpose.msra.mxu0 0.0
    %6840 = vmatprep.subr.mxu0 0.0
    %6841 = vmatpush1.xpose.msra.mxu0 0.0
    %6842 = vmatprep.subr.mxu0 0.0
    %6843 = vmatpush1.xpose.msra.mxu0 0.0
    %6844 = vmatprep.subr.mxu0 0.0
    %6845 = vmatpush1.xpose.msra.mxu0 0.0
    %6846 = vmatprep.subr.mxu0 0.0
    %6847 = vmatpush1.xpose.msra.mxu0 0.0
    %6848 = vmatprep.subr.mxu0 0.0
    %6849 = vmatpush1.xpose.msra.mxu0 0.0
    %6850 = vmatprep.subr.mxu0 0.0
    %6851 = vmatpush1.xpose.msra.mxu0 0.0
    %6852 = vmatprep.subr.mxu0 0.0
    %6853 = vmatpush1.xpose.msra.mxu0 0.0
    %6854 = vmatprep.subr.mxu0 0.0
    %6855 = vmatpush1.xpose.msra.mxu0 0.0
    %6856 = vmatprep.subr.mxu0 0.0
    %6857 = vmatpush1.xpose.msra.mxu0 0.0
    %6858 = vmatprep.subr.mxu0 0.0
    %6859 = vmatpush1.xpose.msra.mxu0 0.0
    %6860 = vmatprep.subr.mxu0 0.0
    %6861 = vmatpush1.xpose.msra.mxu0 0.0
    %6862 = vmatprep.subr.mxu0 0.0
    %6863 = vmatpush1.xpose.msra.mxu0 0.0
    %6864 = vmatprep.subr.mxu0 0.0
    %6865 = vmatpush1.xpose.msra.mxu0 0.0
    %6866 = vmatprep.subr.mxu0 0.0
    %6867 = vmatpush1.xpose.msra.mxu0 0.0
    %6868 = vmatprep.subr.mxu0 0.0
    %6869 = vmatpush1.xpose.msra.mxu0 0.0
    %6870 = vmatprep.subr.mxu0 0.0
    %6871 = vmatpush1.xpose.msra.mxu0 0.0
    %6872 = vmatprep.subr.mxu0 0.0
    %6873 = vmatpush1.xpose.msra.mxu0 0.0
    %6874 = vmatprep.subr.mxu0 0.0
    %6875 = vmatpush1.xpose.msra.mxu0 0.0
    %6876 = vmatprep.subr.mxu0 0.0
    %6877 = vmatpush1.xpose.msra.mxu0 0.0
    %6878 = vmatprep.subr.mxu0 0.0
    %6879 = vmatpush1.xpose.msra.mxu0 0.0
    %6880 = vmatprep.subr.mxu0 0.0
    %6881 = vmatpush1.xpose.msra.mxu0 0.0
    %6882 = vmatprep.subr.mxu0 0.0
    %6883 = vmatpush1.xpose.msra.mxu0 0.0
    %6884 = vmatprep.subr.mxu0 0.0
    %6885 = vmatpush1.xpose.msra.mxu0 0.0
    %6886 = vmatprep.subr.mxu0 0.0
    %6887 = vmatpush1.xpose.msra.mxu0 0.0
    %6888 = vmatprep.mubr.f32.mxu0 0.0
    %6889 = vmatmul.mubr.f32.gmra.mrb[0].mxu0 %v6816
    %v6890 = vpop.f32.mrb[0].mxu0
    %v6891 = vadd.f32 0.0, %v6890
    %v6892 = vpop.f32.mrb[0].mxu0
    %6893 = vdwg.mxu0
    %v6894 = vcombine.low %v6608, %v6616
    %v6895 = vcombine.low %v6618, %v6601
    %v6896 = vcombine.low %v6615, %v6617
    %v6897 = vcombine.low %v6619, %v6644
    %v6899 = vunpack.c.l.s4 1966171168
    %v6900 = vunpack.c.0.s8 %v6899
    %v6901 = vlaneseq
    %v6902 = vshrl.u32 %v6901, 7
    %v6903 = vsub.s32 %v6900, %v6902
    %v6904 = vrot.slane %v6894, %v6903
    %v6906 = vunpack.c.l.s4 1966171168
    %v6907 = vunpack.c.0.s8 %v6906
    %v6908 = vlaneseq
    %v6909 = vshrl.u32 %v6908, 7
    %v6910 = vsub.s32 %v6907, %v6909
    %v6911 = vrot.slane %v6895, %v6910
    %v6913 = vunpack.c.l.s4 1966171168
    %v6914 = vunpack.c.0.s8 %v6913
    %v6915 = vlaneseq
    %v6916 = vshrl.u32 %v6915, 7
    %v6917 = vsub.s32 %v6914, %v6916
    %v6918 = vrot.slane %v6896, %v6917
    %v6920 = vunpack.c.l.s4 1966171168
    %v6921 = vunpack.c.0.s8 %v6920
    %v6922 = vlaneseq
    %v6923 = vshrl.u32 %v6922, 7
    %v6924 = vsub.s32 %v6921, %v6923
    %v6925 = vrot.slane %v6897, %v6924
    %v6926 = vcombine.low %v6904, %v6911
    %v6927 = vcombine.low %v6918, %v6925
    %v6929 = vunpack.c.l.s4 1966171168
    %v6930 = vunpack.c.0.s8 %v6929
    %v6931 = vlaneseq
    %v6932 = vshrl.u32 %v6931, 7
    %v6933 = vsub.s32 %v6930, %v6932
    %v6934 = vrot.slane %v6926, %v6933
    %v6936 = vunpack.c.l.s4 1966171168
    %v6937 = vunpack.c.0.s8 %v6936
    %v6938 = vlaneseq
    %v6939 = vshrl.u32 %v6938, 7
    %v6940 = vsub.s32 %v6937, %v6939
    %v6941 = vrot.slane %v6927, %v6940
    %v6942 = vcombine.low %v6934, %v6941
    %v6943 = vcombine.low %v6658, %v6666
    %v6944 = vcombine.low %v6668, %v6651
    %v6945 = vcombine.low %v6665, %v6667
    %v6946 = vcombine.low %v6669, %v6685
    %v6948 = vunpack.c.l.s4 1966171168
    %v6949 = vunpack.c.0.s8 %v6948
    %v6950 = vlaneseq
    %v6951 = vshrl.u32 %v6950, 7
    %v6952 = vsub.s32 %v6949, %v6951
    %v6953 = vrot.slane %v6943, %v6952
    %v6955 = vunpack.c.l.s4 1966171168
    %v6956 = vunpack.c.0.s8 %v6955
    %v6957 = vlaneseq
    %v6958 = vshrl.u32 %v6957, 7
    %v6959 = vsub.s32 %v6956, %v6958
    %v6960 = vrot.slane %v6944, %v6959
    %v6962 = vunpack.c.l.s4 1966171168
    %v6963 = vunpack.c.0.s8 %v6962
    %v6964 = vlaneseq
    %v6965 = vshrl.u32 %v6964, 7
    %v6966 = vsub.s32 %v6963, %v6965
    %v6967 = vrot.slane %v6945, %v6966
    %v6969 = vunpack.c.l.s4 1966171168
    %v6970 = vunpack.c.0.s8 %v6969
    %v6971 = vlaneseq
    %v6972 = vshrl.u32 %v6971, 7
    %v6973 = vsub.s32 %v6970, %v6972
    %v6974 = vrot.slane %v6946, %v6973
    %v6975 = vcombine.low %v6953, %v6960
    %v6976 = vcombine.low %v6967, %v6974
    %v6978 = vunpack.c.l.s4 1966171168
    %v6979 = vunpack.c.0.s8 %v6978
    %v6980 = vlaneseq
    %v6981 = vshrl.u32 %v6980, 7
    %v6982 = vsub.s32 %v6979, %v6981
    %v6983 = vrot.slane %v6975, %v6982
    %v6985 = vunpack.c.l.s4 1966171168
    %v6986 = vunpack.c.0.s8 %v6985
    %v6987 = vlaneseq
    %v6988 = vshrl.u32 %v6987, 7
    %v6989 = vsub.s32 %v6986, %v6988
    %v6990 = vrot.slane %v6976, %v6989
    %v6991 = vcombine.low %v6983, %v6990
    %v6993 = vunpack.c.l.s4 1966171168
    %v6994 = vunpack.c.0.s8 %v6993
    %v6995 = vlaneseq
    %v6996 = vshrl.u32 %v6995, 7
    %v6997 = vsub.s32 %v6994, %v6996
    %v6998 = vrot.slane %v6692, %v6997
    %v7000 = vunpack.c.l.s4 1966171168
    %v7001 = vunpack.c.0.s8 %v7000
    %v7002 = vlaneseq
    %v7003 = vshrl.u32 %v7002, 7
    %v7004 = vsub.s32 %v7001, %v7003
    %v7005 = vrot.slane %v6998, %v7004
    %7006 = vrot.lane.b32.xlu0 %v6942, 68
    %v7007 = vpop.permute.xlu0 %7006
    %7008 = vrot.lane.b32.xlu0 %v6991, 68
    %v7009 = vpop.permute.xlu0 %7008
    %7010 = vrot.lane.b32.xlu0 %v7005, 68
    %v7011 = vpop.permute.xlu0 %7010
    %v7013 = vsel %vm548, %v6696, 0
    %v7015 = vsel %vm548, %v7007, 0
    %v7017 = vsel %vm548, %v7009, 0
    %v7019 = vsel %vm548, %v7011, 0
    %7021 = vmatprep.subr.mxu0 0.0
    %7022 = vmatpush1.xpose.msra.mxu0 %v7015
    %7023 = vmatprep.subr.mxu0 0.0
    %7024 = vmatpush1.xpose.msra.mxu0 %v7017
    %7025 = vmatprep.subr.mxu0 0.0
    %7026 = vmatpush1.xpose.msra.mxu0 %v7019
    %7027 = vmatprep.subr.mxu0 0.0
    %7028 = vmatpush1.xpose.msra.mxu0 0.0
    %7029 = vmatprep.subr.mxu0 0.0
    %7030 = vmatpush1.xpose.msra.mxu0 0.0
    %7031 = vmatprep.subr.mxu0 0.0
    %7032 = vmatpush1.xpose.msra.mxu0 0.0
    %7033 = vmatprep.subr.mxu0 0.0
    %7034 = vmatpush1.xpose.msra.mxu0 0.0
    %7035 = vmatprep.subr.mxu0 0.0
    %7036 = vmatpush1.xpose.msra.mxu0 0.0
    %7037 = vmatprep.subr.mxu0 0.0
    %7038 = vmatpush1.xpose.msra.mxu0 0.0
    %7039 = vmatprep.subr.mxu0 0.0
    %7040 = vmatpush1.xpose.msra.mxu0 0.0
    %7041 = vmatprep.subr.mxu0 0.0
    %7042 = vmatpush1.xpose.msra.mxu0 0.0
    %7043 = vmatprep.subr.mxu0 0.0
    %7044 = vmatpush1.xpose.msra.mxu0 0.0
    %7045 = vmatprep.subr.mxu0 0.0
    %7046 = vmatpush1.xpose.msra.mxu0 0.0
    %7047 = vmatprep.subr.mxu0 0.0
    %7048 = vmatpush1.xpose.msra.mxu0 0.0
    %7049 = vmatprep.subr.mxu0 0.0
    %7050 = vmatpush1.xpose.msra.mxu0 0.0
    %7051 = vmatprep.subr.mxu0 0.0
    %7052 = vmatpush1.xpose.msra.mxu0 0.0
    %7053 = vmatprep.subr.mxu0 0.0
    %7054 = vmatpush1.xpose.msra.mxu0 0.0
    %7055 = vmatprep.subr.mxu0 0.0
    %7056 = vmatpush1.xpose.msra.mxu0 0.0
    %7057 = vmatprep.subr.mxu0 0.0
    %7058 = vmatpush1.xpose.msra.mxu0 0.0
    %7059 = vmatprep.subr.mxu0 0.0
    %7060 = vmatpush1.xpose.msra.mxu0 0.0
    %7061 = vmatprep.subr.mxu0 0.0
    %7062 = vmatpush1.xpose.msra.mxu0 0.0
    %7063 = vmatprep.subr.mxu0 0.0
    %7064 = vmatpush1.xpose.msra.mxu0 0.0
    %7065 = vmatprep.subr.mxu0 0.0
    %7066 = vmatpush1.xpose.msra.mxu0 0.0
    %7067 = vmatprep.subr.mxu0 0.0
    %7068 = vmatpush1.xpose.msra.mxu0 0.0
    %7069 = vmatprep.subr.mxu0 0.0
    %7070 = vmatpush1.xpose.msra.mxu0 0.0
    %7071 = vmatprep.subr.mxu0 0.0
    %7072 = vmatpush1.xpose.msra.mxu0 0.0
    %7073 = vmatprep.subr.mxu0 0.0
    %7074 = vmatpush1.xpose.msra.mxu0 0.0
    %7075 = vmatprep.subr.mxu0 0.0
    %7076 = vmatpush1.xpose.msra.mxu0 0.0
    %7077 = vmatprep.subr.mxu0 0.0
    %7078 = vmatpush1.xpose.msra.mxu0 0.0
    %7079 = vmatprep.subr.mxu0 0.0
    %7080 = vmatpush1.xpose.msra.mxu0 0.0
    %7081 = vmatprep.subr.mxu0 0.0
    %7082 = vmatpush1.xpose.msra.mxu0 0.0
    %7083 = vmatprep.subr.mxu0 0.0
    %7084 = vmatpush1.xpose.msra.mxu0 0.0
    %7085 = vmatprep.mubr.f32.mxu0 0.0
    %7086 = vmatmul.mubr.f32.gmra.mrb[0].mxu0 %v7013
    %v7087 = vpop.f32.mrb[0].mxu0
    %v7088 = vadd.f32 0.0, %v7087
    %v7089 = vpop.f32.mrb[0].mxu0
    %7090 = vdwg.mxu0
    %v7091 = vsel %vm1647, %v6891, -inf
    %7092 = vmax.xlane.f32.xlu0 %v7091
    %v7093 = vpop.xlane.xlu0 %7092
    %v7094 = vsel %vm1647, %v7088, -inf
    %7095 = vmax.xlane.f32.xlu0 %v7094
    %v7096 = vpop.xlane.xlu0 %7095
    %v7097 = vsub.f32 %v6891, %v7093
    %v7098 = vsub.f32 %v7088, %v7096
    %v7099 = vmul.f32 %v7097, 1.442695
    %v7100 = vpow.pop %v7099
    %v7101 = vmul.f32 %v7098, 1.442695
    %v7102 = vpow.pop %v7101
    %v7103 = vsel %vm1647, %v7100, 0.0
    %7104 = vadd.xlane.f32.xlu0 %v7103
    %v7105 = vpop.xlane.xlu0 %7104
    %v7106 = vsel %vm1647, %v7102, 0.0
    %7107 = vadd.xlane.f32.xlu0 %v7106
    %v7108 = vpop.xlane.xlu0 %7107
    %v7109 = vrcp.pop %v7105
    %v7110 = vrcp.pop %v7108
    %v7111 = vmul.f32 %v7100, %v7109
    %v7112 = vmul.f32 %v7102, %v7110
    %v7113 = vcombine.high %v6707, %v6714
    %v7114 = vcombine.high %v6721, %v6728
    %v7116 = vunpack.c.l.s4 1966171168
    %v7117 = vunpack.c.0.s8 %v7116
    %v7118 = vlaneseq
    %v7119 = vshrl.u32 %v7118, 7
    %v7120 = vsub.s32 %v7117, %v7119
    %v7121 = vrot.slane %v7113, %v7120
    %v7123 = vunpack.c.l.s4 1966171168
    %v7124 = vunpack.c.0.s8 %v7123
    %v7125 = vlaneseq
    %v7126 = vshrl.u32 %v7125, 7
    %v7127 = vsub.s32 %v7124, %v7126
    %v7128 = vrot.slane %v7114, %v7127
    %v7129 = vcombine.low %v7121, %v7128
    %v7130 = vcombine.high %v6756, %v6763
    %v7131 = vcombine.high %v6770, %v6777
    %v7133 = vunpack.c.l.s4 1966171168
    %v7134 = vunpack.c.0.s8 %v7133
    %v7135 = vlaneseq
    %v7136 = vshrl.u32 %v7135, 7
    %v7137 = vsub.s32 %v7134, %v7136
    %v7138 = vrot.slane %v7130, %v7137
    %v7140 = vunpack.c.l.s4 1966171168
    %v7141 = vunpack.c.0.s8 %v7140
    %v7142 = vlaneseq
    %v7143 = vshrl.u32 %v7142, 7
    %v7144 = vsub.s32 %v7141, %v7143
    %v7145 = vrot.slane %v7131, %v7144
    %v7146 = vcombine.low %v7138, %v7145
    %v7147 = vcombine.high %v6801, %v6801
    %v7149 = vunpack.c.l.s4 1966171168
    %v7150 = vunpack.c.0.s8 %v7149
    %v7151 = vlaneseq
    %v7152 = vshrl.u32 %v7151, 7
    %v7153 = vsub.s32 %v7150, %v7152
    %v7154 = vrot.slane %v7147, %v7153
    %7155 = vrot.lane.b32.xlu0 %v6745, 8
    %v7156 = vpop.permute.xlu0 %7155
    %7157 = vrot.lane.b32.xlu0 %v7129, 8
    %v7158 = vpop.permute.xlu0 %7157
    %7159 = vrot.lane.b32.xlu0 %v6794, 8
    %v7160 = vpop.permute.xlu0 %7159
    %7161 = vrot.lane.b32.xlu0 %v7146, 8
    %v7162 = vpop.permute.xlu0 %7161
    %7163 = vrot.lane.b32.xlu0 %v6808, 8
    %v7164 = vpop.permute.xlu0 %7163
    %7165 = vrot.lane.b32.xlu0 %v7154, 8
    %v7166 = vpop.permute.xlu0 %7165
    %v7167 = vsel %vm1762, %v7156, %v7158
    %v7168 = vsel %vm1762, %v7160, %v7162
    %v7169 = vsel %vm1762, %v7164, %v7166
    %v7173 = vsel %vm1640, %v7111, 0
    %v7175 = vsel %vm1777, %v7169, 0
    %7177 = vmatprep.subr.mxu0 0.0
    %7178 = vmatpush1.msra.mxu0 %v7167
    %7179 = vmatprep.subr.mxu0 0.0
    %7180 = vmatpush1.msra.mxu0 %v7168
    %7181 = vmatprep.subr.mxu0 0.0
    %7182 = vmatpush1.msra.mxu0 %v7175
    %7183 = vmatprep.subr.mxu0 0.0
    %7184 = vmatpush1.msra.mxu0 0.0
    %7185 = vmatprep.subr.mxu0 0.0
    %7186 = vmatpush1.msra.mxu0 0.0
    %7187 = vmatprep.subr.mxu0 0.0
    %7188 = vmatpush1.msra.mxu0 0.0
    %7189 = vmatprep.subr.mxu0 0.0
    %7190 = vmatpush1.msra.mxu0 0.0
    %7191 = vmatprep.subr.mxu0 0.0
    %7192 = vmatpush1.msra.mxu0 0.0
    %7193 = vmatprep.subr.mxu0 0.0
    %7194 = vmatpush1.msra.mxu0 0.0
    %7195 = vmatprep.subr.mxu0 0.0
    %7196 = vmatpush1.msra.mxu0 0.0
    %7197 = vmatprep.subr.mxu0 0.0
    %7198 = vmatpush1.msra.mxu0 0.0
    %7199 = vmatprep.subr.mxu0 0.0
    %7200 = vmatpush1.msra.mxu0 0.0
    %7201 = vmatprep.subr.mxu0 0.0
    %7202 = vmatpush1.msra.mxu0 0.0
    %7203 = vmatprep.subr.mxu0 0.0
    %7204 = vmatpush1.msra.mxu0 0.0
    %7205 = vmatprep.subr.mxu0 0.0
    %7206 = vmatpush1.msra.mxu0 0.0
    %7207 = vmatprep.subr.mxu0 0.0
    %7208 = vmatpush1.msra.mxu0 0.0
    %7209 = vmatprep.subr.mxu0 0.0
    %7210 = vmatpush1.msra.mxu0 0.0
    %7211 = vmatprep.subr.mxu0 0.0
    %7212 = vmatpush1.msra.mxu0 0.0
    %7213 = vmatprep.subr.mxu0 0.0
    %7214 = vmatpush1.msra.mxu0 0.0
    %7215 = vmatprep.subr.mxu0 0.0
    %7216 = vmatpush1.msra.mxu0 0.0
    %7217 = vmatprep.subr.mxu0 0.0
    %7218 = vmatpush1.msra.mxu0 0.0
    %7219 = vmatprep.subr.mxu0 0.0
    %7220 = vmatpush1.msra.mxu0 0.0
    %7221 = vmatprep.subr.mxu0 0.0
    %7222 = vmatpush1.msra.mxu0 0.0
    %7223 = vmatprep.subr.mxu0 0.0
    %7224 = vmatpush1.msra.mxu0 0.0
    %7225 = vmatprep.subr.mxu0 0.0
    %7226 = vmatpush1.msra.mxu0 0.0
    %7227 = vmatprep.subr.mxu0 0.0
    %7228 = vmatpush1.msra.mxu0 0.0
    %7229 = vmatprep.subr.mxu0 0.0
    %7230 = vmatpush1.msra.mxu0 0.0
    %7231 = vmatprep.subr.mxu0 0.0
    %7232 = vmatpush1.msra.mxu0 0.0
    %7233 = vmatprep.subr.mxu0 0.0
    %7234 = vmatpush1.msra.mxu0 0.0
    %7235 = vmatprep.subr.mxu0 0.0
    %7236 = vmatpush1.msra.mxu0 0.0
    %7237 = vmatprep.subr.mxu0 0.0
    %7238 = vmatpush1.msra.mxu0 0.0
    %7239 = vmatprep.subr.mxu0 0.0
    %7240 = vmatpush1.msra.mxu0 0.0
    %7241 = vmatprep.mubr.f32.mxu0 0.0
    %7242 = vmatmul.mubr.f32.gmra.mrb[0].mxu0 %v7173
    %v7243 = vpop.f32.mrb[0].mxu0
    %v7244 = vadd.f32 0.0, %v7243
    %v7245 = vpop.f32.mrb[0].mxu0
    %7246 = vdwg.mxu0
    %v7247 = vcombine.high %v6904, %v6911
    %v7248 = vcombine.high %v6918, %v6925
    %v7250 = vunpack.c.l.s4 1966171168
    %v7251 = vunpack.c.0.s8 %v7250
    %v7252 = vlaneseq
    %v7253 = vshrl.u32 %v7252, 7
    %v7254 = vsub.s32 %v7251, %v7253
    %v7255 = vrot.slane %v7247, %v7254
    %v7257 = vunpack.c.l.s4 1966171168
    %v7258 = vunpack.c.0.s8 %v7257
    %v7259 = vlaneseq
    %v7260 = vshrl.u32 %v7259, 7
    %v7261 = vsub.s32 %v7258, %v7260
    %v7262 = vrot.slane %v7248, %v7261
    %v7263 = vcombine.low %v7255, %v7262
    %v7264 = vcombine.high %v6953, %v6960
    %v7265 = vcombine.high %v6967, %v6974
    %v7267 = vunpack.c.l.s4 1966171168
    %v7268 = vunpack.c.0.s8 %v7267
    %v7269 = vlaneseq
    %v7270 = vshrl.u32 %v7269, 7
    %v7271 = vsub.s32 %v7268, %v7270
    %v7272 = vrot.slane %v7264, %v7271
    %v7274 = vunpack.c.l.s4 1966171168
    %v7275 = vunpack.c.0.s8 %v7274
    %v7276 = vlaneseq
    %v7277 = vshrl.u32 %v7276, 7
    %v7278 = vsub.s32 %v7275, %v7277
    %v7279 = vrot.slane %v7265, %v7278
    %v7280 = vcombine.low %v7272, %v7279
    %v7281 = vcombine.high %v6998, %v6998
    %v7283 = vunpack.c.l.s4 1966171168
    %v7284 = vunpack.c.0.s8 %v7283
    %v7285 = vlaneseq
    %v7286 = vshrl.u32 %v7285, 7
    %v7287 = vsub.s32 %v7284, %v7286
    %v7288 = vrot.slane %v7281, %v7287
    %7289 = vrot.lane.b32.xlu0 %v6942, 8
    %v7290 = vpop.permute.xlu0 %7289
    %7291 = vrot.lane.b32.xlu0 %v7263, 8
    %v7292 = vpop.permute.xlu0 %7291
    %7293 = vrot.lane.b32.xlu0 %v6991, 8
    %v7294 = vpop.permute.xlu0 %7293
    %7295 = vrot.lane.b32.xlu0 %v7280, 8
    %v7296 = vpop.permute.xlu0 %7295
    %7297 = vrot.lane.b32.xlu0 %v7005, 8
    %v7298 = vpop.permute.xlu0 %7297
    %7299 = vrot.lane.b32.xlu0 %v7288, 8
    %v7300 = vpop.permute.xlu0 %7299
    %v7301 = vsel %vm1762, %v7290, %v7292
    %v7302 = vsel %vm1762, %v7294, %v7296
    %v7303 = vsel %vm1762, %v7298, %v7300
    %v7307 = vsel %vm1640, %v7112, 0
    %v7309 = vsel %vm1777, %v7303, 0
    %7311 = vmatprep.subr.mxu0 0.0
    %7312 = vmatpush1.msra.mxu0 %v7301
    %7313 = vmatprep.subr.mxu0 0.0
    %7314 = vmatpush1.msra.mxu0 %v7302
    %7315 = vmatprep.subr.mxu0 0.0
    %7316 = vmatpush1.msra.mxu0 %v7309
    %7317 = vmatprep.subr.mxu0 0.0
    %7318 = vmatpush1.msra.mxu0 0.0
    %7319 = vmatprep.subr.mxu0 0.0
    %7320 = vmatpush1.msra.mxu0 0.0
    %7321 = vmatprep.subr.mxu0 0.0
    %7322 = vmatpush1.msra.mxu0 0.0
    %7323 = vmatprep.subr.mxu0 0.0
    %7324 = vmatpush1.msra.mxu0 0.0
    %7325 = vmatprep.subr.mxu0 0.0
    %7326 = vmatpush1.msra.mxu0 0.0
    %7327 = vmatprep.subr.mxu0 0.0
    %7328 = vmatpush1.msra.mxu0 0.0
    %7329 = vmatprep.subr.mxu0 0.0
    %7330 = vmatpush1.msra.mxu0 0.0
    %7331 = vmatprep.subr.mxu0 0.0
    %7332 = vmatpush1.msra.mxu0 0.0
    %7333 = vmatprep.subr.mxu0 0.0
    %7334 = vmatpush1.msra.mxu0 0.0
    %7335 = vmatprep.subr.mxu0 0.0
    %7336 = vmatpush1.msra.mxu0 0.0
    %7337 = vmatprep.subr.mxu0 0.0
    %7338 = vmatpush1.msra.mxu0 0.0
    %7339 = vmatprep.subr.mxu0 0.0
    %7340 = vmatpush1.msra.mxu0 0.0
    %7341 = vmatprep.subr.mxu0 0.0
    %7342 = vmatpush1.msra.mxu0 0.0
    %7343 = vmatprep.subr.mxu0 0.0
    %7344 = vmatpush1.msra.mxu0 0.0
    %7345 = vmatprep.subr.mxu0 0.0
    %7346 = vmatpush1.msra.mxu0 0.0
    %7347 = vmatprep.subr.mxu0 0.0
    %7348 = vmatpush1.msra.mxu0 0.0
    %7349 = vmatprep.subr.mxu0 0.0
    %7350 = vmatpush1.msra.mxu0 0.0
    %7351 = vmatprep.subr.mxu0 0.0
    %7352 = vmatpush1.msra.mxu0 0.0
    %7353 = vmatprep.subr.mxu0 0.0
    %7354 = vmatpush1.msra.mxu0 0.0
    %7355 = vmatprep.subr.mxu0 0.0
    %7356 = vmatpush1.msra.mxu0 0.0
    %7357 = vmatprep.subr.mxu0 0.0
    %7358 = vmatpush1.msra.mxu0 0.0
    %7359 = vmatprep.subr.mxu0 0.0
    %7360 = vmatpush1.msra.mxu0 0.0
    %7361 = vmatprep.subr.mxu0 0.0
    %7362 = vmatpush1.msra.mxu0 0.0
    %7363 = vmatprep.subr.mxu0 0.0
    %7364 = vmatpush1.msra.mxu0 0.0
    %7365 = vmatprep.subr.mxu0 0.0
    %7366 = vmatpush1.msra.mxu0 0.0
    %7367 = vmatprep.subr.mxu0 0.0
    %7368 = vmatpush1.msra.mxu0 0.0
    %7369 = vmatprep.subr.mxu0 0.0
    %7370 = vmatpush1.msra.mxu0 0.0
    %7371 = vmatprep.subr.mxu0 0.0
    %7372 = vmatpush1.msra.mxu0 0.0
    %7373 = vmatprep.subr.mxu0 0.0
    %7374 = vmatpush1.msra.mxu0 0.0
    %7375 = vmatprep.mubr.f32.mxu0 0.0
    %7376 = vmatmul.mubr.f32.gmra.mrb[0].mxu0 %v7307
    %v7377 = vpop.f32.mrb[0].mxu0
    %v7378 = vadd.f32 0.0, %v7377
    %v7379 = vpop.f32.mrb[0].mxu0
    %7380 = vdwg.mxu0
    %s7381 = scalar_lea.vmem %s3, 64
    %v7382 = vld [vmem:[%s7381] sm:$0xff]
    %v7383 = vld [vmem:[%s7381 + $0x8] sm:$0xff]
    %v7384 = vld [vmem:[%s7381 + $0x10] sm:$0xff]
    %v7385 = vld [vmem:[%s7381 + $0x18] sm:$0xff]
    %v7386 = vld [vmem:[%s7381 + $0x20] sm:$0xff]
    %v7387 = vld [vmem:[%s7381 + $0x28] sm:$0xff]
    %v7388 = vld [vmem:[%s7381 + $0x30] sm:$0xff]
    %v7389 = vld [vmem:[%s7381 + $0x38] sm:$0xf]
    %s7390 = scalar_lea.vmem %s4, 1
    %v7391 = vld [vmem:[%s7390] sm:$0x1]
    %v7393 = vlaneseq
    %v7394 = vshrl.u32 %v7393, 7
    %v7395 = vsub.s32 0, %v7394
    %v7396 = vrot.slane %v7391, %v7395
    %v7400 = vrot.slane %v7378, 7
    %vm7401 = vcmask 1041409
    %v7402 = vsel %vm7401, %v7400, %v7244
    %v7403 = vsel %vm548, %v7402, 0
    %v7406 = vsel %vm559, %v7389, 0
    %7408 = vmatprep.subr.mxu0 0.0
    %7409 = vmatpush1.msra.mxu0 %v7382
    %7410 = vmatprep.subr.mxu0 0.0
    %7411 = vmatpush1.msra.mxu0 %v7383
    %7412 = vmatprep.subr.mxu0 0.0
    %7413 = vmatpush1.msra.mxu0 %v7384
    %7414 = vmatprep.subr.mxu0 0.0
    %7415 = vmatpush1.msra.mxu0 %v7385
    %7416 = vmatprep.subr.mxu0 0.0
    %7417 = vmatpush1.msra.mxu0 %v7386
    %7418 = vmatprep.subr.mxu0 0.0
    %7419 = vmatpush1.msra.mxu0 %v7387
    %7420 = vmatprep.subr.mxu0 0.0
    %7421 = vmatpush1.msra.mxu0 %v7388
    %7422 = vmatprep.subr.mxu0 0.0
    %7423 = vmatpush1.msra.mxu0 %v7406
    %7424 = vmatprep.subr.mxu0 0.0
    %7425 = vmatpush1.msra.mxu0 0.0
    %7426 = vmatprep.subr.mxu0 0.0
    %7427 = vmatpush1.msra.mxu0 0.0
    %7428 = vmatprep.subr.mxu0 0.0
    %7429 = vmatpush1.msra.mxu0 0.0
    %7430 = vmatprep.subr.mxu0 0.0
    %7431 = vmatpush1.msra.mxu0 0.0
    %7432 = vmatprep.subr.mxu0 0.0
    %7433 = vmatpush1.msra.mxu0 0.0
    %7434 = vmatprep.subr.mxu0 0.0
    %7435 = vmatpush1.msra.mxu0 0.0
    %7436 = vmatprep.subr.mxu0 0.0
    %7437 = vmatpush1.msra.mxu0 0.0
    %7438 = vmatprep.subr.mxu0 0.0
    %7439 = vmatpush1.msra.mxu0 0.0
    %7440 = vmatprep.subr.mxu0 0.0
    %7441 = vmatpush1.msra.mxu0 0.0
    %7442 = vmatprep.subr.mxu0 0.0
    %7443 = vmatpush1.msra.mxu0 0.0
    %7444 = vmatprep.subr.mxu0 0.0
    %7445 = vmatpush1.msra.mxu0 0.0
    %7446 = vmatprep.subr.mxu0 0.0
    %7447 = vmatpush1.msra.mxu0 0.0
    %7448 = vmatprep.subr.mxu0 0.0
    %7449 = vmatpush1.msra.mxu0 0.0
    %7450 = vmatprep.subr.mxu0 0.0
    %7451 = vmatpush1.msra.mxu0 0.0
    %7452 = vmatprep.subr.mxu0 0.0
    %7453 = vmatpush1.msra.mxu0 0.0
    %7454 = vmatprep.subr.mxu0 0.0
    %7455 = vmatpush1.msra.mxu0 0.0
    %7456 = vmatprep.subr.mxu0 0.0
    %7457 = vmatpush1.msra.mxu0 0.0
    %7458 = vmatprep.subr.mxu0 0.0
    %7459 = vmatpush1.msra.mxu0 0.0
    %7460 = vmatprep.subr.mxu0 0.0
    %7461 = vmatpush1.msra.mxu0 0.0
    %7462 = vmatprep.subr.mxu0 0.0
    %7463 = vmatpush1.msra.mxu0 0.0
    %7464 = vmatprep.subr.mxu0 0.0
    %7465 = vmatpush1.msra.mxu0 0.0
    %7466 = vmatprep.subr.mxu0 0.0
    %7467 = vmatpush1.msra.mxu0 0.0
    %7468 = vmatprep.subr.mxu0 0.0
    %7469 = vmatpush1.msra.mxu0 0.0
    %7470 = vmatprep.subr.mxu0 0.0
    %7471 = vmatpush1.msra.mxu0 0.0
    %7472 = vmatprep.mubr.f32.mxu0 0.0
    %7473 = vmatmul.mubr.f32.gmra.mrb[0].mxu0 %v7403
    %v7474 = vpop.f32.mrb[0].mxu0
    %v7475 = vadd.f32 %v7396, %v7474
    %v7476 = vpop.f32.mrb[0].mxu0
    %7477 = vdwg.mxu0
    %s7478 = scalar_lea.vmem %s5, 2
    %v7479 = vld [vmem:[%s7478] sm:$0x3]
    %v7482 = vunpack.c.l.s4 1966171168
    %v7483 = vunpack.c.0.s8 %v7482
    %v7484 = vlaneseq
    %v7485 = vshrl.u32 %v7484, 7
    %v7486 = vsub.s32 %v7483, %v7485
    %v7487 = vrot.slane %v7475, %v7486
    %v7488 = vcombine.high %v7487, %v7487
    %v7490 = vunpack.c.l.s4 1966171168
    %v7491 = vunpack.c.0.s8 %v7490
    %v7492 = vlaneseq
    %v7493 = vshrl.u32 %v7492, 7
    %v7494 = vsub.s32 %v7491, %v7493
    %v7495 = vrot.slane %v7487, %v7494
    %v7497 = vunpack.c.l.s4 1966171168
    %v7498 = vunpack.c.0.s8 %v7497
    %v7499 = vlaneseq
    %v7500 = vshrl.u32 %v7499, 7
    %v7501 = vsub.s32 %v7498, %v7500
    %v7502 = vrot.slane %v7488, %v7501
    %v7505 = vadd.f32 %v6040, %v7495
    %v7506 = vadd.f32 %v6057, %v7502
    %v7509 = vcombine.low %v7505, %v7506
    %v7511 = vunpack.c.l.s4 1966171168
    %v7512 = vunpack.c.0.s8 %v7511
    %v7513 = vlaneseq
    %v7514 = vshrl.u32 %v7513, 7
    %v7515 = vsub.s32 %v7512, %v7514
    %v7516 = vrot.slane %v7509, %v7515
    %v7518 = vunpack.c.l.s4 1966171168
    %v7519 = vunpack.c.0.s8 %v7518
    %v7520 = vlaneseq
    %v7521 = vshrl.u32 %v7520, 7
    %v7522 = vsub.s32 %v7519, %v7521
    %v7523 = vrot.slane %v7516, %v7522
    %v7525 = vsel %vm3123, %v7523, 0.0
    %7526 = vadd.xlane.f32.xlu0 %v7525
    %v7527 = vpop.xlane.xlu0 %7526
    %v7528 = vmul.f32 %v7527, %v3127
    %v7530 = vlaneseq
    %v7531 = vshrl.u32 %v7530, 7
    %v7532 = vsub.s32 0, %v7531
    %v7533 = vrot.slane %v7528, %v7532
    %v7534 = vlaneseq
    %v7535 = vshrl.u32 %v7534, 7
    %v7536 = vsub.s32 1, %v7535
    %v7537 = vrot.slane %v7528, %v7536
    %v7540 = vsub.f32 %v7505, %v7533
    %v7541 = vsub.f32 %v7506, %v7537
    %v7542 = vmul.f32 %v7540, %v7540
    %v7543 = vmul.f32 %v7541, %v7541
    %v7546 = vcombine.low %v7542, %v7543
    %v7548 = vunpack.c.l.s4 1966171168
    %v7549 = vunpack.c.0.s8 %v7548
    %v7550 = vlaneseq
    %v7551 = vshrl.u32 %v7550, 7
    %v7552 = vsub.s32 %v7549, %v7551
    %v7553 = vrot.slane %v7546, %v7552
    %v7555 = vunpack.c.l.s4 1966171168
    %v7556 = vunpack.c.0.s8 %v7555
    %v7557 = vlaneseq
    %v7558 = vshrl.u32 %v7557, 7
    %v7559 = vsub.s32 %v7556, %v7558
    %v7560 = vrot.slane %v7553, %v7559
    %v7562 = vsel %vm3123, %v7560, 0.0
    %7563 = vadd.xlane.f32.xlu0 %v7562
    %v7564 = vpop.xlane.xlu0 %7563
    %v7565 = vmul.f32 %v7564, %v3127
    %v7566 = vadd.f32 %v7565, 1e-05
    %v7567 = vrsqrt.pop %v7566
    %v7569 = vlaneseq
    %v7570 = vshrl.u32 %v7569, 7
    %v7571 = vsub.s32 0, %v7570
    %v7572 = vrot.slane %v7567, %v7571
    %v7573 = vlaneseq
    %v7574 = vshrl.u32 %v7573, 7
    %v7575 = vsub.s32 1, %v7574
    %v7576 = vrot.slane %v7567, %v7575
    %v7579 = vmul.f32 %v7540, %v7572
    %v7580 = vmul.f32 %v7541, %v7576
    %v7581 = vlaneseq
    %v7582 = vshrl.u32 %v7581, 7
    %v7583 = vsub.s32 0, %v7582
    %v7584 = vrot.slane %v7479, %v7583
    %v7587 = vunpack.c.l.s4 1966171168
    %v7588 = vunpack.c.0.s8 %v7587
    %v7589 = vlaneseq
    %v7590 = vshrl.u32 %v7589, 7
    %v7591 = vsub.s32 %v7588, %v7590
    %v7592 = vrot.slane %v7584, %v7591
    %v7593 = vcombine.high %v7592, %v7592
    %v7595 = vunpack.c.l.s4 1966171168
    %v7596 = vunpack.c.0.s8 %v7595
    %v7597 = vlaneseq
    %v7598 = vshrl.u32 %v7597, 7
    %v7599 = vsub.s32 %v7596, %v7598
    %v7600 = vrot.slane %v7592, %v7599
    %v7602 = vunpack.c.l.s4 1966171168
    %v7603 = vunpack.c.0.s8 %v7602
    %v7604 = vlaneseq
    %v7605 = vshrl.u32 %v7604, 7
    %v7606 = vsub.s32 %v7603, %v7605
    %v7607 = vrot.slane %v7593, %v7606
    %v7610 = vmul.f32 %v7579, %v7600
    %v7611 = vmul.f32 %v7580, %v7607
    %v7612 = vlaneseq
    %v7613 = vshrl.u32 %v7612, 7
    %v7614 = vsub.s32 1, %v7613
    %v7615 = vrot.slane %v7479, %v7614
    %v7618 = vunpack.c.l.s4 1966171168
    %v7619 = vunpack.c.0.s8 %v7618
    %v7620 = vlaneseq
    %v7621 = vshrl.u32 %v7620, 7
    %v7622 = vsub.s32 %v7619, %v7621
    %v7623 = vrot.slane %v7615, %v7622
    %v7624 = vcombine.high %v7623, %v7623
    %v7626 = vunpack.c.l.s4 1966171168
    %v7627 = vunpack.c.0.s8 %v7626
    %v7628 = vlaneseq
    %v7629 = vshrl.u32 %v7628, 7
    %v7630 = vsub.s32 %v7627, %v7629
    %v7631 = vrot.slane %v7623, %v7630
    %v7633 = vunpack.c.l.s4 1966171168
    %v7634 = vunpack.c.0.s8 %v7633
    %v7635 = vlaneseq
    %v7636 = vshrl.u32 %v7635, 7
    %v7637 = vsub.s32 %v7634, %v7636
    %v7638 = vrot.slane %v7624, %v7637
    %v7641 = vadd.f32 %v7610, %v7631
    %v7642 = vadd.f32 %v7611, %v7638
    %s7643 = scalar_lea.vmem %s6, 64
    %v7644 = vld [vmem:[%s7643] sm:$0xff]
    %v7645 = vld [vmem:[%s7643 + $0x8] sm:$0xff]
    %v7646 = vld [vmem:[%s7643 + $0x10] sm:$0xff]
    %v7647 = vld [vmem:[%s7643 + $0x18] sm:$0xff]
    %v7648 = vld [vmem:[%s7643 + $0x20] sm:$0xff]
    %v7649 = vld [vmem:[%s7643 + $0x28] sm:$0xff]
    %v7650 = vld [vmem:[%s7643 + $0x30] sm:$0xff]
    %v7651 = vld [vmem:[%s7643 + $0x38] sm:$0xf]
    %s7652 = scalar_lea.vmem %s7, 1
    %v7653 = vld [vmem:[%s7652] sm:$0x1]
    %v7655 = vlaneseq
    %v7656 = vshrl.u32 %v7655, 7
    %v7657 = vsub.s32 0, %v7656
    %v7658 = vrot.slane %v7653, %v7657
    %v7662 = vcombine.low %v7641, %v7642
    %v7664 = vunpack.c.l.s4 1966171168
    %v7665 = vunpack.c.0.s8 %v7664
    %v7666 = vlaneseq
    %v7667 = vshrl.u32 %v7666, 7
    %v7668 = vsub.s32 %v7665, %v7667
    %v7669 = vrot.slane %v7662, %v7668
    %v7671 = vunpack.c.l.s4 1966171168
    %v7672 = vunpack.c.0.s8 %v7671
    %v7673 = vlaneseq
    %v7674 = vshrl.u32 %v7673, 7
    %v7675 = vsub.s32 %v7672, %v7674
    %v7676 = vrot.slane %v7669, %v7675
    %v7677 = vsel %vm548, %v7676, 0
    %v7680 = vsel %vm559, %v7651, 0
    %7682 = vmatprep.subr.mxu0 0.0
    %7683 = vmatpush1.msra.mxu0 %v7644
    %7684 = vmatprep.subr.mxu0 0.0
    %7685 = vmatpush1.msra.mxu0 %v7645
    %7686 = vmatprep.subr.mxu0 0.0
    %7687 = vmatpush1.msra.mxu0 %v7646
    %7688 = vmatprep.subr.mxu0 0.0
    %7689 = vmatpush1.msra.mxu0 %v7647
    %7690 = vmatprep.subr.mxu0 0.0
    %7691 = vmatpush1.msra.mxu0 %v7648
    %7692 = vmatprep.subr.mxu0 0.0
    %7693 = vmatpush1.msra.mxu0 %v7649
    %7694 = vmatprep.subr.mxu0 0.0
    %7695 = vmatpush1.msra.mxu0 %v7650
    %7696 = vmatprep.subr.mxu0 0.0
    %7697 = vmatpush1.msra.mxu0 %v7680
    %7698 = vmatprep.subr.mxu0 0.0
    %7699 = vmatpush1.msra.mxu0 0.0
    %7700 = vmatprep.subr.mxu0 0.0
    %7701 = vmatpush1.msra.mxu0 0.0
    %7702 = vmatprep.subr.mxu0 0.0
    %7703 = vmatpush1.msra.mxu0 0.0
    %7704 = vmatprep.subr.mxu0 0.0
    %7705 = vmatpush1.msra.mxu0 0.0
    %7706 = vmatprep.subr.mxu0 0.0
    %7707 = vmatpush1.msra.mxu0 0.0
    %7708 = vmatprep.subr.mxu0 0.0
    %7709 = vmatpush1.msra.mxu0 0.0
    %7710 = vmatprep.subr.mxu0 0.0
    %7711 = vmatpush1.msra.mxu0 0.0
    %7712 = vmatprep.subr.mxu0 0.0
    %7713 = vmatpush1.msra.mxu0 0.0
    %7714 = vmatprep.subr.mxu0 0.0
    %7715 = vmatpush1.msra.mxu0 0.0
    %7716 = vmatprep.subr.mxu0 0.0
    %7717 = vmatpush1.msra.mxu0 0.0
    %7718 = vmatprep.subr.mxu0 0.0
    %7719 = vmatpush1.msra.mxu0 0.0
    %7720 = vmatprep.subr.mxu0 0.0
    %7721 = vmatpush1.msra.mxu0 0.0
    %7722 = vmatprep.subr.mxu0 0.0
    %7723 = vmatpush1.msra.mxu0 0.0
    %7724 = vmatprep.subr.mxu0 0.0
    %7725 = vmatpush1.msra.mxu0 0.0
    %7726 = vmatprep.subr.mxu0 0.0
    %7727 = vmatpush1.msra.mxu0 0.0
    %7728 = vmatprep.subr.mxu0 0.0
    %7729 = vmatpush1.msra.mxu0 0.0
    %7730 = vmatprep.subr.mxu0 0.0
    %7731 = vmatpush1.msra.mxu0 0.0
    %7732 = vmatprep.subr.mxu0 0.0
    %7733 = vmatpush1.msra.mxu0 0.0
    %7734 = vmatprep.subr.mxu0 0.0
    %7735 = vmatpush1.msra.mxu0 0.0
    %7736 = vmatprep.subr.mxu0 0.0
    %7737 = vmatpush1.msra.mxu0 0.0
    %7738 = vmatprep.subr.mxu0 0.0
    %7739 = vmatpush1.msra.mxu0 0.0
    %7740 = vmatprep.subr.mxu0 0.0
    %7741 = vmatpush1.msra.mxu0 0.0
    %7742 = vmatprep.subr.mxu0 0.0
    %7743 = vmatpush1.msra.mxu0 0.0
    %7744 = vmatprep.subr.mxu0 0.0
    %7745 = vmatpush1.msra.mxu0 0.0
    %7746 = vmatprep.mubr.f32.mxu0 0.0
    %7747 = vmatmul.mubr.f32.gmra.mrb[0].mxu0 %v7677
    %v7748 = vpop.f32.mrb[0].mxu0
    %v7749 = vadd.f32 %v7658, %v7748
    %v7750 = vpop.f32.mrb[0].mxu0
    %7751 = vdwg.mxu0
    %v7752 = vmul.f32 %v7749, 0.5
    %v7753 = vmul.f32 %v7749, 0.044715
    %v7754 = vmul.f32 %v7753, %v7749
    %v7755 = vmul.f32 %v7754, %v7749
    %v7756 = vadd.f32 %v7749, %v7755
    %v7757 = vmul.f32 %v7756, 0.7978846
    %v7758 = vtanh.pop %v7757
    %v7759 = vadd.f32 %v7758, 1.0
    %v7760 = vmul.f32 %v7752, %v7759
    %s7761 = scalar_lea.vmem %s8, 64
    %v7762 = vld [vmem:[%s7761] sm:$0xff]
    %v7763 = vld [vmem:[%s7761 + $0x8] sm:$0xff]
    %v7764 = vld [vmem:[%s7761 + $0x10] sm:$0xff]
    %v7765 = vld [vmem:[%s7761 + $0x18] sm:$0xff]
    %v7766 = vld [vmem:[%s7761 + $0x20] sm:$0xff]
    %v7767 = vld [vmem:[%s7761 + $0x28] sm:$0xff]
    %v7768 = vld [vmem:[%s7761 + $0x30] sm:$0xff]
    %v7769 = vld [vmem:[%s7761 + $0x38] sm:$0xf]
    %s7770 = scalar_lea.vmem %s9, 1
    %v7771 = vld [vmem:[%s7770] sm:$0x1]
    %v7773 = vlaneseq
    %v7774 = vshrl.u32 %v7773, 7
    %v7775 = vsub.s32 0, %v7774
    %v7776 = vrot.slane %v7771, %v7775
    %v7779 = vsel %vm548, %v7760, 0
    %v7782 = vsel %vm559, %v7769, 0
    %7784 = vmatprep.subr.mxu0 0.0
    %7785 = vmatpush1.msra.mxu0 %v7762
    %7786 = vmatprep.subr.mxu0 0.0
    %7787 = vmatpush1.msra.mxu0 %v7763
    %7788 = vmatprep.subr.mxu0 0.0
    %7789 = vmatpush1.msra.mxu0 %v7764
    %7790 = vmatprep.subr.mxu0 0.0
    %7791 = vmatpush1.msra.mxu0 %v7765
    %7792 = vmatprep.subr.mxu0 0.0
    %7793 = vmatpush1.msra.mxu0 %v7766
    %7794 = vmatprep.subr.mxu0 0.0
    %7795 = vmatpush1.msra.mxu0 %v7767
    %7796 = vmatprep.subr.mxu0 0.0
    %7797 = vmatpush1.msra.mxu0 %v7768
    %7798 = vmatprep.subr.mxu0 0.0
    %7799 = vmatpush1.msra.mxu0 %v7782
    %7800 = vmatprep.subr.mxu0 0.0
    %7801 = vmatpush1.msra.mxu0 0.0
    %7802 = vmatprep.subr.mxu0 0.0
    %7803 = vmatpush1.msra.mxu0 0.0
    %7804 = vmatprep.subr.mxu0 0.0
    %7805 = vmatpush1.msra.mxu0 0.0
    %7806 = vmatprep.subr.mxu0 0.0
    %7807 = vmatpush1.msra.mxu0 0.0
    %7808 = vmatprep.subr.mxu0 0.0
    %7809 = vmatpush1.msra.mxu0 0.0
    %7810 = vmatprep.subr.mxu0 0.0
    %7811 = vmatpush1.msra.mxu0 0.0
    %7812 = vmatprep.subr.mxu0 0.0
    %7813 = vmatpush1.msra.mxu0 0.0
    %7814 = vmatprep.subr.mxu0 0.0
    %7815 = vmatpush1.msra.mxu0 0.0
    %7816 = vmatprep.subr.mxu0 0.0
    %7817 = vmatpush1.msra.mxu0 0.0
    %7818 = vmatprep.subr.mxu0 0.0
    %7819 = vmatpush1.msra.mxu0 0.0
    %7820 = vmatprep.subr.mxu0 0.0
    %7821 = vmatpush1.msra.mxu0 0.0
    %7822 = vmatprep.subr.mxu0 0.0
    %7823 = vmatpush1.msra.mxu0 0.0
    %7824 = vmatprep.subr.mxu0 0.0
    %7825 = vmatpush1.msra.mxu0 0.0
    %7826 = vmatprep.subr.mxu0 0.0
    %7827 = vmatpush1.msra.mxu0 0.0
    %7828 = vmatprep.subr.mxu0 0.0
    %7829 = vmatpush1.msra.mxu0 0.0
    %7830 = vmatprep.subr.mxu0 0.0
    %7831 = vmatpush1.msra.mxu0 0.0
    %7832 = vmatprep.subr.mxu0 0.0
    %7833 = vmatpush1.msra.mxu0 0.0
    %7834 = vmatprep.subr.mxu0 0.0
    %7835 = vmatpush1.msra.mxu0 0.0
    %7836 = vmatprep.subr.mxu0 0.0
    %7837 = vmatpush1.msra.mxu0 0.0
    %7838 = vmatprep.subr.mxu0 0.0
    %7839 = vmatpush1.msra.mxu0 0.0
    %7840 = vmatprep.subr.mxu0 0.0
    %7841 = vmatpush1.msra.mxu0 0.0
    %7842 = vmatprep.subr.mxu0 0.0
    %7843 = vmatpush1.msra.mxu0 0.0
    %7844 = vmatprep.subr.mxu0 0.0
    %7845 = vmatpush1.msra.mxu0 0.0
    %7846 = vmatprep.subr.mxu0 0.0
    %7847 = vmatpush1.msra.mxu0 0.0
    %7848 = vmatprep.mubr.f32.mxu0 0.0
    %7849 = vmatmul.mubr.f32.gmra.mrb[0].mxu0 %v7779
    %v7850 = vpop.f32.mrb[0].mxu0
    %v7851 = vadd.f32 %v7776, %v7850
    %v7852 = vpop.f32.mrb[0].mxu0
    %7853 = vdwg.mxu0
    %s7854 = scalar_lea.vmem %s10, 2
    %v7855 = vld [vmem:[%s7854] sm:$0x3]
    %v7858 = vunpack.c.l.s4 1966171168
    %v7859 = vunpack.c.0.s8 %v7858
    %v7860 = vlaneseq
    %v7861 = vshrl.u32 %v7860, 7
    %v7862 = vsub.s32 %v7859, %v7861
    %v7863 = vrot.slane %v7851, %v7862
    %v7864 = vcombine.high %v7863, %v7863
    %v7866 = vunpack.c.l.s4 1966171168
    %v7867 = vunpack.c.0.s8 %v7866
    %v7868 = vlaneseq
    %v7869 = vshrl.u32 %v7868, 7
    %v7870 = vsub.s32 %v7867, %v7869
    %v7871 = vrot.slane %v7863, %v7870
    %v7873 = vunpack.c.l.s4 1966171168
    %v7874 = vunpack.c.0.s8 %v7873
    %v7875 = vlaneseq
    %v7876 = vshrl.u32 %v7875, 7
    %v7877 = vsub.s32 %v7874, %v7876
    %v7878 = vrot.slane %v7864, %v7877
    %v7881 = vadd.f32 %v7641, %v7871
    %v7882 = vadd.f32 %v7642, %v7878
    %v7885 = vcombine.low %v7881, %v7882
    %v7887 = vunpack.c.l.s4 1966171168
    %v7888 = vunpack.c.0.s8 %v7887
    %v7889 = vlaneseq
    %v7890 = vshrl.u32 %v7889, 7
    %v7891 = vsub.s32 %v7888, %v7890
    %v7892 = vrot.slane %v7885, %v7891
    %v7894 = vunpack.c.l.s4 1966171168
    %v7895 = vunpack.c.0.s8 %v7894
    %v7896 = vlaneseq
    %v7897 = vshrl.u32 %v7896, 7
    %v7898 = vsub.s32 %v7895, %v7897
    %v7899 = vrot.slane %v7892, %v7898
    %v7901 = vsel %vm3123, %v7899, 0.0
    %7902 = vadd.xlane.f32.xlu0 %v7901
    %v7903 = vpop.xlane.xlu0 %7902
    %v7904 = vmul.f32 %v7903, %v3127
    %v7906 = vlaneseq
    %v7907 = vshrl.u32 %v7906, 7
    %v7908 = vsub.s32 0, %v7907
    %v7909 = vrot.slane %v7904, %v7908
    %v7910 = vlaneseq
    %v7911 = vshrl.u32 %v7910, 7
    %v7912 = vsub.s32 1, %v7911
    %v7913 = vrot.slane %v7904, %v7912
    %v7916 = vsub.f32 %v7881, %v7909
    %v7917 = vsub.f32 %v7882, %v7913
    %v7918 = vmul.f32 %v7916, %v7916
    %v7919 = vmul.f32 %v7917, %v7917
    %v7922 = vcombine.low %v7918, %v7919
    %v7924 = vunpack.c.l.s4 1966171168
    %v7925 = vunpack.c.0.s8 %v7924
    %v7926 = vlaneseq
    %v7927 = vshrl.u32 %v7926, 7
    %v7928 = vsub.s32 %v7925, %v7927
    %v7929 = vrot.slane %v7922, %v7928
    %v7931 = vunpack.c.l.s4 1966171168
    %v7932 = vunpack.c.0.s8 %v7931
    %v7933 = vlaneseq
    %v7934 = vshrl.u32 %v7933, 7
    %v7935 = vsub.s32 %v7932, %v7934
    %v7936 = vrot.slane %v7929, %v7935
    %v7938 = vsel %vm3123, %v7936, 0.0
    %7939 = vadd.xlane.f32.xlu0 %v7938
    %v7940 = vpop.xlane.xlu0 %7939
    %v7941 = vmul.f32 %v7940, %v3127
    %v7942 = vadd.f32 %v7941, 1e-05
    %v7943 = vrsqrt.pop %v7942
    %v7945 = vlaneseq
    %v7946 = vshrl.u32 %v7945, 7
    %v7947 = vsub.s32 0, %v7946
    %v7948 = vrot.slane %v7943, %v7947
    %v7949 = vlaneseq
    %v7950 = vshrl.u32 %v7949, 7
    %v7951 = vsub.s32 1, %v7950
    %v7952 = vrot.slane %v7943, %v7951
    %v7955 = vmul.f32 %v7916, %v7948
    %v7956 = vmul.f32 %v7917, %v7952
    %v7957 = vlaneseq
    %v7958 = vshrl.u32 %v7957, 7
    %v7959 = vsub.s32 0, %v7958
    %v7960 = vrot.slane %v7855, %v7959
    %v7963 = vunpack.c.l.s4 1966171168
    %v7964 = vunpack.c.0.s8 %v7963
    %v7965 = vlaneseq
    %v7966 = vshrl.u32 %v7965, 7
    %v7967 = vsub.s32 %v7964, %v7966
    %v7968 = vrot.slane %v7960, %v7967
    %v7969 = vcombine.high %v7968, %v7968
    %v7971 = vunpack.c.l.s4 1966171168
    %v7972 = vunpack.c.0.s8 %v7971
    %v7973 = vlaneseq
    %v7974 = vshrl.u32 %v7973, 7
    %v7975 = vsub.s32 %v7972, %v7974
    %v7976 = vrot.slane %v7968, %v7975
    %v7978 = vunpack.c.l.s4 1966171168
    %v7979 = vunpack.c.0.s8 %v7978
    %v7980 = vlaneseq
    %v7981 = vshrl.u32 %v7980, 7
    %v7982 = vsub.s32 %v7979, %v7981
    %v7983 = vrot.slane %v7969, %v7982
    %v7986 = vmul.f32 %v7955, %v7976
    %v7987 = vmul.f32 %v7956, %v7983
    %v7988 = vlaneseq
    %v7989 = vshrl.u32 %v7988, 7
    %v7990 = vsub.s32 1, %v7989
    %v7991 = vrot.slane %v7855, %v7990
    %v7994 = vunpack.c.l.s4 1966171168
    %v7995 = vunpack.c.0.s8 %v7994
    %v7996 = vlaneseq
    %v7997 = vshrl.u32 %v7996, 7
    %v7998 = vsub.s32 %v7995, %v7997
    %v7999 = vrot.slane %v7991, %v7998
    %v8000 = vcombine.high %v7999, %v7999
    %v8002 = vunpack.c.l.s4 1966171168
    %v8003 = vunpack.c.0.s8 %v8002
    %v8004 = vlaneseq
    %v8005 = vshrl.u32 %v8004, 7
    %v8006 = vsub.s32 %v8003, %v8005
    %v8007 = vrot.slane %v7999, %v8006
    %v8009 = vunpack.c.l.s4 1966171168
    %v8010 = vunpack.c.0.s8 %v8009
    %v8011 = vlaneseq
    %v8012 = vshrl.u32 %v8011, 7
    %v8013 = vsub.s32 %v8010, %v8012
    %v8014 = vrot.slane %v8000, %v8013
    %v8017 = vadd.f32 %v7986, %v8007
    %v8018 = vadd.f32 %v7987, %v8014
    %v8021 = vcombine.low %v8017, %v8018
    %v8023 = vunpack.c.l.s4 1966171168
    %v8024 = vunpack.c.0.s8 %v8023
    %v8025 = vlaneseq
    %v8026 = vshrl.u32 %v8025, 7
    %v8027 = vsub.s32 %v8024, %v8026
    %v8028 = vrot.slane %v8021, %v8027
    %v8030 = vunpack.c.l.s4 1966171168
    %v8031 = vunpack.c.0.s8 %v8030
    %v8032 = vlaneseq
    %v8033 = vshrl.u32 %v8032, 7
    %v8034 = vsub.s32 %v8031, %v8033
    %v8035 = vrot.slane %v8028, %v8034
    %8037 = vst.msk [vmem:[#allocation2] sm:$0x3] %vm3123, %v8035
    // Predicated region
    $region46: #{trf_rep2_forward.1} parent=1 // pred_check
      _
    $region47: #{trf_rep2_forward.1} parent=1 // pred_check_branch
      %8039 = sbr.rel (0) target = $region49
    $region48: #{trf_rep2_forward.1} parent=1 // pred_region
      %s8041 = ssub.s32 32, 32
      %8042 = vsyncadd [#allocation3], %s8041
      %s8044 = sshll.u32 [#allocation2], 4
      %s8045 = int_to_ptr.vmem [resolvable:$true] %s8044
      %8047 = dma.vmem_to_hbm [thread:$0]  %s8045, 32, %s11, [#allocation3]
    $region49: #{trf_rep2_forward.1} parent=1 // pred_fallthru
      _
    // Predicated region
    $region50: #{trf_rep2_forward.1} parent=1 // pred_check
      _
    $region51: #{trf_rep2_forward.1} parent=1 // pred_check_branch
      %8049 = sbr.rel (0) target = $region53
    $region52: #{trf_rep2_forward.1} parent=1 // pred_region
      %8050 = dma.done [#allocation3], 32
    $region53: #{trf_rep2_forward.1} parent=1 // pred_fallthru
      _
    %8051 = vsyncpa [#allocation3], 1

</llo_original>
